<compile_context>
chip_gen: v7x
topology: tpu7x:2x2x1
jax: 0.10.0
libtpu: 0.0.40
codegen_flags: <defaults>
</compile_context>

<pallas_src>
import functools

import jax
import jax.numpy as jnp
from jax.experimental import pallas as pl
from jax.experimental.pallas import tpu as pltpu


# ----------------------------------------------------------------------------
# Tiling helpers
# ----------------------------------------------------------------------------

def _pick_tile(dim, target, align):
    """Largest tile <= target that is a multiple of `align` AND divides `dim`.

    Falls back to the full dimension (always legal) so no grid axis ever has a
    ragged block -- this keeps K-accumulation exact and avoids masked stores.
    """
    if dim <= target:
        return dim
    t = (target // align) * align
    while t >= align:
        if dim % t == 0:
            return t
        t -= align
    return dim


def _mosaic_params(footprint_bytes, semantics):
    # Raise scoped VMEM above the per-chip defaults (16 MiB v5e / 32 MiB
    # v6e,v7x) but stay below v7x's 64 MiB physical VMEM.
    limit = int(min(56 * 2**20, max(32 * 2**20, 2 * footprint_bytes)))
    return pltpu.CompilerParams(dimension_semantics=semantics,
                                vmem_limit_bytes=limit)


# ----------------------------------------------------------------------------
# Pallas kernels
# ----------------------------------------------------------------------------

def matmul_kernel(x_ref, w_ref, b_ref, o_ref, acc_ref, *, activation):
    @pl.when(pl.program_id(2) == 0)
    def _():
        acc_ref[...] = jnp.zeros_like(acc_ref)

    acc_ref[...] += jnp.dot(x_ref[...], w_ref[...],
                            preferred_element_type=jnp.float32)

    @pl.when(pl.program_id(2) == pl.num_programs(2) - 1)
    def _():
        acc = acc_ref[...] + b_ref[...].astype(jnp.float32)
        if activation == "relu":
            acc = jnp.maximum(acc, 0.0)
        elif activation == "tanh":
            acc = jnp.tanh(acc)
        o_ref[...] = acc.astype(o_ref.dtype)


def dual_matmul_kernel(x1_ref, x2_ref, w1_ref, w2_ref, b_ref, o_ref):
    acc = jnp.dot(x1_ref[...], w1_ref[...], preferred_element_type=jnp.float32)
    acc = acc + jnp.dot(x2_ref[...], w2_ref[...],
                        preferred_element_type=jnp.float32)
    acc = acc + b_ref[...].astype(jnp.float32)
    o_ref[...] = acc.astype(o_ref.dtype)


def attention_kernel(q_ref, k_ref, v_ref, o_ref, *, inv_scale):
    q = q_ref[0].astype(jnp.float32)          # (heads, tq, d)
    k = k_ref[0].astype(jnp.float32)          # (heads, Lk, d)
    v = v_ref[0].astype(jnp.float32)          # (heads, Lk, d)
    e = jnp.einsum("hqd,hkd->hqk", q, k,
                   preferred_element_type=jnp.float32) * inv_scale
    e = e - jnp.max(e, axis=-1, keepdims=True)
    p = jnp.exp(e)
    p = p / jnp.sum(p, axis=-1, keepdims=True)
    o = jnp.einsum("hqk,hkd->hqd", p, v, preferred_element_type=jnp.float32)
    o_ref[0] = o.astype(o_ref.dtype)


def add_layer_norm_kernel(x_ref, y_ref, g_ref, b_ref, o_ref):
    x = x_ref[...].astype(jnp.float32) + y_ref[...].astype(jnp.float32)
    mu = jnp.mean(x, axis=-1, keepdims=True)
    var = jnp.mean(jnp.square(x - mu), axis=-1, keepdims=True)
    y = (x - mu) * jax.lax.rsqrt(var + 1e-5)
    o_ref[...] = (y * g_ref[...] + b_ref[...]).astype(o_ref.dtype)


def conv1d_kernel(x_ref, w_ref, b_ref, o_ref, *, K, L, activation):
    x = x_ref[0].astype(jnp.float32)          # (L + K - 1, Cin)
    w = w_ref[...].astype(jnp.float32)        # (K, Cin, Cout)
    acc = jnp.zeros((L, w.shape[-1]), jnp.float32)
    for k in range(K):                        # K shifted matmuls, no im2col
        acc = acc + jnp.dot(x[k:k + L, :], w[k],
                            preferred_element_type=jnp.float32)
    acc = acc + b_ref[...].astype(jnp.float32)
    if activation == "relu":
        acc = jnp.maximum(acc, 0.0)
    elif activation == "tanh":
        acc = jnp.tanh(acc)
    o_ref[0] = acc.astype(o_ref.dtype)


# ----------------------------------------------------------------------------
# Pallas wrappers
# ----------------------------------------------------------------------------

def pallas_matmul(x, w, b, activation="none"):
    M, K = x.shape
    _, N = w.shape
    tm = _pick_tile(M, 256, 8)
    tn = _pick_tile(N, 256, 128)
    tk = _pick_tile(K, 512, 128)
    grid = (M // tm, N // tn, K // tk)
    footprint = 4 * (2 * tm * tk + 2 * tk * tn + 2 * tn + 2 * tm * tn + tm * tn)
    return pl.pallas_call(
        functools.partial(matmul_kernel, activation=activation),
        out_shape=jax.ShapeDtypeStruct((M, N), jnp.float32),
        grid=grid,
        in_specs=[
            pl.BlockSpec((tm, tk), lambda i, j, k: (i, k)),
            pl.BlockSpec((tk, tn), lambda i, j, k: (k, j)),
            pl.BlockSpec((1, tn), lambda i, j, k: (0, j)),
        ],
        out_specs=pl.BlockSpec((tm, tn), lambda i, j, k: (i, j)),
        scratch_shapes=[pltpu.VMEM((tm, tn), jnp.float32)],
        compiler_params=_mosaic_params(
            footprint, ("parallel", "parallel", "arbitrary")),
    )(x, w, b)


def pallas_dual_matmul(x1, x2, w1, w2, b):
    M, K = x1.shape
    _, N = w1.shape
    tm = _pick_tile(M, 256, 8)
    tn = _pick_tile(N, 256, 128)
    grid = (M // tm, N // tn)
    footprint = 4 * (4 * tm * K + 4 * K * tn + 2 * tn + 2 * tm * tn)
    return pl.pallas_call(
        dual_matmul_kernel,
        out_shape=jax.ShapeDtypeStruct((M, N), jnp.float32),
        grid=grid,
        in_specs=[
            pl.BlockSpec((tm, K), lambda i, j: (i, 0)),
            pl.BlockSpec((tm, K), lambda i, j: (i, 0)),
            pl.BlockSpec((K, tn), lambda i, j: (0, j)),
            pl.BlockSpec((K, tn), lambda i, j: (0, j)),
            pl.BlockSpec((1, tn), lambda i, j: (0, j)),
        ],
        out_specs=pl.BlockSpec((tm, tn), lambda i, j: (i, j)),
        compiler_params=_mosaic_params(footprint, ("parallel", "parallel")),
    )(x1, x2, w1, w2, b)


def pallas_attention(q, k, v, inv_scale):
    # q: (B, H, Lq, d); k, v: (B, H, Lk, d). All heads packed per grid step.
    B, H, Lq, D = q.shape
    Lk = k.shape[2]
    tq = _pick_tile(Lq, 256, 8)
    grid = (B, Lq // tq)
    footprint = 4 * (2 * H * tq * D + 4 * H * Lk * D + 2 * H * tq * D
                     + H * tq * Lk)
    return pl.pallas_call(
        functools.partial(attention_kernel, inv_scale=inv_scale),
        out_shape=jax.ShapeDtypeStruct((B, H, Lq, D), jnp.float32),
        grid=grid,
        in_specs=[
            pl.BlockSpec((1, H, tq, D), lambda b, qi: (b, 0, qi, 0)),
            pl.BlockSpec((1, H, Lk, D), lambda b, qi: (b, 0, 0, 0)),
            pl.BlockSpec((1, H, Lk, D), lambda b, qi: (b, 0, 0, 0)),
        ],
        out_specs=pl.BlockSpec((1, H, tq, D), lambda b, qi: (b, 0, qi, 0)),
        compiler_params=_mosaic_params(footprint, ("parallel", "parallel")),
    )(q, k, v)


def pallas_add_layer_norm(x2d, y2d, gamma, beta):
    M, C = x2d.shape
    tm = _pick_tile(M, 512, 8)
    grid = (M // tm,)
    footprint = 4 * (6 * tm * C + 4 * C)
    return pl.pallas_call(
        add_layer_norm_kernel,
        out_shape=jax.ShapeDtypeStruct((M, C), jnp.float32),
        grid=grid,
        in_specs=[
            pl.BlockSpec((tm, C), lambda i: (i, 0)),
            pl.BlockSpec((tm, C), lambda i: (i, 0)),
            pl.BlockSpec((1, C), lambda i: (0, 0)),
            pl.BlockSpec((1, C), lambda i: (0, 0)),
        ],
        out_specs=pl.BlockSpec((tm, C), lambda i: (i, 0)),
        compiler_params=_mosaic_params(footprint, ("parallel",)),
    )(x2d, y2d, gamma.reshape(1, C), beta.reshape(1, C))


def pallas_conv1d(xp, w_kio, bias, activation, L):
    B, Lp, Cin = xp.shape
    K, _, Cout = w_kio.shape
    footprint = 4 * (2 * Lp * Cin + 2 * K * Cin * Cout + 3 * L * Cout + 2 * Cout)
    return pl.pallas_call(
        functools.partial(conv1d_kernel, K=K, L=L, activation=activation),
        out_shape=jax.ShapeDtypeStruct((B, L, Cout), jnp.float32),
        grid=(B,),
        in_specs=[
            pl.BlockSpec((1, Lp, Cin), lambda b: (b, 0, 0)),
            pl.BlockSpec((K, Cin, Cout), lambda b: (0, 0, 0)),
            pl.BlockSpec((1, Cout), lambda b: (0, 0)),
        ],
        out_specs=pl.BlockSpec((1, L, Cout), lambda b: (b, 0, 0)),
        compiler_params=_mosaic_params(footprint, ("parallel",)),
    )(xp, w_kio, bias.reshape(1, -1))


# ----------------------------------------------------------------------------
# Glue ops built on the Pallas kernels
# ----------------------------------------------------------------------------

def dense(x, w, b, activation="none"):
    """x: (..., K), w: (K, N), b: (N,)"""
    lead = x.shape[:-1]
    out = pallas_matmul(x.reshape(-1, x.shape[-1]), w, b.reshape(1, -1),
                        activation)
    return out.reshape(*lead, w.shape[1])


def dense_dual(x1, x2, w1, w2, b):
    """o = x1 @ w1 + x2 @ w2 + b without materializing concat([x1, x2])."""
    lead = x1.shape[:-1]
    out = pallas_dual_matmul(x1.reshape(-1, x1.shape[-1]),
                             x2.reshape(-1, x2.shape[-1]),
                             w1, w2, b.reshape(1, -1))
    return out.reshape(*lead, w1.shape[1])


def add_layer_norm(x, y, gamma, beta):
    """LayerNorm(x + y) with residual add fused into the LN kernel."""
    lead = x.shape[:-1]
    C = x.shape[-1]
    out = pallas_add_layer_norm(x.reshape(-1, C), y.reshape(-1, C), gamma, beta)
    return out.reshape(*lead, C)


def conv1d(x, w_torch, b, pad_left, pad_right, activation="none", bn=None):
    """Conv1d over sequence. x: (B, L, Cin); w: torch layout (Cout, Cin, K)."""
    Cout, Cin, K = w_torch.shape
    w_kio = jnp.transpose(w_torch, (2, 1, 0))       # (K, Cin, Cout)
    bias = b
    if bn is not None:  # fold eval-mode BatchNorm1d into the conv weights
        s = bn["gamma"] / jnp.sqrt(bn["var"] + 1e-5)
        w_kio = w_kio * s[None, None, :]
        bias = b * s + (bn["beta"] - bn["mean"] * s)
    L = x.shape[1]
    xp = jnp.pad(x, ((0, 0), (pad_left, pad_right), (0, 0)))
    return pallas_conv1d(xp, w_kio, bias, activation, L)


# ----------------------------------------------------------------------------
# Model forward (mirrors the PyTorch module structure)
# ----------------------------------------------------------------------------

def self_attention(p, query, key, value, heads):
    # NOTE: masks are intentionally ignored -- masked_fill in the PyTorch
    # source is not in-place, so it never affects the forward pass.
    B, Lq, E = query.shape
    Lk = key.shape[1]
    d = E // heads

    q4 = query.reshape(B, Lq, heads, d)
    if key is query and value is query:
        # Fused QKV projection (one lane-denser matmul instead of three).
        w_qkv = jnp.concatenate([p["wq"], p["wk"], p["wv"]], axis=1)  # (d, 3d)
        b_qkv = jnp.concatenate([p["bq"], p["bk"], p["bv"]], axis=0)
        qkv = dense(q4, w_qkv, b_qkv)
        qp, kp, vp = qkv[..., :d], qkv[..., d:2 * d], qkv[..., 2 * d:]
    else:
        qp = dense(q4, p["wq"], p["bq"])
        k4 = key.reshape(B, Lk, heads, d)
        v4 = value.reshape(B, Lk, heads, d)
        if key is value:
            w_kv = jnp.concatenate([p["wk"], p["wv"]], axis=1)        # (d, 2d)
            b_kv = jnp.concatenate([p["bk"], p["bv"]], axis=0)
            kv = dense(k4, w_kv, b_kv)
            kp, vp = kv[..., :d], kv[..., d:]
        else:
            kp = dense(k4, p["wk"], p["bk"])
            vp = dense(v4, p["wv"], p["bv"])

    qh = jnp.transpose(qp, (0, 2, 1, 3))            # (B, heads, Lq, d)
    kh = jnp.transpose(kp, (0, 2, 1, 3))
    vh = jnp.transpose(vp, (0, 2, 1, 3))

    inv_scale = 2.0 / d  # energy / (depth ** 1 / 2) == energy / (depth / 2)
    oh = pallas_attention(qh, kh, vh, inv_scale)    # (B, heads, Lq, d)

    out = jnp.transpose(oh, (0, 2, 1, 3)).reshape(B, Lq, heads * d)
    q_flat = qp.reshape(B, Lq, heads * d)
    H = heads * d
    # fc_out over cat([q_flat, out]) done as a dual matmul (no concat in HBM).
    return dense_dual(q_flat, out, p["wo"][:H], p["wo"][H:], p["bo"])


def transformer_block(p, query, key, value, heads):
    attn = self_attention(p["attn"], query, key, value, heads)
    add = add_layer_norm(attn, query, p["ln1_g"], p["ln1_b"])   # dropout = id
    h = dense(add, p["ffn_w1"], p["ffn_b1"])                    # Conv1d k=1
    # TODO(synk): exact erf-based GELU kept in plain JAX (no guaranteed erf
    # lowering in Mosaic); fusing it into the matmul epilogue would remove one
    # HBM round-trip of the (B, L, H*fe) activation.
    h = jax.nn.gelu(h, approximate=False)                       # nn.GELU()
    ffn = dense(h, p["ffn_w2"], p["ffn_b2"])                    # Conv1d k=1
    return add_layer_norm(ffn, add, p["ln2_g"], p["ln2_b"])


def decoder_block(p, query, enc_out, heads):
    cm = self_attention(p["cm_attn"], query, query, query, heads)
    q2 = add_layer_norm(cm, query, p["ln_g"], p["ln_b"])
    return transformer_block(p["tblock"], q2, enc_out, enc_out, heads)


def encoder_forward(p, text_idx, heads):
    B, L = text_idx.shape
    tok = jnp.take(p["token_embed"], text_idx, axis=0)           # (B, L, E)
    x = conv1d(tok, p["pre_conv1_w"], p["pre_conv1_b"], 2, 2, "relu", p["pre_bn1"])
    x = conv1d(x, p["pre_conv2_w"], p["pre_conv2_b"], 2, 2, "relu", p["pre_bn2"])
    x = conv1d(x, p["pre_conv3_w"], p["pre_conv3_b"], 2, 2, "relu", p["pre_bn3"])
    x = dense(x, p["pre_fc_w"], p["pre_fc_b"])
    x = x + p["pos_embed"][:, :L, :]
    for lp in p["layers"]:
        x = transformer_block(lp, x, x, x, heads)
    return x


def postnet_forward(p, x):
    # causal conv: pad 4 left, kernel 5 == torch pad=4 then [:, :, :-4]
    h = conv1d(x, p["conv1_w"], p["conv1_b"], 4, 0, "tanh", p["bn1"])
    for i in range(3):
        h = conv1d(h, p["convs_w"][i], p["convs_b"][i], 4, 0, "tanh", p["bns"][i])
    return conv1d(h, p["conv5_w"], p["conv5_b"], 4, 0)


def decoder_forward(p, mel, enc_out, heads):
    B, L, _ = mel.shape
    n_mel = p["mel_w"].shape[1]
    x = dense(mel, p["pre_fc1_w"], p["pre_fc1_b"], "relu")
    x = dense(x, p["pre_fc2_w"], p["pre_fc2_b"], "relu")
    x = x + p["pos_embed"][:, :L, :]
    for lp in p["layers"]:
        x = decoder_block(lp, x, enc_out, heads)
    # Merge mel (N=mel) + stop (N=1) projections into one lane-denser matmul.
    w_ms = jnp.concatenate([p["mel_w"], p["stop_w"]], axis=1)    # (H, mel+1)
    b_ms = jnp.concatenate([p["mel_b"], p["stop_b"]], axis=0)
    ms = dense(x, w_ms, b_ms)
    mel_linear = ms[..., :n_mel]
    stop_linear = ms[..., n_mel:]
    post = postnet_forward(p["postnet"], mel_linear)
    return post + mel_linear, mel_linear, stop_linear


def transformer_tts_forward(params, text_idx, mel, mel_mask, heads, pad_idx):
    # Pad / causal masks exist in the torch code, but `masked_fill` there is
    # not in-place so they never affect the attention -> ignored (faithfully).
    del mel_mask, pad_idx
    enc_out = encoder_forward(params["encoder"], text_idx, heads)
    return decoder_forward(params["decoder"], mel, enc_out, heads)


# ----------------------------------------------------------------------------
# Deterministic parameter init (shapes from the nn.Module __init__)
# ----------------------------------------------------------------------------

def init_params(key, cfg):
    keys = iter(jax.random.split(key, 512))

    def nrm(shape, scale=0.05):
        return (scale * jax.random.normal(next(keys), shape)).astype(jnp.float32)

    zeros = lambda s: jnp.zeros(s, jnp.float32)
    ones = lambda s: jnp.ones(s, jnp.float32)

    H, E, heads, fe = cfg["hidden"], cfg["embed"], cfg["heads"], cfg["fe"]
    mel, ml = cfg["mel"], cfg["max_len"]
    d = H // heads

    def attn_params():
        return dict(wq=nrm((d, d)), bq=nrm((d,)),
                    wk=nrm((d, d)), bk=nrm((d,)),
                    wv=nrm((d, d)), bv=nrm((d,)),
                    wo=nrm((2 * H, H)), bo=nrm((H,)))

    def tblock_params():
        return dict(attn=attn_params(),
                    ln1_g=ones((H,)), ln1_b=zeros((H,)),
                    ln2_g=ones((H,)), ln2_b=zeros((H,)),
                    ffn_w1=nrm((H, H * fe)), ffn_b1=nrm((H * fe,)),
                    ffn_w2=nrm((H * fe, H)), ffn_b2=nrm((H,)))

    def dblock_params():
        return dict(cm_attn=attn_params(), tblock=tblock_params(),
                    ln_g=ones((H,)), ln_b=zeros((H,)))

    def bn_params(c):  # PyTorch eval-mode defaults
        return dict(gamma=ones((c,)), beta=zeros((c,)), mean=zeros((c,)), var=ones((c,)))

    encoder = dict(
        token_embed=nrm((cfg["vocab"], E), 0.1),
        pos_embed=zeros((1, ml, H)),                 # nn.Parameter(torch.zeros)
        pre_conv1_w=nrm((H, E, 5)), pre_conv1_b=nrm((H,)), pre_bn1=bn_params(H),
        pre_conv2_w=nrm((H, H, 5)), pre_conv2_b=nrm((H,)), pre_bn2=bn_params(H),
        pre_conv3_w=nrm((H, H, 5)), pre_conv3_b=nrm((H,)), pre_bn3=bn_params(H),
        pre_fc_w=nrm((H, H)), pre_fc_b=nrm((H,)),
        layers=[tblock_params() for _ in range(cfg["layers"])],
    )
    postnet = dict(
        conv1_w=nrm((H, mel, 5)), conv1_b=nrm((H,)), bn1=bn_params(H),
        convs_w=[nrm((H, H, 5)) for _ in range(3)],
        convs_b=[nrm((H,)) for _ in range(3)],
        bns=[bn_params(H) for _ in range(3)],
        conv5_w=nrm((mel, H, 5)), conv5_b=nrm((mel,)),
    )
    decoder = dict(
        pos_embed=zeros((1, ml, H)),
        pre_fc1_w=nrm((mel, H)), pre_fc1_b=nrm((H,)),
        pre_fc2_w=nrm((H, H)), pre_fc2_b=nrm((H,)),
        layers=[dblock_params() for _ in range(cfg["layers"])],
        mel_w=nrm((H, mel)), mel_b=nrm((mel,)),
        stop_w=nrm((H, 1)), stop_b=nrm((1,)),
        postnet=postnet,
    )
    return dict(encoder=encoder, decoder=decoder)


# ----------------------------------------------------------------------------
# Demo
# ----------------------------------------------------------------------------

if __name__ == "__main__":
    cfg = dict(vocab=50, embed=16, hidden=32, heads=4, fe=2,
               layers=2, mel=16, max_len=32, pad_idx=0)

    root = jax.random.PRNGKey(0)
    pkey, dkey = jax.random.split(root)
    params = init_params(pkey, cfg)

    B, L_text, L_mel = 2, 8, 8
    k1, k2 = jax.random.split(dkey)
    text_idx = jax.random.randint(k1, (B, L_text), 1, cfg["vocab"], dtype=jnp.int32)
    mel = jax.random.normal(k2, (B, L_mel, cfg["mel"]), jnp.float32)
    mel_mask = jnp.ones((B, L_mel), jnp.int32)

    fwd = jax.jit(functools.partial(transformer_tts_forward,
                                    heads=cfg["heads"], pad_idx=cfg["pad_idx"]))
    mel_postout, mel_linear, stop_linear = fwd(params, text_idx, mel, mel_mask)
    jax.block_until_ready((mel_postout, mel_linear, stop_linear))

    assert mel_postout.shape == (B, L_mel, cfg["mel"])
    assert mel_linear.shape == (B, L_mel, cfg["mel"])
    assert stop_linear.shape == (B, L_mel, 1)
    print("KERNEL_OK")
</pallas_src>

<mosaic_0001>
module attributes {stable_mosaic.version = 11 : i64} {
  func.func @matmul_kernel(%arg0: i32, %arg1: i32, %arg2: i32, %arg3: memref<16x16xf32, #tpu.memory_space<vmem>>, %arg4: memref<16x32xf32, #tpu.memory_space<vmem>>, %arg5: memref<1x32xf32, #tpu.memory_space<vmem>>, %arg6: memref<16x32xf32, #tpu.memory_space<vmem>>, %arg7: memref<16x32xf32, #tpu.memory_space<vmem>>) attributes {dimension_semantics = [#tpu.dimension_semantics<parallel>, #tpu.dimension_semantics<parallel>, #tpu.dimension_semantics<arbitrary>], iteration_bounds = array<i64: 1, 1, 1>, scalar_prefetch = 0 : i64, scratch_operands = 1 : i64, tpu.core_type = #tpu.core_type<tc>, window_params = [{transform_indices = @transform_0, window_bounds = array<i64: 16, 16>}, {transform_indices = @transform_1, window_bounds = array<i64: 16, 32>}, {transform_indices = @transform_2, window_bounds = array<i64: 1, 32>}, {transform_indices = @transform_3, window_bounds = array<i64: 16, 32>}]} {
    %c0_i32 = arith.constant 0 : i32
    %0 = arith.cmpi eq, %arg2, %c0_i32 : i32
    %1 = arith.extui %0 : i1 to i32
    %c0_i32_0 = arith.constant 0 : i32
    %2 = arith.cmpi ne, %1, %c0_i32_0 : i32
    scf.if %2 {
      %cst_10 = arith.constant 0.000000e+00 : f32
      %12 = vector.broadcast %cst_10 : f32 to vector<16x32xf32>
      %c0_11 = arith.constant 0 : index
      %c0_12 = arith.constant 0 : index
      %13 = vector.load %arg7[%c0_11, %c0_12] : memref<16x32xf32, #tpu.memory_space<vmem>>, vector<16x32xf32>
      tpu.vector_store %arg7[%c0_11, %c0_12], %12 {strides = array<i32>} : memref<16x32xf32, #tpu.memory_space<vmem>>, vector<16x32xf32>,
    } else {
    }
    %c0 = arith.constant 0 : index
    %c0_1 = arith.constant 0 : index
    %3 = vector.load %arg7[%c0, %c0_1] : memref<16x32xf32, #tpu.memory_space<vmem>>, vector<16x32xf32>
    %c0_2 = arith.constant 0 : index
    %c0_3 = arith.constant 0 : index
    %4 = vector.load %arg3[%c0_2, %c0_3] : memref<16x16xf32, #tpu.memory_space<vmem>>, vector<16x16xf32>
    %c0_4 = arith.constant 0 : index
    %c0_5 = arith.constant 0 : index
    %5 = vector.load %arg4[%c0_4, %c0_5] : memref<16x32xf32, #tpu.memory_space<vmem>>, vector<16x32xf32>
    %cst = arith.constant dense<0.000000e+00> : vector<16x32xf32>
    %6 = tpu.matmul %4, %5, %cst {dimension_numbers = #tpu.dot_dimension_numbers<[1], [0], [0], [1], [0, 0, 1, 1], [], []>} : vector<16x16xf32>, vector<16x32xf32>, vector<16x32xf32> -> vector<16x32xf32>
    %7 = arith.addf %3, %6 : vector<16x32xf32>
    %c0_6 = arith.constant 0 : index
    %c0_7 = arith.constant 0 : index
    %8 = vector.load %arg7[%c0_6, %c0_7] : memref<16x32xf32, #tpu.memory_space<vmem>>, vector<16x32xf32>
    tpu.vector_store %arg7[%c0_6, %c0_7], %7 {strides = array<i32>} : memref<16x32xf32, #tpu.memory_space<vmem>>, vector<16x32xf32>,
    %c0_i32_8 = arith.constant 0 : i32
    %9 = arith.cmpi eq, %arg2, %c0_i32_8 : i32
    %10 = arith.extui %9 : i1 to i32
    %c0_i32_9 = arith.constant 0 : i32
    %11 = arith.cmpi ne, %10, %c0_i32_9 : i32
    scf.if %11 {
      %c0_10 = arith.constant 0 : index
      %c0_11 = arith.constant 0 : index
      %12 = vector.load %arg7[%c0_10, %c0_11] : memref<16x32xf32, #tpu.memory_space<vmem>>, vector<16x32xf32>
      %c0_12 = arith.constant 0 : index
      %c0_13 = arith.constant 0 : index
      %13 = vector.load %arg5[%c0_12, %c0_13] : memref<1x32xf32, #tpu.memory_space<vmem>>, vector<1x32xf32>
      %14 = vector.broadcast %13 : vector<1x32xf32> to vector<16x32xf32>
      %15 = arith.addf %12, %14 : vector<16x32xf32>
      %cst_14 = arith.constant 0.000000e+00 : f32
      %16 = vector.broadcast %cst_14 : f32 to vector<16x32xf32>
      %17 = arith.maximumf %15, %16 : vector<16x32xf32>
      %c0_15 = arith.constant 0 : index
      %c0_16 = arith.constant 0 : index
      %18 = vector.load %arg6[%c0_15, %c0_16] : memref<16x32xf32, #tpu.memory_space<vmem>>, vector<16x32xf32>
      tpu.vector_store %arg6[%c0_15, %c0_16], %17 {strides = array<i32>} : memref<16x32xf32, #tpu.memory_space<vmem>>, vector<16x32xf32>,
    } else {
    }
    return
  }
  func.func @transform_0(%arg0: i32, %arg1: i32, %arg2: i32) -> (i32, i32) {
    %c0_i32 = arith.constant 0 : i32
    return %arg0, %arg2 : i32, i32
  }
  func.func @transform_1(%arg0: i32, %arg1: i32, %arg2: i32) -> (i32, i32) {
    %c0_i32 = arith.constant 0 : i32
    return %arg2, %arg1 : i32, i32
  }
  func.func @transform_2(%arg0: i32, %arg1: i32, %arg2: i32) -> (i32, i32) {
    %c0_i32 = arith.constant 0 : i32
    %c0_i32_0 = arith.constant 0 : i32
    return %c0_i32, %arg1 : i32, i32
  }
  func.func @transform_3(%arg0: i32, %arg1: i32, %arg2: i32) -> (i32, i32) {
    %c0_i32 = arith.constant 0 : i32
    return %arg0, %arg1 : i32, i32
  }
}

module attributes {stable_mosaic.version = 11 : i64} {
  func.func @matmul_kernel(%arg0: i32, %arg1: i32, %arg2: i32, %arg3: memref<16x32xf32, #tpu.memory_space<vmem>>, %arg4: memref<32x32xf32, #tpu.memory_space<vmem>>, %arg5: memref<1x32xf32, #tpu.memory_space<vmem>>, %arg6: memref<16x32xf32, #tpu.memory_space<vmem>>, %arg7: memref<16x32xf32, #tpu.memory_space<vmem>>) attributes {dimension_semantics = [#tpu.dimension_semantics<parallel>, #tpu.dimension_semantics<parallel>, #tpu.dimension_semantics<arbitrary>], iteration_bounds = array<i64: 1, 1, 1>, scalar_prefetch = 0 : i64, scratch_operands = 1 : i64, tpu.core_type = #tpu.core_type<tc>, window_params = [{transform_indices = @transform_0, window_bounds = array<i64: 16, 32>}, {transform_indices = @transform_1, window_bounds = array<i64: 32, 32>}, {transform_indices = @transform_2, window_bounds = array<i64: 1, 32>}, {transform_indices = @transform_3, window_bounds = array<i64: 16, 32>}]} {
    %c0_i32 = arith.constant 0 : i32
    %0 = arith.cmpi eq, %arg2, %c0_i32 : i32
    %1 = arith.extui %0 : i1 to i32
    %c0_i32_0 = arith.constant 0 : i32
    %2 = arith.cmpi ne, %1, %c0_i32_0 : i32
    scf.if %2 {
      %cst_10 = arith.constant 0.000000e+00 : f32
      %12 = vector.broadcast %cst_10 : f32 to vector<16x32xf32>
      %c0_11 = arith.constant 0 : index
      %c0_12 = arith.constant 0 : index
      %13 = vector.load %arg7[%c0_11, %c0_12] : memref<16x32xf32, #tpu.memory_space<vmem>>, vector<16x32xf32>
      tpu.vector_store %arg7[%c0_11, %c0_12], %12 {strides = array<i32>} : memref<16x32xf32, #tpu.memory_space<vmem>>, vector<16x32xf32>,
    } else {
    }
    %c0 = arith.constant 0 : index
    %c0_1 = arith.constant 0 : index
    %3 = vector.load %arg7[%c0, %c0_1] : memref<16x32xf32, #tpu.memory_space<vmem>>, vector<16x32xf32>
    %c0_2 = arith.constant 0 : index
    %c0_3 = arith.constant 0 : index
    %4 = vector.load %arg3[%c0_2, %c0_3] : memref<16x32xf32, #tpu.memory_space<vmem>>, vector<16x32xf32>
    %c0_4 = arith.constant 0 : index
    %c0_5 = arith.constant 0 : index
    %5 = vector.load %arg4[%c0_4, %c0_5] : memref<32x32xf32, #tpu.memory_space<vmem>>, vector<32x32xf32>
    %cst = arith.constant dense<0.000000e+00> : vector<16x32xf32>
    %6 = tpu.matmul %4, %5, %cst {dimension_numbers = #tpu.dot_dimension_numbers<[1], [0], [0], [1], [0, 0, 1, 1], [], []>} : vector<16x32xf32>, vector<32x32xf32>, vector<16x32xf32> -> vector<16x32xf32>
    %7 = arith.addf %3, %6 : vector<16x32xf32>
    %c0_6 = arith.constant 0 : index
    %c0_7 = arith.constant 0 : index
    %8 = vector.load %arg7[%c0_6, %c0_7] : memref<16x32xf32, #tpu.memory_space<vmem>>, vector<16x32xf32>
    tpu.vector_store %arg7[%c0_6, %c0_7], %7 {strides = array<i32>} : memref<16x32xf32, #tpu.memory_space<vmem>>, vector<16x32xf32>,
    %c0_i32_8 = arith.constant 0 : i32
    %9 = arith.cmpi eq, %arg2, %c0_i32_8 : i32
    %10 = arith.extui %9 : i1 to i32
    %c0_i32_9 = arith.constant 0 : i32
    %11 = arith.cmpi ne, %10, %c0_i32_9 : i32
    scf.if %11 {
      %c0_10 = arith.constant 0 : index
      %c0_11 = arith.constant 0 : index
      %12 = vector.load %arg7[%c0_10, %c0_11] : memref<16x32xf32, #tpu.memory_space<vmem>>, vector<16x32xf32>
      %c0_12 = arith.constant 0 : index
      %c0_13 = arith.constant 0 : index
      %13 = vector.load %arg5[%c0_12, %c0_13] : memref<1x32xf32, #tpu.memory_space<vmem>>, vector<1x32xf32>
      %14 = vector.broadcast %13 : vector<1x32xf32> to vector<16x32xf32>
      %15 = arith.addf %12, %14 : vector<16x32xf32>
      %cst_14 = arith.constant 0.000000e+00 : f32
      %16 = vector.broadcast %cst_14 : f32 to vector<16x32xf32>
      %17 = arith.maximumf %15, %16 : vector<16x32xf32>
      %c0_15 = arith.constant 0 : index
      %c0_16 = arith.constant 0 : index
      %18 = vector.load %arg6[%c0_15, %c0_16] : memref<16x32xf32, #tpu.memory_space<vmem>>, vector<16x32xf32>
      tpu.vector_store %arg6[%c0_15, %c0_16], %17 {strides = array<i32>} : memref<16x32xf32, #tpu.memory_space<vmem>>, vector<16x32xf32>,
    } else {
    }
    return
  }
  func.func @transform_0(%arg0: i32, %arg1: i32, %arg2: i32) -> (i32, i32) {
    %c0_i32 = arith.constant 0 : i32
    return %arg0, %arg2 : i32, i32
  }
  func.func @transform_1(%arg0: i32, %arg1: i32, %arg2: i32) -> (i32, i32) {
    %c0_i32 = arith.constant 0 : i32
    return %arg2, %arg1 : i32, i32
  }
  func.func @transform_2(%arg0: i32, %arg1: i32, %arg2: i32) -> (i32, i32) {
    %c0_i32 = arith.constant 0 : i32
    %c0_i32_0 = arith.constant 0 : i32
    return %c0_i32, %arg1 : i32, i32
  }
  func.func @transform_3(%arg0: i32, %arg1: i32, %arg2: i32) -> (i32, i32) {
    %c0_i32 = arith.constant 0 : i32
    return %arg0, %arg1 : i32, i32
  }
}

module attributes {stable_mosaic.version = 11 : i64} {
  func.func @matmul_kernel(%arg0: i32, %arg1: i32, %arg2: i32, %arg3: memref<64x8xf32, #tpu.memory_space<vmem>>, %arg4: memref<8x24xf32, #tpu.memory_space<vmem>>, %arg5: memref<1x24xf32, #tpu.memory_space<vmem>>, %arg6: memref<64x24xf32, #tpu.memory_space<vmem>>, %arg7: memref<64x24xf32, #tpu.memory_space<vmem>>) attributes {dimension_semantics = [#tpu.dimension_semantics<parallel>, #tpu.dimension_semantics<parallel>, #tpu.dimension_semantics<arbitrary>], iteration_bounds = array<i64: 1, 1, 1>, scalar_prefetch = 0 : i64, scratch_operands = 1 : i64, tpu.core_type = #tpu.core_type<tc>, window_params = [{transform_indices = @transform_0, window_bounds = array<i64: 64, 8>}, {transform_indices = @transform_1, window_bounds = array<i64: 8, 24>}, {transform_indices = @transform_2, window_bounds = array<i64: 1, 24>}, {transform_indices = @transform_3, window_bounds = array<i64: 64, 24>}]} {
    %c0_i32 = arith.constant 0 : i32
    %0 = arith.cmpi eq, %arg2, %c0_i32 : i32
    %1 = arith.extui %0 : i1 to i32
    %c0_i32_0 = arith.constant 0 : i32
    %2 = arith.cmpi ne, %1, %c0_i32_0 : i32
    scf.if %2 {
      %cst_10 = arith.constant 0.000000e+00 : f32
      %12 = vector.broadcast %cst_10 : f32 to vector<64x24xf32>
      %c0_11 = arith.constant 0 : index
      %c0_12 = arith.constant 0 : index
      %13 = vector.load %arg7[%c0_11, %c0_12] : memref<64x24xf32, #tpu.memory_space<vmem>>, vector<64x24xf32>
      tpu.vector_store %arg7[%c0_11, %c0_12], %12 {strides = array<i32>} : memref<64x24xf32, #tpu.memory_space<vmem>>, vector<64x24xf32>,
    } else {
    }
    %c0 = arith.constant 0 : index
    %c0_1 = arith.constant 0 : index
    %3 = vector.load %arg7[%c0, %c0_1] : memref<64x24xf32, #tpu.memory_space<vmem>>, vector<64x24xf32>
    %c0_2 = arith.constant 0 : index
    %c0_3 = arith.constant 0 : index
    %4 = vector.load %arg3[%c0_2, %c0_3] : memref<64x8xf32, #tpu.memory_space<vmem>>, vector<64x8xf32>
    %c0_4 = arith.constant 0 : index
    %c0_5 = arith.constant 0 : index
    %5 = vector.load %arg4[%c0_4, %c0_5] : memref<8x24xf32, #tpu.memory_space<vmem>>, vector<8x24xf32>
    %cst = arith.constant dense<0.000000e+00> : vector<64x24xf32>
    %6 = tpu.matmul %4, %5, %cst {dimension_numbers = #tpu.dot_dimension_numbers<[1], [0], [0], [1], [0, 0, 1, 1], [], []>} : vector<64x8xf32>, vector<8x24xf32>, vector<64x24xf32> -> vector<64x24xf32>
    %7 = arith.addf %3, %6 : vector<64x24xf32>
    %c0_6 = arith.constant 0 : index
    %c0_7 = arith.constant 0 : index
    %8 = vector.load %arg7[%c0_6, %c0_7] : memref<64x24xf32, #tpu.memory_space<vmem>>, vector<64x24xf32>
    tpu.vector_store %arg7[%c0_6, %c0_7], %7 {strides = array<i32>} : memref<64x24xf32, #tpu.memory_space<vmem>>, vector<64x24xf32>,
    %c0_i32_8 = arith.constant 0 : i32
    %9 = arith.cmpi eq, %arg2, %c0_i32_8 : i32
    %10 = arith.extui %9 : i1 to i32
    %c0_i32_9 = arith.constant 0 : i32
    %11 = arith.cmpi ne, %10, %c0_i32_9 : i32
    scf.if %11 {
      %c0_10 = arith.constant 0 : index
      %c0_11 = arith.constant 0 : index
      %12 = vector.load %arg7[%c0_10, %c0_11] : memref<64x24xf32, #tpu.memory_space<vmem>>, vector<64x24xf32>
      %c0_12 = arith.constant 0 : index
      %c0_13 = arith.constant 0 : index
      %13 = vector.load %arg5[%c0_12, %c0_13] : memref<1x24xf32, #tpu.memory_space<vmem>>, vector<1x24xf32>
      %14 = vector.broadcast %13 : vector<1x24xf32> to vector<64x24xf32>
      %15 = arith.addf %12, %14 : vector<64x24xf32>
      %c0_14 = arith.constant 0 : index
      %c0_15 = arith.constant 0 : index
      %16 = vector.load %arg6[%c0_14, %c0_15] : memref<64x24xf32, #tpu.memory_space<vmem>>, vector<64x24xf32>
      tpu.vector_store %arg6[%c0_14, %c0_15], %15 {strides = array<i32>} : memref<64x24xf32, #tpu.memory_space<vmem>>, vector<64x24xf32>,
    } else {
    }
    return
  }
  func.func @transform_0(%arg0: i32, %arg1: i32, %arg2: i32) -> (i32, i32) {
    %c0_i32 = arith.constant 0 : i32
    return %arg0, %arg2 : i32, i32
  }
  func.func @transform_1(%arg0: i32, %arg1: i32, %arg2: i32) -> (i32, i32) {
    %c0_i32 = arith.constant 0 : i32
    return %arg2, %arg1 : i32, i32
  }
  func.func @transform_2(%arg0: i32, %arg1: i32, %arg2: i32) -> (i32, i32) {
    %c0_i32 = arith.constant 0 : i32
    %c0_i32_0 = arith.constant 0 : i32
    return %c0_i32, %arg1 : i32, i32
  }
  func.func @transform_3(%arg0: i32, %arg1: i32, %arg2: i32) -> (i32, i32) {
    %c0_i32 = arith.constant 0 : i32
    return %arg0, %arg1 : i32, i32
  }
}

module attributes {stable_mosaic.version = 11 : i64} {
  func.func @attention_kernel(%arg0: i32, %arg1: i32, %arg2: memref<1x4x8x8xf32, #tpu.memory_space<vmem>>, %arg3: memref<1x4x8x8xf32, #tpu.memory_space<vmem>>, %arg4: memref<1x4x8x8xf32, #tpu.memory_space<vmem>>, %arg5: memref<1x4x8x8xf32, #tpu.memory_space<vmem>>) attributes {dimension_semantics = [#tpu.dimension_semantics<parallel>, #tpu.dimension_semantics<parallel>], iteration_bounds = array<i64: 2, 1>, scalar_prefetch = 0 : i64, scratch_operands = 0 : i64, tpu.core_type = #tpu.core_type<tc>, window_params = [{transform_indices = @transform_0, window_bounds = array<i64: 1, 4, 8, 8>}, {transform_indices = @transform_1, window_bounds = array<i64: 1, 4, 8, 8>}, {transform_indices = @transform_2, window_bounds = array<i64: 1, 4, 8, 8>}, {transform_indices = @transform_3, window_bounds = array<i64: 1, 4, 8, 8>}]} {
    %c0 = arith.constant 0 : index
    %c0_0 = arith.constant 0 : index
    %c0_1 = arith.constant 0 : index
    %c0_2 = arith.constant 0 : index
    %0 = vector.load %arg2[%c0, %c0_0, %c0_1, %c0_2] : memref<1x4x8x8xf32, #tpu.memory_space<vmem>>, vector<1x4x8x8xf32>
    %1 = vector.shape_cast %0 : vector<1x4x8x8xf32> to vector<4x8x8xf32>
    %c0_3 = arith.constant 0 : index
    %c0_4 = arith.constant 0 : index
    %c0_5 = arith.constant 0 : index
    %c0_6 = arith.constant 0 : index
    %2 = vector.load %arg3[%c0_3, %c0_4, %c0_5, %c0_6] : memref<1x4x8x8xf32, #tpu.memory_space<vmem>>, vector<1x4x8x8xf32>
    %3 = vector.shape_cast %2 : vector<1x4x8x8xf32> to vector<4x8x8xf32>
    %c0_7 = arith.constant 0 : index
    %c0_8 = arith.constant 0 : index
    %c0_9 = arith.constant 0 : index
    %c0_10 = arith.constant 0 : index
    %4 = vector.load %arg4[%c0_7, %c0_8, %c0_9, %c0_10] : memref<1x4x8x8xf32, #tpu.memory_space<vmem>>, vector<1x4x8x8xf32>
    %5 = vector.shape_cast %4 : vector<1x4x8x8xf32> to vector<4x8x8xf32>
    "tpu.trace_start"() <{level = 10 : i32, message = "hqd,hkd->hqk"}> : () -> ()
    %cst = arith.constant dense<0.000000e+00> : vector<4x8x8xf32>
    %6 = tpu.matmul %1, %3, %cst {dimension_numbers = #tpu.dot_dimension_numbers<[2], [2], [1], [1], [0, 0, 0, 1, 1, 1], [0], [0]>} : vector<4x8x8xf32>, vector<4x8x8xf32>, vector<4x8x8xf32> -> vector<4x8x8xf32>
    "tpu.trace_stop"() : () -> ()
    %cst_11 = arith.constant 2.500000e-01 : f32
    %7 = vector.broadcast %cst_11 : f32 to vector<4x8x8xf32>
    %8 = arith.mulf %6, %7 : vector<4x8x8xf32>
    %cst_12 = arith.constant dense<0xFF800000> : vector<4x8xf32>
    %9 = vector.multi_reduction <maximumf>, %8, %cst_12 [2] : vector<4x8x8xf32> to vector<4x8xf32>
    %10 = vector.shape_cast %9 : vector<4x8xf32> to vector<4x8x1xf32>
    %11 = vector.broadcast %10 : vector<4x8x1xf32> to vector<4x8x8xf32>
    %12 = arith.subf %8, %11 : vector<4x8x8xf32>
    %13 = math.exp %12 : vector<4x8x8xf32>
    %cst_13 = arith.constant dense<0.000000e+00> : vector<4x8xf32>
    %14 = vector.multi_reduction <add>, %13, %cst_13 [2] : vector<4x8x8xf32> to vector<4x8xf32>
    %15 = vector.shape_cast %14 : vector<4x8xf32> to vector<4x8x1xf32>
    %16 = vector.broadcast %15 : vector<4x8x1xf32> to vector<4x8x8xf32>
    %17 = arith.divf %13, %16 : vector<4x8x8xf32>
    "tpu.trace_start"() <{level = 10 : i32, message = "hqk,hkd->hqd"}> : () -> ()
    %cst_14 = arith.constant dense<0.000000e+00> : vector<4x8x8xf32>
    %18 = tpu.matmul %17, %5, %cst_14 {dimension_numbers = #tpu.dot_dimension_numbers<[2], [1], [1], [2], [0, 0, 0, 1, 1, 2], [0], [0]>} : vector<4x8x8xf32>, vector<4x8x8xf32>, vector<4x8x8xf32> -> vector<4x8x8xf32>
    "tpu.trace_stop"() : () -> ()
    %c0_15 = arith.constant 0 : index
    %c0_16 = arith.constant 0 : index
    %c0_17 = arith.constant 0 : index
    %c0_18 = arith.constant 0 : index
    %19 = vector.load %arg5[%c0_15, %c0_16, %c0_17, %c0_18] : memref<1x4x8x8xf32, #tpu.memory_space<vmem>>, vector<1x4x8x8xf32>
    %20 = vector.shape_cast %19 : vector<1x4x8x8xf32> to vector<4x8x8xf32>
    %21 = vector.shape_cast %18 : vector<4x8x8xf32> to vector<1x4x8x8xf32>
    tpu.vector_store %arg5[%c0_15, %c0_16, %c0_17, %c0_18], %21 {strides = array<i32>} : memref<1x4x8x8xf32, #tpu.memory_space<vmem>>, vector<1x4x8x8xf32>,
    return
  }
  func.func @transform_0(%arg0: i32, %arg1: i32) -> (i32, i32, i32, i32) {
    %c0_i32 = arith.constant 0 : i32
    %c0_i32_0 = arith.constant 0 : i32
    %c0_i32_1 = arith.constant 0 : i32
    return %arg0, %c0_i32, %arg1, %c0_i32_0 : i32, i32, i32, i32
  }
  func.func @transform_1(%arg0: i32, %arg1: i32) -> (i32, i32, i32, i32) {
    %c0_i32 = arith.constant 0 : i32
    %c0_i32_0 = arith.constant 0 : i32
    %c0_i32_1 = arith.constant 0 : i32
    %c0_i32_2 = arith.constant 0 : i32
    return %arg0, %c0_i32, %c0_i32_0, %c0_i32_1 : i32, i32, i32, i32
  }
  func.func @transform_2(%arg0: i32, %arg1: i32) -> (i32, i32, i32, i32) {
    %c0_i32 = arith.constant 0 : i32
    %c0_i32_0 = arith.constant 0 : i32
    %c0_i32_1 = arith.constant 0 : i32
    %c0_i32_2 = arith.constant 0 : i32
    return %arg0, %c0_i32, %c0_i32_0, %c0_i32_1 : i32, i32, i32, i32
  }
  func.func @transform_3(%arg0: i32, %arg1: i32) -> (i32, i32, i32, i32) {
    %c0_i32 = arith.constant 0 : i32
    %c0_i32_0 = arith.constant 0 : i32
    %c0_i32_1 = arith.constant 0 : i32
    return %arg0, %c0_i32, %arg1, %c0_i32_0 : i32, i32, i32, i32
  }
}

module attributes {stable_mosaic.version = 11 : i64} {
  func.func @dual_matmul_kernel(%arg0: i32, %arg1: i32, %arg2: memref<16x32xf32, #tpu.memory_space<vmem>>, %arg3: memref<16x32xf32, #tpu.memory_space<vmem>>, %arg4: memref<32x32xf32, #tpu.memory_space<vmem>>, %arg5: memref<32x32xf32, #tpu.memory_space<vmem>>, %arg6: memref<1x32xf32, #tpu.memory_space<vmem>>, %arg7: memref<16x32xf32, #tpu.memory_space<vmem>>) attributes {dimension_semantics = [#tpu.dimension_semantics<parallel>, #tpu.dimension_semantics<parallel>], iteration_bounds = array<i64: 1, 1>, scalar_prefetch = 0 : i64, scratch_operands = 0 : i64, tpu.core_type = #tpu.core_type<tc>, window_params = [{transform_indices = @transform_0, window_bounds = array<i64: 16, 32>}, {transform_indices = @transform_1, window_bounds = array<i64: 16, 32>}, {transform_indices = @transform_2, window_bounds = array<i64: 32, 32>}, {transform_indices = @transform_3, window_bounds = array<i64: 32, 32>}, {transform_indices = @transform_4, window_bounds = array<i64: 1, 32>}, {transform_indices = @transform_5, window_bounds = array<i64: 16, 32>}]} {
    %c0 = arith.constant 0 : index
    %c0_0 = arith.constant 0 : index
    %0 = vector.load %arg2[%c0, %c0_0] : memref<16x32xf32, #tpu.memory_space<vmem>>, vector<16x32xf32>
    %c0_1 = arith.constant 0 : index
    %c0_2 = arith.constant 0 : index
    %1 = vector.load %arg4[%c0_1, %c0_2] : memref<32x32xf32, #tpu.memory_space<vmem>>, vector<32x32xf32>
    %cst = arith.constant dense<0.000000e+00> : vector<16x32xf32>
    %2 = tpu.matmul %0, %1, %cst {dimension_numbers = #tpu.dot_dimension_numbers<[1], [0], [0], [1], [0, 0, 1, 1], [], []>} : vector<16x32xf32>, vector<32x32xf32>, vector<16x32xf32> -> vector<16x32xf32>
    %c0_3 = arith.constant 0 : index
    %c0_4 = arith.constant 0 : index
    %3 = vector.load %arg3[%c0_3, %c0_4] : memref<16x32xf32, #tpu.memory_space<vmem>>, vector<16x32xf32>
    %c0_5 = arith.constant 0 : index
    %c0_6 = arith.constant 0 : index
    %4 = vector.load %arg5[%c0_5, %c0_6] : memref<32x32xf32, #tpu.memory_space<vmem>>, vector<32x32xf32>
    %cst_7 = arith.constant dense<0.000000e+00> : vector<16x32xf32>
    %5 = tpu.matmul %3, %4, %cst_7 {dimension_numbers = #tpu.dot_dimension_numbers<[1], [0], [0], [1], [0, 0, 1, 1], [], []>} : vector<16x32xf32>, vector<32x32xf32>, vector<16x32xf32> -> vector<16x32xf32>
    %6 = arith.addf %2, %5 : vector<16x32xf32>
    %c0_8 = arith.constant 0 : index
    %c0_9 = arith.constant 0 : index
    %7 = vector.load %arg6[%c0_8, %c0_9] : memref<1x32xf32, #tpu.memory_space<vmem>>, vector<1x32xf32>
    %8 = vector.broadcast %7 : vector<1x32xf32> to vector<16x32xf32>
    %9 = arith.addf %6, %8 : vector<16x32xf32>
    %c0_10 = arith.constant 0 : index
    %c0_11 = arith.constant 0 : index
    %10 = vector.load %arg7[%c0_10, %c0_11] : memref<16x32xf32, #tpu.memory_space<vmem>>, vector<16x32xf32>
    tpu.vector_store %arg7[%c0_10, %c0_11], %9 {strides = array<i32>} : memref<16x32xf32, #tpu.memory_space<vmem>>, vector<16x32xf32>,
    return
  }
  func.func @transform_0(%arg0: i32, %arg1: i32) -> (i32, i32) {
    %c0_i32 = arith.constant 0 : i32
    %c0_i32_0 = arith.constant 0 : i32
    return %arg0, %c0_i32 : i32, i32
  }
  func.func @transform_1(%arg0: i32, %arg1: i32) -> (i32, i32) {
    %c0_i32 = arith.constant 0 : i32
    %c0_i32_0 = arith.constant 0 : i32
    return %arg0, %c0_i32 : i32, i32
  }
  func.func @transform_2(%arg0: i32, %arg1: i32) -> (i32, i32) {
    %c0_i32 = arith.constant 0 : i32
    %c0_i32_0 = arith.constant 0 : i32
    return %c0_i32, %arg1 : i32, i32
  }
  func.func @transform_3(%arg0: i32, %arg1: i32) -> (i32, i32) {
    %c0_i32 = arith.constant 0 : i32
    %c0_i32_0 = arith.constant 0 : i32
    return %c0_i32, %arg1 : i32, i32
  }
  func.func @transform_4(%arg0: i32, %arg1: i32) -> (i32, i32) {
    %c0_i32 = arith.constant 0 : i32
    %c0_i32_0 = arith.constant 0 : i32
    return %c0_i32, %arg1 : i32, i32
  }
  func.func @transform_5(%arg0: i32, %arg1: i32) -> (i32, i32) {
    %c0_i32 = arith.constant 0 : i32
    return %arg0, %arg1 : i32, i32
  }
}

module attributes {stable_mosaic.version = 11 : i64} {
  func.func @add_layer_norm_kernel(%arg0: i32, %arg1: memref<16x32xf32, #tpu.memory_space<vmem>>, %arg2: memref<16x32xf32, #tpu.memory_space<vmem>>, %arg3: memref<1x32xf32, #tpu.memory_space<vmem>>, %arg4: memref<1x32xf32, #tpu.memory_space<vmem>>, %arg5: memref<16x32xf32, #tpu.memory_space<vmem>>) attributes {dimension_semantics = [#tpu.dimension_semantics<parallel>], iteration_bounds = array<i64: 1>, scalar_prefetch = 0 : i64, scratch_operands = 0 : i64, tpu.core_type = #tpu.core_type<tc>, window_params = [{transform_indices = @transform_0, window_bounds = array<i64: 16, 32>}, {transform_indices = @transform_1, window_bounds = array<i64: 16, 32>}, {pipeline_mode = #tpu.pipeline_mode<synchronous>, transform_indices = @transform_2, window_bounds = array<i64: 1, 32>}, {pipeline_mode = #tpu.pipeline_mode<synchronous>, transform_indices = @transform_3, window_bounds = array<i64: 1, 32>}, {transform_indices = @transform_4, window_bounds = array<i64: 16, 32>}]} {
    %c0 = arith.constant 0 : index
    %c0_0 = arith.constant 0 : index
    %0 = vector.load %arg1[%c0, %c0_0] : memref<16x32xf32, #tpu.memory_space<vmem>>, vector<16x32xf32>
    %c0_1 = arith.constant 0 : index
    %c0_2 = arith.constant 0 : index
    %1 = vector.load %arg2[%c0_1, %c0_2] : memref<16x32xf32, #tpu.memory_space<vmem>>, vector<16x32xf32>
    %2 = arith.addf %0, %1 : vector<16x32xf32>
    %cst = arith.constant dense<0.000000e+00> : vector<16xf32>
    %3 = vector.multi_reduction <add>, %2, %cst [1] : vector<16x32xf32> to vector<16xf32>
    %4 = vector.shape_cast %3 : vector<16xf32> to vector<16x1xf32>
    %cst_3 = arith.constant 3.200000e+01 : f32
    %5 = vector.broadcast %cst_3 : f32 to vector<16x1xf32>
    %6 = arith.divf %4, %5 : vector<16x1xf32>
    %7 = vector.broadcast %6 : vector<16x1xf32> to vector<16x32xf32>
    %8 = arith.subf %2, %7 : vector<16x32xf32>
    %9 = arith.mulf %8, %8 : vector<16x32xf32>
    %cst_4 = arith.constant dense<0.000000e+00> : vector<16xf32>
    %10 = vector.multi_reduction <add>, %9, %cst_4 [1] : vector<16x32xf32> to vector<16xf32>
    %11 = vector.shape_cast %10 : vector<16xf32> to vector<16x1xf32>
    %cst_5 = arith.constant 3.200000e+01 : f32
    %12 = vector.broadcast %cst_5 : f32 to vector<16x1xf32>
    %13 = arith.divf %11, %12 : vector<16x1xf32>
    %14 = vector.broadcast %6 : vector<16x1xf32> to vector<16x32xf32>
    %15 = arith.subf %2, %14 : vector<16x32xf32>
    %cst_6 = arith.constant 9.99999974E-6 : f32
    %16 = vector.broadcast %cst_6 : f32 to vector<16x1xf32>
    %17 = arith.addf %13, %16 : vector<16x1xf32>
    %18 = math.rsqrt %17 : vector<16x1xf32>
    %19 = vector.broadcast %18 : vector<16x1xf32> to vector<16x32xf32>
    %20 = arith.mulf %15, %19 : vector<16x32xf32>
    %c0_7 = arith.constant 0 : index
    %c0_8 = arith.constant 0 : index
    %21 = vector.load %arg3[%c0_7, %c0_8] : memref<1x32xf32, #tpu.memory_space<vmem>>, vector<1x32xf32>
    %22 = vector.broadcast %21 : vector<1x32xf32> to vector<16x32xf32>
    %23 = arith.mulf %20, %22 : vector<16x32xf32>
    %c0_9 = arith.constant 0 : index
    %c0_10 = arith.constant 0 : index
    %24 = vector.load %arg4[%c0_9, %c0_10] : memref<1x32xf32, #tpu.memory_space<vmem>>, vector<1x32xf32>
    %25 = vector.broadcast %24 : vector<1x32xf32> to vector<16x32xf32>
    %26 = arith.addf %23, %25 : vector<16x32xf32>
    %c0_11 = arith.constant 0 : index
    %c0_12 = arith.constant 0 : index
    %27 = vector.load %arg5[%c0_11, %c0_12] : memref<16x32xf32, #tpu.memory_space<vmem>>, vector<16x32xf32>
    tpu.vector_store %arg5[%c0_11, %c0_12], %26 {strides = array<i32>} : memref<16x32xf32, #tpu.memory_space<vmem>>, vector<16x32xf32>,
    return
  }
  func.func @transform_0(%arg0: i32) -> (i32, i32) {
    %c0_i32 = arith.constant 0 : i32
    %c0_i32_0 = arith.constant 0 : i32
    return %arg0, %c0_i32 : i32, i32
  }
  func.func @transform_1(%arg0: i32) -> (i32, i32) {
    %c0_i32 = arith.constant 0 : i32
    %c0_i32_0 = arith.constant 0 : i32
    return %arg0, %c0_i32 : i32, i32
  }
  func.func @transform_2(%arg0: i32) -> (i32, i32) {
    %c0_i32 = arith.constant 0 : i32
    %c0_i32_0 = arith.constant 0 : i32
    %c0_i32_1 = arith.constant 0 : i32
    return %c0_i32, %c0_i32_0 : i32, i32
  }
  func.func @transform_3(%arg0: i32) -> (i32, i32) {
    %c0_i32 = arith.constant 0 : i32
    %c0_i32_0 = arith.constant 0 : i32
    %c0_i32_1 = arith.constant 0 : i32
    return %c0_i32, %c0_i32_0 : i32, i32
  }
  func.func @transform_4(%arg0: i32) -> (i32, i32) {
    %c0_i32 = arith.constant 0 : i32
    %c0_i32_0 = arith.constant 0 : i32
    return %arg0, %c0_i32 : i32, i32
  }
}

module attributes {stable_mosaic.version = 11 : i64} {
  func.func @matmul_kernel(%arg0: i32, %arg1: i32, %arg2: i32, %arg3: memref<64x8xf32, #tpu.memory_space<vmem>>, %arg4: memref<8x8xf32, #tpu.memory_space<vmem>>, %arg5: memref<1x8xf32, #tpu.memory_space<vmem>>, %arg6: memref<64x8xf32, #tpu.memory_space<vmem>>, %arg7: memref<64x8xf32, #tpu.memory_space<vmem>>) attributes {dimension_semantics = [#tpu.dimension_semantics<parallel>, #tpu.dimension_semantics<parallel>, #tpu.dimension_semantics<arbitrary>], iteration_bounds = array<i64: 1, 1, 1>, scalar_prefetch = 0 : i64, scratch_operands = 1 : i64, tpu.core_type = #tpu.core_type<tc>, window_params = [{transform_indices = @transform_0, window_bounds = array<i64: 64, 8>}, {transform_indices = @transform_1, window_bounds = array<i64: 8, 8>}, {transform_indices = @transform_2, window_bounds = array<i64: 1, 8>}, {transform_indices = @transform_3, window_bounds = array<i64: 64, 8>}]} {
    %c0_i32 = arith.constant 0 : i32
    %0 = arith.cmpi eq, %arg2, %c0_i32 : i32
    %1 = arith.extui %0 : i1 to i32
    %c0_i32_0 = arith.constant 0 : i32
    %2 = arith.cmpi ne, %1, %c0_i32_0 : i32
    scf.if %2 {
      %cst_10 = arith.constant 0.000000e+00 : f32
      %12 = vector.broadcast %cst_10 : f32 to vector<64x8xf32>
      %c0_11 = arith.constant 0 : index
      %c0_12 = arith.constant 0 : index
      %13 = vector.load %arg7[%c0_11, %c0_12] : memref<64x8xf32, #tpu.memory_space<vmem>>, vector<64x8xf32>
      tpu.vector_store %arg7[%c0_11, %c0_12], %12 {strides = array<i32>} : memref<64x8xf32, #tpu.memory_space<vmem>>, vector<64x8xf32>,
    } else {
    }
    %c0 = arith.constant 0 : index
    %c0_1 = arith.constant 0 : index
    %3 = vector.load %arg7[%c0, %c0_1] : memref<64x8xf32, #tpu.memory_space<vmem>>, vector<64x8xf32>
    %c0_2 = arith.constant 0 : index
    %c0_3 = arith.constant 0 : index
    %4 = vector.load %arg3[%c0_2, %c0_3] : memref<64x8xf32, #tpu.memory_space<vmem>>, vector<64x8xf32>
    %c0_4 = arith.constant 0 : index
    %c0_5 = arith.constant 0 : index
    %5 = vector.load %arg4[%c0_4, %c0_5] : memref<8x8xf32, #tpu.memory_space<vmem>>, vector<8x8xf32>
    %cst = arith.constant dense<0.000000e+00> : vector<64x8xf32>
    %6 = tpu.matmul %4, %5, %cst {dimension_numbers = #tpu.dot_dimension_numbers<[1], [0], [0], [1], [0, 0, 1, 1], [], []>} : vector<64x8xf32>, vector<8x8xf32>, vector<64x8xf32> -> vector<64x8xf32>
    %7 = arith.addf %3, %6 : vector<64x8xf32>
    %c0_6 = arith.constant 0 : index
    %c0_7 = arith.constant 0 : index
    %8 = vector.load %arg7[%c0_6, %c0_7] : memref<64x8xf32, #tpu.memory_space<vmem>>, vector<64x8xf32>
    tpu.vector_store %arg7[%c0_6, %c0_7], %7 {strides = array<i32>} : memref<64x8xf32, #tpu.memory_space<vmem>>, vector<64x8xf32>,
    %c0_i32_8 = arith.constant 0 : i32
    %9 = arith.cmpi eq, %arg2, %c0_i32_8 : i32
    %10 = arith.extui %9 : i1 to i32
    %c0_i32_9 = arith.constant 0 : i32
    %11 = arith.cmpi ne, %10, %c0_i32_9 : i32
    scf.if %11 {
      %c0_10 = arith.constant 0 : index
      %c0_11 = arith.constant 0 : index
      %12 = vector.load %arg7[%c0_10, %c0_11] : memref<64x8xf32, #tpu.memory_space<vmem>>, vector<64x8xf32>
      %c0_12 = arith.constant 0 : index
      %c0_13 = arith.constant 0 : index
      %13 = vector.load %arg5[%c0_12, %c0_13] : memref<1x8xf32, #tpu.memory_space<vmem>>, vector<1x8xf32>
      %14 = vector.broadcast %13 : vector<1x8xf32> to vector<64x8xf32>
      %15 = arith.addf %12, %14 : vector<64x8xf32>
      %c0_14 = arith.constant 0 : index
      %c0_15 = arith.constant 0 : index
      %16 = vector.load %arg6[%c0_14, %c0_15] : memref<64x8xf32, #tpu.memory_space<vmem>>, vector<64x8xf32>
      tpu.vector_store %arg6[%c0_14, %c0_15], %15 {strides = array<i32>} : memref<64x8xf32, #tpu.memory_space<vmem>>, vector<64x8xf32>,
    } else {
    }
    return
  }
  func.func @transform_0(%arg0: i32, %arg1: i32, %arg2: i32) -> (i32, i32) {
    %c0_i32 = arith.constant 0 : i32
    return %arg0, %arg2 : i32, i32
  }
  func.func @transform_1(%arg0: i32, %arg1: i32, %arg2: i32) -> (i32, i32) {
    %c0_i32 = arith.constant 0 : i32
    return %arg2, %arg1 : i32, i32
  }
  func.func @transform_2(%arg0: i32, %arg1: i32, %arg2: i32) -> (i32, i32) {
    %c0_i32 = arith.constant 0 : i32
    %c0_i32_0 = arith.constant 0 : i32
    return %c0_i32, %arg1 : i32, i32
  }
  func.func @transform_3(%arg0: i32, %arg1: i32, %arg2: i32) -> (i32, i32) {
    %c0_i32 = arith.constant 0 : i32
    return %arg0, %arg1 : i32, i32
  }
}

module attributes {stable_mosaic.version = 11 : i64} {
  func.func @conv1d_kernel(%arg0: i32, %arg1: memref<1x12x16xf32, #tpu.memory_space<vmem>>, %arg2: memref<5x16x32xf32, #tpu.memory_space<vmem>>, %arg3: memref<1x32xf32, #tpu.memory_space<vmem>>, %arg4: memref<1x8x32xf32, #tpu.memory_space<vmem>>) attributes {dimension_semantics = [#tpu.dimension_semantics<parallel>], iteration_bounds = array<i64: 2>, scalar_prefetch = 0 : i64, scratch_operands = 0 : i64, tpu.core_type = #tpu.core_type<tc>, window_params = [{transform_indices = @transform_0, window_bounds = array<i64: 1, 12, 16>}, {pipeline_mode = #tpu.pipeline_mode<synchronous>, transform_indices = @transform_1, window_bounds = array<i64: 5, 16, 32>}, {pipeline_mode = #tpu.pipeline_mode<synchronous>, transform_indices = @transform_2, window_bounds = array<i64: 1, 32>}, {transform_indices = @transform_3, window_bounds = array<i64: 1, 8, 32>}]} {
    %c0 = arith.constant 0 : index
    %c0_0 = arith.constant 0 : index
    %c0_1 = arith.constant 0 : index
    %0 = vector.load %arg1[%c0, %c0_0, %c0_1] : memref<1x12x16xf32, #tpu.memory_space<vmem>>, vector<1x12x16xf32>
    %1 = vector.shape_cast %0 : vector<1x12x16xf32> to vector<12x16xf32>
    %c0_2 = arith.constant 0 : index
    %c0_3 = arith.constant 0 : index
    %c0_4 = arith.constant 0 : index
    %2 = vector.load %arg2[%c0_2, %c0_3, %c0_4] : memref<5x16x32xf32, #tpu.memory_space<vmem>>, vector<5x16x32xf32>
    %cst = arith.constant 0.000000e+00 : f32
    %3 = vector.broadcast %cst : f32 to vector<8x32xf32>
    %4 = vector.extract_strided_slice %1 {offsets = [0, 0], sizes = [8, 16], strides = [1, 1]} : vector<12x16xf32> to vector<8x16xf32>
    %5 = vector.extract_strided_slice %2 {offsets = [0, 0, 0], sizes = [1, 16, 32], strides = [1, 1, 1]} : vector<5x16x32xf32> to vector<1x16x32xf32>
    %6 = vector.shape_cast %5 : vector<1x16x32xf32> to vector<16x32xf32>
    %cst_5 = arith.constant dense<0.000000e+00> : vector<8x32xf32>
    %7 = tpu.matmul %4, %6, %cst_5 {dimension_numbers = #tpu.dot_dimension_numbers<[1], [0], [0], [1], [0, 0, 1, 1], [], []>} : vector<8x16xf32>, vector<16x32xf32>, vector<8x32xf32> -> vector<8x32xf32>
    %8 = arith.addf %3, %7 : vector<8x32xf32>
    %9 = vector.extract_strided_slice %1 {offsets = [1, 0], sizes = [8, 16], strides = [1, 1]} : vector<12x16xf32> to vector<8x16xf32>
    %10 = vector.extract_strided_slice %2 {offsets = [1, 0, 0], sizes = [1, 16, 32], strides = [1, 1, 1]} : vector<5x16x32xf32> to vector<1x16x32xf32>
    %11 = vector.shape_cast %10 : vector<1x16x32xf32> to vector<16x32xf32>
    %cst_6 = arith.constant dense<0.000000e+00> : vector<8x32xf32>
    %12 = tpu.matmul %9, %11, %cst_6 {dimension_numbers = #tpu.dot_dimension_numbers<[1], [0], [0], [1], [0, 0, 1, 1], [], []>} : vector<8x16xf32>, vector<16x32xf32>, vector<8x32xf32> -> vector<8x32xf32>
    %13 = arith.addf %8, %12 : vector<8x32xf32>
    %14 = vector.extract_strided_slice %1 {offsets = [2, 0], sizes = [8, 16], strides = [1, 1]} : vector<12x16xf32> to vector<8x16xf32>
    %15 = vector.extract_strided_slice %2 {offsets = [2, 0, 0], sizes = [1, 16, 32], strides = [1, 1, 1]} : vector<5x16x32xf32> to vector<1x16x32xf32>
    %16 = vector.shape_cast %15 : vector<1x16x32xf32> to vector<16x32xf32>
    %cst_7 = arith.constant dense<0.000000e+00> : vector<8x32xf32>
    %17 = tpu.matmul %14, %16, %cst_7 {dimension_numbers = #tpu.dot_dimension_numbers<[1], [0], [0], [1], [0, 0, 1, 1], [], []>} : vector<8x16xf32>, vector<16x32xf32>, vector<8x32xf32> -> vector<8x32xf32>
    %18 = arith.addf %13, %17 : vector<8x32xf32>
    %19 = vector.extract_strided_slice %1 {offsets = [3, 0], sizes = [8, 16], strides = [1, 1]} : vector<12x16xf32> to vector<8x16xf32>
    %20 = vector.extract_strided_slice %2 {offsets = [3, 0, 0], sizes = [1, 16, 32], strides = [1, 1, 1]} : vector<5x16x32xf32> to vector<1x16x32xf32>
    %21 = vector.shape_cast %20 : vector<1x16x32xf32> to vector<16x32xf32>
    %cst_8 = arith.constant dense<0.000000e+00> : vector<8x32xf32>
    %22 = tpu.matmul %19, %21, %cst_8 {dimension_numbers = #tpu.dot_dimension_numbers<[1], [0], [0], [1], [0, 0, 1, 1], [], []>} : vector<8x16xf32>, vector<16x32xf32>, vector<8x32xf32> -> vector<8x32xf32>
    %23 = arith.addf %18, %22 : vector<8x32xf32>
    %24 = vector.extract_strided_slice %1 {offsets = [4, 0], sizes = [8, 16], strides = [1, 1]} : vector<12x16xf32> to vector<8x16xf32>
    %25 = vector.extract_strided_slice %2 {offsets = [4, 0, 0], sizes = [1, 16, 32], strides = [1, 1, 1]} : vector<5x16x32xf32> to vector<1x16x32xf32>
    %26 = vector.shape_cast %25 : vector<1x16x32xf32> to vector<16x32xf32>
    %cst_9 = arith.constant dense<0.000000e+00> : vector<8x32xf32>
    %27 = tpu.matmul %24, %26, %cst_9 {dimension_numbers = #tpu.dot_dimension_numbers<[1], [0], [0], [1], [0, 0, 1, 1], [], []>} : vector<8x16xf32>, vector<16x32xf32>, vector<8x32xf32> -> vector<8x32xf32>
    %28 = arith.addf %23, %27 : vector<8x32xf32>
    %c0_10 = arith.constant 0 : index
    %c0_11 = arith.constant 0 : index
    %29 = vector.load %arg3[%c0_10, %c0_11] : memref<1x32xf32, #tpu.memory_space<vmem>>, vector<1x32xf32>
    %30 = vector.broadcast %29 : vector<1x32xf32> to vector<8x32xf32>
    %31 = arith.addf %28, %30 : vector<8x32xf32>
    %cst_12 = arith.constant 0.000000e+00 : f32
    %32 = vector.broadcast %cst_12 : f32 to vector<8x32xf32>
    %33 = arith.maximumf %31, %32 : vector<8x32xf32>
    %c0_13 = arith.constant 0 : index
    %c0_14 = arith.constant 0 : index
    %c0_15 = arith.constant 0 : index
    %34 = vector.load %arg4[%c0_13, %c0_14, %c0_15] : memref<1x8x32xf32, #tpu.memory_space<vmem>>, vector<1x8x32xf32>
    %35 = vector.shape_cast %34 : vector<1x8x32xf32> to vector<8x32xf32>
    %36 = vector.shape_cast %33 : vector<8x32xf32> to vector<1x8x32xf32>
    tpu.vector_store %arg4[%c0_13, %c0_14, %c0_15], %36 {strides = array<i32>} : memref<1x8x32xf32, #tpu.memory_space<vmem>>, vector<1x8x32xf32>,
    return
  }
  func.func @transform_0(%arg0: i32) -> (i32, i32, i32) {
    %c0_i32 = arith.constant 0 : i32
    %c0_i32_0 = arith.constant 0 : i32
    %c0_i32_1 = arith.constant 0 : i32
    return %arg0, %c0_i32, %c0_i32_0 : i32, i32, i32
  }
  func.func @transform_1(%arg0: i32) -> (i32, i32, i32) {
    %c0_i32 = arith.constant 0 : i32
    %c0_i32_0 = arith.constant 0 : i32
    %c0_i32_1 = arith.constant 0 : i32
    %c0_i32_2 = arith.constant 0 : i32
    return %c0_i32, %c0_i32_0, %c0_i32_1 : i32, i32, i32
  }
  func.func @transform_2(%arg0: i32) -> (i32, i32) {
    %c0_i32 = arith.constant 0 : i32
    %c0_i32_0 = arith.constant 0 : i32
    %c0_i32_1 = arith.constant 0 : i32
    return %c0_i32, %c0_i32_0 : i32, i32
  }
  func.func @transform_3(%arg0: i32) -> (i32, i32, i32) {
    %c0_i32 = arith.constant 0 : i32
    %c0_i32_0 = arith.constant 0 : i32
    %c0_i32_1 = arith.constant 0 : i32
    return %arg0, %c0_i32, %c0_i32_0 : i32, i32, i32
  }
}

module attributes {stable_mosaic.version = 11 : i64} {
  func.func @conv1d_kernel(%arg0: i32, %arg1: memref<1x12x32xf32, #tpu.memory_space<vmem>>, %arg2: memref<5x32x32xf32, #tpu.memory_space<vmem>>, %arg3: memref<1x32xf32, #tpu.memory_space<vmem>>, %arg4: memref<1x8x32xf32, #tpu.memory_space<vmem>>) attributes {dimension_semantics = [#tpu.dimension_semantics<parallel>], iteration_bounds = array<i64: 2>, scalar_prefetch = 0 : i64, scratch_operands = 0 : i64, tpu.core_type = #tpu.core_type<tc>, window_params = [{transform_indices = @transform_0, window_bounds = array<i64: 1, 12, 32>}, {pipeline_mode = #tpu.pipeline_mode<synchronous>, transform_indices = @transform_1, window_bounds = array<i64: 5, 32, 32>}, {pipeline_mode = #tpu.pipeline_mode<synchronous>, transform_indices = @transform_2, window_bounds = array<i64: 1, 32>}, {transform_indices = @transform_3, window_bounds = array<i64: 1, 8, 32>}]} {
    %c0 = arith.constant 0 : index
    %c0_0 = arith.constant 0 : index
    %c0_1 = arith.constant 0 : index
    %0 = vector.load %arg1[%c0, %c0_0, %c0_1] : memref<1x12x32xf32, #tpu.memory_space<vmem>>, vector<1x12x32xf32>
    %1 = vector.shape_cast %0 : vector<1x12x32xf32> to vector<12x32xf32>
    %c0_2 = arith.constant 0 : index
    %c0_3 = arith.constant 0 : index
    %c0_4 = arith.constant 0 : index
    %2 = vector.load %arg2[%c0_2, %c0_3, %c0_4] : memref<5x32x32xf32, #tpu.memory_space<vmem>>, vector<5x32x32xf32>
    %cst = arith.constant 0.000000e+00 : f32
    %3 = vector.broadcast %cst : f32 to vector<8x32xf32>
    %4 = vector.extract_strided_slice %1 {offsets = [0, 0], sizes = [8, 32], strides = [1, 1]} : vector<12x32xf32> to vector<8x32xf32>
    %5 = vector.extract_strided_slice %2 {offsets = [0, 0, 0], sizes = [1, 32, 32], strides = [1, 1, 1]} : vector<5x32x32xf32> to vector<1x32x32xf32>
    %6 = vector.shape_cast %5 : vector<1x32x32xf32> to vector<32x32xf32>
    %cst_5 = arith.constant dense<0.000000e+00> : vector<8x32xf32>
    %7 = tpu.matmul %4, %6, %cst_5 {dimension_numbers = #tpu.dot_dimension_numbers<[1], [0], [0], [1], [0, 0, 1, 1], [], []>} : vector<8x32xf32>, vector<32x32xf32>, vector<8x32xf32> -> vector<8x32xf32>
    %8 = arith.addf %3, %7 : vector<8x32xf32>
    %9 = vector.extract_strided_slice %1 {offsets = [1, 0], sizes = [8, 32], strides = [1, 1]} : vector<12x32xf32> to vector<8x32xf32>
    %10 = vector.extract_strided_slice %2 {offsets = [1, 0, 0], sizes = [1, 32, 32], strides = [1, 1, 1]} : vector<5x32x32xf32> to vector<1x32x32xf32>
    %11 = vector.shape_cast %10 : vector<1x32x32xf32> to vector<32x32xf32>
    %cst_6 = arith.constant dense<0.000000e+00> : vector<8x32xf32>
    %12 = tpu.matmul %9, %11, %cst_6 {dimension_numbers = #tpu.dot_dimension_numbers<[1], [0], [0], [1], [0, 0, 1, 1], [], []>} : vector<8x32xf32>, vector<32x32xf32>, vector<8x32xf32> -> vector<8x32xf32>
    %13 = arith.addf %8, %12 : vector<8x32xf32>
    %14 = vector.extract_strided_slice %1 {offsets = [2, 0], sizes = [8, 32], strides = [1, 1]} : vector<12x32xf32> to vector<8x32xf32>
    %15 = vector.extract_strided_slice %2 {offsets = [2, 0, 0], sizes = [1, 32, 32], strides = [1, 1, 1]} : vector<5x32x32xf32> to vector<1x32x32xf32>
    %16 = vector.shape_cast %15 : vector<1x32x32xf32> to vector<32x32xf32>
    %cst_7 = arith.constant dense<0.000000e+00> : vector<8x32xf32>
    %17 = tpu.matmul %14, %16, %cst_7 {dimension_numbers = #tpu.dot_dimension_numbers<[1], [0], [0], [1], [0, 0, 1, 1], [], []>} : vector<8x32xf32>, vector<32x32xf32>, vector<8x32xf32> -> vector<8x32xf32>
    %18 = arith.addf %13, %17 : vector<8x32xf32>
    %19 = vector.extract_strided_slice %1 {offsets = [3, 0], sizes = [8, 32], strides = [1, 1]} : vector<12x32xf32> to vector<8x32xf32>
    %20 = vector.extract_strided_slice %2 {offsets = [3, 0, 0], sizes = [1, 32, 32], strides = [1, 1, 1]} : vector<5x32x32xf32> to vector<1x32x32xf32>
    %21 = vector.shape_cast %20 : vector<1x32x32xf32> to vector<32x32xf32>
    %cst_8 = arith.constant dense<0.000000e+00> : vector<8x32xf32>
    %22 = tpu.matmul %19, %21, %cst_8 {dimension_numbers = #tpu.dot_dimension_numbers<[1], [0], [0], [1], [0, 0, 1, 1], [], []>} : vector<8x32xf32>, vector<32x32xf32>, vector<8x32xf32> -> vector<8x32xf32>
    %23 = arith.addf %18, %22 : vector<8x32xf32>
    %24 = vector.extract_strided_slice %1 {offsets = [4, 0], sizes = [8, 32], strides = [1, 1]} : vector<12x32xf32> to vector<8x32xf32>
    %25 = vector.extract_strided_slice %2 {offsets = [4, 0, 0], sizes = [1, 32, 32], strides = [1, 1, 1]} : vector<5x32x32xf32> to vector<1x32x32xf32>
    %26 = vector.shape_cast %25 : vector<1x32x32xf32> to vector<32x32xf32>
    %cst_9 = arith.constant dense<0.000000e+00> : vector<8x32xf32>
    %27 = tpu.matmul %24, %26, %cst_9 {dimension_numbers = #tpu.dot_dimension_numbers<[1], [0], [0], [1], [0, 0, 1, 1], [], []>} : vector<8x32xf32>, vector<32x32xf32>, vector<8x32xf32> -> vector<8x32xf32>
    %28 = arith.addf %23, %27 : vector<8x32xf32>
    %c0_10 = arith.constant 0 : index
    %c0_11 = arith.constant 0 : index
    %29 = vector.load %arg3[%c0_10, %c0_11] : memref<1x32xf32, #tpu.memory_space<vmem>>, vector<1x32xf32>
    %30 = vector.broadcast %29 : vector<1x32xf32> to vector<8x32xf32>
    %31 = arith.addf %28, %30 : vector<8x32xf32>
    %cst_12 = arith.constant 0.000000e+00 : f32
    %32 = vector.broadcast %cst_12 : f32 to vector<8x32xf32>
    %33 = arith.maximumf %31, %32 : vector<8x32xf32>
    %c0_13 = arith.constant 0 : index
    %c0_14 = arith.constant 0 : index
    %c0_15 = arith.constant 0 : index
    %34 = vector.load %arg4[%c0_13, %c0_14, %c0_15] : memref<1x8x32xf32, #tpu.memory_space<vmem>>, vector<1x8x32xf32>
    %35 = vector.shape_cast %34 : vector<1x8x32xf32> to vector<8x32xf32>
    %36 = vector.shape_cast %33 : vector<8x32xf32> to vector<1x8x32xf32>
    tpu.vector_store %arg4[%c0_13, %c0_14, %c0_15], %36 {strides = array<i32>} : memref<1x8x32xf32, #tpu.memory_space<vmem>>, vector<1x8x32xf32>,
    return
  }
  func.func @transform_0(%arg0: i32) -> (i32, i32, i32) {
    %c0_i32 = arith.constant 0 : i32
    %c0_i32_0 = arith.constant 0 : i32
    %c0_i32_1 = arith.constant 0 : i32
    return %arg0, %c0_i32, %c0_i32_0 : i32, i32, i32
  }
  func.func @transform_1(%arg0: i32) -> (i32, i32, i32) {
    %c0_i32 = arith.constant 0 : i32
    %c0_i32_0 = arith.constant 0 : i32
    %c0_i32_1 = arith.constant 0 : i32
    %c0_i32_2 = arith.constant 0 : i32
    return %c0_i32, %c0_i32_0, %c0_i32_1 : i32, i32, i32
  }
  func.func @transform_2(%arg0: i32) -> (i32, i32) {
    %c0_i32 = arith.constant 0 : i32
    %c0_i32_0 = arith.constant 0 : i32
    %c0_i32_1 = arith.constant 0 : i32
    return %c0_i32, %c0_i32_0 : i32, i32
  }
  func.func @transform_3(%arg0: i32) -> (i32, i32, i32) {
    %c0_i32 = arith.constant 0 : i32
    %c0_i32_0 = arith.constant 0 : i32
    %c0_i32_1 = arith.constant 0 : i32
    return %arg0, %c0_i32, %c0_i32_0 : i32, i32, i32
  }
}

module attributes {stable_mosaic.version = 11 : i64} {
  func.func @matmul_kernel(%arg0: i32, %arg1: i32, %arg2: i32, %arg3: memref<16x32xf32, #tpu.memory_space<vmem>>, %arg4: memref<32x32xf32, #tpu.memory_space<vmem>>, %arg5: memref<1x32xf32, #tpu.memory_space<vmem>>, %arg6: memref<16x32xf32, #tpu.memory_space<vmem>>, %arg7: memref<16x32xf32, #tpu.memory_space<vmem>>) attributes {dimension_semantics = [#tpu.dimension_semantics<parallel>, #tpu.dimension_semantics<parallel>, #tpu.dimension_semantics<arbitrary>], iteration_bounds = array<i64: 1, 1, 1>, scalar_prefetch = 0 : i64, scratch_operands = 1 : i64, tpu.core_type = #tpu.core_type<tc>, window_params = [{transform_indices = @transform_0, window_bounds = array<i64: 16, 32>}, {transform_indices = @transform_1, window_bounds = array<i64: 32, 32>}, {transform_indices = @transform_2, window_bounds = array<i64: 1, 32>}, {transform_indices = @transform_3, window_bounds = array<i64: 16, 32>}]} {
    %c0_i32 = arith.constant 0 : i32
    %0 = arith.cmpi eq, %arg2, %c0_i32 : i32
    %1 = arith.extui %0 : i1 to i32
    %c0_i32_0 = arith.constant 0 : i32
    %2 = arith.cmpi ne, %1, %c0_i32_0 : i32
    scf.if %2 {
      %cst_10 = arith.constant 0.000000e+00 : f32
      %12 = vector.broadcast %cst_10 : f32 to vector<16x32xf32>
      %c0_11 = arith.constant 0 : index
      %c0_12 = arith.constant 0 : index
      %13 = vector.load %arg7[%c0_11, %c0_12] : memref<16x32xf32, #tpu.memory_space<vmem>>, vector<16x32xf32>
      tpu.vector_store %arg7[%c0_11, %c0_12], %12 {strides = array<i32>} : memref<16x32xf32, #tpu.memory_space<vmem>>, vector<16x32xf32>,
    } else {
    }
    %c0 = arith.constant 0 : index
    %c0_1 = arith.constant 0 : index
    %3 = vector.load %arg7[%c0, %c0_1] : memref<16x32xf32, #tpu.memory_space<vmem>>, vector<16x32xf32>
    %c0_2 = arith.constant 0 : index
    %c0_3 = arith.constant 0 : index
    %4 = vector.load %arg3[%c0_2, %c0_3] : memref<16x32xf32, #tpu.memory_space<vmem>>, vector<16x32xf32>
    %c0_4 = arith.constant 0 : index
    %c0_5 = arith.constant 0 : index
    %5 = vector.load %arg4[%c0_4, %c0_5] : memref<32x32xf32, #tpu.memory_space<vmem>>, vector<32x32xf32>
    %cst = arith.constant dense<0.000000e+00> : vector<16x32xf32>
    %6 = tpu.matmul %4, %5, %cst {dimension_numbers = #tpu.dot_dimension_numbers<[1], [0], [0], [1], [0, 0, 1, 1], [], []>} : vector<16x32xf32>, vector<32x32xf32>, vector<16x32xf32> -> vector<16x32xf32>
    %7 = arith.addf %3, %6 : vector<16x32xf32>
    %c0_6 = arith.constant 0 : index
    %c0_7 = arith.constant 0 : index
    %8 = vector.load %arg7[%c0_6, %c0_7] : memref<16x32xf32, #tpu.memory_space<vmem>>, vector<16x32xf32>
    tpu.vector_store %arg7[%c0_6, %c0_7], %7 {strides = array<i32>} : memref<16x32xf32, #tpu.memory_space<vmem>>, vector<16x32xf32>,
    %c0_i32_8 = arith.constant 0 : i32
    %9 = arith.cmpi eq, %arg2, %c0_i32_8 : i32
    %10 = arith.extui %9 : i1 to i32
    %c0_i32_9 = arith.constant 0 : i32
    %11 = arith.cmpi ne, %10, %c0_i32_9 : i32
    scf.if %11 {
      %c0_10 = arith.constant 0 : index
      %c0_11 = arith.constant 0 : index
      %12 = vector.load %arg7[%c0_10, %c0_11] : memref<16x32xf32, #tpu.memory_space<vmem>>, vector<16x32xf32>
      %c0_12 = arith.constant 0 : index
      %c0_13 = arith.constant 0 : index
      %13 = vector.load %arg5[%c0_12, %c0_13] : memref<1x32xf32, #tpu.memory_space<vmem>>, vector<1x32xf32>
      %14 = vector.broadcast %13 : vector<1x32xf32> to vector<16x32xf32>
      %15 = arith.addf %12, %14 : vector<16x32xf32>
      %c0_14 = arith.constant 0 : index
      %c0_15 = arith.constant 0 : index
      %16 = vector.load %arg6[%c0_14, %c0_15] : memref<16x32xf32, #tpu.memory_space<vmem>>, vector<16x32xf32>
      tpu.vector_store %arg6[%c0_14, %c0_15], %15 {strides = array<i32>} : memref<16x32xf32, #tpu.memory_space<vmem>>, vector<16x32xf32>,
    } else {
    }
    return
  }
  func.func @transform_0(%arg0: i32, %arg1: i32, %arg2: i32) -> (i32, i32) {
    %c0_i32 = arith.constant 0 : i32
    return %arg0, %arg2 : i32, i32
  }
  func.func @transform_1(%arg0: i32, %arg1: i32, %arg2: i32) -> (i32, i32) {
    %c0_i32 = arith.constant 0 : i32
    return %arg2, %arg1 : i32, i32
  }
  func.func @transform_2(%arg0: i32, %arg1: i32, %arg2: i32) -> (i32, i32) {
    %c0_i32 = arith.constant 0 : i32
    %c0_i32_0 = arith.constant 0 : i32
    return %c0_i32, %arg1 : i32, i32
  }
  func.func @transform_3(%arg0: i32, %arg1: i32, %arg2: i32) -> (i32, i32) {
    %c0_i32 = arith.constant 0 : i32
    return %arg0, %arg1 : i32, i32
  }
}

module attributes {stable_mosaic.version = 11 : i64} {
  func.func @matmul_kernel(%arg0: i32, %arg1: i32, %arg2: i32, %arg3: memref<16x32xf32, #tpu.memory_space<vmem>>, %arg4: memref<32x64xf32, #tpu.memory_space<vmem>>, %arg5: memref<1x64xf32, #tpu.memory_space<vmem>>, %arg6: memref<16x64xf32, #tpu.memory_space<vmem>>, %arg7: memref<16x64xf32, #tpu.memory_space<vmem>>) attributes {dimension_semantics = [#tpu.dimension_semantics<parallel>, #tpu.dimension_semantics<parallel>, #tpu.dimension_semantics<arbitrary>], iteration_bounds = array<i64: 1, 1, 1>, scalar_prefetch = 0 : i64, scratch_operands = 1 : i64, tpu.core_type = #tpu.core_type<tc>, window_params = [{transform_indices = @transform_0, window_bounds = array<i64: 16, 32>}, {transform_indices = @transform_1, window_bounds = array<i64: 32, 64>}, {transform_indices = @transform_2, window_bounds = array<i64: 1, 64>}, {transform_indices = @transform_3, window_bounds = array<i64: 16, 64>}]} {
    %c0_i32 = arith.constant 0 : i32
    %0 = arith.cmpi eq, %arg2, %c0_i32 : i32
    %1 = arith.extui %0 : i1 to i32
    %c0_i32_0 = arith.constant 0 : i32
    %2 = arith.cmpi ne, %1, %c0_i32_0 : i32
    scf.if %2 {
      %cst_10 = arith.constant 0.000000e+00 : f32
      %12 = vector.broadcast %cst_10 : f32 to vector<16x64xf32>
      %c0_11 = arith.constant 0 : index
      %c0_12 = arith.constant 0 : index
      %13 = vector.load %arg7[%c0_11, %c0_12] : memref<16x64xf32, #tpu.memory_space<vmem>>, vector<16x64xf32>
      tpu.vector_store %arg7[%c0_11, %c0_12], %12 {strides = array<i32>} : memref<16x64xf32, #tpu.memory_space<vmem>>, vector<16x64xf32>,
    } else {
    }
    %c0 = arith.constant 0 : index
    %c0_1 = arith.constant 0 : index
    %3 = vector.load %arg7[%c0, %c0_1] : memref<16x64xf32, #tpu.memory_space<vmem>>, vector<16x64xf32>
    %c0_2 = arith.constant 0 : index
    %c0_3 = arith.constant 0 : index
    %4 = vector.load %arg3[%c0_2, %c0_3] : memref<16x32xf32, #tpu.memory_space<vmem>>, vector<16x32xf32>
    %c0_4 = arith.constant 0 : index
    %c0_5 = arith.constant 0 : index
    %5 = vector.load %arg4[%c0_4, %c0_5] : memref<32x64xf32, #tpu.memory_space<vmem>>, vector<32x64xf32>
    %cst = arith.constant dense<0.000000e+00> : vector<16x64xf32>
    %6 = tpu.matmul %4, %5, %cst {dimension_numbers = #tpu.dot_dimension_numbers<[1], [0], [0], [1], [0, 0, 1, 1], [], []>} : vector<16x32xf32>, vector<32x64xf32>, vector<16x64xf32> -> vector<16x64xf32>
    %7 = arith.addf %3, %6 : vector<16x64xf32>
    %c0_6 = arith.constant 0 : index
    %c0_7 = arith.constant 0 : index
    %8 = vector.load %arg7[%c0_6, %c0_7] : memref<16x64xf32, #tpu.memory_space<vmem>>, vector<16x64xf32>
    tpu.vector_store %arg7[%c0_6, %c0_7], %7 {strides = array<i32>} : memref<16x64xf32, #tpu.memory_space<vmem>>, vector<16x64xf32>,
    %c0_i32_8 = arith.constant 0 : i32
    %9 = arith.cmpi eq, %arg2, %c0_i32_8 : i32
    %10 = arith.extui %9 : i1 to i32
    %c0_i32_9 = arith.constant 0 : i32
    %11 = arith.cmpi ne, %10, %c0_i32_9 : i32
    scf.if %11 {
      %c0_10 = arith.constant 0 : index
      %c0_11 = arith.constant 0 : index
      %12 = vector.load %arg7[%c0_10, %c0_11] : memref<16x64xf32, #tpu.memory_space<vmem>>, vector<16x64xf32>
      %c0_12 = arith.constant 0 : index
      %c0_13 = arith.constant 0 : index
      %13 = vector.load %arg5[%c0_12, %c0_13] : memref<1x64xf32, #tpu.memory_space<vmem>>, vector<1x64xf32>
      %14 = vector.broadcast %13 : vector<1x64xf32> to vector<16x64xf32>
      %15 = arith.addf %12, %14 : vector<16x64xf32>
      %c0_14 = arith.constant 0 : index
      %c0_15 = arith.constant 0 : index
      %16 = vector.load %arg6[%c0_14, %c0_15] : memref<16x64xf32, #tpu.memory_space<vmem>>, vector<16x64xf32>
      tpu.vector_store %arg6[%c0_14, %c0_15], %15 {strides = array<i32>} : memref<16x64xf32, #tpu.memory_space<vmem>>, vector<16x64xf32>,
    } else {
    }
    return
  }
  func.func @transform_0(%arg0: i32, %arg1: i32, %arg2: i32) -> (i32, i32) {
    %c0_i32 = arith.constant 0 : i32
    return %arg0, %arg2 : i32, i32
  }
  func.func @transform_1(%arg0: i32, %arg1: i32, %arg2: i32) -> (i32, i32) {
    %c0_i32 = arith.constant 0 : i32
    return %arg2, %arg1 : i32, i32
  }
  func.func @transform_2(%arg0: i32, %arg1: i32, %arg2: i32) -> (i32, i32) {
    %c0_i32 = arith.constant 0 : i32
    %c0_i32_0 = arith.constant 0 : i32
    return %c0_i32, %arg1 : i32, i32
  }
  func.func @transform_3(%arg0: i32, %arg1: i32, %arg2: i32) -> (i32, i32) {
    %c0_i32 = arith.constant 0 : i32
    return %arg0, %arg1 : i32, i32
  }
}

module attributes {stable_mosaic.version = 11 : i64} {
  func.func @matmul_kernel(%arg0: i32, %arg1: i32, %arg2: i32, %arg3: memref<16x64xf32, #tpu.memory_space<vmem>>, %arg4: memref<64x32xf32, #tpu.memory_space<vmem>>, %arg5: memref<1x32xf32, #tpu.memory_space<vmem>>, %arg6: memref<16x32xf32, #tpu.memory_space<vmem>>, %arg7: memref<16x32xf32, #tpu.memory_space<vmem>>) attributes {dimension_semantics = [#tpu.dimension_semantics<parallel>, #tpu.dimension_semantics<parallel>, #tpu.dimension_semantics<arbitrary>], iteration_bounds = array<i64: 1, 1, 1>, scalar_prefetch = 0 : i64, scratch_operands = 1 : i64, tpu.core_type = #tpu.core_type<tc>, window_params = [{transform_indices = @transform_0, window_bounds = array<i64: 16, 64>}, {transform_indices = @transform_1, window_bounds = array<i64: 64, 32>}, {transform_indices = @transform_2, window_bounds = array<i64: 1, 32>}, {transform_indices = @transform_3, window_bounds = array<i64: 16, 32>}]} {
    %c0_i32 = arith.constant 0 : i32
    %0 = arith.cmpi eq, %arg2, %c0_i32 : i32
    %1 = arith.extui %0 : i1 to i32
    %c0_i32_0 = arith.constant 0 : i32
    %2 = arith.cmpi ne, %1, %c0_i32_0 : i32
    scf.if %2 {
      %cst_10 = arith.constant 0.000000e+00 : f32
      %12 = vector.broadcast %cst_10 : f32 to vector<16x32xf32>
      %c0_11 = arith.constant 0 : index
      %c0_12 = arith.constant 0 : index
      %13 = vector.load %arg7[%c0_11, %c0_12] : memref<16x32xf32, #tpu.memory_space<vmem>>, vector<16x32xf32>
      tpu.vector_store %arg7[%c0_11, %c0_12], %12 {strides = array<i32>} : memref<16x32xf32, #tpu.memory_space<vmem>>, vector<16x32xf32>,
    } else {
    }
    %c0 = arith.constant 0 : index
    %c0_1 = arith.constant 0 : index
    %3 = vector.load %arg7[%c0, %c0_1] : memref<16x32xf32, #tpu.memory_space<vmem>>, vector<16x32xf32>
    %c0_2 = arith.constant 0 : index
    %c0_3 = arith.constant 0 : index
    %4 = vector.load %arg3[%c0_2, %c0_3] : memref<16x64xf32, #tpu.memory_space<vmem>>, vector<16x64xf32>
    %c0_4 = arith.constant 0 : index
    %c0_5 = arith.constant 0 : index
    %5 = vector.load %arg4[%c0_4, %c0_5] : memref<64x32xf32, #tpu.memory_space<vmem>>, vector<64x32xf32>
    %cst = arith.constant dense<0.000000e+00> : vector<16x32xf32>
    %6 = tpu.matmul %4, %5, %cst {dimension_numbers = #tpu.dot_dimension_numbers<[1], [0], [0], [1], [0, 0, 1, 1], [], []>} : vector<16x64xf32>, vector<64x32xf32>, vector<16x32xf32> -> vector<16x32xf32>
    %7 = arith.addf %3, %6 : vector<16x32xf32>
    %c0_6 = arith.constant 0 : index
    %c0_7 = arith.constant 0 : index
    %8 = vector.load %arg7[%c0_6, %c0_7] : memref<16x32xf32, #tpu.memory_space<vmem>>, vector<16x32xf32>
    tpu.vector_store %arg7[%c0_6, %c0_7], %7 {strides = array<i32>} : memref<16x32xf32, #tpu.memory_space<vmem>>, vector<16x32xf32>,
    %c0_i32_8 = arith.constant 0 : i32
    %9 = arith.cmpi eq, %arg2, %c0_i32_8 : i32
    %10 = arith.extui %9 : i1 to i32
    %c0_i32_9 = arith.constant 0 : i32
    %11 = arith.cmpi ne, %10, %c0_i32_9 : i32
    scf.if %11 {
      %c0_10 = arith.constant 0 : index
      %c0_11 = arith.constant 0 : index
      %12 = vector.load %arg7[%c0_10, %c0_11] : memref<16x32xf32, #tpu.memory_space<vmem>>, vector<16x32xf32>
      %c0_12 = arith.constant 0 : index
      %c0_13 = arith.constant 0 : index
      %13 = vector.load %arg5[%c0_12, %c0_13] : memref<1x32xf32, #tpu.memory_space<vmem>>, vector<1x32xf32>
      %14 = vector.broadcast %13 : vector<1x32xf32> to vector<16x32xf32>
      %15 = arith.addf %12, %14 : vector<16x32xf32>
      %c0_14 = arith.constant 0 : index
      %c0_15 = arith.constant 0 : index
      %16 = vector.load %arg6[%c0_14, %c0_15] : memref<16x32xf32, #tpu.memory_space<vmem>>, vector<16x32xf32>
      tpu.vector_store %arg6[%c0_14, %c0_15], %15 {strides = array<i32>} : memref<16x32xf32, #tpu.memory_space<vmem>>, vector<16x32xf32>,
    } else {
    }
    return
  }
  func.func @transform_0(%arg0: i32, %arg1: i32, %arg2: i32) -> (i32, i32) {
    %c0_i32 = arith.constant 0 : i32
    return %arg0, %arg2 : i32, i32
  }
  func.func @transform_1(%arg0: i32, %arg1: i32, %arg2: i32) -> (i32, i32) {
    %c0_i32 = arith.constant 0 : i32
    return %arg2, %arg1 : i32, i32
  }
  func.func @transform_2(%arg0: i32, %arg1: i32, %arg2: i32) -> (i32, i32) {
    %c0_i32 = arith.constant 0 : i32
    %c0_i32_0 = arith.constant 0 : i32
    return %c0_i32, %arg1 : i32, i32
  }
  func.func @transform_3(%arg0: i32, %arg1: i32, %arg2: i32) -> (i32, i32) {
    %c0_i32 = arith.constant 0 : i32
    return %arg0, %arg1 : i32, i32
  }
}

module attributes {stable_mosaic.version = 11 : i64} {
  func.func @matmul_kernel(%arg0: i32, %arg1: i32, %arg2: i32, %arg3: memref<64x8xf32, #tpu.memory_space<vmem>>, %arg4: memref<8x16xf32, #tpu.memory_space<vmem>>, %arg5: memref<1x16xf32, #tpu.memory_space<vmem>>, %arg6: memref<64x16xf32, #tpu.memory_space<vmem>>, %arg7: memref<64x16xf32, #tpu.memory_space<vmem>>) attributes {dimension_semantics = [#tpu.dimension_semantics<parallel>, #tpu.dimension_semantics<parallel>, #tpu.dimension_semantics<arbitrary>], iteration_bounds = array<i64: 1, 1, 1>, scalar_prefetch = 0 : i64, scratch_operands = 1 : i64, tpu.core_type = #tpu.core_type<tc>, window_params = [{transform_indices = @transform_0, window_bounds = array<i64: 64, 8>}, {transform_indices = @transform_1, window_bounds = array<i64: 8, 16>}, {transform_indices = @transform_2, window_bounds = array<i64: 1, 16>}, {transform_indices = @transform_3, window_bounds = array<i64: 64, 16>}]} {
    %c0_i32 = arith.constant 0 : i32
    %0 = arith.cmpi eq, %arg2, %c0_i32 : i32
    %1 = arith.extui %0 : i1 to i32
    %c0_i32_0 = arith.constant 0 : i32
    %2 = arith.cmpi ne, %1, %c0_i32_0 : i32
    scf.if %2 {
      %cst_10 = arith.constant 0.000000e+00 : f32
      %12 = vector.broadcast %cst_10 : f32 to vector<64x16xf32>
      %c0_11 = arith.constant 0 : index
      %c0_12 = arith.constant 0 : index
      %13 = vector.load %arg7[%c0_11, %c0_12] : memref<64x16xf32, #tpu.memory_space<vmem>>, vector<64x16xf32>
      tpu.vector_store %arg7[%c0_11, %c0_12], %12 {strides = array<i32>} : memref<64x16xf32, #tpu.memory_space<vmem>>, vector<64x16xf32>,
    } else {
    }
    %c0 = arith.constant 0 : index
    %c0_1 = arith.constant 0 : index
    %3 = vector.load %arg7[%c0, %c0_1] : memref<64x16xf32, #tpu.memory_space<vmem>>, vector<64x16xf32>
    %c0_2 = arith.constant 0 : index
    %c0_3 = arith.constant 0 : index
    %4 = vector.load %arg3[%c0_2, %c0_3] : memref<64x8xf32, #tpu.memory_space<vmem>>, vector<64x8xf32>
    %c0_4 = arith.constant 0 : index
    %c0_5 = arith.constant 0 : index
    %5 = vector.load %arg4[%c0_4, %c0_5] : memref<8x16xf32, #tpu.memory_space<vmem>>, vector<8x16xf32>
    %cst = arith.constant dense<0.000000e+00> : vector<64x16xf32>
    %6 = tpu.matmul %4, %5, %cst {dimension_numbers = #tpu.dot_dimension_numbers<[1], [0], [0], [1], [0, 0, 1, 1], [], []>} : vector<64x8xf32>, vector<8x16xf32>, vector<64x16xf32> -> vector<64x16xf32>
    %7 = arith.addf %3, %6 : vector<64x16xf32>
    %c0_6 = arith.constant 0 : index
    %c0_7 = arith.constant 0 : index
    %8 = vector.load %arg7[%c0_6, %c0_7] : memref<64x16xf32, #tpu.memory_space<vmem>>, vector<64x16xf32>
    tpu.vector_store %arg7[%c0_6, %c0_7], %7 {strides = array<i32>} : memref<64x16xf32, #tpu.memory_space<vmem>>, vector<64x16xf32>,
    %c0_i32_8 = arith.constant 0 : i32
    %9 = arith.cmpi eq, %arg2, %c0_i32_8 : i32
    %10 = arith.extui %9 : i1 to i32
    %c0_i32_9 = arith.constant 0 : i32
    %11 = arith.cmpi ne, %10, %c0_i32_9 : i32
    scf.if %11 {
      %c0_10 = arith.constant 0 : index
      %c0_11 = arith.constant 0 : index
      %12 = vector.load %arg7[%c0_10, %c0_11] : memref<64x16xf32, #tpu.memory_space<vmem>>, vector<64x16xf32>
      %c0_12 = arith.constant 0 : index
      %c0_13 = arith.constant 0 : index
      %13 = vector.load %arg5[%c0_12, %c0_13] : memref<1x16xf32, #tpu.memory_space<vmem>>, vector<1x16xf32>
      %14 = vector.broadcast %13 : vector<1x16xf32> to vector<64x16xf32>
      %15 = arith.addf %12, %14 : vector<64x16xf32>
      %c0_14 = arith.constant 0 : index
      %c0_15 = arith.constant 0 : index
      %16 = vector.load %arg6[%c0_14, %c0_15] : memref<64x16xf32, #tpu.memory_space<vmem>>, vector<64x16xf32>
      tpu.vector_store %arg6[%c0_14, %c0_15], %15 {strides = array<i32>} : memref<64x16xf32, #tpu.memory_space<vmem>>, vector<64x16xf32>,
    } else {
    }
    return
  }
  func.func @transform_0(%arg0: i32, %arg1: i32, %arg2: i32) -> (i32, i32) {
    %c0_i32 = arith.constant 0 : i32
    return %arg0, %arg2 : i32, i32
  }
  func.func @transform_1(%arg0: i32, %arg1: i32, %arg2: i32) -> (i32, i32) {
    %c0_i32 = arith.constant 0 : i32
    return %arg2, %arg1 : i32, i32
  }
  func.func @transform_2(%arg0: i32, %arg1: i32, %arg2: i32) -> (i32, i32) {
    %c0_i32 = arith.constant 0 : i32
    %c0_i32_0 = arith.constant 0 : i32
    return %c0_i32, %arg1 : i32, i32
  }
  func.func @transform_3(%arg0: i32, %arg1: i32, %arg2: i32) -> (i32, i32) {
    %c0_i32 = arith.constant 0 : i32
    return %arg0, %arg1 : i32, i32
  }
}

module attributes {stable_mosaic.version = 11 : i64} {
  func.func @matmul_kernel(%arg0: i32, %arg1: i32, %arg2: i32, %arg3: memref<16x32xf32, #tpu.memory_space<vmem>>, %arg4: memref<32x17xf32, #tpu.memory_space<vmem>>, %arg5: memref<1x17xf32, #tpu.memory_space<vmem>>, %arg6: memref<16x17xf32, #tpu.memory_space<vmem>>, %arg7: memref<16x17xf32, #tpu.memory_space<vmem>>) attributes {dimension_semantics = [#tpu.dimension_semantics<parallel>, #tpu.dimension_semantics<parallel>, #tpu.dimension_semantics<arbitrary>], iteration_bounds = array<i64: 1, 1, 1>, scalar_prefetch = 0 : i64, scratch_operands = 1 : i64, tpu.core_type = #tpu.core_type<tc>, window_params = [{transform_indices = @transform_0, window_bounds = array<i64: 16, 32>}, {transform_indices = @transform_1, window_bounds = array<i64: 32, 17>}, {transform_indices = @transform_2, window_bounds = array<i64: 1, 17>}, {transform_indices = @transform_3, window_bounds = array<i64: 16, 17>}]} {
    %c0_i32 = arith.constant 0 : i32
    %0 = arith.cmpi eq, %arg2, %c0_i32 : i32
    %1 = arith.extui %0 : i1 to i32
    %c0_i32_0 = arith.constant 0 : i32
    %2 = arith.cmpi ne, %1, %c0_i32_0 : i32
    scf.if %2 {
      %cst_10 = arith.constant 0.000000e+00 : f32
      %12 = vector.broadcast %cst_10 : f32 to vector<16x17xf32>
      %c0_11 = arith.constant 0 : index
      %c0_12 = arith.constant 0 : index
      %13 = vector.load %arg7[%c0_11, %c0_12] : memref<16x17xf32, #tpu.memory_space<vmem>>, vector<16x17xf32>
      tpu.vector_store %arg7[%c0_11, %c0_12], %12 {strides = array<i32>} : memref<16x17xf32, #tpu.memory_space<vmem>>, vector<16x17xf32>,
    } else {
    }
    %c0 = arith.constant 0 : index
    %c0_1 = arith.constant 0 : index
    %3 = vector.load %arg7[%c0, %c0_1] : memref<16x17xf32, #tpu.memory_space<vmem>>, vector<16x17xf32>
    %c0_2 = arith.constant 0 : index
    %c0_3 = arith.constant 0 : index
    %4 = vector.load %arg3[%c0_2, %c0_3] : memref<16x32xf32, #tpu.memory_space<vmem>>, vector<16x32xf32>
    %c0_4 = arith.constant 0 : index
    %c0_5 = arith.constant 0 : index
    %5 = vector.load %arg4[%c0_4, %c0_5] : memref<32x17xf32, #tpu.memory_space<vmem>>, vector<32x17xf32>
    %cst = arith.constant dense<0.000000e+00> : vector<16x17xf32>
    %6 = tpu.matmul %4, %5, %cst {dimension_numbers = #tpu.dot_dimension_numbers<[1], [0], [0], [1], [0, 0, 1, 1], [], []>} : vector<16x32xf32>, vector<32x17xf32>, vector<16x17xf32> -> vector<16x17xf32>
    %7 = arith.addf %3, %6 : vector<16x17xf32>
    %c0_6 = arith.constant 0 : index
    %c0_7 = arith.constant 0 : index
    %8 = vector.load %arg7[%c0_6, %c0_7] : memref<16x17xf32, #tpu.memory_space<vmem>>, vector<16x17xf32>
    tpu.vector_store %arg7[%c0_6, %c0_7], %7 {strides = array<i32>} : memref<16x17xf32, #tpu.memory_space<vmem>>, vector<16x17xf32>,
    %c0_i32_8 = arith.constant 0 : i32
    %9 = arith.cmpi eq, %arg2, %c0_i32_8 : i32
    %10 = arith.extui %9 : i1 to i32
    %c0_i32_9 = arith.constant 0 : i32
    %11 = arith.cmpi ne, %10, %c0_i32_9 : i32
    scf.if %11 {
      %c0_10 = arith.constant 0 : index
      %c0_11 = arith.constant 0 : index
      %12 = vector.load %arg7[%c0_10, %c0_11] : memref<16x17xf32, #tpu.memory_space<vmem>>, vector<16x17xf32>
      %c0_12 = arith.constant 0 : index
      %c0_13 = arith.constant 0 : index
      %13 = vector.load %arg5[%c0_12, %c0_13] : memref<1x17xf32, #tpu.memory_space<vmem>>, vector<1x17xf32>
      %14 = vector.broadcast %13 : vector<1x17xf32> to vector<16x17xf32>
      %15 = arith.addf %12, %14 : vector<16x17xf32>
      %c0_14 = arith.constant 0 : index
      %c0_15 = arith.constant 0 : index
      %16 = vector.load %arg6[%c0_14, %c0_15] : memref<16x17xf32, #tpu.memory_space<vmem>>, vector<16x17xf32>
      tpu.vector_store %arg6[%c0_14, %c0_15], %15 {strides = array<i32>} : memref<16x17xf32, #tpu.memory_space<vmem>>, vector<16x17xf32>,
    } else {
    }
    return
  }
  func.func @transform_0(%arg0: i32, %arg1: i32, %arg2: i32) -> (i32, i32) {
    %c0_i32 = arith.constant 0 : i32
    return %arg0, %arg2 : i32, i32
  }
  func.func @transform_1(%arg0: i32, %arg1: i32, %arg2: i32) -> (i32, i32) {
    %c0_i32 = arith.constant 0 : i32
    return %arg2, %arg1 : i32, i32
  }
  func.func @transform_2(%arg0: i32, %arg1: i32, %arg2: i32) -> (i32, i32) {
    %c0_i32 = arith.constant 0 : i32
    %c0_i32_0 = arith.constant 0 : i32
    return %c0_i32, %arg1 : i32, i32
  }
  func.func @transform_3(%arg0: i32, %arg1: i32, %arg2: i32) -> (i32, i32) {
    %c0_i32 = arith.constant 0 : i32
    return %arg0, %arg1 : i32, i32
  }
}

module attributes {stable_mosaic.version = 11 : i64} {
  func.func @conv1d_kernel(%arg0: i32, %arg1: memref<1x12x16xf32, #tpu.memory_space<vmem>>, %arg2: memref<5x16x32xf32, #tpu.memory_space<vmem>>, %arg3: memref<1x32xf32, #tpu.memory_space<vmem>>, %arg4: memref<1x8x32xf32, #tpu.memory_space<vmem>>) attributes {dimension_semantics = [#tpu.dimension_semantics<parallel>], iteration_bounds = array<i64: 2>, scalar_prefetch = 0 : i64, scratch_operands = 0 : i64, tpu.core_type = #tpu.core_type<tc>, window_params = [{transform_indices = @transform_0, window_bounds = array<i64: 1, 12, 16>}, {pipeline_mode = #tpu.pipeline_mode<synchronous>, transform_indices = @transform_1, window_bounds = array<i64: 5, 16, 32>}, {pipeline_mode = #tpu.pipeline_mode<synchronous>, transform_indices = @transform_2, window_bounds = array<i64: 1, 32>}, {transform_indices = @transform_3, window_bounds = array<i64: 1, 8, 32>}]} {
    %c0 = arith.constant 0 : index
    %c0_0 = arith.constant 0 : index
    %c0_1 = arith.constant 0 : index
    %0 = vector.load %arg1[%c0, %c0_0, %c0_1] : memref<1x12x16xf32, #tpu.memory_space<vmem>>, vector<1x12x16xf32>
    %1 = vector.shape_cast %0 : vector<1x12x16xf32> to vector<12x16xf32>
    %c0_2 = arith.constant 0 : index
    %c0_3 = arith.constant 0 : index
    %c0_4 = arith.constant 0 : index
    %2 = vector.load %arg2[%c0_2, %c0_3, %c0_4] : memref<5x16x32xf32, #tpu.memory_space<vmem>>, vector<5x16x32xf32>
    %cst = arith.constant 0.000000e+00 : f32
    %3 = vector.broadcast %cst : f32 to vector<8x32xf32>
    %4 = vector.extract_strided_slice %1 {offsets = [0, 0], sizes = [8, 16], strides = [1, 1]} : vector<12x16xf32> to vector<8x16xf32>
    %5 = vector.extract_strided_slice %2 {offsets = [0, 0, 0], sizes = [1, 16, 32], strides = [1, 1, 1]} : vector<5x16x32xf32> to vector<1x16x32xf32>
    %6 = vector.shape_cast %5 : vector<1x16x32xf32> to vector<16x32xf32>
    %cst_5 = arith.constant dense<0.000000e+00> : vector<8x32xf32>
    %7 = tpu.matmul %4, %6, %cst_5 {dimension_numbers = #tpu.dot_dimension_numbers<[1], [0], [0], [1], [0, 0, 1, 1], [], []>} : vector<8x16xf32>, vector<16x32xf32>, vector<8x32xf32> -> vector<8x32xf32>
    %8 = arith.addf %3, %7 : vector<8x32xf32>
    %9 = vector.extract_strided_slice %1 {offsets = [1, 0], sizes = [8, 16], strides = [1, 1]} : vector<12x16xf32> to vector<8x16xf32>
    %10 = vector.extract_strided_slice %2 {offsets = [1, 0, 0], sizes = [1, 16, 32], strides = [1, 1, 1]} : vector<5x16x32xf32> to vector<1x16x32xf32>
    %11 = vector.shape_cast %10 : vector<1x16x32xf32> to vector<16x32xf32>
    %cst_6 = arith.constant dense<0.000000e+00> : vector<8x32xf32>
    %12 = tpu.matmul %9, %11, %cst_6 {dimension_numbers = #tpu.dot_dimension_numbers<[1], [0], [0], [1], [0, 0, 1, 1], [], []>} : vector<8x16xf32>, vector<16x32xf32>, vector<8x32xf32> -> vector<8x32xf32>
    %13 = arith.addf %8, %12 : vector<8x32xf32>
    %14 = vector.extract_strided_slice %1 {offsets = [2, 0], sizes = [8, 16], strides = [1, 1]} : vector<12x16xf32> to vector<8x16xf32>
    %15 = vector.extract_strided_slice %2 {offsets = [2, 0, 0], sizes = [1, 16, 32], strides = [1, 1, 1]} : vector<5x16x32xf32> to vector<1x16x32xf32>
    %16 = vector.shape_cast %15 : vector<1x16x32xf32> to vector<16x32xf32>
    %cst_7 = arith.constant dense<0.000000e+00> : vector<8x32xf32>
    %17 = tpu.matmul %14, %16, %cst_7 {dimension_numbers = #tpu.dot_dimension_numbers<[1], [0], [0], [1], [0, 0, 1, 1], [], []>} : vector<8x16xf32>, vector<16x32xf32>, vector<8x32xf32> -> vector<8x32xf32>
    %18 = arith.addf %13, %17 : vector<8x32xf32>
    %19 = vector.extract_strided_slice %1 {offsets = [3, 0], sizes = [8, 16], strides = [1, 1]} : vector<12x16xf32> to vector<8x16xf32>
    %20 = vector.extract_strided_slice %2 {offsets = [3, 0, 0], sizes = [1, 16, 32], strides = [1, 1, 1]} : vector<5x16x32xf32> to vector<1x16x32xf32>
    %21 = vector.shape_cast %20 : vector<1x16x32xf32> to vector<16x32xf32>
    %cst_8 = arith.constant dense<0.000000e+00> : vector<8x32xf32>
    %22 = tpu.matmul %19, %21, %cst_8 {dimension_numbers = #tpu.dot_dimension_numbers<[1], [0], [0], [1], [0, 0, 1, 1], [], []>} : vector<8x16xf32>, vector<16x32xf32>, vector<8x32xf32> -> vector<8x32xf32>
    %23 = arith.addf %18, %22 : vector<8x32xf32>
    %24 = vector.extract_strided_slice %1 {offsets = [4, 0], sizes = [8, 16], strides = [1, 1]} : vector<12x16xf32> to vector<8x16xf32>
    %25 = vector.extract_strided_slice %2 {offsets = [4, 0, 0], sizes = [1, 16, 32], strides = [1, 1, 1]} : vector<5x16x32xf32> to vector<1x16x32xf32>
    %26 = vector.shape_cast %25 : vector<1x16x32xf32> to vector<16x32xf32>
    %cst_9 = arith.constant dense<0.000000e+00> : vector<8x32xf32>
    %27 = tpu.matmul %24, %26, %cst_9 {dimension_numbers = #tpu.dot_dimension_numbers<[1], [0], [0], [1], [0, 0, 1, 1], [], []>} : vector<8x16xf32>, vector<16x32xf32>, vector<8x32xf32> -> vector<8x32xf32>
    %28 = arith.addf %23, %27 : vector<8x32xf32>
    %c0_10 = arith.constant 0 : index
    %c0_11 = arith.constant 0 : index
    %29 = vector.load %arg3[%c0_10, %c0_11] : memref<1x32xf32, #tpu.memory_space<vmem>>, vector<1x32xf32>
    %30 = vector.broadcast %29 : vector<1x32xf32> to vector<8x32xf32>
    %31 = arith.addf %28, %30 : vector<8x32xf32>
    %32 = math.tanh %31 : vector<8x32xf32>
    %c0_12 = arith.constant 0 : index
    %c0_13 = arith.constant 0 : index
    %c0_14 = arith.constant 0 : index
    %33 = vector.load %arg4[%c0_12, %c0_13, %c0_14] : memref<1x8x32xf32, #tpu.memory_space<vmem>>, vector<1x8x32xf32>
    %34 = vector.shape_cast %33 : vector<1x8x32xf32> to vector<8x32xf32>
    %35 = vector.shape_cast %32 : vector<8x32xf32> to vector<1x8x32xf32>
    tpu.vector_store %arg4[%c0_12, %c0_13, %c0_14], %35 {strides = array<i32>} : memref<1x8x32xf32, #tpu.memory_space<vmem>>, vector<1x8x32xf32>,
    return
  }
  func.func @transform_0(%arg0: i32) -> (i32, i32, i32) {
    %c0_i32 = arith.constant 0 : i32
    %c0_i32_0 = arith.constant 0 : i32
    %c0_i32_1 = arith.constant 0 : i32
    return %arg0, %c0_i32, %c0_i32_0 : i32, i32, i32
  }
  func.func @transform_1(%arg0: i32) -> (i32, i32, i32) {
    %c0_i32 = arith.constant 0 : i32
    %c0_i32_0 = arith.constant 0 : i32
    %c0_i32_1 = arith.constant 0 : i32
    %c0_i32_2 = arith.constant 0 : i32
    return %c0_i32, %c0_i32_0, %c0_i32_1 : i32, i32, i32
  }
  func.func @transform_2(%arg0: i32) -> (i32, i32) {
    %c0_i32 = arith.constant 0 : i32
    %c0_i32_0 = arith.constant 0 : i32
    %c0_i32_1 = arith.constant 0 : i32
    return %c0_i32, %c0_i32_0 : i32, i32
  }
  func.func @transform_3(%arg0: i32) -> (i32, i32, i32) {
    %c0_i32 = arith.constant 0 : i32
    %c0_i32_0 = arith.constant 0 : i32
    %c0_i32_1 = arith.constant 0 : i32
    return %arg0, %c0_i32, %c0_i32_0 : i32, i32, i32
  }
}

module attributes {stable_mosaic.version = 11 : i64} {
  func.func @conv1d_kernel(%arg0: i32, %arg1: memref<1x12x32xf32, #tpu.memory_space<vmem>>, %arg2: memref<5x32x32xf32, #tpu.memory_space<vmem>>, %arg3: memref<1x32xf32, #tpu.memory_space<vmem>>, %arg4: memref<1x8x32xf32, #tpu.memory_space<vmem>>) attributes {dimension_semantics = [#tpu.dimension_semantics<parallel>], iteration_bounds = array<i64: 2>, scalar_prefetch = 0 : i64, scratch_operands = 0 : i64, tpu.core_type = #tpu.core_type<tc>, window_params = [{transform_indices = @transform_0, window_bounds = array<i64: 1, 12, 32>}, {pipeline_mode = #tpu.pipeline_mode<synchronous>, transform_indices = @transform_1, window_bounds = array<i64: 5, 32, 32>}, {pipeline_mode = #tpu.pipeline_mode<synchronous>, transform_indices = @transform_2, window_bounds = array<i64: 1, 32>}, {transform_indices = @transform_3, window_bounds = array<i64: 1, 8, 32>}]} {
    %c0 = arith.constant 0 : index
    %c0_0 = arith.constant 0 : index
    %c0_1 = arith.constant 0 : index
    %0 = vector.load %arg1[%c0, %c0_0, %c0_1] : memref<1x12x32xf32, #tpu.memory_space<vmem>>, vector<1x12x32xf32>
    %1 = vector.shape_cast %0 : vector<1x12x32xf32> to vector<12x32xf32>
    %c0_2 = arith.constant 0 : index
    %c0_3 = arith.constant 0 : index
    %c0_4 = arith.constant 0 : index
    %2 = vector.load %arg2[%c0_2, %c0_3, %c0_4] : memref<5x32x32xf32, #tpu.memory_space<vmem>>, vector<5x32x32xf32>
    %cst = arith.constant 0.000000e+00 : f32
    %3 = vector.broadcast %cst : f32 to vector<8x32xf32>
    %4 = vector.extract_strided_slice %1 {offsets = [0, 0], sizes = [8, 32], strides = [1, 1]} : vector<12x32xf32> to vector<8x32xf32>
    %5 = vector.extract_strided_slice %2 {offsets = [0, 0, 0], sizes = [1, 32, 32], strides = [1, 1, 1]} : vector<5x32x32xf32> to vector<1x32x32xf32>
    %6 = vector.shape_cast %5 : vector<1x32x32xf32> to vector<32x32xf32>
    %cst_5 = arith.constant dense<0.000000e+00> : vector<8x32xf32>
    %7 = tpu.matmul %4, %6, %cst_5 {dimension_numbers = #tpu.dot_dimension_numbers<[1], [0], [0], [1], [0, 0, 1, 1], [], []>} : vector<8x32xf32>, vector<32x32xf32>, vector<8x32xf32> -> vector<8x32xf32>
    %8 = arith.addf %3, %7 : vector<8x32xf32>
    %9 = vector.extract_strided_slice %1 {offsets = [1, 0], sizes = [8, 32], strides = [1, 1]} : vector<12x32xf32> to vector<8x32xf32>
    %10 = vector.extract_strided_slice %2 {offsets = [1, 0, 0], sizes = [1, 32, 32], strides = [1, 1, 1]} : vector<5x32x32xf32> to vector<1x32x32xf32>
    %11 = vector.shape_cast %10 : vector<1x32x32xf32> to vector<32x32xf32>
    %cst_6 = arith.constant dense<0.000000e+00> : vector<8x32xf32>
    %12 = tpu.matmul %9, %11, %cst_6 {dimension_numbers = #tpu.dot_dimension_numbers<[1], [0], [0], [1], [0, 0, 1, 1], [], []>} : vector<8x32xf32>, vector<32x32xf32>, vector<8x32xf32> -> vector<8x32xf32>
    %13 = arith.addf %8, %12 : vector<8x32xf32>
    %14 = vector.extract_strided_slice %1 {offsets = [2, 0], sizes = [8, 32], strides = [1, 1]} : vector<12x32xf32> to vector<8x32xf32>
    %15 = vector.extract_strided_slice %2 {offsets = [2, 0, 0], sizes = [1, 32, 32], strides = [1, 1, 1]} : vector<5x32x32xf32> to vector<1x32x32xf32>
    %16 = vector.shape_cast %15 : vector<1x32x32xf32> to vector<32x32xf32>
    %cst_7 = arith.constant dense<0.000000e+00> : vector<8x32xf32>
    %17 = tpu.matmul %14, %16, %cst_7 {dimension_numbers = #tpu.dot_dimension_numbers<[1], [0], [0], [1], [0, 0, 1, 1], [], []>} : vector<8x32xf32>, vector<32x32xf32>, vector<8x32xf32> -> vector<8x32xf32>
    %18 = arith.addf %13, %17 : vector<8x32xf32>
    %19 = vector.extract_strided_slice %1 {offsets = [3, 0], sizes = [8, 32], strides = [1, 1]} : vector<12x32xf32> to vector<8x32xf32>
    %20 = vector.extract_strided_slice %2 {offsets = [3, 0, 0], sizes = [1, 32, 32], strides = [1, 1, 1]} : vector<5x32x32xf32> to vector<1x32x32xf32>
    %21 = vector.shape_cast %20 : vector<1x32x32xf32> to vector<32x32xf32>
    %cst_8 = arith.constant dense<0.000000e+00> : vector<8x32xf32>
    %22 = tpu.matmul %19, %21, %cst_8 {dimension_numbers = #tpu.dot_dimension_numbers<[1], [0], [0], [1], [0, 0, 1, 1], [], []>} : vector<8x32xf32>, vector<32x32xf32>, vector<8x32xf32> -> vector<8x32xf32>
    %23 = arith.addf %18, %22 : vector<8x32xf32>
    %24 = vector.extract_strided_slice %1 {offsets = [4, 0], sizes = [8, 32], strides = [1, 1]} : vector<12x32xf32> to vector<8x32xf32>
    %25 = vector.extract_strided_slice %2 {offsets = [4, 0, 0], sizes = [1, 32, 32], strides = [1, 1, 1]} : vector<5x32x32xf32> to vector<1x32x32xf32>
    %26 = vector.shape_cast %25 : vector<1x32x32xf32> to vector<32x32xf32>
    %cst_9 = arith.constant dense<0.000000e+00> : vector<8x32xf32>
    %27 = tpu.matmul %24, %26, %cst_9 {dimension_numbers = #tpu.dot_dimension_numbers<[1], [0], [0], [1], [0, 0, 1, 1], [], []>} : vector<8x32xf32>, vector<32x32xf32>, vector<8x32xf32> -> vector<8x32xf32>
    %28 = arith.addf %23, %27 : vector<8x32xf32>
    %c0_10 = arith.constant 0 : index
    %c0_11 = arith.constant 0 : index
    %29 = vector.load %arg3[%c0_10, %c0_11] : memref<1x32xf32, #tpu.memory_space<vmem>>, vector<1x32xf32>
    %30 = vector.broadcast %29 : vector<1x32xf32> to vector<8x32xf32>
    %31 = arith.addf %28, %30 : vector<8x32xf32>
    %32 = math.tanh %31 : vector<8x32xf32>
    %c0_12 = arith.constant 0 : index
    %c0_13 = arith.constant 0 : index
    %c0_14 = arith.constant 0 : index
    %33 = vector.load %arg4[%c0_12, %c0_13, %c0_14] : memref<1x8x32xf32, #tpu.memory_space<vmem>>, vector<1x8x32xf32>
    %34 = vector.shape_cast %33 : vector<1x8x32xf32> to vector<8x32xf32>
    %35 = vector.shape_cast %32 : vector<8x32xf32> to vector<1x8x32xf32>
    tpu.vector_store %arg4[%c0_12, %c0_13, %c0_14], %35 {strides = array<i32>} : memref<1x8x32xf32, #tpu.memory_space<vmem>>, vector<1x8x32xf32>,
    return
  }
  func.func @transform_0(%arg0: i32) -> (i32, i32, i32) {
    %c0_i32 = arith.constant 0 : i32
    %c0_i32_0 = arith.constant 0 : i32
    %c0_i32_1 = arith.constant 0 : i32
    return %arg0, %c0_i32, %c0_i32_0 : i32, i32, i32
  }
  func.func @transform_1(%arg0: i32) -> (i32, i32, i32) {
    %c0_i32 = arith.constant 0 : i32
    %c0_i32_0 = arith.constant 0 : i32
    %c0_i32_1 = arith.constant 0 : i32
    %c0_i32_2 = arith.constant 0 : i32
    return %c0_i32, %c0_i32_0, %c0_i32_1 : i32, i32, i32
  }
  func.func @transform_2(%arg0: i32) -> (i32, i32) {
    %c0_i32 = arith.constant 0 : i32
    %c0_i32_0 = arith.constant 0 : i32
    %c0_i32_1 = arith.constant 0 : i32
    return %c0_i32, %c0_i32_0 : i32, i32
  }
  func.func @transform_3(%arg0: i32) -> (i32, i32, i32) {
    %c0_i32 = arith.constant 0 : i32
    %c0_i32_0 = arith.constant 0 : i32
    %c0_i32_1 = arith.constant 0 : i32
    return %arg0, %c0_i32, %c0_i32_0 : i32, i32, i32
  }
}

module attributes {stable_mosaic.version = 11 : i64} {
  func.func @conv1d_kernel(%arg0: i32, %arg1: memref<1x12x32xf32, #tpu.memory_space<vmem>>, %arg2: memref<5x32x16xf32, #tpu.memory_space<vmem>>, %arg3: memref<1x16xf32, #tpu.memory_space<vmem>>, %arg4: memref<1x8x16xf32, #tpu.memory_space<vmem>>) attributes {dimension_semantics = [#tpu.dimension_semantics<parallel>], iteration_bounds = array<i64: 2>, scalar_prefetch = 0 : i64, scratch_operands = 0 : i64, tpu.core_type = #tpu.core_type<tc>, window_params = [{transform_indices = @transform_0, window_bounds = array<i64: 1, 12, 32>}, {pipeline_mode = #tpu.pipeline_mode<synchronous>, transform_indices = @transform_1, window_bounds = array<i64: 5, 32, 16>}, {pipeline_mode = #tpu.pipeline_mode<synchronous>, transform_indices = @transform_2, window_bounds = array<i64: 1, 16>}, {transform_indices = @transform_3, window_bounds = array<i64: 1, 8, 16>}]} {
    %c0 = arith.constant 0 : index
    %c0_0 = arith.constant 0 : index
    %c0_1 = arith.constant 0 : index
    %0 = vector.load %arg1[%c0, %c0_0, %c0_1] : memref<1x12x32xf32, #tpu.memory_space<vmem>>, vector<1x12x32xf32>
    %1 = vector.shape_cast %0 : vector<1x12x32xf32> to vector<12x32xf32>
    %c0_2 = arith.constant 0 : index
    %c0_3 = arith.constant 0 : index
    %c0_4 = arith.constant 0 : index
    %2 = vector.load %arg2[%c0_2, %c0_3, %c0_4] : memref<5x32x16xf32, #tpu.memory_space<vmem>>, vector<5x32x16xf32>
    %cst = arith.constant 0.000000e+00 : f32
    %3 = vector.broadcast %cst : f32 to vector<8x16xf32>
    %4 = vector.extract_strided_slice %1 {offsets = [0, 0], sizes = [8, 32], strides = [1, 1]} : vector<12x32xf32> to vector<8x32xf32>
    %5 = vector.extract_strided_slice %2 {offsets = [0, 0, 0], sizes = [1, 32, 16], strides = [1, 1, 1]} : vector<5x32x16xf32> to vector<1x32x16xf32>
    %6 = vector.shape_cast %5 : vector<1x32x16xf32> to vector<32x16xf32>
    %cst_5 = arith.constant dense<0.000000e+00> : vector<8x16xf32>
    %7 = tpu.matmul %4, %6, %cst_5 {dimension_numbers = #tpu.dot_dimension_numbers<[1], [0], [0], [1], [0, 0, 1, 1], [], []>} : vector<8x32xf32>, vector<32x16xf32>, vector<8x16xf32> -> vector<8x16xf32>
    %8 = arith.addf %3, %7 : vector<8x16xf32>
    %9 = vector.extract_strided_slice %1 {offsets = [1, 0], sizes = [8, 32], strides = [1, 1]} : vector<12x32xf32> to vector<8x32xf32>
    %10 = vector.extract_strided_slice %2 {offsets = [1, 0, 0], sizes = [1, 32, 16], strides = [1, 1, 1]} : vector<5x32x16xf32> to vector<1x32x16xf32>
    %11 = vector.shape_cast %10 : vector<1x32x16xf32> to vector<32x16xf32>
    %cst_6 = arith.constant dense<0.000000e+00> : vector<8x16xf32>
    %12 = tpu.matmul %9, %11, %cst_6 {dimension_numbers = #tpu.dot_dimension_numbers<[1], [0], [0], [1], [0, 0, 1, 1], [], []>} : vector<8x32xf32>, vector<32x16xf32>, vector<8x16xf32> -> vector<8x16xf32>
    %13 = arith.addf %8, %12 : vector<8x16xf32>
    %14 = vector.extract_strided_slice %1 {offsets = [2, 0], sizes = [8, 32], strides = [1, 1]} : vector<12x32xf32> to vector<8x32xf32>
    %15 = vector.extract_strided_slice %2 {offsets = [2, 0, 0], sizes = [1, 32, 16], strides = [1, 1, 1]} : vector<5x32x16xf32> to vector<1x32x16xf32>
    %16 = vector.shape_cast %15 : vector<1x32x16xf32> to vector<32x16xf32>
    %cst_7 = arith.constant dense<0.000000e+00> : vector<8x16xf32>
    %17 = tpu.matmul %14, %16, %cst_7 {dimension_numbers = #tpu.dot_dimension_numbers<[1], [0], [0], [1], [0, 0, 1, 1], [], []>} : vector<8x32xf32>, vector<32x16xf32>, vector<8x16xf32> -> vector<8x16xf32>
    %18 = arith.addf %13, %17 : vector<8x16xf32>
    %19 = vector.extract_strided_slice %1 {offsets = [3, 0], sizes = [8, 32], strides = [1, 1]} : vector<12x32xf32> to vector<8x32xf32>
    %20 = vector.extract_strided_slice %2 {offsets = [3, 0, 0], sizes = [1, 32, 16], strides = [1, 1, 1]} : vector<5x32x16xf32> to vector<1x32x16xf32>
    %21 = vector.shape_cast %20 : vector<1x32x16xf32> to vector<32x16xf32>
    %cst_8 = arith.constant dense<0.000000e+00> : vector<8x16xf32>
    %22 = tpu.matmul %19, %21, %cst_8 {dimension_numbers = #tpu.dot_dimension_numbers<[1], [0], [0], [1], [0, 0, 1, 1], [], []>} : vector<8x32xf32>, vector<32x16xf32>, vector<8x16xf32> -> vector<8x16xf32>
    %23 = arith.addf %18, %22 : vector<8x16xf32>
    %24 = vector.extract_strided_slice %1 {offsets = [4, 0], sizes = [8, 32], strides = [1, 1]} : vector<12x32xf32> to vector<8x32xf32>
    %25 = vector.extract_strided_slice %2 {offsets = [4, 0, 0], sizes = [1, 32, 16], strides = [1, 1, 1]} : vector<5x32x16xf32> to vector<1x32x16xf32>
    %26 = vector.shape_cast %25 : vector<1x32x16xf32> to vector<32x16xf32>
    %cst_9 = arith.constant dense<0.000000e+00> : vector<8x16xf32>
    %27 = tpu.matmul %24, %26, %cst_9 {dimension_numbers = #tpu.dot_dimension_numbers<[1], [0], [0], [1], [0, 0, 1, 1], [], []>} : vector<8x32xf32>, vector<32x16xf32>, vector<8x16xf32> -> vector<8x16xf32>
    %28 = arith.addf %23, %27 : vector<8x16xf32>
    %c0_10 = arith.constant 0 : index
    %c0_11 = arith.constant 0 : index
    %29 = vector.load %arg3[%c0_10, %c0_11] : memref<1x16xf32, #tpu.memory_space<vmem>>, vector<1x16xf32>
    %30 = vector.broadcast %29 : vector<1x16xf32> to vector<8x16xf32>
    %31 = arith.addf %28, %30 : vector<8x16xf32>
    %c0_12 = arith.constant 0 : index
    %c0_13 = arith.constant 0 : index
    %c0_14 = arith.constant 0 : index
    %32 = vector.load %arg4[%c0_12, %c0_13, %c0_14] : memref<1x8x16xf32, #tpu.memory_space<vmem>>, vector<1x8x16xf32>
    %33 = vector.shape_cast %32 : vector<1x8x16xf32> to vector<8x16xf32>
    %34 = vector.shape_cast %31 : vector<8x16xf32> to vector<1x8x16xf32>
    tpu.vector_store %arg4[%c0_12, %c0_13, %c0_14], %34 {strides = array<i32>} : memref<1x8x16xf32, #tpu.memory_space<vmem>>, vector<1x8x16xf32>,
    return
  }
  func.func @transform_0(%arg0: i32) -> (i32, i32, i32) {
    %c0_i32 = arith.constant 0 : i32
    %c0_i32_0 = arith.constant 0 : i32
    %c0_i32_1 = arith.constant 0 : i32
    return %arg0, %c0_i32, %c0_i32_0 : i32, i32, i32
  }
  func.func @transform_1(%arg0: i32) -> (i32, i32, i32) {
    %c0_i32 = arith.constant 0 : i32
    %c0_i32_0 = arith.constant 0 : i32
    %c0_i32_1 = arith.constant 0 : i32
    %c0_i32_2 = arith.constant 0 : i32
    return %c0_i32, %c0_i32_0, %c0_i32_1 : i32, i32, i32
  }
  func.func @transform_2(%arg0: i32) -> (i32, i32) {
    %c0_i32 = arith.constant 0 : i32
    %c0_i32_0 = arith.constant 0 : i32
    %c0_i32_1 = arith.constant 0 : i32
    return %c0_i32, %c0_i32_0 : i32, i32
  }
  func.func @transform_3(%arg0: i32) -> (i32, i32, i32) {
    %c0_i32 = arith.constant 0 : i32
    %c0_i32_0 = arith.constant 0 : i32
    %c0_i32_1 = arith.constant 0 : i32
    return %arg0, %c0_i32, %c0_i32_0 : i32, i32, i32
  }
}

</mosaic_0001>

<llo_original>
// kernel: transformer_tts_forward.68
$region0: #{transformer_tts_forward.68}
  #allocation0 [shape = 'u32[]', space=smem, size = 0x4, offset = 0x4, fixed_abs, tag = 'smem constant byte address 0x4 - core index']
  #allocation1 [shape = 'u32[144,128]{1,0:T(1,128)}', space=vmem, size = 0x12000, scoped, tag = 'internal scratch']
  #allocation2 [shape = 'f32[16,32]{1,0:T(8,128)}', space=vmem, size = 0x2000, scoped, tag = 'scratch operand']
  %s0 = inlined_call_operand.vmem [shape: f32[16,16], index: 0, kind: input, shape index: {}]
  %s1 = inlined_call_operand.vmem [shape: f32[16,32], index: 1, kind: input, shape index: {}]
  %s2 = inlined_call_operand.vmem [shape: f32[1,32], index: 2, kind: input, shape index: {}]
  %s3 = inlined_call_operand.vmem [shape: f32[16,32], index: 3, kind: output, shape index: {}]
  %s4 = sld [smem:[#allocation0]]
  $region30: #{transformer_tts_forward.68} parent=0
    _
  %s6 = ssub.s32 1, %s4
  %s7 = scalar_select 0, %s6, %s4
  // Predicated region
  $region2: #{transformer_tts_forward.68} parent=0 // pred_check
    _
  $region3: #{transformer_tts_forward.68} parent=0 // pred_check_branch
    %9 = sbr.rel (0) target = $region5
  $region4: #{transformer_tts_forward.68} parent=0 // pred_region
    _
  $region5: #{transformer_tts_forward.68} parent=0 // pred_fallthru
    _
  // Predicated region
  $region6: #{transformer_tts_forward.68} parent=0 // pred_check
    _
  $region7: #{transformer_tts_forward.68} parent=0 // pred_check_branch
    %11 = sbr.rel (0) target = $region9
  $region8: #{transformer_tts_forward.68} parent=0 // pred_region
    _
  $region9: #{transformer_tts_forward.68} parent=0 // pred_fallthru
    _
  // Predicated region
  $region10: #{transformer_tts_forward.68} parent=0 // pred_check
    _
  $region11: #{transformer_tts_forward.68} parent=0 // pred_check_branch
    %13 = sbr.rel (0) target = $region13
  $region12: #{transformer_tts_forward.68} parent=0 // pred_region
    _
  $region13: #{transformer_tts_forward.68} parent=0 // pred_fallthru
    _
  %p14 = scmp.eq.s32.totalorder 0, 0
  // Predicated region
  $region14: #{transformer_tts_forward.68} parent=0 // pred_check
    %p15 = pneg %p14
  $region15: #{transformer_tts_forward.68} parent=0 // pred_check_branch
    %17 = sbr.rel (%p15) target = $region17
  $region16: #{transformer_tts_forward.68} parent=0 // pred_region
    %vm18 = vcmask 261120
    %19 = vst.msk [vmem:[#allocation2] sm:$0xff] %vm18, 0.0
    %20 = vst.msk [vmem:[#allocation2 + $0x8] sm:$0xff] %vm18, 0.0
  $region17: #{transformer_tts_forward.68} parent=0 // pred_fallthru
    _
  %v21 = vld [vmem:[#allocation2] sm:$0xff]
  %v22 = vld [vmem:[#allocation2 + $0x8] sm:$0xff]
  %v23 = vld [vmem:[%s0] sm:$0xff]
  %v24 = vld [vmem:[%s0 + $0x8] sm:$0xff]
  %v25 = vld [vmem:[%s1] sm:$0xff]
  %v26 = vld [vmem:[%s1 + $0x8] sm:$0xff]
  %vm27 = vcmask 130048
  %v29 = vsel %vm27, %v23, 0
  %v32 = vsel %vm27, %v24, 0
  %34 = vmatprep.subr.mxu0 0.0
  %35 = vmatpush1.msra.mxu0 %v25
  %36 = vmatprep.subr.mxu0 0.0
  %37 = vmatpush1.msra.mxu0 %v26
  %38 = vmatprep.subr.mxu0 0.0
  %39 = vmatpush1.msra.mxu0 0.0
  %40 = vmatprep.subr.mxu0 0.0
  %41 = vmatpush1.msra.mxu0 0.0
  %42 = vmatprep.subr.mxu0 0.0
  %43 = vmatpush1.msra.mxu0 0.0
  %44 = vmatprep.subr.mxu0 0.0
  %45 = vmatpush1.msra.mxu0 0.0
  %46 = vmatprep.subr.mxu0 0.0
  %47 = vmatpush1.msra.mxu0 0.0
  %48 = vmatprep.subr.mxu0 0.0
  %49 = vmatpush1.msra.mxu0 0.0
  %50 = vmatprep.subr.mxu0 0.0
  %51 = vmatpush1.msra.mxu0 0.0
  %52 = vmatprep.subr.mxu0 0.0
  %53 = vmatpush1.msra.mxu0 0.0
  %54 = vmatprep.subr.mxu0 0.0
  %55 = vmatpush1.msra.mxu0 0.0
  %56 = vmatprep.subr.mxu0 0.0
  %57 = vmatpush1.msra.mxu0 0.0
  %58 = vmatprep.subr.mxu0 0.0
  %59 = vmatpush1.msra.mxu0 0.0
  %60 = vmatprep.subr.mxu0 0.0
  %61 = vmatpush1.msra.mxu0 0.0
  %62 = vmatprep.subr.mxu0 0.0
  %63 = vmatpush1.msra.mxu0 0.0
  %64 = vmatprep.subr.mxu0 0.0
  %65 = vmatpush1.msra.mxu0 0.0
  %66 = vmatprep.subr.mxu0 0.0
  %67 = vmatpush1.msra.mxu0 0.0
  %68 = vmatprep.subr.mxu0 0.0
  %69 = vmatpush1.msra.mxu0 0.0
  %70 = vmatprep.subr.mxu0 0.0
  %71 = vmatpush1.msra.mxu0 0.0
  %72 = vmatprep.subr.mxu0 0.0
  %73 = vmatpush1.msra.mxu0 0.0
  %74 = vmatprep.subr.mxu0 0.0
  %75 = vmatpush1.msra.mxu0 0.0
  %76 = vmatprep.subr.mxu0 0.0
  %77 = vmatpush1.msra.mxu0 0.0
  %78 = vmatprep.subr.mxu0 0.0
  %79 = vmatpush1.msra.mxu0 0.0
  %80 = vmatprep.subr.mxu0 0.0
  %81 = vmatpush1.msra.mxu0 0.0
  %82 = vmatprep.subr.mxu0 0.0
  %83 = vmatpush1.msra.mxu0 0.0
  %84 = vmatprep.subr.mxu0 0.0
  %85 = vmatpush1.msra.mxu0 0.0
  %86 = vmatprep.subr.mxu0 0.0
  %87 = vmatpush1.msra.mxu0 0.0
  %88 = vmatprep.subr.mxu0 0.0
  %89 = vmatpush1.msra.mxu0 0.0
  %90 = vmatprep.subr.mxu0 0.0
  %91 = vmatpush1.msra.mxu0 0.0
  %92 = vmatprep.subr.mxu0 0.0
  %93 = vmatpush1.msra.mxu0 0.0
  %94 = vmatprep.subr.mxu0 0.0
  %95 = vmatpush1.msra.mxu0 0.0
  %96 = vmatprep.subr.mxu0 0.0
  %97 = vmatpush1.msra.mxu0 0.0
  %98 = vmatprep.mubr.f32.mxu0 0.0
  %99 = vmatmul.mubr.f32.gmra.mrb[0].mxu0 %v29
  %v100 = vpop.f32.mrb[0].mxu0
  %v101 = vadd.f32 0.0, %v100
  %v102 = vpop.f32.mrb[0].mxu0
  %103 = vmatprep.mubr.f32.mxu0 0.0
  %104 = vmatmul.mubr.f32.gmra.mrb[0].mxu0 %v32
  %v105 = vpop.f32.mrb[0].mxu0
  %v106 = vadd.f32 0.0, %v105
  %v107 = vpop.f32.mrb[0].mxu0
  %108 = vdwg.mxu0
  %v109 = vadd.f32 %v21, %v101
  %v110 = vadd.f32 %v22, %v106
  %vm111 = vcmask 261120
  %112 = vst.msk [vmem:[#allocation2] sm:$0xff] %vm111, %v109
  %113 = vst.msk [vmem:[#allocation2 + $0x8] sm:$0xff] %vm111, %v110
  // Predicated region
  $region18: #{transformer_tts_forward.68} parent=0 // pred_check
    %p114 = pneg %p14
  $region19: #{transformer_tts_forward.68} parent=0 // pred_check_branch
    %116 = sbr.rel (%p114) target = $region21
  $region20: #{transformer_tts_forward.68} parent=0 // pred_region
    %v117 = vld [vmem:[#allocation2] sm:$0xff]
    %v118 = vld [vmem:[#allocation2 + $0x8] sm:$0xff]
    %v119 = vld [vmem:[%s2] sm:$0x1]
    %v121 = vlaneseq
    %v122 = vshrl.u32 %v121, 7
    %v123 = vsub.s32 0, %v122
    %v124 = vrot.slane %v119, %v123
    %v126 = vadd.f32 %v117, %v124
    %v127 = vadd.f32 %v118, %v124
    %v128 = vmax.f32 %v126, 0.0
    %v129 = vmax.f32 %v127, 0.0
    %130 = vst.msk [vmem:[%s3] sm:$0xff] %vm111, %v128
    %131 = vst.msk [vmem:[%s3 + $0x8] sm:$0xff] %vm111, %v129
  $region21: #{transformer_tts_forward.68} parent=0 // pred_fallthru
    _
  // Predicated region
  $region22: #{transformer_tts_forward.68} parent=0 // pred_check
    _
  $region23: #{transformer_tts_forward.68} parent=0 // pred_check_branch
    %133 = sbr.rel (0) target = $region25
  $region24: #{transformer_tts_forward.68} parent=0 // pred_region
    _
  $region25: #{transformer_tts_forward.68} parent=0 // pred_fallthru
    _
  // Predicated region
  $region26: #{transformer_tts_forward.68} parent=0 // pred_check
    _
  $region27: #{transformer_tts_forward.68} parent=0 // pred_check_branch
    %135 = sbr.rel (0) target = $region29
  $region28: #{transformer_tts_forward.68} parent=0 // pred_region
    _
  $region29: #{transformer_tts_forward.68} parent=0 // pred_fallthru
    _

// kernel: transformer_tts_forward.69
$region0: #{transformer_tts_forward.69}
  #allocation0 [shape = 'u32[]', space=smem, size = 0x4, offset = 0x4, fixed_abs, tag = 'smem constant byte address 0x4 - core index']
  #allocation1 [shape = 'u32[144,128]{1,0:T(1,128)}', space=vmem, size = 0x12000, scoped, tag = 'internal scratch']
  #allocation2 [shape = 'f32[16,32]{1,0:T(8,128)}', space=vmem, size = 0x2000, scoped, tag = 'scratch operand']
  %s0 = inlined_call_operand.vmem [shape: f32[16,32], index: 0, kind: input, shape index: {}]
  %s1 = inlined_call_operand.vmem [shape: f32[32,32], index: 1, kind: input, shape index: {}]
  %s2 = inlined_call_operand.vmem [shape: f32[1,32], index: 2, kind: input, shape index: {}]
  %s3 = inlined_call_operand.vmem [shape: f32[16,32], index: 3, kind: output, shape index: {}]
  %s4 = sld [smem:[#allocation0]]
  $region30: #{transformer_tts_forward.69} parent=0
    _
  %s6 = ssub.s32 1, %s4
  %s7 = scalar_select 0, %s6, %s4
  // Predicated region
  $region2: #{transformer_tts_forward.69} parent=0 // pred_check
    _
  $region3: #{transformer_tts_forward.69} parent=0 // pred_check_branch
    %9 = sbr.rel (0) target = $region5
  $region4: #{transformer_tts_forward.69} parent=0 // pred_region
    _
  $region5: #{transformer_tts_forward.69} parent=0 // pred_fallthru
    _
  // Predicated region
  $region6: #{transformer_tts_forward.69} parent=0 // pred_check
    _
  $region7: #{transformer_tts_forward.69} parent=0 // pred_check_branch
    %11 = sbr.rel (0) target = $region9
  $region8: #{transformer_tts_forward.69} parent=0 // pred_region
    _
  $region9: #{transformer_tts_forward.69} parent=0 // pred_fallthru
    _
  // Predicated region
  $region10: #{transformer_tts_forward.69} parent=0 // pred_check
    _
  $region11: #{transformer_tts_forward.69} parent=0 // pred_check_branch
    %13 = sbr.rel (0) target = $region13
  $region12: #{transformer_tts_forward.69} parent=0 // pred_region
    _
  $region13: #{transformer_tts_forward.69} parent=0 // pred_fallthru
    _
  %p14 = scmp.eq.s32.totalorder 0, 0
  // Predicated region
  $region14: #{transformer_tts_forward.69} parent=0 // pred_check
    %p15 = pneg %p14
  $region15: #{transformer_tts_forward.69} parent=0 // pred_check_branch
    %17 = sbr.rel (%p15) target = $region17
  $region16: #{transformer_tts_forward.69} parent=0 // pred_region
    %vm18 = vcmask 261120
    %19 = vst.msk [vmem:[#allocation2] sm:$0xff] %vm18, 0.0
    %20 = vst.msk [vmem:[#allocation2 + $0x8] sm:$0xff] %vm18, 0.0
  $region17: #{transformer_tts_forward.69} parent=0 // pred_fallthru
    _
  %v21 = vld [vmem:[#allocation2] sm:$0xff]
  %v22 = vld [vmem:[#allocation2 + $0x8] sm:$0xff]
  %v23 = vld [vmem:[%s0] sm:$0xff]
  %v24 = vld [vmem:[%s0 + $0x8] sm:$0xff]
  %v25 = vld [vmem:[%s1] sm:$0xff]
  %v26 = vld [vmem:[%s1 + $0x8] sm:$0xff]
  %v27 = vld [vmem:[%s1 + $0x10] sm:$0xff]
  %v28 = vld [vmem:[%s1 + $0x18] sm:$0xff]
  %vm29 = vcmask 261120
  %v31 = vsel %vm29, %v23, 0
  %v34 = vsel %vm29, %v24, 0
  %36 = vmatprep.subr.mxu0 0.0
  %37 = vmatpush1.msra.mxu0 %v25
  %38 = vmatprep.subr.mxu0 0.0
  %39 = vmatpush1.msra.mxu0 %v26
  %40 = vmatprep.subr.mxu0 0.0
  %41 = vmatpush1.msra.mxu0 %v27
  %42 = vmatprep.subr.mxu0 0.0
  %43 = vmatpush1.msra.mxu0 %v28
  %44 = vmatprep.subr.mxu0 0.0
  %45 = vmatpush1.msra.mxu0 0.0
  %46 = vmatprep.subr.mxu0 0.0
  %47 = vmatpush1.msra.mxu0 0.0
  %48 = vmatprep.subr.mxu0 0.0
  %49 = vmatpush1.msra.mxu0 0.0
  %50 = vmatprep.subr.mxu0 0.0
  %51 = vmatpush1.msra.mxu0 0.0
  %52 = vmatprep.subr.mxu0 0.0
  %53 = vmatpush1.msra.mxu0 0.0
  %54 = vmatprep.subr.mxu0 0.0
  %55 = vmatpush1.msra.mxu0 0.0
  %56 = vmatprep.subr.mxu0 0.0
  %57 = vmatpush1.msra.mxu0 0.0
  %58 = vmatprep.subr.mxu0 0.0
  %59 = vmatpush1.msra.mxu0 0.0
  %60 = vmatprep.subr.mxu0 0.0
  %61 = vmatpush1.msra.mxu0 0.0
  %62 = vmatprep.subr.mxu0 0.0
  %63 = vmatpush1.msra.mxu0 0.0
  %64 = vmatprep.subr.mxu0 0.0
  %65 = vmatpush1.msra.mxu0 0.0
  %66 = vmatprep.subr.mxu0 0.0
  %67 = vmatpush1.msra.mxu0 0.0
  %68 = vmatprep.subr.mxu0 0.0
  %69 = vmatpush1.msra.mxu0 0.0
  %70 = vmatprep.subr.mxu0 0.0
  %71 = vmatpush1.msra.mxu0 0.0
  %72 = vmatprep.subr.mxu0 0.0
  %73 = vmatpush1.msra.mxu0 0.0
  %74 = vmatprep.subr.mxu0 0.0
  %75 = vmatpush1.msra.mxu0 0.0
  %76 = vmatprep.subr.mxu0 0.0
  %77 = vmatpush1.msra.mxu0 0.0
  %78 = vmatprep.subr.mxu0 0.0
  %79 = vmatpush1.msra.mxu0 0.0
  %80 = vmatprep.subr.mxu0 0.0
  %81 = vmatpush1.msra.mxu0 0.0
  %82 = vmatprep.subr.mxu0 0.0
  %83 = vmatpush1.msra.mxu0 0.0
  %84 = vmatprep.subr.mxu0 0.0
  %85 = vmatpush1.msra.mxu0 0.0
  %86 = vmatprep.subr.mxu0 0.0
  %87 = vmatpush1.msra.mxu0 0.0
  %88 = vmatprep.subr.mxu0 0.0
  %89 = vmatpush1.msra.mxu0 0.0
  %90 = vmatprep.subr.mxu0 0.0
  %91 = vmatpush1.msra.mxu0 0.0
  %92 = vmatprep.subr.mxu0 0.0
  %93 = vmatpush1.msra.mxu0 0.0
  %94 = vmatprep.subr.mxu0 0.0
  %95 = vmatpush1.msra.mxu0 0.0
  %96 = vmatprep.subr.mxu0 0.0
  %97 = vmatpush1.msra.mxu0 0.0
  %98 = vmatprep.subr.mxu0 0.0
  %99 = vmatpush1.msra.mxu0 0.0
  %100 = vmatprep.mubr.f32.mxu0 0.0
  %101 = vmatmul.mubr.f32.gmra.mrb[0].mxu0 %v31
  %v102 = vpop.f32.mrb[0].mxu0
  %v103 = vadd.f32 0.0, %v102
  %v104 = vpop.f32.mrb[0].mxu0
  %105 = vmatprep.mubr.f32.mxu0 0.0
  %106 = vmatmul.mubr.f32.gmra.mrb[0].mxu0 %v34
  %v107 = vpop.f32.mrb[0].mxu0
  %v108 = vadd.f32 0.0, %v107
  %v109 = vpop.f32.mrb[0].mxu0
  %110 = vdwg.mxu0
  %v111 = vadd.f32 %v21, %v103
  %v112 = vadd.f32 %v22, %v108
  %113 = vst.msk [vmem:[#allocation2] sm:$0xff] %vm29, %v111
  %114 = vst.msk [vmem:[#allocation2 + $0x8] sm:$0xff] %vm29, %v112
  // Predicated region
  $region18: #{transformer_tts_forward.69} parent=0 // pred_check
    %p115 = pneg %p14
  $region19: #{transformer_tts_forward.69} parent=0 // pred_check_branch
    %117 = sbr.rel (%p115) target = $region21
  $region20: #{transformer_tts_forward.69} parent=0 // pred_region
    %v118 = vld [vmem:[#allocation2] sm:$0xff]
    %v119 = vld [vmem:[#allocation2 + $0x8] sm:$0xff]
    %v120 = vld [vmem:[%s2] sm:$0x1]
    %v122 = vlaneseq
    %v123 = vshrl.u32 %v122, 7
    %v124 = vsub.s32 0, %v123
    %v125 = vrot.slane %v120, %v124
    %v127 = vadd.f32 %v118, %v125
    %v128 = vadd.f32 %v119, %v125
    %v129 = vmax.f32 %v127, 0.0
    %v130 = vmax.f32 %v128, 0.0
    %131 = vst.msk [vmem:[%s3] sm:$0xff] %vm29, %v129
    %132 = vst.msk [vmem:[%s3 + $0x8] sm:$0xff] %vm29, %v130
  $region21: #{transformer_tts_forward.69} parent=0 // pred_fallthru
    _
  // Predicated region
  $region22: #{transformer_tts_forward.69} parent=0 // pred_check
    _
  $region23: #{transformer_tts_forward.69} parent=0 // pred_check_branch
    %134 = sbr.rel (0) target = $region25
  $region24: #{transformer_tts_forward.69} parent=0 // pred_region
    _
  $region25: #{transformer_tts_forward.69} parent=0 // pred_fallthru
    _
  // Predicated region
  $region26: #{transformer_tts_forward.69} parent=0 // pred_check
    _
  $region27: #{transformer_tts_forward.69} parent=0 // pred_check_branch
    %136 = sbr.rel (0) target = $region29
  $region28: #{transformer_tts_forward.69} parent=0 // pred_region
    _
  $region29: #{transformer_tts_forward.69} parent=0 // pred_fallthru
    _

// kernel: transformer_tts_forward.70
$region0: #{transformer_tts_forward.70}
  #allocation0 [shape = 'u32[]', space=smem, size = 0x4, offset = 0x4, fixed_abs, tag = 'smem constant byte address 0x4 - core index']
  #allocation1 [shape = 'u32[144,128]{1,0:T(1,128)}', space=vmem, size = 0x12000, scoped, tag = 'internal scratch']
  #allocation2 [shape = 'f32[64,24]{1,0:T(8,128)}', space=vmem, size = 0x8000, scoped, tag = 'scratch operand']
  %s0 = inlined_call_operand.vmem [shape: f32[64,8], index: 0, kind: input, shape index: {}]
  %s1 = inlined_call_operand.vmem [shape: f32[8,24], index: 1, kind: input, shape index: {}]
  %s2 = inlined_call_operand.vmem [shape: f32[1,24], index: 2, kind: input, shape index: {}]
  %s3 = inlined_call_operand.vmem [shape: f32[64,24], index: 3, kind: output, shape index: {}]
  %s4 = sld [smem:[#allocation0]]
  $region30: #{transformer_tts_forward.70} parent=0
    _
  %s6 = ssub.s32 1, %s4
  %s7 = scalar_select 0, %s6, %s4
  // Predicated region
  $region2: #{transformer_tts_forward.70} parent=0 // pred_check
    _
  $region3: #{transformer_tts_forward.70} parent=0 // pred_check_branch
    %9 = sbr.rel (0) target = $region5
  $region4: #{transformer_tts_forward.70} parent=0 // pred_region
    _
  $region5: #{transformer_tts_forward.70} parent=0 // pred_fallthru
    _
  // Predicated region
  $region6: #{transformer_tts_forward.70} parent=0 // pred_check
    _
  $region7: #{transformer_tts_forward.70} parent=0 // pred_check_branch
    %11 = sbr.rel (0) target = $region9
  $region8: #{transformer_tts_forward.70} parent=0 // pred_region
    _
  $region9: #{transformer_tts_forward.70} parent=0 // pred_fallthru
    _
  // Predicated region
  $region10: #{transformer_tts_forward.70} parent=0 // pred_check
    _
  $region11: #{transformer_tts_forward.70} parent=0 // pred_check_branch
    %13 = sbr.rel (0) target = $region13
  $region12: #{transformer_tts_forward.70} parent=0 // pred_region
    _
  $region13: #{transformer_tts_forward.70} parent=0 // pred_fallthru
    _
  %p14 = scmp.eq.s32.totalorder 0, 0
  // Predicated region
  $region14: #{transformer_tts_forward.70} parent=0 // pred_check
    %p15 = pneg %p14
  $region15: #{transformer_tts_forward.70} parent=0 // pred_check_branch
    %17 = sbr.rel (%p15) target = $region17
  $region16: #{transformer_tts_forward.70} parent=0 // pred_region
    %vm18 = vcmask 195584
    %19 = vst.msk [vmem:[#allocation2] sm:$0xff] %vm18, 0.0
    %20 = vst.msk [vmem:[#allocation2 + $0x8] sm:$0xff] %vm18, 0.0
    %21 = vst.msk [vmem:[#allocation2 + $0x10] sm:$0xff] %vm18, 0.0
    %22 = vst.msk [vmem:[#allocation2 + $0x18] sm:$0xff] %vm18, 0.0
    %23 = vst.msk [vmem:[#allocation2 + $0x20] sm:$0xff] %vm18, 0.0
    %24 = vst.msk [vmem:[#allocation2 + $0x28] sm:$0xff] %vm18, 0.0
    %25 = vst.msk [vmem:[#allocation2 + $0x30] sm:$0xff] %vm18, 0.0
    %26 = vst.msk [vmem:[#allocation2 + $0x38] sm:$0xff] %vm18, 0.0
  $region17: #{transformer_tts_forward.70} parent=0 // pred_fallthru
    _
  %v27 = vld [vmem:[#allocation2] sm:$0xff]
  %v28 = vld [vmem:[#allocation2 + $0x8] sm:$0xff]
  %v29 = vld [vmem:[#allocation2 + $0x10] sm:$0xff]
  %v30 = vld [vmem:[#allocation2 + $0x18] sm:$0xff]
  %v31 = vld [vmem:[#allocation2 + $0x20] sm:$0xff]
  %v32 = vld [vmem:[#allocation2 + $0x28] sm:$0xff]
  %v33 = vld [vmem:[#allocation2 + $0x30] sm:$0xff]
  %v34 = vld [vmem:[#allocation2 + $0x38] sm:$0xff]
  %v35 = vld [vmem:[%s0] sm:$0xff]
  %v36 = vld [vmem:[%s0 + $0x8] sm:$0xff]
  %v37 = vld [vmem:[%s0 + $0x10] sm:$0xff]
  %v38 = vld [vmem:[%s0 + $0x18] sm:$0xff]
  %v39 = vld [vmem:[%s0 + $0x20] sm:$0xff]
  %v40 = vld [vmem:[%s0 + $0x28] sm:$0xff]
  %v41 = vld [vmem:[%s0 + $0x30] sm:$0xff]
  %v42 = vld [vmem:[%s0 + $0x38] sm:$0xff]
  %v43 = vld [vmem:[%s1] sm:$0xff]
  %vm44 = vcmask 64512
  %v46 = vsel %vm44, %v35, 0
  %v49 = vsel %vm44, %v36, 0
  %v52 = vsel %vm44, %v37, 0
  %v55 = vsel %vm44, %v38, 0
  %v58 = vsel %vm44, %v39, 0
  %v61 = vsel %vm44, %v40, 0
  %v64 = vsel %vm44, %v41, 0
  %v67 = vsel %vm44, %v42, 0
  %69 = vmatprep.subr.mxu0 0.0
  %70 = vmatpush1.msra.mxu0 %v43
  %71 = vmatprep.subr.mxu0 0.0
  %72 = vmatpush1.msra.mxu0 0.0
  %73 = vmatprep.subr.mxu0 0.0
  %74 = vmatpush1.msra.mxu0 0.0
  %75 = vmatprep.subr.mxu0 0.0
  %76 = vmatpush1.msra.mxu0 0.0
  %77 = vmatprep.subr.mxu0 0.0
  %78 = vmatpush1.msra.mxu0 0.0
  %79 = vmatprep.subr.mxu0 0.0
  %80 = vmatpush1.msra.mxu0 0.0
  %81 = vmatprep.subr.mxu0 0.0
  %82 = vmatpush1.msra.mxu0 0.0
  %83 = vmatprep.subr.mxu0 0.0
  %84 = vmatpush1.msra.mxu0 0.0
  %85 = vmatprep.subr.mxu0 0.0
  %86 = vmatpush1.msra.mxu0 0.0
  %87 = vmatprep.subr.mxu0 0.0
  %88 = vmatpush1.msra.mxu0 0.0
  %89 = vmatprep.subr.mxu0 0.0
  %90 = vmatpush1.msra.mxu0 0.0
  %91 = vmatprep.subr.mxu0 0.0
  %92 = vmatpush1.msra.mxu0 0.0
  %93 = vmatprep.subr.mxu0 0.0
  %94 = vmatpush1.msra.mxu0 0.0
  %95 = vmatprep.subr.mxu0 0.0
  %96 = vmatpush1.msra.mxu0 0.0
  %97 = vmatprep.subr.mxu0 0.0
  %98 = vmatpush1.msra.mxu0 0.0
  %99 = vmatprep.subr.mxu0 0.0
  %100 = vmatpush1.msra.mxu0 0.0
  %101 = vmatprep.subr.mxu0 0.0
  %102 = vmatpush1.msra.mxu0 0.0
  %103 = vmatprep.subr.mxu0 0.0
  %104 = vmatpush1.msra.mxu0 0.0
  %105 = vmatprep.subr.mxu0 0.0
  %106 = vmatpush1.msra.mxu0 0.0
  %107 = vmatprep.subr.mxu0 0.0
  %108 = vmatpush1.msra.mxu0 0.0
  %109 = vmatprep.subr.mxu0 0.0
  %110 = vmatpush1.msra.mxu0 0.0
  %111 = vmatprep.subr.mxu0 0.0
  %112 = vmatpush1.msra.mxu0 0.0
  %113 = vmatprep.subr.mxu0 0.0
  %114 = vmatpush1.msra.mxu0 0.0
  %115 = vmatprep.subr.mxu0 0.0
  %116 = vmatpush1.msra.mxu0 0.0
  %117 = vmatprep.subr.mxu0 0.0
  %118 = vmatpush1.msra.mxu0 0.0
  %119 = vmatprep.subr.mxu0 0.0
  %120 = vmatpush1.msra.mxu0 0.0
  %121 = vmatprep.subr.mxu0 0.0
  %122 = vmatpush1.msra.mxu0 0.0
  %123 = vmatprep.subr.mxu0 0.0
  %124 = vmatpush1.msra.mxu0 0.0
  %125 = vmatprep.subr.mxu0 0.0
  %126 = vmatpush1.msra.mxu0 0.0
  %127 = vmatprep.subr.mxu0 0.0
  %128 = vmatpush1.msra.mxu0 0.0
  %129 = vmatprep.subr.mxu0 0.0
  %130 = vmatpush1.msra.mxu0 0.0
  %131 = vmatprep.subr.mxu0 0.0
  %132 = vmatpush1.msra.mxu0 0.0
  %133 = vmatprep.mubr.f32.mxu0 0.0
  %134 = vmatmul.mubr.f32.gmra.mrb[0].mxu0 %v46
  %v135 = vpop.f32.mrb[0].mxu0
  %v136 = vadd.f32 0.0, %v135
  %v137 = vpop.f32.mrb[0].mxu0
  %138 = vmatprep.mubr.f32.mxu0 0.0
  %139 = vmatmul.mubr.f32.gmra.mrb[0].mxu0 %v49
  %v140 = vpop.f32.mrb[0].mxu0
  %v141 = vadd.f32 0.0, %v140
  %v142 = vpop.f32.mrb[0].mxu0
  %143 = vmatprep.mubr.f32.mxu0 0.0
  %144 = vmatmul.mubr.f32.gmra.mrb[0].mxu0 %v52
  %v145 = vpop.f32.mrb[0].mxu0
  %v146 = vadd.f32 0.0, %v145
  %v147 = vpop.f32.mrb[0].mxu0
  %148 = vmatprep.mubr.f32.mxu0 0.0
  %149 = vmatmul.mubr.f32.gmra.mrb[0].mxu0 %v55
  %v150 = vpop.f32.mrb[0].mxu0
  %v151 = vadd.f32 0.0, %v150
  %v152 = vpop.f32.mrb[0].mxu0
  %153 = vmatprep.mubr.f32.mxu0 0.0
  %154 = vmatmul.mubr.f32.gmra.mrb[0].mxu0 %v58
  %v155 = vpop.f32.mrb[0].mxu0
  %v156 = vadd.f32 0.0, %v155
  %v157 = vpop.f32.mrb[0].mxu0
  %158 = vmatprep.mubr.f32.mxu0 0.0
  %159 = vmatmul.mubr.f32.gmra.mrb[0].mxu0 %v61
  %v160 = vpop.f32.mrb[0].mxu0
  %v161 = vadd.f32 0.0, %v160
  %v162 = vpop.f32.mrb[0].mxu0
  %163 = vmatprep.mubr.f32.mxu0 0.0
  %164 = vmatmul.mubr.f32.gmra.mrb[0].mxu0 %v64
  %v165 = vpop.f32.mrb[0].mxu0
  %v166 = vadd.f32 0.0, %v165
  %v167 = vpop.f32.mrb[0].mxu0
  %168 = vmatprep.mubr.f32.mxu0 0.0
  %169 = vmatmul.mubr.f32.gmra.mrb[0].mxu0 %v67
  %v170 = vpop.f32.mrb[0].mxu0
  %v171 = vadd.f32 0.0, %v170
  %v172 = vpop.f32.mrb[0].mxu0
  %173 = vdwg.mxu0
  %v174 = vadd.f32 %v27, %v136
  %v175 = vadd.f32 %v28, %v141
  %v176 = vadd.f32 %v29, %v146
  %v177 = vadd.f32 %v30, %v151
  %v178 = vadd.f32 %v31, %v156
  %v179 = vadd.f32 %v32, %v161
  %v180 = vadd.f32 %v33, %v166
  %v181 = vadd.f32 %v34, %v171
  %vm182 = vcmask 195584
  %183 = vst.msk [vmem:[#allocation2] sm:$0xff] %vm182, %v174
  %184 = vst.msk [vmem:[#allocation2 + $0x8] sm:$0xff] %vm182, %v175
  %185 = vst.msk [vmem:[#allocation2 + $0x10] sm:$0xff] %vm182, %v176
  %186 = vst.msk [vmem:[#allocation2 + $0x18] sm:$0xff] %vm182, %v177
  %187 = vst.msk [vmem:[#allocation2 + $0x20] sm:$0xff] %vm182, %v178
  %188 = vst.msk [vmem:[#allocation2 + $0x28] sm:$0xff] %vm182, %v179
  %189 = vst.msk [vmem:[#allocation2 + $0x30] sm:$0xff] %vm182, %v180
  %190 = vst.msk [vmem:[#allocation2 + $0x38] sm:$0xff] %vm182, %v181
  // Predicated region
  $region18: #{transformer_tts_forward.70} parent=0 // pred_check
    %p191 = pneg %p14
  $region19: #{transformer_tts_forward.70} parent=0 // pred_check_branch
    %193 = sbr.rel (%p191) target = $region21
  $region20: #{transformer_tts_forward.70} parent=0 // pred_region
    %v194 = vld [vmem:[#allocation2] sm:$0xff]
    %v195 = vld [vmem:[#allocation2 + $0x8] sm:$0xff]
    %v196 = vld [vmem:[#allocation2 + $0x10] sm:$0xff]
    %v197 = vld [vmem:[#allocation2 + $0x18] sm:$0xff]
    %v198 = vld [vmem:[#allocation2 + $0x20] sm:$0xff]
    %v199 = vld [vmem:[#allocation2 + $0x28] sm:$0xff]
    %v200 = vld [vmem:[#allocation2 + $0x30] sm:$0xff]
    %v201 = vld [vmem:[#allocation2 + $0x38] sm:$0xff]
    %v202 = vld [vmem:[%s2] sm:$0x1]
    %v204 = vlaneseq
    %v205 = vshrl.u32 %v204, 7
    %v206 = vsub.s32 0, %v205
    %v207 = vrot.slane %v202, %v206
    %v209 = vadd.f32 %v194, %v207
    %v210 = vadd.f32 %v195, %v207
    %v211 = vadd.f32 %v196, %v207
    %v212 = vadd.f32 %v197, %v207
    %v213 = vadd.f32 %v198, %v207
    %v214 = vadd.f32 %v199, %v207
    %v215 = vadd.f32 %v200, %v207
    %v216 = vadd.f32 %v201, %v207
    %217 = vst.msk [vmem:[%s3] sm:$0xff] %vm182, %v209
    %218 = vst.msk [vmem:[%s3 + $0x8] sm:$0xff] %vm182, %v210
    %219 = vst.msk [vmem:[%s3 + $0x10] sm:$0xff] %vm182, %v211
    %220 = vst.msk [vmem:[%s3 + $0x18] sm:$0xff] %vm182, %v212
    %221 = vst.msk [vmem:[%s3 + $0x20] sm:$0xff] %vm182, %v213
    %222 = vst.msk [vmem:[%s3 + $0x28] sm:$0xff] %vm182, %v214
    %223 = vst.msk [vmem:[%s3 + $0x30] sm:$0xff] %vm182, %v215
    %224 = vst.msk [vmem:[%s3 + $0x38] sm:$0xff] %vm182, %v216
  $region21: #{transformer_tts_forward.70} parent=0 // pred_fallthru
    _
  // Predicated region
  $region22: #{transformer_tts_forward.70} parent=0 // pred_check
    _
  $region23: #{transformer_tts_forward.70} parent=0 // pred_check_branch
    %226 = sbr.rel (0) target = $region25
  $region24: #{transformer_tts_forward.70} parent=0 // pred_region
    _
  $region25: #{transformer_tts_forward.70} parent=0 // pred_fallthru
    _
  // Predicated region
  $region26: #{transformer_tts_forward.70} parent=0 // pred_check
    _
  $region27: #{transformer_tts_forward.70} parent=0 // pred_check_branch
    %228 = sbr.rel (0) target = $region29
  $region28: #{transformer_tts_forward.70} parent=0 // pred_region
    _
  $region29: #{transformer_tts_forward.70} parent=0 // pred_fallthru
    _

// kernel: transformer_tts_forward.72
$region0: #{transformer_tts_forward.72}
  #allocation0 [shape = 'u32[]', space=smem, size = 0x4, offset = 0x4, fixed_abs, tag = 'smem constant byte address 0x4 - core index']
  #allocation1 [shape = 'u32[144,128]{1,0:T(1,128)}', space=vmem, size = 0x12000, scoped, tag = 'internal scratch']
  %s0 = inlined_call_operand.vmem [shape: f32[16,32], index: 0, kind: input, shape index: {}]
  %s1 = inlined_call_operand.vmem [shape: f32[16,32], index: 1, kind: input, shape index: {}]
  %s2 = inlined_call_operand.vmem [shape: f32[32,32], index: 2, kind: input, shape index: {}]
  %s3 = inlined_call_operand.vmem [shape: f32[32,32], index: 3, kind: input, shape index: {}]
  %s4 = inlined_call_operand.vmem [shape: f32[1,32], index: 4, kind: input, shape index: {}]
  %s5 = inlined_call_operand.vmem [shape: f32[16,32], index: 5, kind: output, shape index: {}]
  %s6 = sld [smem:[#allocation0]]
  $region30: #{transformer_tts_forward.72} parent=0
    _
  %s8 = ssub.s32 1, %s6
  %s9 = scalar_select 0, %s8, %s6
  // Predicated region
  $region2: #{transformer_tts_forward.72} parent=0 // pred_check
    _
  $region3: #{transformer_tts_forward.72} parent=0 // pred_check_branch
    %11 = sbr.rel (0) target = $region5
  $region4: #{transformer_tts_forward.72} parent=0 // pred_region
    _
  $region5: #{transformer_tts_forward.72} parent=0 // pred_fallthru
    _
  // Predicated region
  $region6: #{transformer_tts_forward.72} parent=0 // pred_check
    _
  $region7: #{transformer_tts_forward.72} parent=0 // pred_check_branch
    %13 = sbr.rel (0) target = $region9
  $region8: #{transformer_tts_forward.72} parent=0 // pred_region
    _
  $region9: #{transformer_tts_forward.72} parent=0 // pred_fallthru
    _
  // Predicated region
  $region10: #{transformer_tts_forward.72} parent=0 // pred_check
    _
  $region11: #{transformer_tts_forward.72} parent=0 // pred_check_branch
    %15 = sbr.rel (0) target = $region13
  $region12: #{transformer_tts_forward.72} parent=0 // pred_region
    _
  $region13: #{transformer_tts_forward.72} parent=0 // pred_fallthru
    _
  // Predicated region
  $region14: #{transformer_tts_forward.72} parent=0 // pred_check
    _
  $region15: #{transformer_tts_forward.72} parent=0 // pred_check_branch
    %17 = sbr.rel (0) target = $region17
  $region16: #{transformer_tts_forward.72} parent=0 // pred_region
    _
  $region17: #{transformer_tts_forward.72} parent=0 // pred_fallthru
    _
  // Predicated region
  $region18: #{transformer_tts_forward.72} parent=0 // pred_check
    _
  $region19: #{transformer_tts_forward.72} parent=0 // pred_check_branch
    %19 = sbr.rel (0) target = $region21
  $region20: #{transformer_tts_forward.72} parent=0 // pred_region
    _
  $region21: #{transformer_tts_forward.72} parent=0 // pred_fallthru
    _
  %v20 = vld [vmem:[%s0] sm:$0xff]
  %v21 = vld [vmem:[%s0 + $0x8] sm:$0xff]
  %v22 = vld [vmem:[%s2] sm:$0xff]
  %v23 = vld [vmem:[%s2 + $0x8] sm:$0xff]
  %v24 = vld [vmem:[%s2 + $0x10] sm:$0xff]
  %v25 = vld [vmem:[%s2 + $0x18] sm:$0xff]
  %v26 = vld [vmem:[%s1] sm:$0xff]
  %v27 = vld [vmem:[%s1 + $0x8] sm:$0xff]
  %v28 = vld [vmem:[%s3] sm:$0xff]
  %v29 = vld [vmem:[%s3 + $0x8] sm:$0xff]
  %v30 = vld [vmem:[%s3 + $0x10] sm:$0xff]
  %v31 = vld [vmem:[%s3 + $0x18] sm:$0xff]
  %vm32 = vcmask 261120
  %v34 = vsel %vm32, %v26, 0
  %v37 = vsel %vm32, %v27, 0
  %39 = vmatprep.subr.mxu0 0.0
  %40 = vmatpush1.msra.mxu0 %v28
  %41 = vmatprep.subr.mxu0 0.0
  %42 = vmatpush1.msra.mxu0 %v29
  %43 = vmatprep.subr.mxu0 0.0
  %44 = vmatpush1.msra.mxu0 %v30
  %45 = vmatprep.subr.mxu0 0.0
  %46 = vmatpush1.msra.mxu0 %v31
  %47 = vmatprep.subr.mxu0 0.0
  %48 = vmatpush1.msra.mxu0 0.0
  %49 = vmatprep.subr.mxu0 0.0
  %50 = vmatpush1.msra.mxu0 0.0
  %51 = vmatprep.subr.mxu0 0.0
  %52 = vmatpush1.msra.mxu0 0.0
  %53 = vmatprep.subr.mxu0 0.0
  %54 = vmatpush1.msra.mxu0 0.0
  %55 = vmatprep.subr.mxu0 0.0
  %56 = vmatpush1.msra.mxu0 0.0
  %57 = vmatprep.subr.mxu0 0.0
  %58 = vmatpush1.msra.mxu0 0.0
  %59 = vmatprep.subr.mxu0 0.0
  %60 = vmatpush1.msra.mxu0 0.0
  %61 = vmatprep.subr.mxu0 0.0
  %62 = vmatpush1.msra.mxu0 0.0
  %63 = vmatprep.subr.mxu0 0.0
  %64 = vmatpush1.msra.mxu0 0.0
  %65 = vmatprep.subr.mxu0 0.0
  %66 = vmatpush1.msra.mxu0 0.0
  %67 = vmatprep.subr.mxu0 0.0
  %68 = vmatpush1.msra.mxu0 0.0
  %69 = vmatprep.subr.mxu0 0.0
  %70 = vmatpush1.msra.mxu0 0.0
  %71 = vmatprep.subr.mxu0 0.0
  %72 = vmatpush1.msra.mxu0 0.0
  %73 = vmatprep.subr.mxu0 0.0
  %74 = vmatpush1.msra.mxu0 0.0
  %75 = vmatprep.subr.mxu0 0.0
  %76 = vmatpush1.msra.mxu0 0.0
  %77 = vmatprep.subr.mxu0 0.0
  %78 = vmatpush1.msra.mxu0 0.0
  %79 = vmatprep.subr.mxu0 0.0
  %80 = vmatpush1.msra.mxu0 0.0
  %81 = vmatprep.subr.mxu0 0.0
  %82 = vmatpush1.msra.mxu0 0.0
  %83 = vmatprep.subr.mxu0 0.0
  %84 = vmatpush1.msra.mxu0 0.0
  %85 = vmatprep.subr.mxu0 0.0
  %86 = vmatpush1.msra.mxu0 0.0
  %87 = vmatprep.subr.mxu0 0.0
  %88 = vmatpush1.msra.mxu0 0.0
  %89 = vmatprep.subr.mxu0 0.0
  %90 = vmatpush1.msra.mxu0 0.0
  %91 = vmatprep.subr.mxu0 0.0
  %92 = vmatpush1.msra.mxu0 0.0
  %93 = vmatprep.subr.mxu0 0.0
  %94 = vmatpush1.msra.mxu0 0.0
  %95 = vmatprep.subr.mxu0 0.0
  %96 = vmatpush1.msra.mxu0 0.0
  %97 = vmatprep.subr.mxu0 0.0
  %98 = vmatpush1.msra.mxu0 0.0
  %99 = vmatprep.subr.mxu0 0.0
  %100 = vmatpush1.msra.mxu0 0.0
  %101 = vmatprep.subr.mxu0 0.0
  %102 = vmatpush1.msra.mxu0 0.0
  %103 = vmatprep.mubr.f32.mxu0 0.0
  %104 = vmatmul.mubr.f32.gmra.mrb[0].mxu0 %v34
  %v105 = vpop.f32.mrb[0].mxu0
  %v106 = vadd.f32 0.0, %v105
  %v107 = vpop.f32.mrb[0].mxu0
  %108 = vmatprep.mubr.f32.mxu0 0.0
  %109 = vmatmul.mubr.f32.gmra.mrb[0].mxu0 %v37
  %v110 = vpop.f32.mrb[0].mxu0
  %v111 = vadd.f32 0.0, %v110
  %v112 = vpop.f32.mrb[0].mxu0
  %113 = vdwg.mxu0
  %v115 = vsel %vm32, %v20, 0
  %v118 = vsel %vm32, %v21, 0
  %120 = vmatprep.subr.mxu0 0.0
  %121 = vmatpush1.msra.mxu0 %v22
  %122 = vmatprep.subr.mxu0 0.0
  %123 = vmatpush1.msra.mxu0 %v23
  %124 = vmatprep.subr.mxu0 0.0
  %125 = vmatpush1.msra.mxu0 %v24
  %126 = vmatprep.subr.mxu0 0.0
  %127 = vmatpush1.msra.mxu0 %v25
  %128 = vmatprep.subr.mxu0 0.0
  %129 = vmatpush1.msra.mxu0 0.0
  %130 = vmatprep.subr.mxu0 0.0
  %131 = vmatpush1.msra.mxu0 0.0
  %132 = vmatprep.subr.mxu0 0.0
  %133 = vmatpush1.msra.mxu0 0.0
  %134 = vmatprep.subr.mxu0 0.0
  %135 = vmatpush1.msra.mxu0 0.0
  %136 = vmatprep.subr.mxu0 0.0
  %137 = vmatpush1.msra.mxu0 0.0
  %138 = vmatprep.subr.mxu0 0.0
  %139 = vmatpush1.msra.mxu0 0.0
  %140 = vmatprep.subr.mxu0 0.0
  %141 = vmatpush1.msra.mxu0 0.0
  %142 = vmatprep.subr.mxu0 0.0
  %143 = vmatpush1.msra.mxu0 0.0
  %144 = vmatprep.subr.mxu0 0.0
  %145 = vmatpush1.msra.mxu0 0.0
  %146 = vmatprep.subr.mxu0 0.0
  %147 = vmatpush1.msra.mxu0 0.0
  %148 = vmatprep.subr.mxu0 0.0
  %149 = vmatpush1.msra.mxu0 0.0
  %150 = vmatprep.subr.mxu0 0.0
  %151 = vmatpush1.msra.mxu0 0.0
  %152 = vmatprep.subr.mxu0 0.0
  %153 = vmatpush1.msra.mxu0 0.0
  %154 = vmatprep.subr.mxu0 0.0
  %155 = vmatpush1.msra.mxu0 0.0
  %156 = vmatprep.subr.mxu0 0.0
  %157 = vmatpush1.msra.mxu0 0.0
  %158 = vmatprep.subr.mxu0 0.0
  %159 = vmatpush1.msra.mxu0 0.0
  %160 = vmatprep.subr.mxu0 0.0
  %161 = vmatpush1.msra.mxu0 0.0
  %162 = vmatprep.subr.mxu0 0.0
  %163 = vmatpush1.msra.mxu0 0.0
  %164 = vmatprep.subr.mxu0 0.0
  %165 = vmatpush1.msra.mxu0 0.0
  %166 = vmatprep.subr.mxu0 0.0
  %167 = vmatpush1.msra.mxu0 0.0
  %168 = vmatprep.subr.mxu0 0.0
  %169 = vmatpush1.msra.mxu0 0.0
  %170 = vmatprep.subr.mxu0 0.0
  %171 = vmatpush1.msra.mxu0 0.0
  %172 = vmatprep.subr.mxu0 0.0
  %173 = vmatpush1.msra.mxu0 0.0
  %174 = vmatprep.subr.mxu0 0.0
  %175 = vmatpush1.msra.mxu0 0.0
  %176 = vmatprep.subr.mxu0 0.0
  %177 = vmatpush1.msra.mxu0 0.0
  %178 = vmatprep.subr.mxu0 0.0
  %179 = vmatpush1.msra.mxu0 0.0
  %180 = vmatprep.subr.mxu0 0.0
  %181 = vmatpush1.msra.mxu0 0.0
  %182 = vmatprep.subr.mxu0 0.0
  %183 = vmatpush1.msra.mxu0 0.0
  %184 = vmatprep.mubr.f32.mxu0 0.0
  %185 = vmatmul.mubr.f32.gmra.mrb[0].mxu0 %v115
  %v186 = vpop.f32.mrb[0].mxu0
  %v187 = vadd.f32 %v106, %v186
  %v188 = vpop.f32.mrb[0].mxu0
  %189 = vmatprep.mubr.f32.mxu0 0.0
  %190 = vmatmul.mubr.f32.gmra.mrb[0].mxu0 %v118
  %v191 = vpop.f32.mrb[0].mxu0
  %v192 = vadd.f32 %v111, %v191
  %v193 = vpop.f32.mrb[0].mxu0
  %194 = vdwg.mxu0
  %v195 = vld [vmem:[%s4] sm:$0x1]
  %v197 = vlaneseq
  %v198 = vshrl.u32 %v197, 7
  %v199 = vsub.s32 0, %v198
  %v200 = vrot.slane %v195, %v199
  %v202 = vadd.f32 %v187, %v200
  %v203 = vadd.f32 %v192, %v200
  %204 = vst.msk [vmem:[%s5] sm:$0xff] %vm32, %v202
  %205 = vst.msk [vmem:[%s5 + $0x8] sm:$0xff] %vm32, %v203
  // Predicated region
  $region22: #{transformer_tts_forward.72} parent=0 // pred_check
    _
  $region23: #{transformer_tts_forward.72} parent=0 // pred_check_branch
    %207 = sbr.rel (0) target = $region25
  $region24: #{transformer_tts_forward.72} parent=0 // pred_region
    _
  $region25: #{transformer_tts_forward.72} parent=0 // pred_fallthru
    _
  // Predicated region
  $region26: #{transformer_tts_forward.72} parent=0 // pred_check
    _
  $region27: #{transformer_tts_forward.72} parent=0 // pred_check_branch
    %209 = sbr.rel (0) target = $region29
  $region28: #{transformer_tts_forward.72} parent=0 // pred_region
    _
  $region29: #{transformer_tts_forward.72} parent=0 // pred_fallthru
    _

// kernel: transformer_tts_forward.73
$region0: #{transformer_tts_forward.73}
  #allocation0 [shape = 'u32[]', space=smem, size = 0x4, offset = 0x4, fixed_abs, tag = 'smem constant byte address 0x4 - core index']
  #allocation1 [shape = 'u32[144,128]{1,0:T(1,128)}', space=vmem, size = 0x12000, scoped, tag = 'internal scratch']
  %s0 = inlined_call_operand.vmem [shape: f32[16,32], index: 0, kind: input, shape index: {}]
  %s1 = inlined_call_operand.vmem [shape: f32[16,32], index: 1, kind: input, shape index: {}]
  %s2 = inlined_call_operand.vmem [shape: f32[1,32], index: 2, kind: input, shape index: {}]
  %s3 = inlined_call_operand.vmem [shape: f32[1,32], index: 3, kind: input, shape index: {}]
  %s4 = inlined_call_operand.vmem [shape: f32[16,32], index: 4, kind: output, shape index: {}]
  %s5 = sld [smem:[#allocation0]]
  $region26: #{transformer_tts_forward.73} parent=0
    _
  %s7 = ssub.s32 1, %s5
  %s8 = scalar_select 0, %s7, %s5
  // Predicated region
  $region2: #{transformer_tts_forward.73} parent=0 // pred_check
    _
  $region3: #{transformer_tts_forward.73} parent=0 // pred_check_branch
    %10 = sbr.rel (0) target = $region5
  $region4: #{transformer_tts_forward.73} parent=0 // pred_region
    _
  $region5: #{transformer_tts_forward.73} parent=0 // pred_fallthru
    _
  // Predicated region
  $region6: #{transformer_tts_forward.73} parent=0 // pred_check
    _
  $region7: #{transformer_tts_forward.73} parent=0 // pred_check_branch
    %12 = sbr.rel (0) target = $region9
  $region8: #{transformer_tts_forward.73} parent=0 // pred_region
    _
  $region9: #{transformer_tts_forward.73} parent=0 // pred_fallthru
    _
  // Predicated region
  $region10: #{transformer_tts_forward.73} parent=0 // pred_check
    _
  $region11: #{transformer_tts_forward.73} parent=0 // pred_check_branch
    %14 = sbr.rel (0) target = $region13
  $region12: #{transformer_tts_forward.73} parent=0 // pred_region
    _
  $region13: #{transformer_tts_forward.73} parent=0 // pred_fallthru
    _
  // Predicated region
  $region14: #{transformer_tts_forward.73} parent=0 // pred_check
    _
  $region15: #{transformer_tts_forward.73} parent=0 // pred_check_branch
    %16 = sbr.rel (0) target = $region17
  $region16: #{transformer_tts_forward.73} parent=0 // pred_region
    _
  $region17: #{transformer_tts_forward.73} parent=0 // pred_fallthru
    _
  %v17 = vld [vmem:[%s0] sm:$0xff]
  %v18 = vld [vmem:[%s0 + $0x8] sm:$0xff]
  %v19 = vld [vmem:[%s1] sm:$0xff]
  %v20 = vld [vmem:[%s1 + $0x8] sm:$0xff]
  %v21 = vadd.f32 %v17, %v19
  %v22 = vadd.f32 %v18, %v20
  %vm23 = vcmask 261120
  %v24 = vsel %vm23, %v21, 0.0
  %25 = vadd.xlane.f32.xlu0 %v24
  %v26 = vpop.xlane.xlu0 %25
  %v27 = vsel %vm23, %v22, 0.0
  %28 = vadd.xlane.f32.xlu0 %v27
  %v29 = vpop.xlane.xlu0 %28
  %v30 = vrcp.pop 32.0
  %v31 = vmul.f32 %v26, %v30
  %v32 = vmul.f32 %v29, %v30
  %v33 = vsub.f32 %v21, %v31
  %v34 = vsub.f32 %v22, %v32
  %v35 = vmul.f32 %v33, %v33
  %v36 = vmul.f32 %v34, %v34
  %v37 = vsel %vm23, %v35, 0.0
  %38 = vadd.xlane.f32.xlu0 %v37
  %v39 = vpop.xlane.xlu0 %38
  %v40 = vsel %vm23, %v36, 0.0
  %41 = vadd.xlane.f32.xlu0 %v40
  %v42 = vpop.xlane.xlu0 %41
  %v43 = vmul.f32 %v39, %v30
  %v44 = vmul.f32 %v42, %v30
  %v45 = vadd.f32 %v43, 1e-05
  %v46 = vadd.f32 %v44, 1e-05
  %v47 = vrsqrt.pop %v45
  %v48 = vrsqrt.pop %v46
  %v49 = vmul.f32 %v33, %v47
  %v50 = vmul.f32 %v34, %v48
  %v51 = vld [vmem:[%s2] sm:$0x1]
  %v53 = vlaneseq
  %v54 = vshrl.u32 %v53, 7
  %v55 = vsub.s32 0, %v54
  %v56 = vrot.slane %v51, %v55
  %v58 = vmul.f32 %v49, %v56
  %v59 = vmul.f32 %v50, %v56
  %v60 = vld [vmem:[%s3] sm:$0x1]
  %v62 = vlaneseq
  %v63 = vshrl.u32 %v62, 7
  %v64 = vsub.s32 0, %v63
  %v65 = vrot.slane %v60, %v64
  %v67 = vadd.f32 %v58, %v65
  %v68 = vadd.f32 %v59, %v65
  %69 = vst.msk [vmem:[%s4] sm:$0xff] %vm23, %v67
  %70 = vst.msk [vmem:[%s4 + $0x8] sm:$0xff] %vm23, %v68
  // Predicated region
  $region18: #{transformer_tts_forward.73} parent=0 // pred_check
    _
  $region19: #{transformer_tts_forward.73} parent=0 // pred_check_branch
    %72 = sbr.rel (0) target = $region21
  $region20: #{transformer_tts_forward.73} parent=0 // pred_region
    _
  $region21: #{transformer_tts_forward.73} parent=0 // pred_fallthru
    _
  // Predicated region
  $region22: #{transformer_tts_forward.73} parent=0 // pred_check
    _
  $region23: #{transformer_tts_forward.73} parent=0 // pred_check_branch
    %74 = sbr.rel (0) target = $region25
  $region24: #{transformer_tts_forward.73} parent=0 // pred_region
    _
  $region25: #{transformer_tts_forward.73} parent=0 // pred_fallthru
    _

// kernel: transformer_tts_forward.74
$region0: #{transformer_tts_forward.74}
  #allocation0 [shape = 'u32[]', space=smem, size = 0x4, offset = 0x4, fixed_abs, tag = 'smem constant byte address 0x4 - core index']
  #allocation1 [shape = 'u32[144,128]{1,0:T(1,128)}', space=vmem, size = 0x12000, scoped, tag = 'internal scratch']
  #allocation2 [shape = 'f32[64,8]{1,0:T(8,128)}', space=vmem, size = 0x8000, scoped, tag = 'scratch operand']
  %s0 = inlined_call_operand.vmem [shape: f32[64,8], index: 0, kind: input, shape index: {}]
  %s1 = inlined_call_operand.vmem [shape: f32[8,8], index: 1, kind: input, shape index: {}]
  %s2 = inlined_call_operand.vmem [shape: f32[1,8], index: 2, kind: input, shape index: {}]
  %s3 = inlined_call_operand.vmem [shape: f32[64,8], index: 3, kind: output, shape index: {}]
  %s4 = sld [smem:[#allocation0]]
  $region30: #{transformer_tts_forward.74} parent=0
    _
  %s6 = ssub.s32 1, %s4
  %s7 = scalar_select 0, %s6, %s4
  // Predicated region
  $region2: #{transformer_tts_forward.74} parent=0 // pred_check
    _
  $region3: #{transformer_tts_forward.74} parent=0 // pred_check_branch
    %9 = sbr.rel (0) target = $region5
  $region4: #{transformer_tts_forward.74} parent=0 // pred_region
    _
  $region5: #{transformer_tts_forward.74} parent=0 // pred_fallthru
    _
  // Predicated region
  $region6: #{transformer_tts_forward.74} parent=0 // pred_check
    _
  $region7: #{transformer_tts_forward.74} parent=0 // pred_check_branch
    %11 = sbr.rel (0) target = $region9
  $region8: #{transformer_tts_forward.74} parent=0 // pred_region
    _
  $region9: #{transformer_tts_forward.74} parent=0 // pred_fallthru
    _
  // Predicated region
  $region10: #{transformer_tts_forward.74} parent=0 // pred_check
    _
  $region11: #{transformer_tts_forward.74} parent=0 // pred_check_branch
    %13 = sbr.rel (0) target = $region13
  $region12: #{transformer_tts_forward.74} parent=0 // pred_region
    _
  $region13: #{transformer_tts_forward.74} parent=0 // pred_fallthru
    _
  %p14 = scmp.eq.s32.totalorder 0, 0
  // Predicated region
  $region14: #{transformer_tts_forward.74} parent=0 // pred_check
    %p15 = pneg %p14
  $region15: #{transformer_tts_forward.74} parent=0 // pred_check_branch
    %17 = sbr.rel (%p15) target = $region17
  $region16: #{transformer_tts_forward.74} parent=0 // pred_region
    %vm18 = vcmask 64512
    %19 = vst.msk [vmem:[#allocation2] sm:$0xff] %vm18, 0.0
    %20 = vst.msk [vmem:[#allocation2 + $0x8] sm:$0xff] %vm18, 0.0
    %21 = vst.msk [vmem:[#allocation2 + $0x10] sm:$0xff] %vm18, 0.0
    %22 = vst.msk [vmem:[#allocation2 + $0x18] sm:$0xff] %vm18, 0.0
    %23 = vst.msk [vmem:[#allocation2 + $0x20] sm:$0xff] %vm18, 0.0
    %24 = vst.msk [vmem:[#allocation2 + $0x28] sm:$0xff] %vm18, 0.0
    %25 = vst.msk [vmem:[#allocation2 + $0x30] sm:$0xff] %vm18, 0.0
    %26 = vst.msk [vmem:[#allocation2 + $0x38] sm:$0xff] %vm18, 0.0
  $region17: #{transformer_tts_forward.74} parent=0 // pred_fallthru
    _
  %v27 = vld [vmem:[#allocation2] sm:$0xff]
  %v28 = vld [vmem:[#allocation2 + $0x8] sm:$0xff]
  %v29 = vld [vmem:[#allocation2 + $0x10] sm:$0xff]
  %v30 = vld [vmem:[#allocation2 + $0x18] sm:$0xff]
  %v31 = vld [vmem:[#allocation2 + $0x20] sm:$0xff]
  %v32 = vld [vmem:[#allocation2 + $0x28] sm:$0xff]
  %v33 = vld [vmem:[#allocation2 + $0x30] sm:$0xff]
  %v34 = vld [vmem:[#allocation2 + $0x38] sm:$0xff]
  %v35 = vld [vmem:[%s0] sm:$0xff]
  %v36 = vld [vmem:[%s0 + $0x8] sm:$0xff]
  %v37 = vld [vmem:[%s0 + $0x10] sm:$0xff]
  %v38 = vld [vmem:[%s0 + $0x18] sm:$0xff]
  %v39 = vld [vmem:[%s0 + $0x20] sm:$0xff]
  %v40 = vld [vmem:[%s0 + $0x28] sm:$0xff]
  %v41 = vld [vmem:[%s0 + $0x30] sm:$0xff]
  %v42 = vld [vmem:[%s0 + $0x38] sm:$0xff]
  %v43 = vld [vmem:[%s1] sm:$0xff]
  %vm44 = vcmask 64512
  %v46 = vsel %vm44, %v35, 0
  %v49 = vsel %vm44, %v36, 0
  %v52 = vsel %vm44, %v37, 0
  %v55 = vsel %vm44, %v38, 0
  %v58 = vsel %vm44, %v39, 0
  %v61 = vsel %vm44, %v40, 0
  %v64 = vsel %vm44, %v41, 0
  %v67 = vsel %vm44, %v42, 0
  %69 = vmatprep.subr.mxu0 0.0
  %70 = vmatpush1.msra.mxu0 %v43
  %71 = vmatprep.subr.mxu0 0.0
  %72 = vmatpush1.msra.mxu0 0.0
  %73 = vmatprep.subr.mxu0 0.0
  %74 = vmatpush1.msra.mxu0 0.0
  %75 = vmatprep.subr.mxu0 0.0
  %76 = vmatpush1.msra.mxu0 0.0
  %77 = vmatprep.subr.mxu0 0.0
  %78 = vmatpush1.msra.mxu0 0.0
  %79 = vmatprep.subr.mxu0 0.0
  %80 = vmatpush1.msra.mxu0 0.0
  %81 = vmatprep.subr.mxu0 0.0
  %82 = vmatpush1.msra.mxu0 0.0
  %83 = vmatprep.subr.mxu0 0.0
  %84 = vmatpush1.msra.mxu0 0.0
  %85 = vmatprep.subr.mxu0 0.0
  %86 = vmatpush1.msra.mxu0 0.0
  %87 = vmatprep.subr.mxu0 0.0
  %88 = vmatpush1.msra.mxu0 0.0
  %89 = vmatprep.subr.mxu0 0.0
  %90 = vmatpush1.msra.mxu0 0.0
  %91 = vmatprep.subr.mxu0 0.0
  %92 = vmatpush1.msra.mxu0 0.0
  %93 = vmatprep.subr.mxu0 0.0
  %94 = vmatpush1.msra.mxu0 0.0
  %95 = vmatprep.subr.mxu0 0.0
  %96 = vmatpush1.msra.mxu0 0.0
  %97 = vmatprep.subr.mxu0 0.0
  %98 = vmatpush1.msra.mxu0 0.0
  %99 = vmatprep.subr.mxu0 0.0
  %100 = vmatpush1.msra.mxu0 0.0
  %101 = vmatprep.subr.mxu0 0.0
  %102 = vmatpush1.msra.mxu0 0.0
  %103 = vmatprep.subr.mxu0 0.0
  %104 = vmatpush1.msra.mxu0 0.0
  %105 = vmatprep.subr.mxu0 0.0
  %106 = vmatpush1.msra.mxu0 0.0
  %107 = vmatprep.subr.mxu0 0.0
  %108 = vmatpush1.msra.mxu0 0.0
  %109 = vmatprep.subr.mxu0 0.0
  %110 = vmatpush1.msra.mxu0 0.0
  %111 = vmatprep.subr.mxu0 0.0
  %112 = vmatpush1.msra.mxu0 0.0
  %113 = vmatprep.subr.mxu0 0.0
  %114 = vmatpush1.msra.mxu0 0.0
  %115 = vmatprep.subr.mxu0 0.0
  %116 = vmatpush1.msra.mxu0 0.0
  %117 = vmatprep.subr.mxu0 0.0
  %118 = vmatpush1.msra.mxu0 0.0
  %119 = vmatprep.subr.mxu0 0.0
  %120 = vmatpush1.msra.mxu0 0.0
  %121 = vmatprep.subr.mxu0 0.0
  %122 = vmatpush1.msra.mxu0 0.0
  %123 = vmatprep.subr.mxu0 0.0
  %124 = vmatpush1.msra.mxu0 0.0
  %125 = vmatprep.subr.mxu0 0.0
  %126 = vmatpush1.msra.mxu0 0.0
  %127 = vmatprep.subr.mxu0 0.0
  %128 = vmatpush1.msra.mxu0 0.0
  %129 = vmatprep.subr.mxu0 0.0
  %130 = vmatpush1.msra.mxu0 0.0
  %131 = vmatprep.subr.mxu0 0.0
  %132 = vmatpush1.msra.mxu0 0.0
  %133 = vmatprep.mubr.f32.mxu0 0.0
  %134 = vmatmul.mubr.f32.gmra.mrb[0].mxu0 %v46
  %v135 = vpop.f32.mrb[0].mxu0
  %v136 = vadd.f32 0.0, %v135
  %v137 = vpop.f32.mrb[0].mxu0
  %138 = vmatprep.mubr.f32.mxu0 0.0
  %139 = vmatmul.mubr.f32.gmra.mrb[0].mxu0 %v49
  %v140 = vpop.f32.mrb[0].mxu0
  %v141 = vadd.f32 0.0, %v140
  %v142 = vpop.f32.mrb[0].mxu0
  %143 = vmatprep.mubr.f32.mxu0 0.0
  %144 = vmatmul.mubr.f32.gmra.mrb[0].mxu0 %v52
  %v145 = vpop.f32.mrb[0].mxu0
  %v146 = vadd.f32 0.0, %v145
  %v147 = vpop.f32.mrb[0].mxu0
  %148 = vmatprep.mubr.f32.mxu0 0.0
  %149 = vmatmul.mubr.f32.gmra.mrb[0].mxu0 %v55
  %v150 = vpop.f32.mrb[0].mxu0
  %v151 = vadd.f32 0.0, %v150
  %v152 = vpop.f32.mrb[0].mxu0
  %153 = vmatprep.mubr.f32.mxu0 0.0
  %154 = vmatmul.mubr.f32.gmra.mrb[0].mxu0 %v58
  %v155 = vpop.f32.mrb[0].mxu0
  %v156 = vadd.f32 0.0, %v155
  %v157 = vpop.f32.mrb[0].mxu0
  %158 = vmatprep.mubr.f32.mxu0 0.0
  %159 = vmatmul.mubr.f32.gmra.mrb[0].mxu0 %v61
  %v160 = vpop.f32.mrb[0].mxu0
  %v161 = vadd.f32 0.0, %v160
  %v162 = vpop.f32.mrb[0].mxu0
  %163 = vmatprep.mubr.f32.mxu0 0.0
  %164 = vmatmul.mubr.f32.gmra.mrb[0].mxu0 %v64
  %v165 = vpop.f32.mrb[0].mxu0
  %v166 = vadd.f32 0.0, %v165
  %v167 = vpop.f32.mrb[0].mxu0
  %168 = vmatprep.mubr.f32.mxu0 0.0
  %169 = vmatmul.mubr.f32.gmra.mrb[0].mxu0 %v67
  %v170 = vpop.f32.mrb[0].mxu0
  %v171 = vadd.f32 0.0, %v170
  %v172 = vpop.f32.mrb[0].mxu0
  %173 = vdwg.mxu0
  %v174 = vadd.f32 %v27, %v136
  %v175 = vadd.f32 %v28, %v141
  %v176 = vadd.f32 %v29, %v146
  %v177 = vadd.f32 %v30, %v151
  %v178 = vadd.f32 %v31, %v156
  %v179 = vadd.f32 %v32, %v161
  %v180 = vadd.f32 %v33, %v166
  %v181 = vadd.f32 %v34, %v171
  %182 = vst.msk [vmem:[#allocation2] sm:$0xff] %vm44, %v174
  %183 = vst.msk [vmem:[#allocation2 + $0x8] sm:$0xff] %vm44, %v175
  %184 = vst.msk [vmem:[#allocation2 + $0x10] sm:$0xff] %vm44, %v176
  %185 = vst.msk [vmem:[#allocation2 + $0x18] sm:$0xff] %vm44, %v177
  %186 = vst.msk [vmem:[#allocation2 + $0x20] sm:$0xff] %vm44, %v178
  %187 = vst.msk [vmem:[#allocation2 + $0x28] sm:$0xff] %vm44, %v179
  %188 = vst.msk [vmem:[#allocation2 + $0x30] sm:$0xff] %vm44, %v180
  %189 = vst.msk [vmem:[#allocation2 + $0x38] sm:$0xff] %vm44, %v181
  // Predicated region
  $region18: #{transformer_tts_forward.74} parent=0 // pred_check
    %p190 = pneg %p14
  $region19: #{transformer_tts_forward.74} parent=0 // pred_check_branch
    %192 = sbr.rel (%p190) target = $region21
  $region20: #{transformer_tts_forward.74} parent=0 // pred_region
    %v193 = vld [vmem:[#allocation2] sm:$0xff]
    %v194 = vld [vmem:[#allocation2 + $0x8] sm:$0xff]
    %v195 = vld [vmem:[#allocation2 + $0x10] sm:$0xff]
    %v196 = vld [vmem:[#allocation2 + $0x18] sm:$0xff]
    %v197 = vld [vmem:[#allocation2 + $0x20] sm:$0xff]
    %v198 = vld [vmem:[#allocation2 + $0x28] sm:$0xff]
    %v199 = vld [vmem:[#allocation2 + $0x30] sm:$0xff]
    %v200 = vld [vmem:[#allocation2 + $0x38] sm:$0xff]
    %v201 = vld [vmem:[%s2] sm:$0x1]
    %v203 = vlaneseq
    %v204 = vshrl.u32 %v203, 7
    %v205 = vsub.s32 0, %v204
    %v206 = vrot.slane %v201, %v205
    %v208 = vadd.f32 %v193, %v206
    %v209 = vadd.f32 %v194, %v206
    %v210 = vadd.f32 %v195, %v206
    %v211 = vadd.f32 %v196, %v206
    %v212 = vadd.f32 %v197, %v206
    %v213 = vadd.f32 %v198, %v206
    %v214 = vadd.f32 %v199, %v206
    %v215 = vadd.f32 %v200, %v206
    %216 = vst.msk [vmem:[%s3] sm:$0xff] %vm44, %v208
    %217 = vst.msk [vmem:[%s3 + $0x8] sm:$0xff] %vm44, %v209
    %218 = vst.msk [vmem:[%s3 + $0x10] sm:$0xff] %vm44, %v210
    %219 = vst.msk [vmem:[%s3 + $0x18] sm:$0xff] %vm44, %v211
    %220 = vst.msk [vmem:[%s3 + $0x20] sm:$0xff] %vm44, %v212
    %221 = vst.msk [vmem:[%s3 + $0x28] sm:$0xff] %vm44, %v213
    %222 = vst.msk [vmem:[%s3 + $0x30] sm:$0xff] %vm44, %v214
    %223 = vst.msk [vmem:[%s3 + $0x38] sm:$0xff] %vm44, %v215
  $region21: #{transformer_tts_forward.74} parent=0 // pred_fallthru
    _
  // Predicated region
  $region22: #{transformer_tts_forward.74} parent=0 // pred_check
    _
  $region23: #{transformer_tts_forward.74} parent=0 // pred_check_branch
    %225 = sbr.rel (0) target = $region25
  $region24: #{transformer_tts_forward.74} parent=0 // pred_region
    _
  $region25: #{transformer_tts_forward.74} parent=0 // pred_fallthru
    _
  // Predicated region
  $region26: #{transformer_tts_forward.74} parent=0 // pred_check
    _
  $region27: #{transformer_tts_forward.74} parent=0 // pred_check_branch
    %227 = sbr.rel (0) target = $region29
  $region28: #{transformer_tts_forward.74} parent=0 // pred_region
    _
  $region29: #{transformer_tts_forward.74} parent=0 // pred_fallthru
    _

// kernel: transformer_tts_forward.71
$region0: #{transformer_tts_forward.71}
  #allocation0 [shape = 'u32[]', space=smem, size = 0x4, offset = 0x4, fixed_abs, tag = 'smem constant byte address 0x4 - core index']
  #allocation1 [shape = 'u32[144,128]{1,0:T(1,128)}', space=vmem, size = 0x12000, scoped, tag = 'internal scratch']
  %s0 = inlined_call_operand.vmem [shape: f32[2,4,8,8], index: 0, kind: input, shape index: {}]
  %s1 = inlined_call_operand.vmem [shape: f32[2,4,8,8], index: 1, kind: input, shape index: {}]
  %s2 = inlined_call_operand.vmem [shape: f32[2,4,8,8], index: 2, kind: input, shape index: {}]
  %s3 = inlined_call_operand.vmem [shape: f32[2,4,8,8], index: 3, kind: output, shape index: {}]
  %s4 = sld [smem:[#allocation0]]
  $region45: #{transformer_tts_forward.71} parent=0
    _
  %s6 = ssub.s32 1, %s4
  %s7 = scalar_select 0, %s6, %s4
  loop: start=0, step=1, limit=4
  $region2: #{transformer_tts_forward.71} parent=0 // loop_pre_header
    _
  $region3: #{transformer_tts_forward.71} parent=0 // loop_header
    %s9 = sphi 0, %s13
    %p10 = scmp.ge.s32.totalorder %s9, 4
    %s16 = sphi 0, %s28
    %s17 = sphi 0, %s24
    %s18 = sphi 0, %s16
    %s19 = sphi 0, %s17
    %s20 = sphi 0, %s18
    %s21 = sphi 0, %s19
    %s33 = sphi 0, %s35
    %s36 = sphi 0, %s33
    %s37 = sphi 0, %s36
    %s53 = sphi 0, %s37
    %s59 = sphi 0, %s61
    %s62 = sphi 0, %s59
    %s63 = sphi 0, %s62
    %s79 = sphi 0, %s63
    %s85 = sphi 0, %s87
    %s88 = sphi 0, %s85
    %s89 = sphi 0, %s88
    %s105 = sphi 0, %s89
    %s113 = sphi 0, %s115
    %s116 = sphi 0, %s113
    %s117 = sphi 0, %s116
    %s133 = sphi 0, %s117
  $region4: #{transformer_tts_forward.71} parent=0 // loop_header_branch
    %12 = sbr.rel (%p10) target = $region8
  $region5: #{transformer_tts_forward.71} parent=0 // loop_body
    %s14 = ssub.s32 %s9, 1
    %s15 = ssub.s32 %s9, 2
    %s22 = sadd.s32 1, %s17
    %p23 = scmp.ge.s32.totalorder %s22, 1
    %s24 = scalar_select %p23, 0, %s22
    %s25 = sadd.s32 1, %s16
    %s26 = scalar_select %p23, %s25, %s16
    %p27 = scmp.ge.s32.totalorder %s26, 2
    %s28 = scalar_select %p27, 0, %s26
    %s29 = ssub.s32 %s16, %s28
    %s30 = ssub.s32 %s17, %s24
    %s31 = sor.u32 %s29, %s30
    %p32 = scmp.eq.s32.totalorder %s31, 0
    %s34 = sadd.s32 %s33, 1
    %s35 = scalar_select %p32, %s33, %s34
    %p38 = pneg %p32
    %p39 = scmp.eq.s32.totalorder %s9, 1
    %p40 = por %p38, %p39
    %p41 = scmp.ne.s32.totalorder %s33, %s36
    %p42 = scmp.eq.s32.totalorder %s9, 0
    %p43 = por %p41, %p42
    %p44 = scmp.ne.s32.totalorder %s33, %s36
    %p45 = scmp.eq.s32.totalorder %s14, 1
    %p46 = por %p44, %p45
    %p47 = scmp.ne.s32.totalorder %s36, %s37
    %p48 = scmp.eq.s32.totalorder %s14, 0
    %p49 = por %p47, %p48
    %p50 = scmp.ne.s32.totalorder %s36, %s37
    %p51 = scmp.eq.s32.totalorder %s15, 1
    %p52 = por %p50, %p51
    %p54 = scmp.ne.s32.totalorder %s37, %s53
    %p55 = scmp.eq.s32.totalorder %s15, 0
    %p56 = por %p54, %p55
    %s57 = ssub.s32 %s16, %s28
    %p58 = scmp.eq.s32.totalorder %s57, 0
    %s60 = sadd.s32 %s59, 1
    %s61 = scalar_select %p58, %s59, %s60
    %p64 = pneg %p58
    %p65 = scmp.eq.s32.totalorder %s9, 1
    %p66 = por %p64, %p65
    %p67 = scmp.ne.s32.totalorder %s59, %s62
    %p68 = scmp.eq.s32.totalorder %s9, 0
    %p69 = por %p67, %p68
    %p70 = scmp.ne.s32.totalorder %s59, %s62
    %p71 = scmp.eq.s32.totalorder %s14, 1
    %p72 = por %p70, %p71
    %p73 = scmp.ne.s32.totalorder %s62, %s63
    %p74 = scmp.eq.s32.totalorder %s14, 0
    %p75 = por %p73, %p74
    %p76 = scmp.ne.s32.totalorder %s62, %s63
    %p77 = scmp.eq.s32.totalorder %s15, 1
    %p78 = por %p76, %p77
    %p80 = scmp.ne.s32.totalorder %s63, %s79
    %p81 = scmp.eq.s32.totalorder %s15, 0
    %p82 = por %p80, %p81
    %s83 = ssub.s32 %s16, %s28
    %p84 = scmp.eq.s32.totalorder %s83, 0
    %s86 = sadd.s32 %s85, 1
    %s87 = scalar_select %p84, %s85, %s86
    %p90 = pneg %p84
    %p91 = scmp.eq.s32.totalorder %s9, 1
    %p92 = por %p90, %p91
    %p93 = scmp.ne.s32.totalorder %s85, %s88
    %p94 = scmp.eq.s32.totalorder %s9, 0
    %p95 = por %p93, %p94
    %p96 = scmp.ne.s32.totalorder %s85, %s88
    %p97 = scmp.eq.s32.totalorder %s14, 1
    %p98 = por %p96, %p97
    %p99 = scmp.ne.s32.totalorder %s88, %s89
    %p100 = scmp.eq.s32.totalorder %s14, 0
    %p101 = por %p99, %p100
    %p102 = scmp.ne.s32.totalorder %s88, %s89
    %p103 = scmp.eq.s32.totalorder %s15, 1
    %p104 = por %p102, %p103
    %p106 = scmp.ne.s32.totalorder %s89, %s105
    %p107 = scmp.eq.s32.totalorder %s15, 0
    %p108 = por %p106, %p107
    %s109 = ssub.s32 %s16, %s28
    %s110 = ssub.s32 %s17, %s24
    %s111 = sor.u32 %s109, %s110
    %p112 = scmp.eq.s32.totalorder %s111, 0
    %s114 = sadd.s32 %s113, 1
    %s115 = scalar_select %p112, %s113, %s114
    %p118 = pneg %p112
    %p119 = scmp.eq.s32.totalorder %s9, 1
    %p120 = por %p118, %p119
    %p121 = scmp.ne.s32.totalorder %s113, %s116
    %p122 = scmp.eq.s32.totalorder %s9, 0
    %p123 = por %p121, %p122
    %p124 = scmp.ne.s32.totalorder %s113, %s116
    %p125 = scmp.eq.s32.totalorder %s14, 1
    %p126 = por %p124, %p125
    %p127 = scmp.ne.s32.totalorder %s116, %s117
    %p128 = scmp.eq.s32.totalorder %s14, 0
    %p129 = por %p127, %p128
    %p130 = scmp.ne.s32.totalorder %s116, %s117
    %p131 = scmp.eq.s32.totalorder %s15, 1
    %p132 = por %p130, %p131
    %p134 = scmp.ne.s32.totalorder %s117, %s133
    %p135 = scmp.eq.s32.totalorder %s15, 0
    %p136 = por %p134, %p135
    %p137 = scmp.le.s32.totalorder 1, %s9
    %p138 = scmp.lt.s32.totalorder %s9, 3
    %p139 = pnand %p137, %p138
    %p140 = pneg %p139
    // Predicated region
    $region9: #{transformer_tts_forward.71} parent=5 // pred_check
      _
    $region10: #{transformer_tts_forward.71} parent=5 // pred_check_branch
      %142 = sbr.rel (%p139) target = $region12
    $region11: #{transformer_tts_forward.71} parent=5 // pred_region
      %s143 = ssub.s32 %s9, 1
    $region12: #{transformer_tts_forward.71} parent=5 // pred_fallthru
      _
    %p144 = scmp.lt.s32.totalorder %s9, 2
    // Predicated region
    $region13: #{transformer_tts_forward.71} parent=5 // pred_check
      %p145 = pneg %p144
    $region14: #{transformer_tts_forward.71} parent=5 // pred_check_branch
      %147 = sbr.rel (%p145) target = $region16
    $region15: #{transformer_tts_forward.71} parent=5 // pred_region
      // Predicated region
      $region17: #{transformer_tts_forward.71} parent=15 // pred_check
        %p148 = pneg %p43
      $region18: #{transformer_tts_forward.71} parent=15 // pred_check_branch
        %150 = sbr.rel (%p148) target = $region20
      $region19: #{transformer_tts_forward.71} parent=15 // pred_region
        %p151 = scmp.lt.s32.totalorder %s16, 1
        %s152 = scalar_select %p151, %s16, 1
        %p153 = scmp.lt.s32.totalorder %s17, 0
        %s154 = scalar_select %p153, %s17, 0
        %s155 = smul.addr %s152, 4
        %s156 = sadd.s32 %s154, %s155
        %s157 = smul.addr %s156, 8
        %s158 = scalar_lea.vmem %s0, %s157
      $region20: #{transformer_tts_forward.71} parent=15 // pred_fallthru
        _
      // Predicated region
      $region21: #{transformer_tts_forward.71} parent=15 // pred_check
        %p159 = pneg %p69
      $region22: #{transformer_tts_forward.71} parent=15 // pred_check_branch
        %161 = sbr.rel (%p159) target = $region24
      $region23: #{transformer_tts_forward.71} parent=15 // pred_region
        %p162 = scmp.lt.s32.totalorder %s16, 1
        %s163 = scalar_select %p162, %s16, 1
        %s164 = smul.addr %s163, 4
        %s165 = smul.addr %s164, 8
        %s166 = scalar_lea.vmem %s1, %s165
      $region24: #{transformer_tts_forward.71} parent=15 // pred_fallthru
        _
      // Predicated region
      $region25: #{transformer_tts_forward.71} parent=15 // pred_check
        %p167 = pneg %p95
      $region26: #{transformer_tts_forward.71} parent=15 // pred_check_branch
        %169 = sbr.rel (%p167) target = $region28
      $region27: #{transformer_tts_forward.71} parent=15 // pred_region
        %p170 = scmp.lt.s32.totalorder %s16, 1
        %s171 = scalar_select %p170, %s16, 1
        %s172 = smul.addr %s171, 4
        %s173 = smul.addr %s172, 8
        %s174 = scalar_lea.vmem %s2, %s173
      $region28: #{transformer_tts_forward.71} parent=15 // pred_fallthru
        _
    $region16: #{transformer_tts_forward.71} parent=5 // pred_fallthru
      _
    %p175 = scmp.le.s32.totalorder 1, %s9
    %p176 = scmp.lt.s32.totalorder %s9, 3
    %p177 = pnand %p175, %p176
    %p178 = pneg %p177
    // Predicated region
    $region29: #{transformer_tts_forward.71} parent=5 // pred_check
      _
    $region30: #{transformer_tts_forward.71} parent=5 // pred_check_branch
      %180 = sbr.rel (%p177) target = $region32
    $region31: #{transformer_tts_forward.71} parent=5 // pred_region
      %s181 = ssub.s32 %s9, 1
      %p182 = scmp.lt.s32.totalorder %s18, 1
      %s183 = scalar_select %p182, %s18, 1
      %p184 = scmp.lt.s32.totalorder %s19, 0
      %s185 = scalar_select %p184, %s19, 0
      %s186 = smul.addr %s183, 4
      %s187 = sadd.s32 %s185, %s186
      %s188 = smul.addr %s187, 8
      %s189 = scalar_lea.vmem %s0, %s188
      %p190 = pneg %p49
      %p191 = pneg %p46
      %p192 = scmp.lt.s32.totalorder %s18, 1
      %s193 = scalar_select %p192, %s18, 1
      %s194 = smul.addr %s193, 4
      %s195 = smul.addr %s194, 8
      %s196 = scalar_lea.vmem %s1, %s195
      %p197 = pneg %p75
      %p198 = pneg %p72
      %p199 = scmp.lt.s32.totalorder %s18, 1
      %s200 = scalar_select %p199, %s18, 1
      %s201 = smul.addr %s200, 4
      %s202 = smul.addr %s201, 8
      %s203 = scalar_lea.vmem %s2, %s202
      %p204 = pneg %p101
      %p205 = pneg %p98
      %p206 = pneg %p129
      %p207 = pneg %p126
      %p208 = scmp.lt.s32.totalorder %s18, 1
      %s209 = scalar_select %p208, %s18, 1
      %p210 = scmp.lt.s32.totalorder %s19, 0
      %s211 = scalar_select %p210, %s19, 0
      %s212 = smul.addr %s209, 4
      %s213 = sadd.s32 %s211, %s212
      %s214 = smul.addr %s213, 8
      %s215 = scalar_lea.vmem %s3, %s214
      %p216 = scmp.lt.s32.totalorder %s18, 1
      %s217 = scalar_select %p216, %s18, 1
      %p218 = scmp.lt.s32.totalorder %s19, 0
      %s219 = scalar_select %p218, %s19, 0
      %s220 = smul.addr %s217, 4
      %s221 = sadd.s32 %s219, %s220
      %s222 = smul.addr %s221, 8
      %s223 = scalar_lea.vmem %s0, %s222
      %p224 = scmp.lt.s32.totalorder %s18, 1
      %s225 = scalar_select %p224, %s18, 1
      %s226 = smul.addr %s225, 4
      %s227 = smul.addr %s226, 8
      %s228 = scalar_lea.vmem %s1, %s227
      %p229 = scmp.lt.s32.totalorder %s18, 1
      %s230 = scalar_select %p229, %s18, 1
      %s231 = smul.addr %s230, 4
      %s232 = smul.addr %s231, 8
      %s233 = scalar_lea.vmem %s2, %s232
      %p234 = scmp.lt.s32.totalorder %s18, 1
      %s235 = scalar_select %p234, %s18, 1
      %p236 = scmp.lt.s32.totalorder %s19, 0
      %s237 = scalar_select %p236, %s19, 0
      %s238 = smul.addr %s235, 4
      %s239 = sadd.s32 %s237, %s238
      %s240 = smul.addr %s239, 8
      %s241 = scalar_lea.vmem %s3, %s240
      %v242 = vld [vmem:[%s223] sm:$0xff]
      %v243 = vld [vmem:[%s223 + $0x8] sm:$0xff]
      %v244 = vld [vmem:[%s223 + $0x10] sm:$0xff]
      %v245 = vld [vmem:[%s223 + $0x18] sm:$0xff]
      %v246 = vld [vmem:[%s228] sm:$0xff]
      %v247 = vld [vmem:[%s228 + $0x8] sm:$0xff]
      %v248 = vld [vmem:[%s228 + $0x10] sm:$0xff]
      %v249 = vld [vmem:[%s228 + $0x18] sm:$0xff]
      %v250 = vld [vmem:[%s233] sm:$0xff]
      %v251 = vld [vmem:[%s233 + $0x8] sm:$0xff]
      %v252 = vld [vmem:[%s233 + $0x10] sm:$0xff]
      %v253 = vld [vmem:[%s233 + $0x18] sm:$0xff]
      %vm254 = vcmask 64512
      %v256 = vsel %vm254, %v242, 0
      %v259 = vsel %vm254, %v246, 0
      %261 = vmatprep.subr.mxu0 0.0
      %262 = vmatpush1.xpose.msra.mxu0 %v259
      %263 = vmatprep.subr.mxu0 0.0
      %264 = vmatpush1.xpose.msra.mxu0 0.0
      %265 = vmatprep.subr.mxu0 0.0
      %266 = vmatpush1.xpose.msra.mxu0 0.0
      %267 = vmatprep.subr.mxu0 0.0
      %268 = vmatpush1.xpose.msra.mxu0 0.0
      %269 = vmatprep.subr.mxu0 0.0
      %270 = vmatpush1.xpose.msra.mxu0 0.0
      %271 = vmatprep.subr.mxu0 0.0
      %272 = vmatpush1.xpose.msra.mxu0 0.0
      %273 = vmatprep.subr.mxu0 0.0
      %274 = vmatpush1.xpose.msra.mxu0 0.0
      %275 = vmatprep.subr.mxu0 0.0
      %276 = vmatpush1.xpose.msra.mxu0 0.0
      %277 = vmatprep.subr.mxu0 0.0
      %278 = vmatpush1.xpose.msra.mxu0 0.0
      %279 = vmatprep.subr.mxu0 0.0
      %280 = vmatpush1.xpose.msra.mxu0 0.0
      %281 = vmatprep.subr.mxu0 0.0
      %282 = vmatpush1.xpose.msra.mxu0 0.0
      %283 = vmatprep.subr.mxu0 0.0
      %284 = vmatpush1.xpose.msra.mxu0 0.0
      %285 = vmatprep.subr.mxu0 0.0
      %286 = vmatpush1.xpose.msra.mxu0 0.0
      %287 = vmatprep.subr.mxu0 0.0
      %288 = vmatpush1.xpose.msra.mxu0 0.0
      %289 = vmatprep.subr.mxu0 0.0
      %290 = vmatpush1.xpose.msra.mxu0 0.0
      %291 = vmatprep.subr.mxu0 0.0
      %292 = vmatpush1.xpose.msra.mxu0 0.0
      %293 = vmatprep.subr.mxu0 0.0
      %294 = vmatpush1.xpose.msra.mxu0 0.0
      %295 = vmatprep.subr.mxu0 0.0
      %296 = vmatpush1.xpose.msra.mxu0 0.0
      %297 = vmatprep.subr.mxu0 0.0
      %298 = vmatpush1.xpose.msra.mxu0 0.0
      %299 = vmatprep.subr.mxu0 0.0
      %300 = vmatpush1.xpose.msra.mxu0 0.0
      %301 = vmatprep.subr.mxu0 0.0
      %302 = vmatpush1.xpose.msra.mxu0 0.0
      %303 = vmatprep.subr.mxu0 0.0
      %304 = vmatpush1.xpose.msra.mxu0 0.0
      %305 = vmatprep.subr.mxu0 0.0
      %306 = vmatpush1.xpose.msra.mxu0 0.0
      %307 = vmatprep.subr.mxu0 0.0
      %308 = vmatpush1.xpose.msra.mxu0 0.0
      %309 = vmatprep.subr.mxu0 0.0
      %310 = vmatpush1.xpose.msra.mxu0 0.0
      %311 = vmatprep.subr.mxu0 0.0
      %312 = vmatpush1.xpose.msra.mxu0 0.0
      %313 = vmatprep.subr.mxu0 0.0
      %314 = vmatpush1.xpose.msra.mxu0 0.0
      %315 = vmatprep.subr.mxu0 0.0
      %316 = vmatpush1.xpose.msra.mxu0 0.0
      %317 = vmatprep.subr.mxu0 0.0
      %318 = vmatpush1.xpose.msra.mxu0 0.0
      %319 = vmatprep.subr.mxu0 0.0
      %320 = vmatpush1.xpose.msra.mxu0 0.0
      %321 = vmatprep.subr.mxu0 0.0
      %322 = vmatpush1.xpose.msra.mxu0 0.0
      %323 = vmatprep.subr.mxu0 0.0
      %324 = vmatpush1.xpose.msra.mxu0 0.0
      %325 = vmatprep.mubr.f32.mxu0 0.0
      %326 = vmatmul.mubr.f32.gmra.mrb[0].mxu0 %v256
      %v327 = vpop.f32.mrb[0].mxu0
      %v328 = vadd.f32 0.0, %v327
      %v329 = vpop.f32.mrb[0].mxu0
      %330 = vdwg.mxu0
      %v332 = vsel %vm254, %v243, 0
      %v335 = vsel %vm254, %v247, 0
      %337 = vmatprep.subr.mxu0 0.0
      %338 = vmatpush1.xpose.msra.mxu0 %v335
      %339 = vmatprep.subr.mxu0 0.0
      %340 = vmatpush1.xpose.msra.mxu0 0.0
      %341 = vmatprep.subr.mxu0 0.0
      %342 = vmatpush1.xpose.msra.mxu0 0.0
      %343 = vmatprep.subr.mxu0 0.0
      %344 = vmatpush1.xpose.msra.mxu0 0.0
      %345 = vmatprep.subr.mxu0 0.0
      %346 = vmatpush1.xpose.msra.mxu0 0.0
      %347 = vmatprep.subr.mxu0 0.0
      %348 = vmatpush1.xpose.msra.mxu0 0.0
      %349 = vmatprep.subr.mxu0 0.0
      %350 = vmatpush1.xpose.msra.mxu0 0.0
      %351 = vmatprep.subr.mxu0 0.0
      %352 = vmatpush1.xpose.msra.mxu0 0.0
      %353 = vmatprep.subr.mxu0 0.0
      %354 = vmatpush1.xpose.msra.mxu0 0.0
      %355 = vmatprep.subr.mxu0 0.0
      %356 = vmatpush1.xpose.msra.mxu0 0.0
      %357 = vmatprep.subr.mxu0 0.0
      %358 = vmatpush1.xpose.msra.mxu0 0.0
      %359 = vmatprep.subr.mxu0 0.0
      %360 = vmatpush1.xpose.msra.mxu0 0.0
      %361 = vmatprep.subr.mxu0 0.0
      %362 = vmatpush1.xpose.msra.mxu0 0.0
      %363 = vmatprep.subr.mxu0 0.0
      %364 = vmatpush1.xpose.msra.mxu0 0.0
      %365 = vmatprep.subr.mxu0 0.0
      %366 = vmatpush1.xpose.msra.mxu0 0.0
      %367 = vmatprep.subr.mxu0 0.0
      %368 = vmatpush1.xpose.msra.mxu0 0.0
      %369 = vmatprep.subr.mxu0 0.0
      %370 = vmatpush1.xpose.msra.mxu0 0.0
      %371 = vmatprep.subr.mxu0 0.0
      %372 = vmatpush1.xpose.msra.mxu0 0.0
      %373 = vmatprep.subr.mxu0 0.0
      %374 = vmatpush1.xpose.msra.mxu0 0.0
      %375 = vmatprep.subr.mxu0 0.0
      %376 = vmatpush1.xpose.msra.mxu0 0.0
      %377 = vmatprep.subr.mxu0 0.0
      %378 = vmatpush1.xpose.msra.mxu0 0.0
      %379 = vmatprep.subr.mxu0 0.0
      %380 = vmatpush1.xpose.msra.mxu0 0.0
      %381 = vmatprep.subr.mxu0 0.0
      %382 = vmatpush1.xpose.msra.mxu0 0.0
      %383 = vmatprep.subr.mxu0 0.0
      %384 = vmatpush1.xpose.msra.mxu0 0.0
      %385 = vmatprep.subr.mxu0 0.0
      %386 = vmatpush1.xpose.msra.mxu0 0.0
      %387 = vmatprep.subr.mxu0 0.0
      %388 = vmatpush1.xpose.msra.mxu0 0.0
      %389 = vmatprep.subr.mxu0 0.0
      %390 = vmatpush1.xpose.msra.mxu0 0.0
      %391 = vmatprep.subr.mxu0 0.0
      %392 = vmatpush1.xpose.msra.mxu0 0.0
      %393 = vmatprep.subr.mxu0 0.0
      %394 = vmatpush1.xpose.msra.mxu0 0.0
      %395 = vmatprep.subr.mxu0 0.0
      %396 = vmatpush1.xpose.msra.mxu0 0.0
      %397 = vmatprep.subr.mxu0 0.0
      %398 = vmatpush1.xpose.msra.mxu0 0.0
      %399 = vmatprep.subr.mxu0 0.0
      %400 = vmatpush1.xpose.msra.mxu0 0.0
      %401 = vmatprep.mubr.f32.mxu0 0.0
      %402 = vmatmul.mubr.f32.gmra.mrb[0].mxu0 %v332
      %v403 = vpop.f32.mrb[0].mxu0
      %v404 = vadd.f32 0.0, %v403
      %v405 = vpop.f32.mrb[0].mxu0
      %406 = vdwg.mxu0
      %v408 = vsel %vm254, %v244, 0
      %v411 = vsel %vm254, %v248, 0
      %413 = vmatprep.subr.mxu0 0.0
      %414 = vmatpush1.xpose.msra.mxu0 %v411
      %415 = vmatprep.subr.mxu0 0.0
      %416 = vmatpush1.xpose.msra.mxu0 0.0
      %417 = vmatprep.subr.mxu0 0.0
      %418 = vmatpush1.xpose.msra.mxu0 0.0
      %419 = vmatprep.subr.mxu0 0.0
      %420 = vmatpush1.xpose.msra.mxu0 0.0
      %421 = vmatprep.subr.mxu0 0.0
      %422 = vmatpush1.xpose.msra.mxu0 0.0
      %423 = vmatprep.subr.mxu0 0.0
      %424 = vmatpush1.xpose.msra.mxu0 0.0
      %425 = vmatprep.subr.mxu0 0.0
      %426 = vmatpush1.xpose.msra.mxu0 0.0
      %427 = vmatprep.subr.mxu0 0.0
      %428 = vmatpush1.xpose.msra.mxu0 0.0
      %429 = vmatprep.subr.mxu0 0.0
      %430 = vmatpush1.xpose.msra.mxu0 0.0
      %431 = vmatprep.subr.mxu0 0.0
      %432 = vmatpush1.xpose.msra.mxu0 0.0
      %433 = vmatprep.subr.mxu0 0.0
      %434 = vmatpush1.xpose.msra.mxu0 0.0
      %435 = vmatprep.subr.mxu0 0.0
      %436 = vmatpush1.xpose.msra.mxu0 0.0
      %437 = vmatprep.subr.mxu0 0.0
      %438 = vmatpush1.xpose.msra.mxu0 0.0
      %439 = vmatprep.subr.mxu0 0.0
      %440 = vmatpush1.xpose.msra.mxu0 0.0
      %441 = vmatprep.subr.mxu0 0.0
      %442 = vmatpush1.xpose.msra.mxu0 0.0
      %443 = vmatprep.subr.mxu0 0.0
      %444 = vmatpush1.xpose.msra.mxu0 0.0
      %445 = vmatprep.subr.mxu0 0.0
      %446 = vmatpush1.xpose.msra.mxu0 0.0
      %447 = vmatprep.subr.mxu0 0.0
      %448 = vmatpush1.xpose.msra.mxu0 0.0
      %449 = vmatprep.subr.mxu0 0.0
      %450 = vmatpush1.xpose.msra.mxu0 0.0
      %451 = vmatprep.subr.mxu0 0.0
      %452 = vmatpush1.xpose.msra.mxu0 0.0
      %453 = vmatprep.subr.mxu0 0.0
      %454 = vmatpush1.xpose.msra.mxu0 0.0
      %455 = vmatprep.subr.mxu0 0.0
      %456 = vmatpush1.xpose.msra.mxu0 0.0
      %457 = vmatprep.subr.mxu0 0.0
      %458 = vmatpush1.xpose.msra.mxu0 0.0
      %459 = vmatprep.subr.mxu0 0.0
      %460 = vmatpush1.xpose.msra.mxu0 0.0
      %461 = vmatprep.subr.mxu0 0.0
      %462 = vmatpush1.xpose.msra.mxu0 0.0
      %463 = vmatprep.subr.mxu0 0.0
      %464 = vmatpush1.xpose.msra.mxu0 0.0
      %465 = vmatprep.subr.mxu0 0.0
      %466 = vmatpush1.xpose.msra.mxu0 0.0
      %467 = vmatprep.subr.mxu0 0.0
      %468 = vmatpush1.xpose.msra.mxu0 0.0
      %469 = vmatprep.subr.mxu0 0.0
      %470 = vmatpush1.xpose.msra.mxu0 0.0
      %471 = vmatprep.subr.mxu0 0.0
      %472 = vmatpush1.xpose.msra.mxu0 0.0
      %473 = vmatprep.subr.mxu0 0.0
      %474 = vmatpush1.xpose.msra.mxu0 0.0
      %475 = vmatprep.subr.mxu0 0.0
      %476 = vmatpush1.xpose.msra.mxu0 0.0
      %477 = vmatprep.mubr.f32.mxu0 0.0
      %478 = vmatmul.mubr.f32.gmra.mrb[0].mxu0 %v408
      %v479 = vpop.f32.mrb[0].mxu0
      %v480 = vadd.f32 0.0, %v479
      %v481 = vpop.f32.mrb[0].mxu0
      %482 = vdwg.mxu0
      %v484 = vsel %vm254, %v245, 0
      %v487 = vsel %vm254, %v249, 0
      %489 = vmatprep.subr.mxu0 0.0
      %490 = vmatpush1.xpose.msra.mxu0 %v487
      %491 = vmatprep.subr.mxu0 0.0
      %492 = vmatpush1.xpose.msra.mxu0 0.0
      %493 = vmatprep.subr.mxu0 0.0
      %494 = vmatpush1.xpose.msra.mxu0 0.0
      %495 = vmatprep.subr.mxu0 0.0
      %496 = vmatpush1.xpose.msra.mxu0 0.0
      %497 = vmatprep.subr.mxu0 0.0
      %498 = vmatpush1.xpose.msra.mxu0 0.0
      %499 = vmatprep.subr.mxu0 0.0
      %500 = vmatpush1.xpose.msra.mxu0 0.0
      %501 = vmatprep.subr.mxu0 0.0
      %502 = vmatpush1.xpose.msra.mxu0 0.0
      %503 = vmatprep.subr.mxu0 0.0
      %504 = vmatpush1.xpose.msra.mxu0 0.0
      %505 = vmatprep.subr.mxu0 0.0
      %506 = vmatpush1.xpose.msra.mxu0 0.0
      %507 = vmatprep.subr.mxu0 0.0
      %508 = vmatpush1.xpose.msra.mxu0 0.0
      %509 = vmatprep.subr.mxu0 0.0
      %510 = vmatpush1.xpose.msra.mxu0 0.0
      %511 = vmatprep.subr.mxu0 0.0
      %512 = vmatpush1.xpose.msra.mxu0 0.0
      %513 = vmatprep.subr.mxu0 0.0
      %514 = vmatpush1.xpose.msra.mxu0 0.0
      %515 = vmatprep.subr.mxu0 0.0
      %516 = vmatpush1.xpose.msra.mxu0 0.0
      %517 = vmatprep.subr.mxu0 0.0
      %518 = vmatpush1.xpose.msra.mxu0 0.0
      %519 = vmatprep.subr.mxu0 0.0
      %520 = vmatpush1.xpose.msra.mxu0 0.0
      %521 = vmatprep.subr.mxu0 0.0
      %522 = vmatpush1.xpose.msra.mxu0 0.0
      %523 = vmatprep.subr.mxu0 0.0
      %524 = vmatpush1.xpose.msra.mxu0 0.0
      %525 = vmatprep.subr.mxu0 0.0
      %526 = vmatpush1.xpose.msra.mxu0 0.0
      %527 = vmatprep.subr.mxu0 0.0
      %528 = vmatpush1.xpose.msra.mxu0 0.0
      %529 = vmatprep.subr.mxu0 0.0
      %530 = vmatpush1.xpose.msra.mxu0 0.0
      %531 = vmatprep.subr.mxu0 0.0
      %532 = vmatpush1.xpose.msra.mxu0 0.0
      %533 = vmatprep.subr.mxu0 0.0
      %534 = vmatpush1.xpose.msra.mxu0 0.0
      %535 = vmatprep.subr.mxu0 0.0
      %536 = vmatpush1.xpose.msra.mxu0 0.0
      %537 = vmatprep.subr.mxu0 0.0
      %538 = vmatpush1.xpose.msra.mxu0 0.0
      %539 = vmatprep.subr.mxu0 0.0
      %540 = vmatpush1.xpose.msra.mxu0 0.0
      %541 = vmatprep.subr.mxu0 0.0
      %542 = vmatpush1.xpose.msra.mxu0 0.0
      %543 = vmatprep.subr.mxu0 0.0
      %544 = vmatpush1.xpose.msra.mxu0 0.0
      %545 = vmatprep.subr.mxu0 0.0
      %546 = vmatpush1.xpose.msra.mxu0 0.0
      %547 = vmatprep.subr.mxu0 0.0
      %548 = vmatpush1.xpose.msra.mxu0 0.0
      %549 = vmatprep.subr.mxu0 0.0
      %550 = vmatpush1.xpose.msra.mxu0 0.0
      %551 = vmatprep.subr.mxu0 0.0
      %552 = vmatpush1.xpose.msra.mxu0 0.0
      %553 = vmatprep.mubr.f32.mxu0 0.0
      %554 = vmatmul.mubr.f32.gmra.mrb[0].mxu0 %v484
      %v555 = vpop.f32.mrb[0].mxu0
      %v556 = vadd.f32 0.0, %v555
      %v557 = vpop.f32.mrb[0].mxu0
      %558 = vdwg.mxu0
      %v559 = vmul.f32 %v328, 0.25
      %v560 = vmul.f32 %v404, 0.25
      %v561 = vmul.f32 %v480, 0.25
      %v562 = vmul.f32 %v556, 0.25
      %v563 = vsel %vm254, %v559, -inf
      %564 = vmax.xlane.f32.xlu0 %v563
      %v565 = vpop.xlane.xlu0 %564
      %v566 = vsel %vm254, %v560, -inf
      %567 = vmax.xlane.f32.xlu0 %v566
      %v568 = vpop.xlane.xlu0 %567
      %v569 = vsel %vm254, %v561, -inf
      %570 = vmax.xlane.f32.xlu0 %v569
      %v571 = vpop.xlane.xlu0 %570
      %v572 = vsel %vm254, %v562, -inf
      %573 = vmax.xlane.f32.xlu0 %v572
      %v574 = vpop.xlane.xlu0 %573
      %v575 = vsub.f32 %v559, %v565
      %v576 = vsub.f32 %v560, %v568
      %v577 = vsub.f32 %v561, %v571
      %v578 = vsub.f32 %v562, %v574
      %v579 = vmul.f32 %v575, 1.442695
      %v580 = vpow.pop %v579
      %v581 = vmul.f32 %v576, 1.442695
      %v582 = vpow.pop %v581
      %v583 = vmul.f32 %v577, 1.442695
      %v584 = vpow.pop %v583
      %v585 = vmul.f32 %v578, 1.442695
      %v586 = vpow.pop %v585
      %v587 = vsel %vm254, %v580, 0.0
      %588 = vadd.xlane.f32.xlu0 %v587
      %v589 = vpop.xlane.xlu0 %588
      %v590 = vsel %vm254, %v582, 0.0
      %591 = vadd.xlane.f32.xlu0 %v590
      %v592 = vpop.xlane.xlu0 %591
      %v593 = vsel %vm254, %v584, 0.0
      %594 = vadd.xlane.f32.xlu0 %v593
      %v595 = vpop.xlane.xlu0 %594
      %v596 = vsel %vm254, %v586, 0.0
      %597 = vadd.xlane.f32.xlu0 %v596
      %v598 = vpop.xlane.xlu0 %597
      %v599 = vrcp.pop %v589
      %v600 = vmul.f32 %v580, %v599
      %v601 = vrcp.pop %v592
      %v602 = vmul.f32 %v582, %v601
      %v603 = vrcp.pop %v595
      %v604 = vmul.f32 %v584, %v603
      %v605 = vrcp.pop %v598
      %v606 = vmul.f32 %v586, %v605
      %v608 = vsel %vm254, %v600, 0
      %610 = vmatprep.subr.mxu0 0.0
      %611 = vmatpush1.msra.mxu0 %v250
      %612 = vmatprep.subr.mxu0 0.0
      %613 = vmatpush1.msra.mxu0 0.0
      %614 = vmatprep.subr.mxu0 0.0
      %615 = vmatpush1.msra.mxu0 0.0
      %616 = vmatprep.subr.mxu0 0.0
      %617 = vmatpush1.msra.mxu0 0.0
      %618 = vmatprep.subr.mxu0 0.0
      %619 = vmatpush1.msra.mxu0 0.0
      %620 = vmatprep.subr.mxu0 0.0
      %621 = vmatpush1.msra.mxu0 0.0
      %622 = vmatprep.subr.mxu0 0.0
      %623 = vmatpush1.msra.mxu0 0.0
      %624 = vmatprep.subr.mxu0 0.0
      %625 = vmatpush1.msra.mxu0 0.0
      %626 = vmatprep.subr.mxu0 0.0
      %627 = vmatpush1.msra.mxu0 0.0
      %628 = vmatprep.subr.mxu0 0.0
      %629 = vmatpush1.msra.mxu0 0.0
      %630 = vmatprep.subr.mxu0 0.0
      %631 = vmatpush1.msra.mxu0 0.0
      %632 = vmatprep.subr.mxu0 0.0
      %633 = vmatpush1.msra.mxu0 0.0
      %634 = vmatprep.subr.mxu0 0.0
      %635 = vmatpush1.msra.mxu0 0.0
      %636 = vmatprep.subr.mxu0 0.0
      %637 = vmatpush1.msra.mxu0 0.0
      %638 = vmatprep.subr.mxu0 0.0
      %639 = vmatpush1.msra.mxu0 0.0
      %640 = vmatprep.subr.mxu0 0.0
      %641 = vmatpush1.msra.mxu0 0.0
      %642 = vmatprep.subr.mxu0 0.0
      %643 = vmatpush1.msra.mxu0 0.0
      %644 = vmatprep.subr.mxu0 0.0
      %645 = vmatpush1.msra.mxu0 0.0
      %646 = vmatprep.subr.mxu0 0.0
      %647 = vmatpush1.msra.mxu0 0.0
      %648 = vmatprep.subr.mxu0 0.0
      %649 = vmatpush1.msra.mxu0 0.0
      %650 = vmatprep.subr.mxu0 0.0
      %651 = vmatpush1.msra.mxu0 0.0
      %652 = vmatprep.subr.mxu0 0.0
      %653 = vmatpush1.msra.mxu0 0.0
      %654 = vmatprep.subr.mxu0 0.0
      %655 = vmatpush1.msra.mxu0 0.0
      %656 = vmatprep.subr.mxu0 0.0
      %657 = vmatpush1.msra.mxu0 0.0
      %658 = vmatprep.subr.mxu0 0.0
      %659 = vmatpush1.msra.mxu0 0.0
      %660 = vmatprep.subr.mxu0 0.0
      %661 = vmatpush1.msra.mxu0 0.0
      %662 = vmatprep.subr.mxu0 0.0
      %663 = vmatpush1.msra.mxu0 0.0
      %664 = vmatprep.subr.mxu0 0.0
      %665 = vmatpush1.msra.mxu0 0.0
      %666 = vmatprep.subr.mxu0 0.0
      %667 = vmatpush1.msra.mxu0 0.0
      %668 = vmatprep.subr.mxu0 0.0
      %669 = vmatpush1.msra.mxu0 0.0
      %670 = vmatprep.subr.mxu0 0.0
      %671 = vmatpush1.msra.mxu0 0.0
      %672 = vmatprep.subr.mxu0 0.0
      %673 = vmatpush1.msra.mxu0 0.0
      %674 = vmatprep.mubr.f32.mxu0 0.0
      %675 = vmatmul.mubr.f32.gmra.mrb[0].mxu0 %v608
      %v676 = vpop.f32.mrb[0].mxu0
      %v677 = vadd.f32 0.0, %v676
      %v678 = vpop.f32.mrb[0].mxu0
      %679 = vdwg.mxu0
      %v681 = vsel %vm254, %v602, 0
      %683 = vmatprep.subr.mxu0 0.0
      %684 = vmatpush1.msra.mxu0 %v251
      %685 = vmatprep.subr.mxu0 0.0
      %686 = vmatpush1.msra.mxu0 0.0
      %687 = vmatprep.subr.mxu0 0.0
      %688 = vmatpush1.msra.mxu0 0.0
      %689 = vmatprep.subr.mxu0 0.0
      %690 = vmatpush1.msra.mxu0 0.0
      %691 = vmatprep.subr.mxu0 0.0
      %692 = vmatpush1.msra.mxu0 0.0
      %693 = vmatprep.subr.mxu0 0.0
      %694 = vmatpush1.msra.mxu0 0.0
      %695 = vmatprep.subr.mxu0 0.0
      %696 = vmatpush1.msra.mxu0 0.0
      %697 = vmatprep.subr.mxu0 0.0
      %698 = vmatpush1.msra.mxu0 0.0
      %699 = vmatprep.subr.mxu0 0.0
      %700 = vmatpush1.msra.mxu0 0.0
      %701 = vmatprep.subr.mxu0 0.0
      %702 = vmatpush1.msra.mxu0 0.0
      %703 = vmatprep.subr.mxu0 0.0
      %704 = vmatpush1.msra.mxu0 0.0
      %705 = vmatprep.subr.mxu0 0.0
      %706 = vmatpush1.msra.mxu0 0.0
      %707 = vmatprep.subr.mxu0 0.0
      %708 = vmatpush1.msra.mxu0 0.0
      %709 = vmatprep.subr.mxu0 0.0
      %710 = vmatpush1.msra.mxu0 0.0
      %711 = vmatprep.subr.mxu0 0.0
      %712 = vmatpush1.msra.mxu0 0.0
      %713 = vmatprep.subr.mxu0 0.0
      %714 = vmatpush1.msra.mxu0 0.0
      %715 = vmatprep.subr.mxu0 0.0
      %716 = vmatpush1.msra.mxu0 0.0
      %717 = vmatprep.subr.mxu0 0.0
      %718 = vmatpush1.msra.mxu0 0.0
      %719 = vmatprep.subr.mxu0 0.0
      %720 = vmatpush1.msra.mxu0 0.0
      %721 = vmatprep.subr.mxu0 0.0
      %722 = vmatpush1.msra.mxu0 0.0
      %723 = vmatprep.subr.mxu0 0.0
      %724 = vmatpush1.msra.mxu0 0.0
      %725 = vmatprep.subr.mxu0 0.0
      %726 = vmatpush1.msra.mxu0 0.0
      %727 = vmatprep.subr.mxu0 0.0
      %728 = vmatpush1.msra.mxu0 0.0
      %729 = vmatprep.subr.mxu0 0.0
      %730 = vmatpush1.msra.mxu0 0.0
      %731 = vmatprep.subr.mxu0 0.0
      %732 = vmatpush1.msra.mxu0 0.0
      %733 = vmatprep.subr.mxu0 0.0
      %734 = vmatpush1.msra.mxu0 0.0
      %735 = vmatprep.subr.mxu0 0.0
      %736 = vmatpush1.msra.mxu0 0.0
      %737 = vmatprep.subr.mxu0 0.0
      %738 = vmatpush1.msra.mxu0 0.0
      %739 = vmatprep.subr.mxu0 0.0
      %740 = vmatpush1.msra.mxu0 0.0
      %741 = vmatprep.subr.mxu0 0.0
      %742 = vmatpush1.msra.mxu0 0.0
      %743 = vmatprep.subr.mxu0 0.0
      %744 = vmatpush1.msra.mxu0 0.0
      %745 = vmatprep.subr.mxu0 0.0
      %746 = vmatpush1.msra.mxu0 0.0
      %747 = vmatprep.mubr.f32.mxu0 0.0
      %748 = vmatmul.mubr.f32.gmra.mrb[0].mxu0 %v681
      %v749 = vpop.f32.mrb[0].mxu0
      %v750 = vadd.f32 0.0, %v749
      %v751 = vpop.f32.mrb[0].mxu0
      %752 = vdwg.mxu0
      %v754 = vsel %vm254, %v604, 0
      %756 = vmatprep.subr.mxu0 0.0
      %757 = vmatpush1.msra.mxu0 %v252
      %758 = vmatprep.subr.mxu0 0.0
      %759 = vmatpush1.msra.mxu0 0.0
      %760 = vmatprep.subr.mxu0 0.0
      %761 = vmatpush1.msra.mxu0 0.0
      %762 = vmatprep.subr.mxu0 0.0
      %763 = vmatpush1.msra.mxu0 0.0
      %764 = vmatprep.subr.mxu0 0.0
      %765 = vmatpush1.msra.mxu0 0.0
      %766 = vmatprep.subr.mxu0 0.0
      %767 = vmatpush1.msra.mxu0 0.0
      %768 = vmatprep.subr.mxu0 0.0
      %769 = vmatpush1.msra.mxu0 0.0
      %770 = vmatprep.subr.mxu0 0.0
      %771 = vmatpush1.msra.mxu0 0.0
      %772 = vmatprep.subr.mxu0 0.0
      %773 = vmatpush1.msra.mxu0 0.0
      %774 = vmatprep.subr.mxu0 0.0
      %775 = vmatpush1.msra.mxu0 0.0
      %776 = vmatprep.subr.mxu0 0.0
      %777 = vmatpush1.msra.mxu0 0.0
      %778 = vmatprep.subr.mxu0 0.0
      %779 = vmatpush1.msra.mxu0 0.0
      %780 = vmatprep.subr.mxu0 0.0
      %781 = vmatpush1.msra.mxu0 0.0
      %782 = vmatprep.subr.mxu0 0.0
      %783 = vmatpush1.msra.mxu0 0.0
      %784 = vmatprep.subr.mxu0 0.0
      %785 = vmatpush1.msra.mxu0 0.0
      %786 = vmatprep.subr.mxu0 0.0
      %787 = vmatpush1.msra.mxu0 0.0
      %788 = vmatprep.subr.mxu0 0.0
      %789 = vmatpush1.msra.mxu0 0.0
      %790 = vmatprep.subr.mxu0 0.0
      %791 = vmatpush1.msra.mxu0 0.0
      %792 = vmatprep.subr.mxu0 0.0
      %793 = vmatpush1.msra.mxu0 0.0
      %794 = vmatprep.subr.mxu0 0.0
      %795 = vmatpush1.msra.mxu0 0.0
      %796 = vmatprep.subr.mxu0 0.0
      %797 = vmatpush1.msra.mxu0 0.0
      %798 = vmatprep.subr.mxu0 0.0
      %799 = vmatpush1.msra.mxu0 0.0
      %800 = vmatprep.subr.mxu0 0.0
      %801 = vmatpush1.msra.mxu0 0.0
      %802 = vmatprep.subr.mxu0 0.0
      %803 = vmatpush1.msra.mxu0 0.0
      %804 = vmatprep.subr.mxu0 0.0
      %805 = vmatpush1.msra.mxu0 0.0
      %806 = vmatprep.subr.mxu0 0.0
      %807 = vmatpush1.msra.mxu0 0.0
      %808 = vmatprep.subr.mxu0 0.0
      %809 = vmatpush1.msra.mxu0 0.0
      %810 = vmatprep.subr.mxu0 0.0
      %811 = vmatpush1.msra.mxu0 0.0
      %812 = vmatprep.subr.mxu0 0.0
      %813 = vmatpush1.msra.mxu0 0.0
      %814 = vmatprep.subr.mxu0 0.0
      %815 = vmatpush1.msra.mxu0 0.0
      %816 = vmatprep.subr.mxu0 0.0
      %817 = vmatpush1.msra.mxu0 0.0
      %818 = vmatprep.subr.mxu0 0.0
      %819 = vmatpush1.msra.mxu0 0.0
      %820 = vmatprep.mubr.f32.mxu0 0.0
      %821 = vmatmul.mubr.f32.gmra.mrb[0].mxu0 %v754
      %v822 = vpop.f32.mrb[0].mxu0
      %v823 = vadd.f32 0.0, %v822
      %v824 = vpop.f32.mrb[0].mxu0
      %825 = vdwg.mxu0
      %v827 = vsel %vm254, %v606, 0
      %829 = vmatprep.subr.mxu0 0.0
      %830 = vmatpush1.msra.mxu0 %v253
      %831 = vmatprep.subr.mxu0 0.0
      %832 = vmatpush1.msra.mxu0 0.0
      %833 = vmatprep.subr.mxu0 0.0
      %834 = vmatpush1.msra.mxu0 0.0
      %835 = vmatprep.subr.mxu0 0.0
      %836 = vmatpush1.msra.mxu0 0.0
      %837 = vmatprep.subr.mxu0 0.0
      %838 = vmatpush1.msra.mxu0 0.0
      %839 = vmatprep.subr.mxu0 0.0
      %840 = vmatpush1.msra.mxu0 0.0
      %841 = vmatprep.subr.mxu0 0.0
      %842 = vmatpush1.msra.mxu0 0.0
      %843 = vmatprep.subr.mxu0 0.0
      %844 = vmatpush1.msra.mxu0 0.0
      %845 = vmatprep.subr.mxu0 0.0
      %846 = vmatpush1.msra.mxu0 0.0
      %847 = vmatprep.subr.mxu0 0.0
      %848 = vmatpush1.msra.mxu0 0.0
      %849 = vmatprep.subr.mxu0 0.0
      %850 = vmatpush1.msra.mxu0 0.0
      %851 = vmatprep.subr.mxu0 0.0
      %852 = vmatpush1.msra.mxu0 0.0
      %853 = vmatprep.subr.mxu0 0.0
      %854 = vmatpush1.msra.mxu0 0.0
      %855 = vmatprep.subr.mxu0 0.0
      %856 = vmatpush1.msra.mxu0 0.0
      %857 = vmatprep.subr.mxu0 0.0
      %858 = vmatpush1.msra.mxu0 0.0
      %859 = vmatprep.subr.mxu0 0.0
      %860 = vmatpush1.msra.mxu0 0.0
      %861 = vmatprep.subr.mxu0 0.0
      %862 = vmatpush1.msra.mxu0 0.0
      %863 = vmatprep.subr.mxu0 0.0
      %864 = vmatpush1.msra.mxu0 0.0
      %865 = vmatprep.subr.mxu0 0.0
      %866 = vmatpush1.msra.mxu0 0.0
      %867 = vmatprep.subr.mxu0 0.0
      %868 = vmatpush1.msra.mxu0 0.0
      %869 = vmatprep.subr.mxu0 0.0
      %870 = vmatpush1.msra.mxu0 0.0
      %871 = vmatprep.subr.mxu0 0.0
      %872 = vmatpush1.msra.mxu0 0.0
      %873 = vmatprep.subr.mxu0 0.0
      %874 = vmatpush1.msra.mxu0 0.0
      %875 = vmatprep.subr.mxu0 0.0
      %876 = vmatpush1.msra.mxu0 0.0
      %877 = vmatprep.subr.mxu0 0.0
      %878 = vmatpush1.msra.mxu0 0.0
      %879 = vmatprep.subr.mxu0 0.0
      %880 = vmatpush1.msra.mxu0 0.0
      %881 = vmatprep.subr.mxu0 0.0
      %882 = vmatpush1.msra.mxu0 0.0
      %883 = vmatprep.subr.mxu0 0.0
      %884 = vmatpush1.msra.mxu0 0.0
      %885 = vmatprep.subr.mxu0 0.0
      %886 = vmatpush1.msra.mxu0 0.0
      %887 = vmatprep.subr.mxu0 0.0
      %888 = vmatpush1.msra.mxu0 0.0
      %889 = vmatprep.subr.mxu0 0.0
      %890 = vmatpush1.msra.mxu0 0.0
      %891 = vmatprep.subr.mxu0 0.0
      %892 = vmatpush1.msra.mxu0 0.0
      %893 = vmatprep.mubr.f32.mxu0 0.0
      %894 = vmatmul.mubr.f32.gmra.mrb[0].mxu0 %v827
      %v895 = vpop.f32.mrb[0].mxu0
      %v896 = vadd.f32 0.0, %v895
      %v897 = vpop.f32.mrb[0].mxu0
      %898 = vdwg.mxu0
      %899 = vst.msk [vmem:[%s241] sm:$0xff] %vm254, %v677
      %900 = vst.msk [vmem:[%s241 + $0x8] sm:$0xff] %vm254, %v750
      %901 = vst.msk [vmem:[%s241 + $0x10] sm:$0xff] %vm254, %v823
      %902 = vst.msk [vmem:[%s241 + $0x18] sm:$0xff] %vm254, %v896
      %p903 = scmp.lt.s32.totalorder %s18, 1
      %s904 = scalar_select %p903, %s18, 1
      %p905 = scmp.lt.s32.totalorder %s19, 0
      %s906 = scalar_select %p905, %s19, 0
      %s907 = smul.addr %s904, 4
      %s908 = sadd.s32 %s906, %s907
      %s909 = smul.addr %s908, 8
      %s910 = scalar_lea.vmem %s3, %s909
      // Predicated region
      $region33: #{transformer_tts_forward.71} parent=31 // pred_check
        %p911 = pneg %p126
      $region34: #{transformer_tts_forward.71} parent=31 // pred_check_branch
        %913 = sbr.rel (%p911) target = $region36
      $region35: #{transformer_tts_forward.71} parent=31 // pred_region
        _
      $region36: #{transformer_tts_forward.71} parent=31 // pred_fallthru
        _
    $region32: #{transformer_tts_forward.71} parent=5 // pred_fallthru
      _
    %p914 = scmp.le.s32.totalorder 2, %s9
    // Predicated region
    $region37: #{transformer_tts_forward.71} parent=5 // pred_check
      %p915 = pneg %p914
    $region38: #{transformer_tts_forward.71} parent=5 // pred_check_branch
      %917 = sbr.rel (%p915) target = $region40
    $region39: #{transformer_tts_forward.71} parent=5 // pred_region
      %s918 = ssub.s32 %s9, 2
      // Predicated region
      $region41: #{transformer_tts_forward.71} parent=39 // pred_check
        %p919 = pneg %p132
      $region42: #{transformer_tts_forward.71} parent=39 // pred_check_branch
        %921 = sbr.rel (%p919) target = $region44
      $region43: #{transformer_tts_forward.71} parent=39 // pred_region
        %p922 = scmp.lt.s32.totalorder %s20, 1
        %s923 = scalar_select %p922, %s20, 1
        %p924 = scmp.lt.s32.totalorder %s21, 0
        %s925 = scalar_select %p924, %s21, 0
        %s926 = smul.addr %s923, 4
        %s927 = sadd.s32 %s925, %s926
        %s928 = smul.addr %s927, 8
        %s929 = scalar_lea.vmem %s3, %s928
      $region44: #{transformer_tts_forward.71} parent=39 // pred_fallthru
        _
    $region40: #{transformer_tts_forward.71} parent=5 // pred_fallthru
      _
  $region6: #{transformer_tts_forward.71} parent=0 // loop_footer
    %s13 = sadd.s32 1, %s9
  $region7: #{transformer_tts_forward.71} parent=0 // loop_footer_branch
    %8 = sbr.rel target = $region3
  $region8: #{transformer_tts_forward.71} parent=0 // loop_exit
    _

// kernel: transformer_tts_forward.53
$region0: #{transformer_tts_forward.53}
  #allocation0 [shape = 'u32[]', space=smem, size = 0x4, offset = 0x4, fixed_abs, tag = 'smem constant byte address 0x4 - core index']
  #allocation1 [shape = 'u32[144,128]{1,0:T(1,128)}', space=vmem, size = 0x12000, scoped, tag = 'internal scratch']
  #allocation2 [shape = 'f32[16,32]{1,0:T(8,128)}', space=vmem, size = 0x2000, scoped, tag = 'scratch operand']
  %s0 = inlined_call_operand.vmem [shape: f32[16,32], index: 0, kind: input, shape index: {}]
  %s1 = inlined_call_operand.vmem [shape: f32[32,32], index: 1, kind: input, shape index: {}]
  %s2 = inlined_call_operand.vmem [shape: f32[1,32], index: 2, kind: input, shape index: {}]
  %s3 = inlined_call_operand.vmem [shape: f32[16,32], index: 3, kind: output, shape index: {}]
  %s4 = sld [smem:[#allocation0]]
  $region30: #{transformer_tts_forward.53} parent=0
    _
  %s6 = ssub.s32 1, %s4
  %s7 = scalar_select 0, %s6, %s4
  // Predicated region
  $region2: #{transformer_tts_forward.53} parent=0 // pred_check
    _
  $region3: #{transformer_tts_forward.53} parent=0 // pred_check_branch
    %9 = sbr.rel (0) target = $region5
  $region4: #{transformer_tts_forward.53} parent=0 // pred_region
    _
  $region5: #{transformer_tts_forward.53} parent=0 // pred_fallthru
    _
  // Predicated region
  $region6: #{transformer_tts_forward.53} parent=0 // pred_check
    _
  $region7: #{transformer_tts_forward.53} parent=0 // pred_check_branch
    %11 = sbr.rel (0) target = $region9
  $region8: #{transformer_tts_forward.53} parent=0 // pred_region
    _
  $region9: #{transformer_tts_forward.53} parent=0 // pred_fallthru
    _
  // Predicated region
  $region10: #{transformer_tts_forward.53} parent=0 // pred_check
    _
  $region11: #{transformer_tts_forward.53} parent=0 // pred_check_branch
    %13 = sbr.rel (0) target = $region13
  $region12: #{transformer_tts_forward.53} parent=0 // pred_region
    _
  $region13: #{transformer_tts_forward.53} parent=0 // pred_fallthru
    _
  %p14 = scmp.eq.s32.totalorder 0, 0
  // Predicated region
  $region14: #{transformer_tts_forward.53} parent=0 // pred_check
    %p15 = pneg %p14
  $region15: #{transformer_tts_forward.53} parent=0 // pred_check_branch
    %17 = sbr.rel (%p15) target = $region17
  $region16: #{transformer_tts_forward.53} parent=0 // pred_region
    %vm18 = vcmask 261120
    %19 = vst.msk [vmem:[#allocation2] sm:$0xff] %vm18, 0.0
    %20 = vst.msk [vmem:[#allocation2 + $0x8] sm:$0xff] %vm18, 0.0
  $region17: #{transformer_tts_forward.53} parent=0 // pred_fallthru
    _
  %v21 = vld [vmem:[#allocation2] sm:$0xff]
  %v22 = vld [vmem:[#allocation2 + $0x8] sm:$0xff]
  %v23 = vld [vmem:[%s0] sm:$0xff]
  %v24 = vld [vmem:[%s0 + $0x8] sm:$0xff]
  %v25 = vld [vmem:[%s1] sm:$0xff]
  %v26 = vld [vmem:[%s1 + $0x8] sm:$0xff]
  %v27 = vld [vmem:[%s1 + $0x10] sm:$0xff]
  %v28 = vld [vmem:[%s1 + $0x18] sm:$0xff]
  %vm29 = vcmask 261120
  %v31 = vsel %vm29, %v23, 0
  %v34 = vsel %vm29, %v24, 0
  %36 = vmatprep.subr.mxu0 0.0
  %37 = vmatpush1.msra.mxu0 %v25
  %38 = vmatprep.subr.mxu0 0.0
  %39 = vmatpush1.msra.mxu0 %v26
  %40 = vmatprep.subr.mxu0 0.0
  %41 = vmatpush1.msra.mxu0 %v27
  %42 = vmatprep.subr.mxu0 0.0
  %43 = vmatpush1.msra.mxu0 %v28
  %44 = vmatprep.subr.mxu0 0.0
  %45 = vmatpush1.msra.mxu0 0.0
  %46 = vmatprep.subr.mxu0 0.0
  %47 = vmatpush1.msra.mxu0 0.0
  %48 = vmatprep.subr.mxu0 0.0
  %49 = vmatpush1.msra.mxu0 0.0
  %50 = vmatprep.subr.mxu0 0.0
  %51 = vmatpush1.msra.mxu0 0.0
  %52 = vmatprep.subr.mxu0 0.0
  %53 = vmatpush1.msra.mxu0 0.0
  %54 = vmatprep.subr.mxu0 0.0
  %55 = vmatpush1.msra.mxu0 0.0
  %56 = vmatprep.subr.mxu0 0.0
  %57 = vmatpush1.msra.mxu0 0.0
  %58 = vmatprep.subr.mxu0 0.0
  %59 = vmatpush1.msra.mxu0 0.0
  %60 = vmatprep.subr.mxu0 0.0
  %61 = vmatpush1.msra.mxu0 0.0
  %62 = vmatprep.subr.mxu0 0.0
  %63 = vmatpush1.msra.mxu0 0.0
  %64 = vmatprep.subr.mxu0 0.0
  %65 = vmatpush1.msra.mxu0 0.0
  %66 = vmatprep.subr.mxu0 0.0
  %67 = vmatpush1.msra.mxu0 0.0
  %68 = vmatprep.subr.mxu0 0.0
  %69 = vmatpush1.msra.mxu0 0.0
  %70 = vmatprep.subr.mxu0 0.0
  %71 = vmatpush1.msra.mxu0 0.0
  %72 = vmatprep.subr.mxu0 0.0
  %73 = vmatpush1.msra.mxu0 0.0
  %74 = vmatprep.subr.mxu0 0.0
  %75 = vmatpush1.msra.mxu0 0.0
  %76 = vmatprep.subr.mxu0 0.0
  %77 = vmatpush1.msra.mxu0 0.0
  %78 = vmatprep.subr.mxu0 0.0
  %79 = vmatpush1.msra.mxu0 0.0
  %80 = vmatprep.subr.mxu0 0.0
  %81 = vmatpush1.msra.mxu0 0.0
  %82 = vmatprep.subr.mxu0 0.0
  %83 = vmatpush1.msra.mxu0 0.0
  %84 = vmatprep.subr.mxu0 0.0
  %85 = vmatpush1.msra.mxu0 0.0
  %86 = vmatprep.subr.mxu0 0.0
  %87 = vmatpush1.msra.mxu0 0.0
  %88 = vmatprep.subr.mxu0 0.0
  %89 = vmatpush1.msra.mxu0 0.0
  %90 = vmatprep.subr.mxu0 0.0
  %91 = vmatpush1.msra.mxu0 0.0
  %92 = vmatprep.subr.mxu0 0.0
  %93 = vmatpush1.msra.mxu0 0.0
  %94 = vmatprep.subr.mxu0 0.0
  %95 = vmatpush1.msra.mxu0 0.0
  %96 = vmatprep.subr.mxu0 0.0
  %97 = vmatpush1.msra.mxu0 0.0
  %98 = vmatprep.subr.mxu0 0.0
  %99 = vmatpush1.msra.mxu0 0.0
  %100 = vmatprep.mubr.f32.mxu0 0.0
  %101 = vmatmul.mubr.f32.gmra.mrb[0].mxu0 %v31
  %v102 = vpop.f32.mrb[0].mxu0
  %v103 = vadd.f32 0.0, %v102
  %v104 = vpop.f32.mrb[0].mxu0
  %105 = vmatprep.mubr.f32.mxu0 0.0
  %106 = vmatmul.mubr.f32.gmra.mrb[0].mxu0 %v34
  %v107 = vpop.f32.mrb[0].mxu0
  %v108 = vadd.f32 0.0, %v107
  %v109 = vpop.f32.mrb[0].mxu0
  %110 = vdwg.mxu0
  %v111 = vadd.f32 %v21, %v103
  %v112 = vadd.f32 %v22, %v108
  %113 = vst.msk [vmem:[#allocation2] sm:$0xff] %vm29, %v111
  %114 = vst.msk [vmem:[#allocation2 + $0x8] sm:$0xff] %vm29, %v112
  // Predicated region
  $region18: #{transformer_tts_forward.53} parent=0 // pred_check
    %p115 = pneg %p14
  $region19: #{transformer_tts_forward.53} parent=0 // pred_check_branch
    %117 = sbr.rel (%p115) target = $region21
  $region20: #{transformer_tts_forward.53} parent=0 // pred_region
    %v118 = vld [vmem:[#allocation2] sm:$0xff]
    %v119 = vld [vmem:[#allocation2 + $0x8] sm:$0xff]
    %v120 = vld [vmem:[%s2] sm:$0x1]
    %v122 = vlaneseq
    %v123 = vshrl.u32 %v122, 7
    %v124 = vsub.s32 0, %v123
    %v125 = vrot.slane %v120, %v124
    %v127 = vadd.f32 %v118, %v125
    %v128 = vadd.f32 %v119, %v125
    %129 = vst.msk [vmem:[%s3] sm:$0xff] %vm29, %v127
    %130 = vst.msk [vmem:[%s3 + $0x8] sm:$0xff] %vm29, %v128
  $region21: #{transformer_tts_forward.53} parent=0 // pred_fallthru
    _
  // Predicated region
  $region22: #{transformer_tts_forward.53} parent=0 // pred_check
    _
  $region23: #{transformer_tts_forward.53} parent=0 // pred_check_branch
    %132 = sbr.rel (0) target = $region25
  $region24: #{transformer_tts_forward.53} parent=0 // pred_region
    _
  $region25: #{transformer_tts_forward.53} parent=0 // pred_fallthru
    _
  // Predicated region
  $region26: #{transformer_tts_forward.53} parent=0 // pred_check
    _
  $region27: #{transformer_tts_forward.53} parent=0 // pred_check_branch
    %134 = sbr.rel (0) target = $region29
  $region28: #{transformer_tts_forward.53} parent=0 // pred_region
    _
  $region29: #{transformer_tts_forward.53} parent=0 // pred_fallthru
    _

// kernel: transformer_tts_forward.50
$region0: #{transformer_tts_forward.50}
  #allocation0 [shape = 'u32[]', space=smem, size = 0x4, offset = 0x4, fixed_abs, tag = 'smem constant byte address 0x4 - core index']
  #allocation1 [shape = 'u32[144,128]{1,0:T(1,128)}', space=vmem, size = 0x12000, scoped, tag = 'internal scratch']
  %s0 = inlined_call_operand.vmem [shape: f32[2,12,16], index: 0, kind: input, shape index: {}]
  %s1 = inlined_call_operand.vmem [shape: f32[5,16,32], index: 1, kind: input, shape index: {}]
  %s2 = inlined_call_operand.vmem [shape: f32[1,32], index: 2, kind: input, shape index: {}]
  %s3 = inlined_call_operand.vmem [shape: f32[2,8,32], index: 3, kind: output, shape index: {}]
  %s4 = sld [smem:[#allocation0]]
  $region45: #{transformer_tts_forward.50} parent=0
    _
  %s6 = ssub.s32 1, %s4
  %s7 = scalar_select 0, %s6, %s4
  loop: start=0, step=1, limit=4
  $region2: #{transformer_tts_forward.50} parent=0 // loop_pre_header
    _
  $region3: #{transformer_tts_forward.50} parent=0 // loop_header
    %s9 = sphi 0, %s13
    %p10 = scmp.ge.s32.totalorder %s9, 4
    %s19 = sphi 0, %s21
    %s22 = sphi 0, %s19
    %s23 = sphi 0, %s22
    %s39 = sphi 0, %s23
    %s43 = sphi 0, %s43
    %s45 = sphi 0, %s43
    %s46 = sphi 0, %s45
    %s60 = sphi 0, %s46
    %s64 = sphi 0, %s64
    %s66 = sphi 0, %s64
    %s67 = sphi 0, %s66
    %s81 = sphi 0, %s67
    %s87 = sphi 0, %s89
    %s90 = sphi 0, %s87
    %s91 = sphi 0, %s90
    %s107 = sphi 0, %s91
  $region4: #{transformer_tts_forward.50} parent=0 // loop_header_branch
    %12 = sbr.rel (%p10) target = $region8
  $region5: #{transformer_tts_forward.50} parent=0 // loop_body
    %s14 = ssub.s32 %s9, 1
    %s15 = ssub.s32 %s9, 2
    %s16 = sadd.s32 %s9, 1
    %s17 = ssub.s32 %s9, %s16
    %p18 = scmp.eq.s32.totalorder %s17, 0
    %s20 = sadd.s32 %s19, 1
    %s21 = scalar_select %p18, %s19, %s20
    %p24 = pneg %p18
    %p25 = scmp.eq.s32.totalorder %s9, 1
    %p26 = por %p24, %p25
    %p27 = scmp.ne.s32.totalorder %s19, %s22
    %p28 = scmp.eq.s32.totalorder %s9, 0
    %p29 = por %p27, %p28
    %p30 = scmp.ne.s32.totalorder %s19, %s22
    %p31 = scmp.eq.s32.totalorder %s14, 1
    %p32 = por %p30, %p31
    %p33 = scmp.ne.s32.totalorder %s22, %s23
    %p34 = scmp.eq.s32.totalorder %s14, 0
    %p35 = por %p33, %p34
    %p36 = scmp.ne.s32.totalorder %s22, %s23
    %p37 = scmp.eq.s32.totalorder %s15, 1
    %p38 = por %p36, %p37
    %p40 = scmp.ne.s32.totalorder %s23, %s39
    %p41 = scmp.eq.s32.totalorder %s15, 0
    %p42 = por %p40, %p41
    %s44 = sadd.s32 %s43, 1
    %p47 = scmp.eq.s32.totalorder %s9, 1
    %p48 = scmp.ne.s32.totalorder %s43, %s45
    %p49 = scmp.eq.s32.totalorder %s9, 0
    %p50 = por %p48, %p49
    %p51 = scmp.ne.s32.totalorder %s43, %s45
    %p52 = scmp.eq.s32.totalorder %s14, 1
    %p53 = por %p51, %p52
    %p54 = scmp.ne.s32.totalorder %s45, %s46
    %p55 = scmp.eq.s32.totalorder %s14, 0
    %p56 = por %p54, %p55
    %p57 = scmp.ne.s32.totalorder %s45, %s46
    %p58 = scmp.eq.s32.totalorder %s15, 1
    %p59 = por %p57, %p58
    %p61 = scmp.ne.s32.totalorder %s46, %s60
    %p62 = scmp.eq.s32.totalorder %s15, 0
    %p63 = por %p61, %p62
    %s65 = sadd.s32 %s64, 1
    %p68 = scmp.eq.s32.totalorder %s9, 1
    %p69 = scmp.ne.s32.totalorder %s64, %s66
    %p70 = scmp.eq.s32.totalorder %s9, 0
    %p71 = por %p69, %p70
    %p72 = scmp.ne.s32.totalorder %s64, %s66
    %p73 = scmp.eq.s32.totalorder %s14, 1
    %p74 = por %p72, %p73
    %p75 = scmp.ne.s32.totalorder %s66, %s67
    %p76 = scmp.eq.s32.totalorder %s14, 0
    %p77 = por %p75, %p76
    %p78 = scmp.ne.s32.totalorder %s66, %s67
    %p79 = scmp.eq.s32.totalorder %s15, 1
    %p80 = por %p78, %p79
    %p82 = scmp.ne.s32.totalorder %s67, %s81
    %p83 = scmp.eq.s32.totalorder %s15, 0
    %p84 = por %p82, %p83
    %s85 = ssub.s32 %s9, %s16
    %p86 = scmp.eq.s32.totalorder %s85, 0
    %s88 = sadd.s32 %s87, 1
    %s89 = scalar_select %p86, %s87, %s88
    %p92 = pneg %p86
    %p93 = scmp.eq.s32.totalorder %s9, 1
    %p94 = por %p92, %p93
    %p95 = scmp.ne.s32.totalorder %s87, %s90
    %p96 = scmp.eq.s32.totalorder %s9, 0
    %p97 = por %p95, %p96
    %p98 = scmp.ne.s32.totalorder %s87, %s90
    %p99 = scmp.eq.s32.totalorder %s14, 1
    %p100 = por %p98, %p99
    %p101 = scmp.ne.s32.totalorder %s90, %s91
    %p102 = scmp.eq.s32.totalorder %s14, 0
    %p103 = por %p101, %p102
    %p104 = scmp.ne.s32.totalorder %s90, %s91
    %p105 = scmp.eq.s32.totalorder %s15, 1
    %p106 = por %p104, %p105
    %p108 = scmp.ne.s32.totalorder %s91, %s107
    %p109 = scmp.eq.s32.totalorder %s15, 0
    %p110 = por %p108, %p109
    %p111 = scmp.le.s32.totalorder 1, %s9
    %p112 = scmp.lt.s32.totalorder %s9, 3
    %p113 = pnand %p111, %p112
    %p114 = pneg %p113
    // Predicated region
    $region9: #{transformer_tts_forward.50} parent=5 // pred_check
      _
    $region10: #{transformer_tts_forward.50} parent=5 // pred_check_branch
      %116 = sbr.rel (%p113) target = $region12
    $region11: #{transformer_tts_forward.50} parent=5 // pred_region
      %s117 = ssub.s32 %s9, 1
      // Predicated region
      $region13: #{transformer_tts_forward.50} parent=11 // pred_check
        %p118 = pneg %p56
      $region14: #{transformer_tts_forward.50} parent=11 // pred_check_branch
        %120 = sbr.rel (%p118) target = $region16
      $region15: #{transformer_tts_forward.50} parent=11 // pred_region
        _
      $region16: #{transformer_tts_forward.50} parent=11 // pred_fallthru
        _
      // Predicated region
      $region17: #{transformer_tts_forward.50} parent=11 // pred_check
        %p121 = pneg %p77
      $region18: #{transformer_tts_forward.50} parent=11 // pred_check_branch
        %123 = sbr.rel (%p121) target = $region20
      $region19: #{transformer_tts_forward.50} parent=11 // pred_region
        _
      $region20: #{transformer_tts_forward.50} parent=11 // pred_fallthru
        _
    $region12: #{transformer_tts_forward.50} parent=5 // pred_fallthru
      _
    %p124 = scmp.lt.s32.totalorder %s9, 2
    // Predicated region
    $region21: #{transformer_tts_forward.50} parent=5 // pred_check
      %p125 = pneg %p124
    $region22: #{transformer_tts_forward.50} parent=5 // pred_check_branch
      %127 = sbr.rel (%p125) target = $region24
    $region23: #{transformer_tts_forward.50} parent=5 // pred_region
      // Predicated region
      $region25: #{transformer_tts_forward.50} parent=23 // pred_check
        %p128 = pneg %p29
      $region26: #{transformer_tts_forward.50} parent=23 // pred_check_branch
        %130 = sbr.rel (%p128) target = $region28
      $region27: #{transformer_tts_forward.50} parent=23 // pred_region
        %p131 = scmp.lt.s32.totalorder %s9, 1
        %s132 = scalar_select %p131, %s9, 1
        %s133 = smul.addr %s132, 2
        %s134 = smul.addr %s133, 8
        %s135 = scalar_lea.vmem %s0, %s134
      $region28: #{transformer_tts_forward.50} parent=23 // pred_fallthru
        _
    $region24: #{transformer_tts_forward.50} parent=5 // pred_fallthru
      _
    %p136 = scmp.le.s32.totalorder 1, %s9
    %p137 = scmp.lt.s32.totalorder %s9, 3
    %p138 = pnand %p136, %p137
    %p139 = pneg %p138
    // Predicated region
    $region29: #{transformer_tts_forward.50} parent=5 // pred_check
      _
    $region30: #{transformer_tts_forward.50} parent=5 // pred_check_branch
      %141 = sbr.rel (%p138) target = $region32
    $region31: #{transformer_tts_forward.50} parent=5 // pred_region
      %s142 = ssub.s32 %s9, 1
      %p143 = scmp.lt.s32.totalorder %s14, 1
      %s144 = scalar_select %p143, %s14, 1
      %s145 = smul.addr %s144, 2
      %s146 = smul.addr %s145, 8
      %s147 = scalar_lea.vmem %s0, %s146
      %p148 = pneg %p35
      %p149 = pneg %p32
      %p150 = pneg %p56
      %p151 = pneg %p53
      %p152 = pneg %p77
      %p153 = pneg %p74
      %p154 = pneg %p103
      %p155 = pneg %p100
      %p156 = scmp.lt.s32.totalorder %s14, 1
      %s157 = scalar_select %p156, %s14, 1
      %s158 = smul.addr %s157, 8
      %s159 = scalar_lea.vmem %s3, %s158
      %p160 = scmp.lt.s32.totalorder %s14, 1
      %s161 = scalar_select %p160, %s14, 1
      %s162 = smul.addr %s161, 2
      %s163 = smul.addr %s162, 8
      %s164 = scalar_lea.vmem %s0, %s163
      %p165 = scmp.lt.s32.totalorder %s14, 1
      %s166 = scalar_select %p165, %s14, 1
      %s167 = smul.addr %s166, 8
      %s168 = scalar_lea.vmem %s3, %s167
      %v169 = vld [vmem:[%s164] sm:$0xff]
      %v170 = vld [vmem:[%s164 + $0x8] sm:$0xf]
      %v171 = vld [vmem:[%s1] sm:$0xff]
      %v172 = vld [vmem:[%s1 + $0x8] sm:$0xff]
      %v173 = vld [vmem:[%s1 + $0x10] sm:$0xff]
      %v174 = vld [vmem:[%s1 + $0x18] sm:$0xff]
      %v175 = vld [vmem:[%s1 + $0x20] sm:$0xff]
      %v176 = vld [vmem:[%s1 + $0x28] sm:$0xff]
      %v177 = vld [vmem:[%s1 + $0x30] sm:$0xff]
      %v178 = vld [vmem:[%s1 + $0x38] sm:$0xff]
      %v179 = vld [vmem:[%s1 + $0x40] sm:$0xff]
      %v180 = vld [vmem:[%s1 + $0x48] sm:$0xff]
      %vm183 = vcmask 1046528
      %v184 = vrot.slane %v169, 1
      %v185 = vrot.slane %v170, 1
      %v186 = vsel %vm183, %v184, %v185
      %vm187 = vcmask 130048
      %v188 = vsel %vm187, %v186, 0
      %190 = vmatprep.subr.mxu0 0.0
      %191 = vmatpush1.msra.mxu0 %v173
      %192 = vmatprep.subr.mxu0 0.0
      %193 = vmatpush1.msra.mxu0 %v174
      %194 = vmatprep.subr.mxu0 0.0
      %195 = vmatpush1.msra.mxu0 0.0
      %196 = vmatprep.subr.mxu0 0.0
      %197 = vmatpush1.msra.mxu0 0.0
      %198 = vmatprep.subr.mxu0 0.0
      %199 = vmatpush1.msra.mxu0 0.0
      %200 = vmatprep.subr.mxu0 0.0
      %201 = vmatpush1.msra.mxu0 0.0
      %202 = vmatprep.subr.mxu0 0.0
      %203 = vmatpush1.msra.mxu0 0.0
      %204 = vmatprep.subr.mxu0 0.0
      %205 = vmatpush1.msra.mxu0 0.0
      %206 = vmatprep.subr.mxu0 0.0
      %207 = vmatpush1.msra.mxu0 0.0
      %208 = vmatprep.subr.mxu0 0.0
      %209 = vmatpush1.msra.mxu0 0.0
      %210 = vmatprep.subr.mxu0 0.0
      %211 = vmatpush1.msra.mxu0 0.0
      %212 = vmatprep.subr.mxu0 0.0
      %213 = vmatpush1.msra.mxu0 0.0
      %214 = vmatprep.subr.mxu0 0.0
      %215 = vmatpush1.msra.mxu0 0.0
      %216 = vmatprep.subr.mxu0 0.0
      %217 = vmatpush1.msra.mxu0 0.0
      %218 = vmatprep.subr.mxu0 0.0
      %219 = vmatpush1.msra.mxu0 0.0
      %220 = vmatprep.subr.mxu0 0.0
      %221 = vmatpush1.msra.mxu0 0.0
      %222 = vmatprep.subr.mxu0 0.0
      %223 = vmatpush1.msra.mxu0 0.0
      %224 = vmatprep.subr.mxu0 0.0
      %225 = vmatpush1.msra.mxu0 0.0
      %226 = vmatprep.subr.mxu0 0.0
      %227 = vmatpush1.msra.mxu0 0.0
      %228 = vmatprep.subr.mxu0 0.0
      %229 = vmatpush1.msra.mxu0 0.0
      %230 = vmatprep.subr.mxu0 0.0
      %231 = vmatpush1.msra.mxu0 0.0
      %232 = vmatprep.subr.mxu0 0.0
      %233 = vmatpush1.msra.mxu0 0.0
      %234 = vmatprep.subr.mxu0 0.0
      %235 = vmatpush1.msra.mxu0 0.0
      %236 = vmatprep.subr.mxu0 0.0
      %237 = vmatpush1.msra.mxu0 0.0
      %238 = vmatprep.subr.mxu0 0.0
      %239 = vmatpush1.msra.mxu0 0.0
      %240 = vmatprep.subr.mxu0 0.0
      %241 = vmatpush1.msra.mxu0 0.0
      %242 = vmatprep.subr.mxu0 0.0
      %243 = vmatpush1.msra.mxu0 0.0
      %244 = vmatprep.subr.mxu0 0.0
      %245 = vmatpush1.msra.mxu0 0.0
      %246 = vmatprep.subr.mxu0 0.0
      %247 = vmatpush1.msra.mxu0 0.0
      %248 = vmatprep.subr.mxu0 0.0
      %249 = vmatpush1.msra.mxu0 0.0
      %250 = vmatprep.subr.mxu0 0.0
      %251 = vmatpush1.msra.mxu0 0.0
      %252 = vmatprep.subr.mxu0 0.0
      %253 = vmatpush1.msra.mxu0 0.0
      %254 = vmatprep.mubr.f32.mxu0 0.0
      %255 = vmatmul.mubr.f32.gmra.mrb[0].mxu0 %v188
      %v256 = vpop.f32.mrb[0].mxu0
      %v257 = vadd.f32 0.0, %v256
      %v258 = vpop.f32.mrb[0].mxu0
      %259 = vdwg.mxu0
      %v260 = vsel %vm187, %v169, 0
      %262 = vmatprep.subr.mxu0 0.0
      %263 = vmatpush1.msra.mxu0 %v171
      %264 = vmatprep.subr.mxu0 0.0
      %265 = vmatpush1.msra.mxu0 %v172
      %266 = vmatprep.subr.mxu0 0.0
      %267 = vmatpush1.msra.mxu0 0.0
      %268 = vmatprep.subr.mxu0 0.0
      %269 = vmatpush1.msra.mxu0 0.0
      %270 = vmatprep.subr.mxu0 0.0
      %271 = vmatpush1.msra.mxu0 0.0
      %272 = vmatprep.subr.mxu0 0.0
      %273 = vmatpush1.msra.mxu0 0.0
      %274 = vmatprep.subr.mxu0 0.0
      %275 = vmatpush1.msra.mxu0 0.0
      %276 = vmatprep.subr.mxu0 0.0
      %277 = vmatpush1.msra.mxu0 0.0
      %278 = vmatprep.subr.mxu0 0.0
      %279 = vmatpush1.msra.mxu0 0.0
      %280 = vmatprep.subr.mxu0 0.0
      %281 = vmatpush1.msra.mxu0 0.0
      %282 = vmatprep.subr.mxu0 0.0
      %283 = vmatpush1.msra.mxu0 0.0
      %284 = vmatprep.subr.mxu0 0.0
      %285 = vmatpush1.msra.mxu0 0.0
      %286 = vmatprep.subr.mxu0 0.0
      %287 = vmatpush1.msra.mxu0 0.0
      %288 = vmatprep.subr.mxu0 0.0
      %289 = vmatpush1.msra.mxu0 0.0
      %290 = vmatprep.subr.mxu0 0.0
      %291 = vmatpush1.msra.mxu0 0.0
      %292 = vmatprep.subr.mxu0 0.0
      %293 = vmatpush1.msra.mxu0 0.0
      %294 = vmatprep.subr.mxu0 0.0
      %295 = vmatpush1.msra.mxu0 0.0
      %296 = vmatprep.subr.mxu0 0.0
      %297 = vmatpush1.msra.mxu0 0.0
      %298 = vmatprep.subr.mxu0 0.0
      %299 = vmatpush1.msra.mxu0 0.0
      %300 = vmatprep.subr.mxu0 0.0
      %301 = vmatpush1.msra.mxu0 0.0
      %302 = vmatprep.subr.mxu0 0.0
      %303 = vmatpush1.msra.mxu0 0.0
      %304 = vmatprep.subr.mxu0 0.0
      %305 = vmatpush1.msra.mxu0 0.0
      %306 = vmatprep.subr.mxu0 0.0
      %307 = vmatpush1.msra.mxu0 0.0
      %308 = vmatprep.subr.mxu0 0.0
      %309 = vmatpush1.msra.mxu0 0.0
      %310 = vmatprep.subr.mxu0 0.0
      %311 = vmatpush1.msra.mxu0 0.0
      %312 = vmatprep.subr.mxu0 0.0
      %313 = vmatpush1.msra.mxu0 0.0
      %314 = vmatprep.subr.mxu0 0.0
      %315 = vmatpush1.msra.mxu0 0.0
      %316 = vmatprep.subr.mxu0 0.0
      %317 = vmatpush1.msra.mxu0 0.0
      %318 = vmatprep.subr.mxu0 0.0
      %319 = vmatpush1.msra.mxu0 0.0
      %320 = vmatprep.subr.mxu0 0.0
      %321 = vmatpush1.msra.mxu0 0.0
      %322 = vmatprep.subr.mxu0 0.0
      %323 = vmatpush1.msra.mxu0 0.0
      %324 = vmatprep.subr.mxu0 0.0
      %325 = vmatpush1.msra.mxu0 0.0
      %326 = vmatprep.mubr.f32.mxu0 0.0
      %327 = vmatmul.mubr.f32.gmra.mrb[0].mxu0 %v260
      %v328 = vpop.f32.mrb[0].mxu0
      %v329 = vadd.f32 %v257, %v328
      %v330 = vpop.f32.mrb[0].mxu0
      %331 = vdwg.mxu0
      %vm332 = vcmask 1045504
      %v333 = vrot.slane %v169, 2
      %v334 = vrot.slane %v170, 2
      %v335 = vsel %vm332, %v333, %v334
      %v336 = vsel %vm187, %v335, 0
      %338 = vmatprep.subr.mxu0 0.0
      %339 = vmatpush1.msra.mxu0 %v175
      %340 = vmatprep.subr.mxu0 0.0
      %341 = vmatpush1.msra.mxu0 %v176
      %342 = vmatprep.subr.mxu0 0.0
      %343 = vmatpush1.msra.mxu0 0.0
      %344 = vmatprep.subr.mxu0 0.0
      %345 = vmatpush1.msra.mxu0 0.0
      %346 = vmatprep.subr.mxu0 0.0
      %347 = vmatpush1.msra.mxu0 0.0
      %348 = vmatprep.subr.mxu0 0.0
      %349 = vmatpush1.msra.mxu0 0.0
      %350 = vmatprep.subr.mxu0 0.0
      %351 = vmatpush1.msra.mxu0 0.0
      %352 = vmatprep.subr.mxu0 0.0
      %353 = vmatpush1.msra.mxu0 0.0
      %354 = vmatprep.subr.mxu0 0.0
      %355 = vmatpush1.msra.mxu0 0.0
      %356 = vmatprep.subr.mxu0 0.0
      %357 = vmatpush1.msra.mxu0 0.0
      %358 = vmatprep.subr.mxu0 0.0
      %359 = vmatpush1.msra.mxu0 0.0
      %360 = vmatprep.subr.mxu0 0.0
      %361 = vmatpush1.msra.mxu0 0.0
      %362 = vmatprep.subr.mxu0 0.0
      %363 = vmatpush1.msra.mxu0 0.0
      %364 = vmatprep.subr.mxu0 0.0
      %365 = vmatpush1.msra.mxu0 0.0
      %366 = vmatprep.subr.mxu0 0.0
      %367 = vmatpush1.msra.mxu0 0.0
      %368 = vmatprep.subr.mxu0 0.0
      %369 = vmatpush1.msra.mxu0 0.0
      %370 = vmatprep.subr.mxu0 0.0
      %371 = vmatpush1.msra.mxu0 0.0
      %372 = vmatprep.subr.mxu0 0.0
      %373 = vmatpush1.msra.mxu0 0.0
      %374 = vmatprep.subr.mxu0 0.0
      %375 = vmatpush1.msra.mxu0 0.0
      %376 = vmatprep.subr.mxu0 0.0
      %377 = vmatpush1.msra.mxu0 0.0
      %378 = vmatprep.subr.mxu0 0.0
      %379 = vmatpush1.msra.mxu0 0.0
      %380 = vmatprep.subr.mxu0 0.0
      %381 = vmatpush1.msra.mxu0 0.0
      %382 = vmatprep.subr.mxu0 0.0
      %383 = vmatpush1.msra.mxu0 0.0
      %384 = vmatprep.subr.mxu0 0.0
      %385 = vmatpush1.msra.mxu0 0.0
      %386 = vmatprep.subr.mxu0 0.0
      %387 = vmatpush1.msra.mxu0 0.0
      %388 = vmatprep.subr.mxu0 0.0
      %389 = vmatpush1.msra.mxu0 0.0
      %390 = vmatprep.subr.mxu0 0.0
      %391 = vmatpush1.msra.mxu0 0.0
      %392 = vmatprep.subr.mxu0 0.0
      %393 = vmatpush1.msra.mxu0 0.0
      %394 = vmatprep.subr.mxu0 0.0
      %395 = vmatpush1.msra.mxu0 0.0
      %396 = vmatprep.subr.mxu0 0.0
      %397 = vmatpush1.msra.mxu0 0.0
      %398 = vmatprep.subr.mxu0 0.0
      %399 = vmatpush1.msra.mxu0 0.0
      %400 = vmatprep.subr.mxu0 0.0
      %401 = vmatpush1.msra.mxu0 0.0
      %402 = vmatprep.mubr.f32.mxu0 0.0
      %403 = vmatmul.mubr.f32.gmra.mrb[0].mxu0 %v336
      %v404 = vpop.f32.mrb[0].mxu0
      %v405 = vadd.f32 0.0, %v404
      %v406 = vpop.f32.mrb[0].mxu0
      %407 = vdwg.mxu0
      %v408 = vadd.f32 %v329, %v405
      %vm409 = vcmask 1044480
      %v410 = vrot.slane %v169, 3
      %v411 = vrot.slane %v170, 3
      %v412 = vsel %vm409, %v410, %v411
      %v413 = vsel %vm187, %v412, 0
      %415 = vmatprep.subr.mxu0 0.0
      %416 = vmatpush1.msra.mxu0 %v177
      %417 = vmatprep.subr.mxu0 0.0
      %418 = vmatpush1.msra.mxu0 %v178
      %419 = vmatprep.subr.mxu0 0.0
      %420 = vmatpush1.msra.mxu0 0.0
      %421 = vmatprep.subr.mxu0 0.0
      %422 = vmatpush1.msra.mxu0 0.0
      %423 = vmatprep.subr.mxu0 0.0
      %424 = vmatpush1.msra.mxu0 0.0
      %425 = vmatprep.subr.mxu0 0.0
      %426 = vmatpush1.msra.mxu0 0.0
      %427 = vmatprep.subr.mxu0 0.0
      %428 = vmatpush1.msra.mxu0 0.0
      %429 = vmatprep.subr.mxu0 0.0
      %430 = vmatpush1.msra.mxu0 0.0
      %431 = vmatprep.subr.mxu0 0.0
      %432 = vmatpush1.msra.mxu0 0.0
      %433 = vmatprep.subr.mxu0 0.0
      %434 = vmatpush1.msra.mxu0 0.0
      %435 = vmatprep.subr.mxu0 0.0
      %436 = vmatpush1.msra.mxu0 0.0
      %437 = vmatprep.subr.mxu0 0.0
      %438 = vmatpush1.msra.mxu0 0.0
      %439 = vmatprep.subr.mxu0 0.0
      %440 = vmatpush1.msra.mxu0 0.0
      %441 = vmatprep.subr.mxu0 0.0
      %442 = vmatpush1.msra.mxu0 0.0
      %443 = vmatprep.subr.mxu0 0.0
      %444 = vmatpush1.msra.mxu0 0.0
      %445 = vmatprep.subr.mxu0 0.0
      %446 = vmatpush1.msra.mxu0 0.0
      %447 = vmatprep.subr.mxu0 0.0
      %448 = vmatpush1.msra.mxu0 0.0
      %449 = vmatprep.subr.mxu0 0.0
      %450 = vmatpush1.msra.mxu0 0.0
      %451 = vmatprep.subr.mxu0 0.0
      %452 = vmatpush1.msra.mxu0 0.0
      %453 = vmatprep.subr.mxu0 0.0
      %454 = vmatpush1.msra.mxu0 0.0
      %455 = vmatprep.subr.mxu0 0.0
      %456 = vmatpush1.msra.mxu0 0.0
      %457 = vmatprep.subr.mxu0 0.0
      %458 = vmatpush1.msra.mxu0 0.0
      %459 = vmatprep.subr.mxu0 0.0
      %460 = vmatpush1.msra.mxu0 0.0
      %461 = vmatprep.subr.mxu0 0.0
      %462 = vmatpush1.msra.mxu0 0.0
      %463 = vmatprep.subr.mxu0 0.0
      %464 = vmatpush1.msra.mxu0 0.0
      %465 = vmatprep.subr.mxu0 0.0
      %466 = vmatpush1.msra.mxu0 0.0
      %467 = vmatprep.subr.mxu0 0.0
      %468 = vmatpush1.msra.mxu0 0.0
      %469 = vmatprep.subr.mxu0 0.0
      %470 = vmatpush1.msra.mxu0 0.0
      %471 = vmatprep.subr.mxu0 0.0
      %472 = vmatpush1.msra.mxu0 0.0
      %473 = vmatprep.subr.mxu0 0.0
      %474 = vmatpush1.msra.mxu0 0.0
      %475 = vmatprep.subr.mxu0 0.0
      %476 = vmatpush1.msra.mxu0 0.0
      %477 = vmatprep.subr.mxu0 0.0
      %478 = vmatpush1.msra.mxu0 0.0
      %479 = vmatprep.mubr.f32.mxu0 0.0
      %480 = vmatmul.mubr.f32.gmra.mrb[0].mxu0 %v413
      %v481 = vpop.f32.mrb[0].mxu0
      %v482 = vadd.f32 0.0, %v481
      %v483 = vpop.f32.mrb[0].mxu0
      %484 = vdwg.mxu0
      %v485 = vadd.f32 %v408, %v482
      %vm486 = vcmask 1043456
      %v487 = vrot.slane %v169, 4
      %v488 = vrot.slane %v170, 4
      %v489 = vsel %vm486, %v487, %v488
      %v490 = vsel %vm187, %v489, 0
      %492 = vmatprep.subr.mxu0 0.0
      %493 = vmatpush1.msra.mxu0 %v179
      %494 = vmatprep.subr.mxu0 0.0
      %495 = vmatpush1.msra.mxu0 %v180
      %496 = vmatprep.subr.mxu0 0.0
      %497 = vmatpush1.msra.mxu0 0.0
      %498 = vmatprep.subr.mxu0 0.0
      %499 = vmatpush1.msra.mxu0 0.0
      %500 = vmatprep.subr.mxu0 0.0
      %501 = vmatpush1.msra.mxu0 0.0
      %502 = vmatprep.subr.mxu0 0.0
      %503 = vmatpush1.msra.mxu0 0.0
      %504 = vmatprep.subr.mxu0 0.0
      %505 = vmatpush1.msra.mxu0 0.0
      %506 = vmatprep.subr.mxu0 0.0
      %507 = vmatpush1.msra.mxu0 0.0
      %508 = vmatprep.subr.mxu0 0.0
      %509 = vmatpush1.msra.mxu0 0.0
      %510 = vmatprep.subr.mxu0 0.0
      %511 = vmatpush1.msra.mxu0 0.0
      %512 = vmatprep.subr.mxu0 0.0
      %513 = vmatpush1.msra.mxu0 0.0
      %514 = vmatprep.subr.mxu0 0.0
      %515 = vmatpush1.msra.mxu0 0.0
      %516 = vmatprep.subr.mxu0 0.0
      %517 = vmatpush1.msra.mxu0 0.0
      %518 = vmatprep.subr.mxu0 0.0
      %519 = vmatpush1.msra.mxu0 0.0
      %520 = vmatprep.subr.mxu0 0.0
      %521 = vmatpush1.msra.mxu0 0.0
      %522 = vmatprep.subr.mxu0 0.0
      %523 = vmatpush1.msra.mxu0 0.0
      %524 = vmatprep.subr.mxu0 0.0
      %525 = vmatpush1.msra.mxu0 0.0
      %526 = vmatprep.subr.mxu0 0.0
      %527 = vmatpush1.msra.mxu0 0.0
      %528 = vmatprep.subr.mxu0 0.0
      %529 = vmatpush1.msra.mxu0 0.0
      %530 = vmatprep.subr.mxu0 0.0
      %531 = vmatpush1.msra.mxu0 0.0
      %532 = vmatprep.subr.mxu0 0.0
      %533 = vmatpush1.msra.mxu0 0.0
      %534 = vmatprep.subr.mxu0 0.0
      %535 = vmatpush1.msra.mxu0 0.0
      %536 = vmatprep.subr.mxu0 0.0
      %537 = vmatpush1.msra.mxu0 0.0
      %538 = vmatprep.subr.mxu0 0.0
      %539 = vmatpush1.msra.mxu0 0.0
      %540 = vmatprep.subr.mxu0 0.0
      %541 = vmatpush1.msra.mxu0 0.0
      %542 = vmatprep.subr.mxu0 0.0
      %543 = vmatpush1.msra.mxu0 0.0
      %544 = vmatprep.subr.mxu0 0.0
      %545 = vmatpush1.msra.mxu0 0.0
      %546 = vmatprep.subr.mxu0 0.0
      %547 = vmatpush1.msra.mxu0 0.0
      %548 = vmatprep.subr.mxu0 0.0
      %549 = vmatpush1.msra.mxu0 0.0
      %550 = vmatprep.subr.mxu0 0.0
      %551 = vmatpush1.msra.mxu0 0.0
      %552 = vmatprep.subr.mxu0 0.0
      %553 = vmatpush1.msra.mxu0 0.0
      %554 = vmatprep.subr.mxu0 0.0
      %555 = vmatpush1.msra.mxu0 0.0
      %556 = vmatprep.mubr.f32.mxu0 0.0
      %557 = vmatmul.mubr.f32.gmra.mrb[0].mxu0 %v490
      %v558 = vpop.f32.mrb[0].mxu0
      %v559 = vadd.f32 0.0, %v558
      %v560 = vpop.f32.mrb[0].mxu0
      %561 = vdwg.mxu0
      %v562 = vadd.f32 %v485, %v559
      %v563 = vld [vmem:[%s2] sm:$0x1]
      %v565 = vlaneseq
      %v566 = vshrl.u32 %v565, 7
      %v567 = vsub.s32 0, %v566
      %v568 = vrot.slane %v563, %v567
      %v570 = vadd.f32 %v562, %v568
      %v571 = vmax.f32 %v570, 0.0
      %vm572 = vcmask 261120
      %573 = vst.msk [vmem:[%s168] sm:$0xff] %vm572, %v571
      %p574 = scmp.lt.s32.totalorder %s14, 1
      %s575 = scalar_select %p574, %s14, 1
      %s576 = smul.addr %s575, 8
      %s577 = scalar_lea.vmem %s3, %s576
      // Predicated region
      $region33: #{transformer_tts_forward.50} parent=31 // pred_check
        %p578 = pneg %p100
      $region34: #{transformer_tts_forward.50} parent=31 // pred_check_branch
        %580 = sbr.rel (%p578) target = $region36
      $region35: #{transformer_tts_forward.50} parent=31 // pred_region
        _
      $region36: #{transformer_tts_forward.50} parent=31 // pred_fallthru
        _
    $region32: #{transformer_tts_forward.50} parent=5 // pred_fallthru
      _
    %p581 = scmp.le.s32.totalorder 2, %s9
    // Predicated region
    $region37: #{transformer_tts_forward.50} parent=5 // pred_check
      %p582 = pneg %p581
    $region38: #{transformer_tts_forward.50} parent=5 // pred_check_branch
      %584 = sbr.rel (%p582) target = $region40
    $region39: #{transformer_tts_forward.50} parent=5 // pred_region
      %s585 = ssub.s32 %s9, 2
      // Predicated region
      $region41: #{transformer_tts_forward.50} parent=39 // pred_check
        %p586 = pneg %p106
      $region42: #{transformer_tts_forward.50} parent=39 // pred_check_branch
        %588 = sbr.rel (%p586) target = $region44
      $region43: #{transformer_tts_forward.50} parent=39 // pred_region
        %p589 = scmp.lt.s32.totalorder %s15, 1
        %s590 = scalar_select %p589, %s15, 1
        %s591 = smul.addr %s590, 8
        %s592 = scalar_lea.vmem %s3, %s591
      $region44: #{transformer_tts_forward.50} parent=39 // pred_fallthru
        _
    $region40: #{transformer_tts_forward.50} parent=5 // pred_fallthru
      _
  $region6: #{transformer_tts_forward.50} parent=0 // loop_footer
    %s13 = sadd.s32 1, %s9
  $region7: #{transformer_tts_forward.50} parent=0 // loop_footer_branch
    %8 = sbr.rel target = $region3
  $region8: #{transformer_tts_forward.50} parent=0 // loop_exit
    _

// kernel: transformer_tts_forward.51
$region0: #{transformer_tts_forward.51}
  #allocation0 [shape = 'u32[]', space=smem, size = 0x4, offset = 0x4, fixed_abs, tag = 'smem constant byte address 0x4 - core index']
  #allocation1 [shape = 'u32[144,128]{1,0:T(1,128)}', space=vmem, size = 0x12000, scoped, tag = 'internal scratch']
  %s0 = inlined_call_operand.vmem [shape: f32[2,12,32], index: 0, kind: input, shape index: {}]
  %s1 = inlined_call_operand.vmem [shape: f32[5,32,32], index: 1, kind: input, shape index: {}]
  %s2 = inlined_call_operand.vmem [shape: f32[1,32], index: 2, kind: input, shape index: {}]
  %s3 = inlined_call_operand.vmem [shape: f32[2,8,32], index: 3, kind: output, shape index: {}]
  %s4 = sld [smem:[#allocation0]]
  $region45: #{transformer_tts_forward.51} parent=0
    _
  %s6 = ssub.s32 1, %s4
  %s7 = scalar_select 0, %s6, %s4
  loop: start=0, step=1, limit=4
  $region2: #{transformer_tts_forward.51} parent=0 // loop_pre_header
    _
  $region3: #{transformer_tts_forward.51} parent=0 // loop_header
    %s9 = sphi 0, %s13
    %p10 = scmp.ge.s32.totalorder %s9, 4
    %s19 = sphi 0, %s21
    %s22 = sphi 0, %s19
    %s23 = sphi 0, %s22
    %s39 = sphi 0, %s23
    %s43 = sphi 0, %s43
    %s45 = sphi 0, %s43
    %s46 = sphi 0, %s45
    %s60 = sphi 0, %s46
    %s64 = sphi 0, %s64
    %s66 = sphi 0, %s64
    %s67 = sphi 0, %s66
    %s81 = sphi 0, %s67
    %s87 = sphi 0, %s89
    %s90 = sphi 0, %s87
    %s91 = sphi 0, %s90
    %s107 = sphi 0, %s91
  $region4: #{transformer_tts_forward.51} parent=0 // loop_header_branch
    %12 = sbr.rel (%p10) target = $region8
  $region5: #{transformer_tts_forward.51} parent=0 // loop_body
    %s14 = ssub.s32 %s9, 1
    %s15 = ssub.s32 %s9, 2
    %s16 = sadd.s32 %s9, 1
    %s17 = ssub.s32 %s9, %s16
    %p18 = scmp.eq.s32.totalorder %s17, 0
    %s20 = sadd.s32 %s19, 1
    %s21 = scalar_select %p18, %s19, %s20
    %p24 = pneg %p18
    %p25 = scmp.eq.s32.totalorder %s9, 1
    %p26 = por %p24, %p25
    %p27 = scmp.ne.s32.totalorder %s19, %s22
    %p28 = scmp.eq.s32.totalorder %s9, 0
    %p29 = por %p27, %p28
    %p30 = scmp.ne.s32.totalorder %s19, %s22
    %p31 = scmp.eq.s32.totalorder %s14, 1
    %p32 = por %p30, %p31
    %p33 = scmp.ne.s32.totalorder %s22, %s23
    %p34 = scmp.eq.s32.totalorder %s14, 0
    %p35 = por %p33, %p34
    %p36 = scmp.ne.s32.totalorder %s22, %s23
    %p37 = scmp.eq.s32.totalorder %s15, 1
    %p38 = por %p36, %p37
    %p40 = scmp.ne.s32.totalorder %s23, %s39
    %p41 = scmp.eq.s32.totalorder %s15, 0
    %p42 = por %p40, %p41
    %s44 = sadd.s32 %s43, 1
    %p47 = scmp.eq.s32.totalorder %s9, 1
    %p48 = scmp.ne.s32.totalorder %s43, %s45
    %p49 = scmp.eq.s32.totalorder %s9, 0
    %p50 = por %p48, %p49
    %p51 = scmp.ne.s32.totalorder %s43, %s45
    %p52 = scmp.eq.s32.totalorder %s14, 1
    %p53 = por %p51, %p52
    %p54 = scmp.ne.s32.totalorder %s45, %s46
    %p55 = scmp.eq.s32.totalorder %s14, 0
    %p56 = por %p54, %p55
    %p57 = scmp.ne.s32.totalorder %s45, %s46
    %p58 = scmp.eq.s32.totalorder %s15, 1
    %p59 = por %p57, %p58
    %p61 = scmp.ne.s32.totalorder %s46, %s60
    %p62 = scmp.eq.s32.totalorder %s15, 0
    %p63 = por %p61, %p62
    %s65 = sadd.s32 %s64, 1
    %p68 = scmp.eq.s32.totalorder %s9, 1
    %p69 = scmp.ne.s32.totalorder %s64, %s66
    %p70 = scmp.eq.s32.totalorder %s9, 0
    %p71 = por %p69, %p70
    %p72 = scmp.ne.s32.totalorder %s64, %s66
    %p73 = scmp.eq.s32.totalorder %s14, 1
    %p74 = por %p72, %p73
    %p75 = scmp.ne.s32.totalorder %s66, %s67
    %p76 = scmp.eq.s32.totalorder %s14, 0
    %p77 = por %p75, %p76
    %p78 = scmp.ne.s32.totalorder %s66, %s67
    %p79 = scmp.eq.s32.totalorder %s15, 1
    %p80 = por %p78, %p79
    %p82 = scmp.ne.s32.totalorder %s67, %s81
    %p83 = scmp.eq.s32.totalorder %s15, 0
    %p84 = por %p82, %p83
    %s85 = ssub.s32 %s9, %s16
    %p86 = scmp.eq.s32.totalorder %s85, 0
    %s88 = sadd.s32 %s87, 1
    %s89 = scalar_select %p86, %s87, %s88
    %p92 = pneg %p86
    %p93 = scmp.eq.s32.totalorder %s9, 1
    %p94 = por %p92, %p93
    %p95 = scmp.ne.s32.totalorder %s87, %s90
    %p96 = scmp.eq.s32.totalorder %s9, 0
    %p97 = por %p95, %p96
    %p98 = scmp.ne.s32.totalorder %s87, %s90
    %p99 = scmp.eq.s32.totalorder %s14, 1
    %p100 = por %p98, %p99
    %p101 = scmp.ne.s32.totalorder %s90, %s91
    %p102 = scmp.eq.s32.totalorder %s14, 0
    %p103 = por %p101, %p102
    %p104 = scmp.ne.s32.totalorder %s90, %s91
    %p105 = scmp.eq.s32.totalorder %s15, 1
    %p106 = por %p104, %p105
    %p108 = scmp.ne.s32.totalorder %s91, %s107
    %p109 = scmp.eq.s32.totalorder %s15, 0
    %p110 = por %p108, %p109
    %p111 = scmp.le.s32.totalorder 1, %s9
    %p112 = scmp.lt.s32.totalorder %s9, 3
    %p113 = pnand %p111, %p112
    %p114 = pneg %p113
    // Predicated region
    $region9: #{transformer_tts_forward.51} parent=5 // pred_check
      _
    $region10: #{transformer_tts_forward.51} parent=5 // pred_check_branch
      %116 = sbr.rel (%p113) target = $region12
    $region11: #{transformer_tts_forward.51} parent=5 // pred_region
      %s117 = ssub.s32 %s9, 1
      // Predicated region
      $region13: #{transformer_tts_forward.51} parent=11 // pred_check
        %p118 = pneg %p56
      $region14: #{transformer_tts_forward.51} parent=11 // pred_check_branch
        %120 = sbr.rel (%p118) target = $region16
      $region15: #{transformer_tts_forward.51} parent=11 // pred_region
        _
      $region16: #{transformer_tts_forward.51} parent=11 // pred_fallthru
        _
      // Predicated region
      $region17: #{transformer_tts_forward.51} parent=11 // pred_check
        %p121 = pneg %p77
      $region18: #{transformer_tts_forward.51} parent=11 // pred_check_branch
        %123 = sbr.rel (%p121) target = $region20
      $region19: #{transformer_tts_forward.51} parent=11 // pred_region
        _
      $region20: #{transformer_tts_forward.51} parent=11 // pred_fallthru
        _
    $region12: #{transformer_tts_forward.51} parent=5 // pred_fallthru
      _
    %p124 = scmp.lt.s32.totalorder %s9, 2
    // Predicated region
    $region21: #{transformer_tts_forward.51} parent=5 // pred_check
      %p125 = pneg %p124
    $region22: #{transformer_tts_forward.51} parent=5 // pred_check_branch
      %127 = sbr.rel (%p125) target = $region24
    $region23: #{transformer_tts_forward.51} parent=5 // pred_region
      // Predicated region
      $region25: #{transformer_tts_forward.51} parent=23 // pred_check
        %p128 = pneg %p29
      $region26: #{transformer_tts_forward.51} parent=23 // pred_check_branch
        %130 = sbr.rel (%p128) target = $region28
      $region27: #{transformer_tts_forward.51} parent=23 // pred_region
        %p131 = scmp.lt.s32.totalorder %s9, 1
        %s132 = scalar_select %p131, %s9, 1
        %s133 = smul.addr %s132, 2
        %s134 = smul.addr %s133, 8
        %s135 = scalar_lea.vmem %s0, %s134
      $region28: #{transformer_tts_forward.51} parent=23 // pred_fallthru
        _
    $region24: #{transformer_tts_forward.51} parent=5 // pred_fallthru
      _
    %p136 = scmp.le.s32.totalorder 1, %s9
    %p137 = scmp.lt.s32.totalorder %s9, 3
    %p138 = pnand %p136, %p137
    %p139 = pneg %p138
    // Predicated region
    $region29: #{transformer_tts_forward.51} parent=5 // pred_check
      _
    $region30: #{transformer_tts_forward.51} parent=5 // pred_check_branch
      %141 = sbr.rel (%p138) target = $region32
    $region31: #{transformer_tts_forward.51} parent=5 // pred_region
      %s142 = ssub.s32 %s9, 1
      %p143 = scmp.lt.s32.totalorder %s14, 1
      %s144 = scalar_select %p143, %s14, 1
      %s145 = smul.addr %s144, 2
      %s146 = smul.addr %s145, 8
      %s147 = scalar_lea.vmem %s0, %s146
      %p148 = pneg %p35
      %p149 = pneg %p32
      %p150 = pneg %p56
      %p151 = pneg %p53
      %p152 = pneg %p77
      %p153 = pneg %p74
      %p154 = pneg %p103
      %p155 = pneg %p100
      %p156 = scmp.lt.s32.totalorder %s14, 1
      %s157 = scalar_select %p156, %s14, 1
      %s158 = smul.addr %s157, 8
      %s159 = scalar_lea.vmem %s3, %s158
      %p160 = scmp.lt.s32.totalorder %s14, 1
      %s161 = scalar_select %p160, %s14, 1
      %s162 = smul.addr %s161, 2
      %s163 = smul.addr %s162, 8
      %s164 = scalar_lea.vmem %s0, %s163
      %p165 = scmp.lt.s32.totalorder %s14, 1
      %s166 = scalar_select %p165, %s14, 1
      %s167 = smul.addr %s166, 8
      %s168 = scalar_lea.vmem %s3, %s167
      %v169 = vld [vmem:[%s164] sm:$0xff]
      %v170 = vld [vmem:[%s164 + $0x8] sm:$0xf]
      %v171 = vld [vmem:[%s1] sm:$0xff]
      %v172 = vld [vmem:[%s1 + $0x8] sm:$0xff]
      %v173 = vld [vmem:[%s1 + $0x10] sm:$0xff]
      %v174 = vld [vmem:[%s1 + $0x18] sm:$0xff]
      %v175 = vld [vmem:[%s1 + $0x20] sm:$0xff]
      %v176 = vld [vmem:[%s1 + $0x28] sm:$0xff]
      %v177 = vld [vmem:[%s1 + $0x30] sm:$0xff]
      %v178 = vld [vmem:[%s1 + $0x38] sm:$0xff]
      %v179 = vld [vmem:[%s1 + $0x40] sm:$0xff]
      %v180 = vld [vmem:[%s1 + $0x48] sm:$0xff]
      %v181 = vld [vmem:[%s1 + $0x50] sm:$0xff]
      %v182 = vld [vmem:[%s1 + $0x58] sm:$0xff]
      %v183 = vld [vmem:[%s1 + $0x60] sm:$0xff]
      %v184 = vld [vmem:[%s1 + $0x68] sm:$0xff]
      %v185 = vld [vmem:[%s1 + $0x70] sm:$0xff]
      %v186 = vld [vmem:[%s1 + $0x78] sm:$0xff]
      %v187 = vld [vmem:[%s1 + $0x80] sm:$0xff]
      %v188 = vld [vmem:[%s1 + $0x88] sm:$0xff]
      %v189 = vld [vmem:[%s1 + $0x90] sm:$0xff]
      %v190 = vld [vmem:[%s1 + $0x98] sm:$0xff]
      %vm193 = vcmask 1046528
      %v194 = vrot.slane %v169, 1
      %v195 = vrot.slane %v170, 1
      %v196 = vsel %vm193, %v194, %v195
      %vm197 = vcmask 261120
      %v198 = vsel %vm197, %v196, 0
      %200 = vmatprep.subr.mxu0 0.0
      %201 = vmatpush1.msra.mxu0 %v175
      %202 = vmatprep.subr.mxu0 0.0
      %203 = vmatpush1.msra.mxu0 %v176
      %204 = vmatprep.subr.mxu0 0.0
      %205 = vmatpush1.msra.mxu0 %v177
      %206 = vmatprep.subr.mxu0 0.0
      %207 = vmatpush1.msra.mxu0 %v178
      %208 = vmatprep.subr.mxu0 0.0
      %209 = vmatpush1.msra.mxu0 0.0
      %210 = vmatprep.subr.mxu0 0.0
      %211 = vmatpush1.msra.mxu0 0.0
      %212 = vmatprep.subr.mxu0 0.0
      %213 = vmatpush1.msra.mxu0 0.0
      %214 = vmatprep.subr.mxu0 0.0
      %215 = vmatpush1.msra.mxu0 0.0
      %216 = vmatprep.subr.mxu0 0.0
      %217 = vmatpush1.msra.mxu0 0.0
      %218 = vmatprep.subr.mxu0 0.0
      %219 = vmatpush1.msra.mxu0 0.0
      %220 = vmatprep.subr.mxu0 0.0
      %221 = vmatpush1.msra.mxu0 0.0
      %222 = vmatprep.subr.mxu0 0.0
      %223 = vmatpush1.msra.mxu0 0.0
      %224 = vmatprep.subr.mxu0 0.0
      %225 = vmatpush1.msra.mxu0 0.0
      %226 = vmatprep.subr.mxu0 0.0
      %227 = vmatpush1.msra.mxu0 0.0
      %228 = vmatprep.subr.mxu0 0.0
      %229 = vmatpush1.msra.mxu0 0.0
      %230 = vmatprep.subr.mxu0 0.0
      %231 = vmatpush1.msra.mxu0 0.0
      %232 = vmatprep.subr.mxu0 0.0
      %233 = vmatpush1.msra.mxu0 0.0
      %234 = vmatprep.subr.mxu0 0.0
      %235 = vmatpush1.msra.mxu0 0.0
      %236 = vmatprep.subr.mxu0 0.0
      %237 = vmatpush1.msra.mxu0 0.0
      %238 = vmatprep.subr.mxu0 0.0
      %239 = vmatpush1.msra.mxu0 0.0
      %240 = vmatprep.subr.mxu0 0.0
      %241 = vmatpush1.msra.mxu0 0.0
      %242 = vmatprep.subr.mxu0 0.0
      %243 = vmatpush1.msra.mxu0 0.0
      %244 = vmatprep.subr.mxu0 0.0
      %245 = vmatpush1.msra.mxu0 0.0
      %246 = vmatprep.subr.mxu0 0.0
      %247 = vmatpush1.msra.mxu0 0.0
      %248 = vmatprep.subr.mxu0 0.0
      %249 = vmatpush1.msra.mxu0 0.0
      %250 = vmatprep.subr.mxu0 0.0
      %251 = vmatpush1.msra.mxu0 0.0
      %252 = vmatprep.subr.mxu0 0.0
      %253 = vmatpush1.msra.mxu0 0.0
      %254 = vmatprep.subr.mxu0 0.0
      %255 = vmatpush1.msra.mxu0 0.0
      %256 = vmatprep.subr.mxu0 0.0
      %257 = vmatpush1.msra.mxu0 0.0
      %258 = vmatprep.subr.mxu0 0.0
      %259 = vmatpush1.msra.mxu0 0.0
      %260 = vmatprep.subr.mxu0 0.0
      %261 = vmatpush1.msra.mxu0 0.0
      %262 = vmatprep.subr.mxu0 0.0
      %263 = vmatpush1.msra.mxu0 0.0
      %264 = vmatprep.mubr.f32.mxu0 0.0
      %265 = vmatmul.mubr.f32.gmra.mrb[0].mxu0 %v198
      %v266 = vpop.f32.mrb[0].mxu0
      %v267 = vadd.f32 0.0, %v266
      %v268 = vpop.f32.mrb[0].mxu0
      %269 = vdwg.mxu0
      %v270 = vsel %vm197, %v169, 0
      %272 = vmatprep.subr.mxu0 0.0
      %273 = vmatpush1.msra.mxu0 %v171
      %274 = vmatprep.subr.mxu0 0.0
      %275 = vmatpush1.msra.mxu0 %v172
      %276 = vmatprep.subr.mxu0 0.0
      %277 = vmatpush1.msra.mxu0 %v173
      %278 = vmatprep.subr.mxu0 0.0
      %279 = vmatpush1.msra.mxu0 %v174
      %280 = vmatprep.subr.mxu0 0.0
      %281 = vmatpush1.msra.mxu0 0.0
      %282 = vmatprep.subr.mxu0 0.0
      %283 = vmatpush1.msra.mxu0 0.0
      %284 = vmatprep.subr.mxu0 0.0
      %285 = vmatpush1.msra.mxu0 0.0
      %286 = vmatprep.subr.mxu0 0.0
      %287 = vmatpush1.msra.mxu0 0.0
      %288 = vmatprep.subr.mxu0 0.0
      %289 = vmatpush1.msra.mxu0 0.0
      %290 = vmatprep.subr.mxu0 0.0
      %291 = vmatpush1.msra.mxu0 0.0
      %292 = vmatprep.subr.mxu0 0.0
      %293 = vmatpush1.msra.mxu0 0.0
      %294 = vmatprep.subr.mxu0 0.0
      %295 = vmatpush1.msra.mxu0 0.0
      %296 = vmatprep.subr.mxu0 0.0
      %297 = vmatpush1.msra.mxu0 0.0
      %298 = vmatprep.subr.mxu0 0.0
      %299 = vmatpush1.msra.mxu0 0.0
      %300 = vmatprep.subr.mxu0 0.0
      %301 = vmatpush1.msra.mxu0 0.0
      %302 = vmatprep.subr.mxu0 0.0
      %303 = vmatpush1.msra.mxu0 0.0
      %304 = vmatprep.subr.mxu0 0.0
      %305 = vmatpush1.msra.mxu0 0.0
      %306 = vmatprep.subr.mxu0 0.0
      %307 = vmatpush1.msra.mxu0 0.0
      %308 = vmatprep.subr.mxu0 0.0
      %309 = vmatpush1.msra.mxu0 0.0
      %310 = vmatprep.subr.mxu0 0.0
      %311 = vmatpush1.msra.mxu0 0.0
      %312 = vmatprep.subr.mxu0 0.0
      %313 = vmatpush1.msra.mxu0 0.0
      %314 = vmatprep.subr.mxu0 0.0
      %315 = vmatpush1.msra.mxu0 0.0
      %316 = vmatprep.subr.mxu0 0.0
      %317 = vmatpush1.msra.mxu0 0.0
      %318 = vmatprep.subr.mxu0 0.0
      %319 = vmatpush1.msra.mxu0 0.0
      %320 = vmatprep.subr.mxu0 0.0
      %321 = vmatpush1.msra.mxu0 0.0
      %322 = vmatprep.subr.mxu0 0.0
      %323 = vmatpush1.msra.mxu0 0.0
      %324 = vmatprep.subr.mxu0 0.0
      %325 = vmatpush1.msra.mxu0 0.0
      %326 = vmatprep.subr.mxu0 0.0
      %327 = vmatpush1.msra.mxu0 0.0
      %328 = vmatprep.subr.mxu0 0.0
      %329 = vmatpush1.msra.mxu0 0.0
      %330 = vmatprep.subr.mxu0 0.0
      %331 = vmatpush1.msra.mxu0 0.0
      %332 = vmatprep.subr.mxu0 0.0
      %333 = vmatpush1.msra.mxu0 0.0
      %334 = vmatprep.subr.mxu0 0.0
      %335 = vmatpush1.msra.mxu0 0.0
      %336 = vmatprep.mubr.f32.mxu0 0.0
      %337 = vmatmul.mubr.f32.gmra.mrb[0].mxu0 %v270
      %v338 = vpop.f32.mrb[0].mxu0
      %v339 = vadd.f32 %v267, %v338
      %v340 = vpop.f32.mrb[0].mxu0
      %341 = vdwg.mxu0
      %vm342 = vcmask 1045504
      %v343 = vrot.slane %v169, 2
      %v344 = vrot.slane %v170, 2
      %v345 = vsel %vm342, %v343, %v344
      %v346 = vsel %vm197, %v345, 0
      %348 = vmatprep.subr.mxu0 0.0
      %349 = vmatpush1.msra.mxu0 %v179
      %350 = vmatprep.subr.mxu0 0.0
      %351 = vmatpush1.msra.mxu0 %v180
      %352 = vmatprep.subr.mxu0 0.0
      %353 = vmatpush1.msra.mxu0 %v181
      %354 = vmatprep.subr.mxu0 0.0
      %355 = vmatpush1.msra.mxu0 %v182
      %356 = vmatprep.subr.mxu0 0.0
      %357 = vmatpush1.msra.mxu0 0.0
      %358 = vmatprep.subr.mxu0 0.0
      %359 = vmatpush1.msra.mxu0 0.0
      %360 = vmatprep.subr.mxu0 0.0
      %361 = vmatpush1.msra.mxu0 0.0
      %362 = vmatprep.subr.mxu0 0.0
      %363 = vmatpush1.msra.mxu0 0.0
      %364 = vmatprep.subr.mxu0 0.0
      %365 = vmatpush1.msra.mxu0 0.0
      %366 = vmatprep.subr.mxu0 0.0
      %367 = vmatpush1.msra.mxu0 0.0
      %368 = vmatprep.subr.mxu0 0.0
      %369 = vmatpush1.msra.mxu0 0.0
      %370 = vmatprep.subr.mxu0 0.0
      %371 = vmatpush1.msra.mxu0 0.0
      %372 = vmatprep.subr.mxu0 0.0
      %373 = vmatpush1.msra.mxu0 0.0
      %374 = vmatprep.subr.mxu0 0.0
      %375 = vmatpush1.msra.mxu0 0.0
      %376 = vmatprep.subr.mxu0 0.0
      %377 = vmatpush1.msra.mxu0 0.0
      %378 = vmatprep.subr.mxu0 0.0
      %379 = vmatpush1.msra.mxu0 0.0
      %380 = vmatprep.subr.mxu0 0.0
      %381 = vmatpush1.msra.mxu0 0.0
      %382 = vmatprep.subr.mxu0 0.0
      %383 = vmatpush1.msra.mxu0 0.0
      %384 = vmatprep.subr.mxu0 0.0
      %385 = vmatpush1.msra.mxu0 0.0
      %386 = vmatprep.subr.mxu0 0.0
      %387 = vmatpush1.msra.mxu0 0.0
      %388 = vmatprep.subr.mxu0 0.0
      %389 = vmatpush1.msra.mxu0 0.0
      %390 = vmatprep.subr.mxu0 0.0
      %391 = vmatpush1.msra.mxu0 0.0
      %392 = vmatprep.subr.mxu0 0.0
      %393 = vmatpush1.msra.mxu0 0.0
      %394 = vmatprep.subr.mxu0 0.0
      %395 = vmatpush1.msra.mxu0 0.0
      %396 = vmatprep.subr.mxu0 0.0
      %397 = vmatpush1.msra.mxu0 0.0
      %398 = vmatprep.subr.mxu0 0.0
      %399 = vmatpush1.msra.mxu0 0.0
      %400 = vmatprep.subr.mxu0 0.0
      %401 = vmatpush1.msra.mxu0 0.0
      %402 = vmatprep.subr.mxu0 0.0
      %403 = vmatpush1.msra.mxu0 0.0
      %404 = vmatprep.subr.mxu0 0.0
      %405 = vmatpush1.msra.mxu0 0.0
      %406 = vmatprep.subr.mxu0 0.0
      %407 = vmatpush1.msra.mxu0 0.0
      %408 = vmatprep.subr.mxu0 0.0
      %409 = vmatpush1.msra.mxu0 0.0
      %410 = vmatprep.subr.mxu0 0.0
      %411 = vmatpush1.msra.mxu0 0.0
      %412 = vmatprep.mubr.f32.mxu0 0.0
      %413 = vmatmul.mubr.f32.gmra.mrb[0].mxu0 %v346
      %v414 = vpop.f32.mrb[0].mxu0
      %v415 = vadd.f32 0.0, %v414
      %v416 = vpop.f32.mrb[0].mxu0
      %417 = vdwg.mxu0
      %v418 = vadd.f32 %v339, %v415
      %vm419 = vcmask 1044480
      %v420 = vrot.slane %v169, 3
      %v421 = vrot.slane %v170, 3
      %v422 = vsel %vm419, %v420, %v421
      %v423 = vsel %vm197, %v422, 0
      %425 = vmatprep.subr.mxu0 0.0
      %426 = vmatpush1.msra.mxu0 %v183
      %427 = vmatprep.subr.mxu0 0.0
      %428 = vmatpush1.msra.mxu0 %v184
      %429 = vmatprep.subr.mxu0 0.0
      %430 = vmatpush1.msra.mxu0 %v185
      %431 = vmatprep.subr.mxu0 0.0
      %432 = vmatpush1.msra.mxu0 %v186
      %433 = vmatprep.subr.mxu0 0.0
      %434 = vmatpush1.msra.mxu0 0.0
      %435 = vmatprep.subr.mxu0 0.0
      %436 = vmatpush1.msra.mxu0 0.0
      %437 = vmatprep.subr.mxu0 0.0
      %438 = vmatpush1.msra.mxu0 0.0
      %439 = vmatprep.subr.mxu0 0.0
      %440 = vmatpush1.msra.mxu0 0.0
      %441 = vmatprep.subr.mxu0 0.0
      %442 = vmatpush1.msra.mxu0 0.0
      %443 = vmatprep.subr.mxu0 0.0
      %444 = vmatpush1.msra.mxu0 0.0
      %445 = vmatprep.subr.mxu0 0.0
      %446 = vmatpush1.msra.mxu0 0.0
      %447 = vmatprep.subr.mxu0 0.0
      %448 = vmatpush1.msra.mxu0 0.0
      %449 = vmatprep.subr.mxu0 0.0
      %450 = vmatpush1.msra.mxu0 0.0
      %451 = vmatprep.subr.mxu0 0.0
      %452 = vmatpush1.msra.mxu0 0.0
      %453 = vmatprep.subr.mxu0 0.0
      %454 = vmatpush1.msra.mxu0 0.0
      %455 = vmatprep.subr.mxu0 0.0
      %456 = vmatpush1.msra.mxu0 0.0
      %457 = vmatprep.subr.mxu0 0.0
      %458 = vmatpush1.msra.mxu0 0.0
      %459 = vmatprep.subr.mxu0 0.0
      %460 = vmatpush1.msra.mxu0 0.0
      %461 = vmatprep.subr.mxu0 0.0
      %462 = vmatpush1.msra.mxu0 0.0
      %463 = vmatprep.subr.mxu0 0.0
      %464 = vmatpush1.msra.mxu0 0.0
      %465 = vmatprep.subr.mxu0 0.0
      %466 = vmatpush1.msra.mxu0 0.0
      %467 = vmatprep.subr.mxu0 0.0
      %468 = vmatpush1.msra.mxu0 0.0
      %469 = vmatprep.subr.mxu0 0.0
      %470 = vmatpush1.msra.mxu0 0.0
      %471 = vmatprep.subr.mxu0 0.0
      %472 = vmatpush1.msra.mxu0 0.0
      %473 = vmatprep.subr.mxu0 0.0
      %474 = vmatpush1.msra.mxu0 0.0
      %475 = vmatprep.subr.mxu0 0.0
      %476 = vmatpush1.msra.mxu0 0.0
      %477 = vmatprep.subr.mxu0 0.0
      %478 = vmatpush1.msra.mxu0 0.0
      %479 = vmatprep.subr.mxu0 0.0
      %480 = vmatpush1.msra.mxu0 0.0
      %481 = vmatprep.subr.mxu0 0.0
      %482 = vmatpush1.msra.mxu0 0.0
      %483 = vmatprep.subr.mxu0 0.0
      %484 = vmatpush1.msra.mxu0 0.0
      %485 = vmatprep.subr.mxu0 0.0
      %486 = vmatpush1.msra.mxu0 0.0
      %487 = vmatprep.subr.mxu0 0.0
      %488 = vmatpush1.msra.mxu0 0.0
      %489 = vmatprep.mubr.f32.mxu0 0.0
      %490 = vmatmul.mubr.f32.gmra.mrb[0].mxu0 %v423
      %v491 = vpop.f32.mrb[0].mxu0
      %v492 = vadd.f32 0.0, %v491
      %v493 = vpop.f32.mrb[0].mxu0
      %494 = vdwg.mxu0
      %v495 = vadd.f32 %v418, %v492
      %vm496 = vcmask 1043456
      %v497 = vrot.slane %v169, 4
      %v498 = vrot.slane %v170, 4
      %v499 = vsel %vm496, %v497, %v498
      %v500 = vsel %vm197, %v499, 0
      %502 = vmatprep.subr.mxu0 0.0
      %503 = vmatpush1.msra.mxu0 %v187
      %504 = vmatprep.subr.mxu0 0.0
      %505 = vmatpush1.msra.mxu0 %v188
      %506 = vmatprep.subr.mxu0 0.0
      %507 = vmatpush1.msra.mxu0 %v189
      %508 = vmatprep.subr.mxu0 0.0
      %509 = vmatpush1.msra.mxu0 %v190
      %510 = vmatprep.subr.mxu0 0.0
      %511 = vmatpush1.msra.mxu0 0.0
      %512 = vmatprep.subr.mxu0 0.0
      %513 = vmatpush1.msra.mxu0 0.0
      %514 = vmatprep.subr.mxu0 0.0
      %515 = vmatpush1.msra.mxu0 0.0
      %516 = vmatprep.subr.mxu0 0.0
      %517 = vmatpush1.msra.mxu0 0.0
      %518 = vmatprep.subr.mxu0 0.0
      %519 = vmatpush1.msra.mxu0 0.0
      %520 = vmatprep.subr.mxu0 0.0
      %521 = vmatpush1.msra.mxu0 0.0
      %522 = vmatprep.subr.mxu0 0.0
      %523 = vmatpush1.msra.mxu0 0.0
      %524 = vmatprep.subr.mxu0 0.0
      %525 = vmatpush1.msra.mxu0 0.0
      %526 = vmatprep.subr.mxu0 0.0
      %527 = vmatpush1.msra.mxu0 0.0
      %528 = vmatprep.subr.mxu0 0.0
      %529 = vmatpush1.msra.mxu0 0.0
      %530 = vmatprep.subr.mxu0 0.0
      %531 = vmatpush1.msra.mxu0 0.0
      %532 = vmatprep.subr.mxu0 0.0
      %533 = vmatpush1.msra.mxu0 0.0
      %534 = vmatprep.subr.mxu0 0.0
      %535 = vmatpush1.msra.mxu0 0.0
      %536 = vmatprep.subr.mxu0 0.0
      %537 = vmatpush1.msra.mxu0 0.0
      %538 = vmatprep.subr.mxu0 0.0
      %539 = vmatpush1.msra.mxu0 0.0
      %540 = vmatprep.subr.mxu0 0.0
      %541 = vmatpush1.msra.mxu0 0.0
      %542 = vmatprep.subr.mxu0 0.0
      %543 = vmatpush1.msra.mxu0 0.0
      %544 = vmatprep.subr.mxu0 0.0
      %545 = vmatpush1.msra.mxu0 0.0
      %546 = vmatprep.subr.mxu0 0.0
      %547 = vmatpush1.msra.mxu0 0.0
      %548 = vmatprep.subr.mxu0 0.0
      %549 = vmatpush1.msra.mxu0 0.0
      %550 = vmatprep.subr.mxu0 0.0
      %551 = vmatpush1.msra.mxu0 0.0
      %552 = vmatprep.subr.mxu0 0.0
      %553 = vmatpush1.msra.mxu0 0.0
      %554 = vmatprep.subr.mxu0 0.0
      %555 = vmatpush1.msra.mxu0 0.0
      %556 = vmatprep.subr.mxu0 0.0
      %557 = vmatpush1.msra.mxu0 0.0
      %558 = vmatprep.subr.mxu0 0.0
      %559 = vmatpush1.msra.mxu0 0.0
      %560 = vmatprep.subr.mxu0 0.0
      %561 = vmatpush1.msra.mxu0 0.0
      %562 = vmatprep.subr.mxu0 0.0
      %563 = vmatpush1.msra.mxu0 0.0
      %564 = vmatprep.subr.mxu0 0.0
      %565 = vmatpush1.msra.mxu0 0.0
      %566 = vmatprep.mubr.f32.mxu0 0.0
      %567 = vmatmul.mubr.f32.gmra.mrb[0].mxu0 %v500
      %v568 = vpop.f32.mrb[0].mxu0
      %v569 = vadd.f32 0.0, %v568
      %v570 = vpop.f32.mrb[0].mxu0
      %571 = vdwg.mxu0
      %v572 = vadd.f32 %v495, %v569
      %v573 = vld [vmem:[%s2] sm:$0x1]
      %v575 = vlaneseq
      %v576 = vshrl.u32 %v575, 7
      %v577 = vsub.s32 0, %v576
      %v578 = vrot.slane %v573, %v577
      %v580 = vadd.f32 %v572, %v578
      %v581 = vmax.f32 %v580, 0.0
      %582 = vst.msk [vmem:[%s168] sm:$0xff] %vm197, %v581
      %p583 = scmp.lt.s32.totalorder %s14, 1
      %s584 = scalar_select %p583, %s14, 1
      %s585 = smul.addr %s584, 8
      %s586 = scalar_lea.vmem %s3, %s585
      // Predicated region
      $region33: #{transformer_tts_forward.51} parent=31 // pred_check
        %p587 = pneg %p100
      $region34: #{transformer_tts_forward.51} parent=31 // pred_check_branch
        %589 = sbr.rel (%p587) target = $region36
      $region35: #{transformer_tts_forward.51} parent=31 // pred_region
        _
      $region36: #{transformer_tts_forward.51} parent=31 // pred_fallthru
        _
    $region32: #{transformer_tts_forward.51} parent=5 // pred_fallthru
      _
    %p590 = scmp.le.s32.totalorder 2, %s9
    // Predicated region
    $region37: #{transformer_tts_forward.51} parent=5 // pred_check
      %p591 = pneg %p590
    $region38: #{transformer_tts_forward.51} parent=5 // pred_check_branch
      %593 = sbr.rel (%p591) target = $region40
    $region39: #{transformer_tts_forward.51} parent=5 // pred_region
      %s594 = ssub.s32 %s9, 2
      // Predicated region
      $region41: #{transformer_tts_forward.51} parent=39 // pred_check
        %p595 = pneg %p106
      $region42: #{transformer_tts_forward.51} parent=39 // pred_check_branch
        %597 = sbr.rel (%p595) target = $region44
      $region43: #{transformer_tts_forward.51} parent=39 // pred_region
        %p598 = scmp.lt.s32.totalorder %s15, 1
        %s599 = scalar_select %p598, %s15, 1
        %s600 = smul.addr %s599, 8
        %s601 = scalar_lea.vmem %s3, %s600
      $region44: #{transformer_tts_forward.51} parent=39 // pred_fallthru
        _
    $region40: #{transformer_tts_forward.51} parent=5 // pred_fallthru
      _
  $region6: #{transformer_tts_forward.51} parent=0 // loop_footer
    %s13 = sadd.s32 1, %s9
  $region7: #{transformer_tts_forward.51} parent=0 // loop_footer_branch
    %8 = sbr.rel target = $region3
  $region8: #{transformer_tts_forward.51} parent=0 // loop_exit
    _

// kernel: transformer_tts_forward.58
$region0: #{transformer_tts_forward.58}
  #allocation0 [shape = 'u32[]', space=smem, size = 0x4, offset = 0x4, fixed_abs, tag = 'smem constant byte address 0x4 - core index']
  #allocation1 [shape = 'u32[144,128]{1,0:T(1,128)}', space=vmem, size = 0x12000, scoped, tag = 'internal scratch']
  #allocation2 [shape = 'f32[16,64]{1,0:T(8,128)}', space=vmem, size = 0x2000, scoped, tag = 'scratch operand']
  %s0 = inlined_call_operand.vmem [shape: f32[16,32], index: 0, kind: input, shape index: {}]
  %s1 = inlined_call_operand.vmem [shape: f32[32,64], index: 1, kind: input, shape index: {}]
  %s2 = inlined_call_operand.vmem [shape: f32[1,64], index: 2, kind: input, shape index: {}]
  %s3 = inlined_call_operand.vmem [shape: f32[16,64], index: 3, kind: output, shape index: {}]
  %s4 = sld [smem:[#allocation0]]
  $region30: #{transformer_tts_forward.58} parent=0
    _
  %s6 = ssub.s32 1, %s4
  %s7 = scalar_select 0, %s6, %s4
  // Predicated region
  $region2: #{transformer_tts_forward.58} parent=0 // pred_check
    _
  $region3: #{transformer_tts_forward.58} parent=0 // pred_check_branch
    %9 = sbr.rel (0) target = $region5
  $region4: #{transformer_tts_forward.58} parent=0 // pred_region
    _
  $region5: #{transformer_tts_forward.58} parent=0 // pred_fallthru
    _
  // Predicated region
  $region6: #{transformer_tts_forward.58} parent=0 // pred_check
    _
  $region7: #{transformer_tts_forward.58} parent=0 // pred_check_branch
    %11 = sbr.rel (0) target = $region9
  $region8: #{transformer_tts_forward.58} parent=0 // pred_region
    _
  $region9: #{transformer_tts_forward.58} parent=0 // pred_fallthru
    _
  // Predicated region
  $region10: #{transformer_tts_forward.58} parent=0 // pred_check
    _
  $region11: #{transformer_tts_forward.58} parent=0 // pred_check_branch
    %13 = sbr.rel (0) target = $region13
  $region12: #{transformer_tts_forward.58} parent=0 // pred_region
    _
  $region13: #{transformer_tts_forward.58} parent=0 // pred_fallthru
    _
  %p14 = scmp.eq.s32.totalorder 0, 0
  // Predicated region
  $region14: #{transformer_tts_forward.58} parent=0 // pred_check
    %p15 = pneg %p14
  $region15: #{transformer_tts_forward.58} parent=0 // pred_check_branch
    %17 = sbr.rel (%p15) target = $region17
  $region16: #{transformer_tts_forward.58} parent=0 // pred_region
    %vm18 = vcmask 523264
    %19 = vst.msk [vmem:[#allocation2] sm:$0xff] %vm18, 0.0
    %20 = vst.msk [vmem:[#allocation2 + $0x8] sm:$0xff] %vm18, 0.0
  $region17: #{transformer_tts_forward.58} parent=0 // pred_fallthru
    _
  %v21 = vld [vmem:[#allocation2] sm:$0xff]
  %v22 = vld [vmem:[#allocation2 + $0x8] sm:$0xff]
  %v23 = vld [vmem:[%s0] sm:$0xff]
  %v24 = vld [vmem:[%s0 + $0x8] sm:$0xff]
  %v25 = vld [vmem:[%s1] sm:$0xff]
  %v26 = vld [vmem:[%s1 + $0x8] sm:$0xff]
  %v27 = vld [vmem:[%s1 + $0x10] sm:$0xff]
  %v28 = vld [vmem:[%s1 + $0x18] sm:$0xff]
  %vm29 = vcmask 261120
  %v31 = vsel %vm29, %v23, 0
  %v34 = vsel %vm29, %v24, 0
  %36 = vmatprep.subr.mxu0 0.0
  %37 = vmatpush1.msra.mxu0 %v25
  %38 = vmatprep.subr.mxu0 0.0
  %39 = vmatpush1.msra.mxu0 %v26
  %40 = vmatprep.subr.mxu0 0.0
  %41 = vmatpush1.msra.mxu0 %v27
  %42 = vmatprep.subr.mxu0 0.0
  %43 = vmatpush1.msra.mxu0 %v28
  %44 = vmatprep.subr.mxu0 0.0
  %45 = vmatpush1.msra.mxu0 0.0
  %46 = vmatprep.subr.mxu0 0.0
  %47 = vmatpush1.msra.mxu0 0.0
  %48 = vmatprep.subr.mxu0 0.0
  %49 = vmatpush1.msra.mxu0 0.0
  %50 = vmatprep.subr.mxu0 0.0
  %51 = vmatpush1.msra.mxu0 0.0
  %52 = vmatprep.subr.mxu0 0.0
  %53 = vmatpush1.msra.mxu0 0.0
  %54 = vmatprep.subr.mxu0 0.0
  %55 = vmatpush1.msra.mxu0 0.0
  %56 = vmatprep.subr.mxu0 0.0
  %57 = vmatpush1.msra.mxu0 0.0
  %58 = vmatprep.subr.mxu0 0.0
  %59 = vmatpush1.msra.mxu0 0.0
  %60 = vmatprep.subr.mxu0 0.0
  %61 = vmatpush1.msra.mxu0 0.0
  %62 = vmatprep.subr.mxu0 0.0
  %63 = vmatpush1.msra.mxu0 0.0
  %64 = vmatprep.subr.mxu0 0.0
  %65 = vmatpush1.msra.mxu0 0.0
  %66 = vmatprep.subr.mxu0 0.0
  %67 = vmatpush1.msra.mxu0 0.0
  %68 = vmatprep.subr.mxu0 0.0
  %69 = vmatpush1.msra.mxu0 0.0
  %70 = vmatprep.subr.mxu0 0.0
  %71 = vmatpush1.msra.mxu0 0.0
  %72 = vmatprep.subr.mxu0 0.0
  %73 = vmatpush1.msra.mxu0 0.0
  %74 = vmatprep.subr.mxu0 0.0
  %75 = vmatpush1.msra.mxu0 0.0
  %76 = vmatprep.subr.mxu0 0.0
  %77 = vmatpush1.msra.mxu0 0.0
  %78 = vmatprep.subr.mxu0 0.0
  %79 = vmatpush1.msra.mxu0 0.0
  %80 = vmatprep.subr.mxu0 0.0
  %81 = vmatpush1.msra.mxu0 0.0
  %82 = vmatprep.subr.mxu0 0.0
  %83 = vmatpush1.msra.mxu0 0.0
  %84 = vmatprep.subr.mxu0 0.0
  %85 = vmatpush1.msra.mxu0 0.0
  %86 = vmatprep.subr.mxu0 0.0
  %87 = vmatpush1.msra.mxu0 0.0
  %88 = vmatprep.subr.mxu0 0.0
  %89 = vmatpush1.msra.mxu0 0.0
  %90 = vmatprep.subr.mxu0 0.0
  %91 = vmatpush1.msra.mxu0 0.0
  %92 = vmatprep.subr.mxu0 0.0
  %93 = vmatpush1.msra.mxu0 0.0
  %94 = vmatprep.subr.mxu0 0.0
  %95 = vmatpush1.msra.mxu0 0.0
  %96 = vmatprep.subr.mxu0 0.0
  %97 = vmatpush1.msra.mxu0 0.0
  %98 = vmatprep.subr.mxu0 0.0
  %99 = vmatpush1.msra.mxu0 0.0
  %100 = vmatprep.mubr.f32.mxu0 0.0
  %101 = vmatmul.mubr.f32.gmra.mrb[0].mxu0 %v31
  %v102 = vpop.f32.mrb[0].mxu0
  %v103 = vadd.f32 0.0, %v102
  %v104 = vpop.f32.mrb[0].mxu0
  %105 = vmatprep.mubr.f32.mxu0 0.0
  %106 = vmatmul.mubr.f32.gmra.mrb[0].mxu0 %v34
  %v107 = vpop.f32.mrb[0].mxu0
  %v108 = vadd.f32 0.0, %v107
  %v109 = vpop.f32.mrb[0].mxu0
  %110 = vdwg.mxu0
  %v111 = vadd.f32 %v21, %v103
  %v112 = vadd.f32 %v22, %v108
  %vm113 = vcmask 523264
  %114 = vst.msk [vmem:[#allocation2] sm:$0xff] %vm113, %v111
  %115 = vst.msk [vmem:[#allocation2 + $0x8] sm:$0xff] %vm113, %v112
  // Predicated region
  $region18: #{transformer_tts_forward.58} parent=0 // pred_check
    %p116 = pneg %p14
  $region19: #{transformer_tts_forward.58} parent=0 // pred_check_branch
    %118 = sbr.rel (%p116) target = $region21
  $region20: #{transformer_tts_forward.58} parent=0 // pred_region
    %v119 = vld [vmem:[#allocation2] sm:$0xff]
    %v120 = vld [vmem:[#allocation2 + $0x8] sm:$0xff]
    %v121 = vld [vmem:[%s2] sm:$0x1]
    %v123 = vlaneseq
    %v124 = vshrl.u32 %v123, 7
    %v125 = vsub.s32 0, %v124
    %v126 = vrot.slane %v121, %v125
    %v128 = vadd.f32 %v119, %v126
    %v129 = vadd.f32 %v120, %v126
    %130 = vst.msk [vmem:[%s3] sm:$0xff] %vm113, %v128
    %131 = vst.msk [vmem:[%s3 + $0x8] sm:$0xff] %vm113, %v129
  $region21: #{transformer_tts_forward.58} parent=0 // pred_fallthru
    _
  // Predicated region
  $region22: #{transformer_tts_forward.58} parent=0 // pred_check
    _
  $region23: #{transformer_tts_forward.58} parent=0 // pred_check_branch
    %133 = sbr.rel (0) target = $region25
  $region24: #{transformer_tts_forward.58} parent=0 // pred_region
    _
  $region25: #{transformer_tts_forward.58} parent=0 // pred_fallthru
    _
  // Predicated region
  $region26: #{transformer_tts_forward.58} parent=0 // pred_check
    _
  $region27: #{transformer_tts_forward.58} parent=0 // pred_check_branch
    %135 = sbr.rel (0) target = $region29
  $region28: #{transformer_tts_forward.58} parent=0 // pred_region
    _
  $region29: #{transformer_tts_forward.58} parent=0 // pred_fallthru
    _

// kernel: transformer_tts_forward.59
$region0: #{transformer_tts_forward.59}
  #allocation0 [shape = 'u32[]', space=smem, size = 0x4, offset = 0x4, fixed_abs, tag = 'smem constant byte address 0x4 - core index']
  #allocation1 [shape = 'u32[144,128]{1,0:T(1,128)}', space=vmem, size = 0x12000, scoped, tag = 'internal scratch']
  #allocation2 [shape = 'f32[16,32]{1,0:T(8,128)}', space=vmem, size = 0x2000, scoped, tag = 'scratch operand']
  %s0 = inlined_call_operand.vmem [shape: f32[16,64], index: 0, kind: input, shape index: {}]
  %s1 = inlined_call_operand.vmem [shape: f32[64,32], index: 1, kind: input, shape index: {}]
  %s2 = inlined_call_operand.vmem [shape: f32[1,32], index: 2, kind: input, shape index: {}]
  %s3 = inlined_call_operand.vmem [shape: f32[16,32], index: 3, kind: output, shape index: {}]
  %s4 = sld [smem:[#allocation0]]
  $region30: #{transformer_tts_forward.59} parent=0
    _
  %s6 = ssub.s32 1, %s4
  %s7 = scalar_select 0, %s6, %s4
  // Predicated region
  $region2: #{transformer_tts_forward.59} parent=0 // pred_check
    _
  $region3: #{transformer_tts_forward.59} parent=0 // pred_check_branch
    %9 = sbr.rel (0) target = $region5
  $region4: #{transformer_tts_forward.59} parent=0 // pred_region
    _
  $region5: #{transformer_tts_forward.59} parent=0 // pred_fallthru
    _
  // Predicated region
  $region6: #{transformer_tts_forward.59} parent=0 // pred_check
    _
  $region7: #{transformer_tts_forward.59} parent=0 // pred_check_branch
    %11 = sbr.rel (0) target = $region9
  $region8: #{transformer_tts_forward.59} parent=0 // pred_region
    _
  $region9: #{transformer_tts_forward.59} parent=0 // pred_fallthru
    _
  // Predicated region
  $region10: #{transformer_tts_forward.59} parent=0 // pred_check
    _
  $region11: #{transformer_tts_forward.59} parent=0 // pred_check_branch
    %13 = sbr.rel (0) target = $region13
  $region12: #{transformer_tts_forward.59} parent=0 // pred_region
    _
  $region13: #{transformer_tts_forward.59} parent=0 // pred_fallthru
    _
  %p14 = scmp.eq.s32.totalorder 0, 0
  // Predicated region
  $region14: #{transformer_tts_forward.59} parent=0 // pred_check
    %p15 = pneg %p14
  $region15: #{transformer_tts_forward.59} parent=0 // pred_check_branch
    %17 = sbr.rel (%p15) target = $region17
  $region16: #{transformer_tts_forward.59} parent=0 // pred_region
    %vm18 = vcmask 261120
    %19 = vst.msk [vmem:[#allocation2] sm:$0xff] %vm18, 0.0
    %20 = vst.msk [vmem:[#allocation2 + $0x8] sm:$0xff] %vm18, 0.0
  $region17: #{transformer_tts_forward.59} parent=0 // pred_fallthru
    _
  %v21 = vld [vmem:[#allocation2] sm:$0xff]
  %v22 = vld [vmem:[#allocation2 + $0x8] sm:$0xff]
  %v23 = vld [vmem:[%s0] sm:$0xff]
  %v24 = vld [vmem:[%s0 + $0x8] sm:$0xff]
  %v25 = vld [vmem:[%s1] sm:$0xff]
  %v26 = vld [vmem:[%s1 + $0x8] sm:$0xff]
  %v27 = vld [vmem:[%s1 + $0x10] sm:$0xff]
  %v28 = vld [vmem:[%s1 + $0x18] sm:$0xff]
  %v29 = vld [vmem:[%s1 + $0x20] sm:$0xff]
  %v30 = vld [vmem:[%s1 + $0x28] sm:$0xff]
  %v31 = vld [vmem:[%s1 + $0x30] sm:$0xff]
  %v32 = vld [vmem:[%s1 + $0x38] sm:$0xff]
  %vm33 = vcmask 523264
  %v35 = vsel %vm33, %v23, 0
  %v38 = vsel %vm33, %v24, 0
  %40 = vmatprep.subr.mxu0 0.0
  %41 = vmatpush1.msra.mxu0 %v25
  %42 = vmatprep.subr.mxu0 0.0
  %43 = vmatpush1.msra.mxu0 %v26
  %44 = vmatprep.subr.mxu0 0.0
  %45 = vmatpush1.msra.mxu0 %v27
  %46 = vmatprep.subr.mxu0 0.0
  %47 = vmatpush1.msra.mxu0 %v28
  %48 = vmatprep.subr.mxu0 0.0
  %49 = vmatpush1.msra.mxu0 %v29
  %50 = vmatprep.subr.mxu0 0.0
  %51 = vmatpush1.msra.mxu0 %v30
  %52 = vmatprep.subr.mxu0 0.0
  %53 = vmatpush1.msra.mxu0 %v31
  %54 = vmatprep.subr.mxu0 0.0
  %55 = vmatpush1.msra.mxu0 %v32
  %56 = vmatprep.subr.mxu0 0.0
  %57 = vmatpush1.msra.mxu0 0.0
  %58 = vmatprep.subr.mxu0 0.0
  %59 = vmatpush1.msra.mxu0 0.0
  %60 = vmatprep.subr.mxu0 0.0
  %61 = vmatpush1.msra.mxu0 0.0
  %62 = vmatprep.subr.mxu0 0.0
  %63 = vmatpush1.msra.mxu0 0.0
  %64 = vmatprep.subr.mxu0 0.0
  %65 = vmatpush1.msra.mxu0 0.0
  %66 = vmatprep.subr.mxu0 0.0
  %67 = vmatpush1.msra.mxu0 0.0
  %68 = vmatprep.subr.mxu0 0.0
  %69 = vmatpush1.msra.mxu0 0.0
  %70 = vmatprep.subr.mxu0 0.0
  %71 = vmatpush1.msra.mxu0 0.0
  %72 = vmatprep.subr.mxu0 0.0
  %73 = vmatpush1.msra.mxu0 0.0
  %74 = vmatprep.subr.mxu0 0.0
  %75 = vmatpush1.msra.mxu0 0.0
  %76 = vmatprep.subr.mxu0 0.0
  %77 = vmatpush1.msra.mxu0 0.0
  %78 = vmatprep.subr.mxu0 0.0
  %79 = vmatpush1.msra.mxu0 0.0
  %80 = vmatprep.subr.mxu0 0.0
  %81 = vmatpush1.msra.mxu0 0.0
  %82 = vmatprep.subr.mxu0 0.0
  %83 = vmatpush1.msra.mxu0 0.0
  %84 = vmatprep.subr.mxu0 0.0
  %85 = vmatpush1.msra.mxu0 0.0
  %86 = vmatprep.subr.mxu0 0.0
  %87 = vmatpush1.msra.mxu0 0.0
  %88 = vmatprep.subr.mxu0 0.0
  %89 = vmatpush1.msra.mxu0 0.0
  %90 = vmatprep.subr.mxu0 0.0
  %91 = vmatpush1.msra.mxu0 0.0
  %92 = vmatprep.subr.mxu0 0.0
  %93 = vmatpush1.msra.mxu0 0.0
  %94 = vmatprep.subr.mxu0 0.0
  %95 = vmatpush1.msra.mxu0 0.0
  %96 = vmatprep.subr.mxu0 0.0
  %97 = vmatpush1.msra.mxu0 0.0
  %98 = vmatprep.subr.mxu0 0.0
  %99 = vmatpush1.msra.mxu0 0.0
  %100 = vmatprep.subr.mxu0 0.0
  %101 = vmatpush1.msra.mxu0 0.0
  %102 = vmatprep.subr.mxu0 0.0
  %103 = vmatpush1.msra.mxu0 0.0
  %104 = vmatprep.mubr.f32.mxu0 0.0
  %105 = vmatmul.mubr.f32.gmra.mrb[0].mxu0 %v35
  %v106 = vpop.f32.mrb[0].mxu0
  %v107 = vadd.f32 0.0, %v106
  %v108 = vpop.f32.mrb[0].mxu0
  %109 = vmatprep.mubr.f32.mxu0 0.0
  %110 = vmatmul.mubr.f32.gmra.mrb[0].mxu0 %v38
  %v111 = vpop.f32.mrb[0].mxu0
  %v112 = vadd.f32 0.0, %v111
  %v113 = vpop.f32.mrb[0].mxu0
  %114 = vdwg.mxu0
  %v115 = vadd.f32 %v21, %v107
  %v116 = vadd.f32 %v22, %v112
  %vm117 = vcmask 261120
  %118 = vst.msk [vmem:[#allocation2] sm:$0xff] %vm117, %v115
  %119 = vst.msk [vmem:[#allocation2 + $0x8] sm:$0xff] %vm117, %v116
  // Predicated region
  $region18: #{transformer_tts_forward.59} parent=0 // pred_check
    %p120 = pneg %p14
  $region19: #{transformer_tts_forward.59} parent=0 // pred_check_branch
    %122 = sbr.rel (%p120) target = $region21
  $region20: #{transformer_tts_forward.59} parent=0 // pred_region
    %v123 = vld [vmem:[#allocation2] sm:$0xff]
    %v124 = vld [vmem:[#allocation2 + $0x8] sm:$0xff]
    %v125 = vld [vmem:[%s2] sm:$0x1]
    %v127 = vlaneseq
    %v128 = vshrl.u32 %v127, 7
    %v129 = vsub.s32 0, %v128
    %v130 = vrot.slane %v125, %v129
    %v132 = vadd.f32 %v123, %v130
    %v133 = vadd.f32 %v124, %v130
    %134 = vst.msk [vmem:[%s3] sm:$0xff] %vm117, %v132
    %135 = vst.msk [vmem:[%s3 + $0x8] sm:$0xff] %vm117, %v133
  $region21: #{transformer_tts_forward.59} parent=0 // pred_fallthru
    _
  // Predicated region
  $region22: #{transformer_tts_forward.59} parent=0 // pred_check
    _
  $region23: #{transformer_tts_forward.59} parent=0 // pred_check_branch
    %137 = sbr.rel (0) target = $region25
  $region24: #{transformer_tts_forward.59} parent=0 // pred_region
    _
  $region25: #{transformer_tts_forward.59} parent=0 // pred_fallthru
    _
  // Predicated region
  $region26: #{transformer_tts_forward.59} parent=0 // pred_check
    _
  $region27: #{transformer_tts_forward.59} parent=0 // pred_check_branch
    %139 = sbr.rel (0) target = $region29
  $region28: #{transformer_tts_forward.59} parent=0 // pred_region
    _
  $region29: #{transformer_tts_forward.59} parent=0 // pred_fallthru
    _

// kernel: transformer_tts_forward.75
$region0: #{transformer_tts_forward.75}
  #allocation0 [shape = 'u32[]', space=smem, size = 0x4, offset = 0x4, fixed_abs, tag = 'smem constant byte address 0x4 - core index']
  #allocation1 [shape = 'u32[144,128]{1,0:T(1,128)}', space=vmem, size = 0x12000, scoped, tag = 'internal scratch']
  #allocation2 [shape = 'f32[64,16]{1,0:T(8,128)}', space=vmem, size = 0x8000, scoped, tag = 'scratch operand']
  %s0 = inlined_call_operand.vmem [shape: f32[64,8], index: 0, kind: input, shape index: {}]
  %s1 = inlined_call_operand.vmem [shape: f32[8,16], index: 1, kind: input, shape index: {}]
  %s2 = inlined_call_operand.vmem [shape: f32[1,16], index: 2, kind: input, shape index: {}]
  %s3 = inlined_call_operand.vmem [shape: f32[64,16], index: 3, kind: output, shape index: {}]
  %s4 = sld [smem:[#allocation0]]
  $region30: #{transformer_tts_forward.75} parent=0
    _
  %s6 = ssub.s32 1, %s4
  %s7 = scalar_select 0, %s6, %s4
  // Predicated region
  $region2: #{transformer_tts_forward.75} parent=0 // pred_check
    _
  $region3: #{transformer_tts_forward.75} parent=0 // pred_check_branch
    %9 = sbr.rel (0) target = $region5
  $region4: #{transformer_tts_forward.75} parent=0 // pred_region
    _
  $region5: #{transformer_tts_forward.75} parent=0 // pred_fallthru
    _
  // Predicated region
  $region6: #{transformer_tts_forward.75} parent=0 // pred_check
    _
  $region7: #{transformer_tts_forward.75} parent=0 // pred_check_branch
    %11 = sbr.rel (0) target = $region9
  $region8: #{transformer_tts_forward.75} parent=0 // pred_region
    _
  $region9: #{transformer_tts_forward.75} parent=0 // pred_fallthru
    _
  // Predicated region
  $region10: #{transformer_tts_forward.75} parent=0 // pred_check
    _
  $region11: #{transformer_tts_forward.75} parent=0 // pred_check_branch
    %13 = sbr.rel (0) target = $region13
  $region12: #{transformer_tts_forward.75} parent=0 // pred_region
    _
  $region13: #{transformer_tts_forward.75} parent=0 // pred_fallthru
    _
  %p14 = scmp.eq.s32.totalorder 0, 0
  // Predicated region
  $region14: #{transformer_tts_forward.75} parent=0 // pred_check
    %p15 = pneg %p14
  $region15: #{transformer_tts_forward.75} parent=0 // pred_check_branch
    %17 = sbr.rel (%p15) target = $region17
  $region16: #{transformer_tts_forward.75} parent=0 // pred_region
    %vm18 = vcmask 130048
    %19 = vst.msk [vmem:[#allocation2] sm:$0xff] %vm18, 0.0
    %20 = vst.msk [vmem:[#allocation2 + $0x8] sm:$0xff] %vm18, 0.0
    %21 = vst.msk [vmem:[#allocation2 + $0x10] sm:$0xff] %vm18, 0.0
    %22 = vst.msk [vmem:[#allocation2 + $0x18] sm:$0xff] %vm18, 0.0
    %23 = vst.msk [vmem:[#allocation2 + $0x20] sm:$0xff] %vm18, 0.0
    %24 = vst.msk [vmem:[#allocation2 + $0x28] sm:$0xff] %vm18, 0.0
    %25 = vst.msk [vmem:[#allocation2 + $0x30] sm:$0xff] %vm18, 0.0
    %26 = vst.msk [vmem:[#allocation2 + $0x38] sm:$0xff] %vm18, 0.0
  $region17: #{transformer_tts_forward.75} parent=0 // pred_fallthru
    _
  %v27 = vld [vmem:[#allocation2] sm:$0xff]
  %v28 = vld [vmem:[#allocation2 + $0x8] sm:$0xff]
  %v29 = vld [vmem:[#allocation2 + $0x10] sm:$0xff]
  %v30 = vld [vmem:[#allocation2 + $0x18] sm:$0xff]
  %v31 = vld [vmem:[#allocation2 + $0x20] sm:$0xff]
  %v32 = vld [vmem:[#allocation2 + $0x28] sm:$0xff]
  %v33 = vld [vmem:[#allocation2 + $0x30] sm:$0xff]
  %v34 = vld [vmem:[#allocation2 + $0x38] sm:$0xff]
  %v35 = vld [vmem:[%s0] sm:$0xff]
  %v36 = vld [vmem:[%s0 + $0x8] sm:$0xff]
  %v37 = vld [vmem:[%s0 + $0x10] sm:$0xff]
  %v38 = vld [vmem:[%s0 + $0x18] sm:$0xff]
  %v39 = vld [vmem:[%s0 + $0x20] sm:$0xff]
  %v40 = vld [vmem:[%s0 + $0x28] sm:$0xff]
  %v41 = vld [vmem:[%s0 + $0x30] sm:$0xff]
  %v42 = vld [vmem:[%s0 + $0x38] sm:$0xff]
  %v43 = vld [vmem:[%s1] sm:$0xff]
  %vm44 = vcmask 64512
  %v46 = vsel %vm44, %v35, 0
  %v49 = vsel %vm44, %v36, 0
  %v52 = vsel %vm44, %v37, 0
  %v55 = vsel %vm44, %v38, 0
  %v58 = vsel %vm44, %v39, 0
  %v61 = vsel %vm44, %v40, 0
  %v64 = vsel %vm44, %v41, 0
  %v67 = vsel %vm44, %v42, 0
  %69 = vmatprep.subr.mxu0 0.0
  %70 = vmatpush1.msra.mxu0 %v43
  %71 = vmatprep.subr.mxu0 0.0
  %72 = vmatpush1.msra.mxu0 0.0
  %73 = vmatprep.subr.mxu0 0.0
  %74 = vmatpush1.msra.mxu0 0.0
  %75 = vmatprep.subr.mxu0 0.0
  %76 = vmatpush1.msra.mxu0 0.0
  %77 = vmatprep.subr.mxu0 0.0
  %78 = vmatpush1.msra.mxu0 0.0
  %79 = vmatprep.subr.mxu0 0.0
  %80 = vmatpush1.msra.mxu0 0.0
  %81 = vmatprep.subr.mxu0 0.0
  %82 = vmatpush1.msra.mxu0 0.0
  %83 = vmatprep.subr.mxu0 0.0
  %84 = vmatpush1.msra.mxu0 0.0
  %85 = vmatprep.subr.mxu0 0.0
  %86 = vmatpush1.msra.mxu0 0.0
  %87 = vmatprep.subr.mxu0 0.0
  %88 = vmatpush1.msra.mxu0 0.0
  %89 = vmatprep.subr.mxu0 0.0
  %90 = vmatpush1.msra.mxu0 0.0
  %91 = vmatprep.subr.mxu0 0.0
  %92 = vmatpush1.msra.mxu0 0.0
  %93 = vmatprep.subr.mxu0 0.0
  %94 = vmatpush1.msra.mxu0 0.0
  %95 = vmatprep.subr.mxu0 0.0
  %96 = vmatpush1.msra.mxu0 0.0
  %97 = vmatprep.subr.mxu0 0.0
  %98 = vmatpush1.msra.mxu0 0.0
  %99 = vmatprep.subr.mxu0 0.0
  %100 = vmatpush1.msra.mxu0 0.0
  %101 = vmatprep.subr.mxu0 0.0
  %102 = vmatpush1.msra.mxu0 0.0
  %103 = vmatprep.subr.mxu0 0.0
  %104 = vmatpush1.msra.mxu0 0.0
  %105 = vmatprep.subr.mxu0 0.0
  %106 = vmatpush1.msra.mxu0 0.0
  %107 = vmatprep.subr.mxu0 0.0
  %108 = vmatpush1.msra.mxu0 0.0
  %109 = vmatprep.subr.mxu0 0.0
  %110 = vmatpush1.msra.mxu0 0.0
  %111 = vmatprep.subr.mxu0 0.0
  %112 = vmatpush1.msra.mxu0 0.0
  %113 = vmatprep.subr.mxu0 0.0
  %114 = vmatpush1.msra.mxu0 0.0
  %115 = vmatprep.subr.mxu0 0.0
  %116 = vmatpush1.msra.mxu0 0.0
  %117 = vmatprep.subr.mxu0 0.0
  %118 = vmatpush1.msra.mxu0 0.0
  %119 = vmatprep.subr.mxu0 0.0
  %120 = vmatpush1.msra.mxu0 0.0
  %121 = vmatprep.subr.mxu0 0.0
  %122 = vmatpush1.msra.mxu0 0.0
  %123 = vmatprep.subr.mxu0 0.0
  %124 = vmatpush1.msra.mxu0 0.0
  %125 = vmatprep.subr.mxu0 0.0
  %126 = vmatpush1.msra.mxu0 0.0
  %127 = vmatprep.subr.mxu0 0.0
  %128 = vmatpush1.msra.mxu0 0.0
  %129 = vmatprep.subr.mxu0 0.0
  %130 = vmatpush1.msra.mxu0 0.0
  %131 = vmatprep.subr.mxu0 0.0
  %132 = vmatpush1.msra.mxu0 0.0
  %133 = vmatprep.mubr.f32.mxu0 0.0
  %134 = vmatmul.mubr.f32.gmra.mrb[0].mxu0 %v46
  %v135 = vpop.f32.mrb[0].mxu0
  %v136 = vadd.f32 0.0, %v135
  %v137 = vpop.f32.mrb[0].mxu0
  %138 = vmatprep.mubr.f32.mxu0 0.0
  %139 = vmatmul.mubr.f32.gmra.mrb[0].mxu0 %v49
  %v140 = vpop.f32.mrb[0].mxu0
  %v141 = vadd.f32 0.0, %v140
  %v142 = vpop.f32.mrb[0].mxu0
  %143 = vmatprep.mubr.f32.mxu0 0.0
  %144 = vmatmul.mubr.f32.gmra.mrb[0].mxu0 %v52
  %v145 = vpop.f32.mrb[0].mxu0
  %v146 = vadd.f32 0.0, %v145
  %v147 = vpop.f32.mrb[0].mxu0
  %148 = vmatprep.mubr.f32.mxu0 0.0
  %149 = vmatmul.mubr.f32.gmra.mrb[0].mxu0 %v55
  %v150 = vpop.f32.mrb[0].mxu0
  %v151 = vadd.f32 0.0, %v150
  %v152 = vpop.f32.mrb[0].mxu0
  %153 = vmatprep.mubr.f32.mxu0 0.0
  %154 = vmatmul.mubr.f32.gmra.mrb[0].mxu0 %v58
  %v155 = vpop.f32.mrb[0].mxu0
  %v156 = vadd.f32 0.0, %v155
  %v157 = vpop.f32.mrb[0].mxu0
  %158 = vmatprep.mubr.f32.mxu0 0.0
  %159 = vmatmul.mubr.f32.gmra.mrb[0].mxu0 %v61
  %v160 = vpop.f32.mrb[0].mxu0
  %v161 = vadd.f32 0.0, %v160
  %v162 = vpop.f32.mrb[0].mxu0
  %163 = vmatprep.mubr.f32.mxu0 0.0
  %164 = vmatmul.mubr.f32.gmra.mrb[0].mxu0 %v64
  %v165 = vpop.f32.mrb[0].mxu0
  %v166 = vadd.f32 0.0, %v165
  %v167 = vpop.f32.mrb[0].mxu0
  %168 = vmatprep.mubr.f32.mxu0 0.0
  %169 = vmatmul.mubr.f32.gmra.mrb[0].mxu0 %v67
  %v170 = vpop.f32.mrb[0].mxu0
  %v171 = vadd.f32 0.0, %v170
  %v172 = vpop.f32.mrb[0].mxu0
  %173 = vdwg.mxu0
  %v174 = vadd.f32 %v27, %v136
  %v175 = vadd.f32 %v28, %v141
  %v176 = vadd.f32 %v29, %v146
  %v177 = vadd.f32 %v30, %v151
  %v178 = vadd.f32 %v31, %v156
  %v179 = vadd.f32 %v32, %v161
  %v180 = vadd.f32 %v33, %v166
  %v181 = vadd.f32 %v34, %v171
  %vm182 = vcmask 130048
  %183 = vst.msk [vmem:[#allocation2] sm:$0xff] %vm182, %v174
  %184 = vst.msk [vmem:[#allocation2 + $0x8] sm:$0xff] %vm182, %v175
  %185 = vst.msk [vmem:[#allocation2 + $0x10] sm:$0xff] %vm182, %v176
  %186 = vst.msk [vmem:[#allocation2 + $0x18] sm:$0xff] %vm182, %v177
  %187 = vst.msk [vmem:[#allocation2 + $0x20] sm:$0xff] %vm182, %v178
  %188 = vst.msk [vmem:[#allocation2 + $0x28] sm:$0xff] %vm182, %v179
  %189 = vst.msk [vmem:[#allocation2 + $0x30] sm:$0xff] %vm182, %v180
  %190 = vst.msk [vmem:[#allocation2 + $0x38] sm:$0xff] %vm182, %v181
  // Predicated region
  $region18: #{transformer_tts_forward.75} parent=0 // pred_check
    %p191 = pneg %p14
  $region19: #{transformer_tts_forward.75} parent=0 // pred_check_branch
    %193 = sbr.rel (%p191) target = $region21
  $region20: #{transformer_tts_forward.75} parent=0 // pred_region
    %v194 = vld [vmem:[#allocation2] sm:$0xff]
    %v195 = vld [vmem:[#allocation2 + $0x8] sm:$0xff]
    %v196 = vld [vmem:[#allocation2 + $0x10] sm:$0xff]
    %v197 = vld [vmem:[#allocation2 + $0x18] sm:$0xff]
    %v198 = vld [vmem:[#allocation2 + $0x20] sm:$0xff]
    %v199 = vld [vmem:[#allocation2 + $0x28] sm:$0xff]
    %v200 = vld [vmem:[#allocation2 + $0x30] sm:$0xff]
    %v201 = vld [vmem:[#allocation2 + $0x38] sm:$0xff]
    %v202 = vld [vmem:[%s2] sm:$0x1]
    %v204 = vlaneseq
    %v205 = vshrl.u32 %v204, 7
    %v206 = vsub.s32 0, %v205
    %v207 = vrot.slane %v202, %v206
    %v209 = vadd.f32 %v194, %v207
    %v210 = vadd.f32 %v195, %v207
    %v211 = vadd.f32 %v196, %v207
    %v212 = vadd.f32 %v197, %v207
    %v213 = vadd.f32 %v198, %v207
    %v214 = vadd.f32 %v199, %v207
    %v215 = vadd.f32 %v200, %v207
    %v216 = vadd.f32 %v201, %v207
    %217 = vst.msk [vmem:[%s3] sm:$0xff] %vm182, %v209
    %218 = vst.msk [vmem:[%s3 + $0x8] sm:$0xff] %vm182, %v210
    %219 = vst.msk [vmem:[%s3 + $0x10] sm:$0xff] %vm182, %v211
    %220 = vst.msk [vmem:[%s3 + $0x18] sm:$0xff] %vm182, %v212
    %221 = vst.msk [vmem:[%s3 + $0x20] sm:$0xff] %vm182, %v213
    %222 = vst.msk [vmem:[%s3 + $0x28] sm:$0xff] %vm182, %v214
    %223 = vst.msk [vmem:[%s3 + $0x30] sm:$0xff] %vm182, %v215
    %224 = vst.msk [vmem:[%s3 + $0x38] sm:$0xff] %vm182, %v216
  $region21: #{transformer_tts_forward.75} parent=0 // pred_fallthru
    _
  // Predicated region
  $region22: #{transformer_tts_forward.75} parent=0 // pred_check
    _
  $region23: #{transformer_tts_forward.75} parent=0 // pred_check_branch
    %226 = sbr.rel (0) target = $region25
  $region24: #{transformer_tts_forward.75} parent=0 // pred_region
    _
  $region25: #{transformer_tts_forward.75} parent=0 // pred_fallthru
    _
  // Predicated region
  $region26: #{transformer_tts_forward.75} parent=0 // pred_check
    _
  $region27: #{transformer_tts_forward.75} parent=0 // pred_check_branch
    %228 = sbr.rel (0) target = $region29
  $region28: #{transformer_tts_forward.75} parent=0 // pred_region
    _
  $region29: #{transformer_tts_forward.75} parent=0 // pred_fallthru
    _

// kernel: transformer_tts_forward.94
$region0: #{transformer_tts_forward.94}
  #allocation0 [shape = 'u32[]', space=smem, size = 0x4, offset = 0x4, fixed_abs, tag = 'smem constant byte address 0x4 - core index']
  #allocation1 [shape = 'u32[144,128]{1,0:T(1,128)}', space=vmem, size = 0x12000, scoped, tag = 'internal scratch']
  #allocation2 [shape = 'f32[16,17]{1,0:T(8,128)}', space=vmem, size = 0x2000, scoped, tag = 'scratch operand']
  %s0 = inlined_call_operand.vmem [shape: f32[16,32], index: 0, kind: input, shape index: {}]
  %s1 = inlined_call_operand.vmem [shape: f32[32,17], index: 1, kind: input, shape index: {}]
  %s2 = inlined_call_operand.vmem [shape: f32[1,17], index: 2, kind: input, shape index: {}]
  %s3 = inlined_call_operand.vmem [shape: f32[16,17], index: 3, kind: output, shape index: {}]
  %s4 = sld [smem:[#allocation0]]
  $region30: #{transformer_tts_forward.94} parent=0
    _
  %s6 = ssub.s32 1, %s4
  %s7 = scalar_select 0, %s6, %s4
  // Predicated region
  $region2: #{transformer_tts_forward.94} parent=0 // pred_check
    _
  $region3: #{transformer_tts_forward.94} parent=0 // pred_check_branch
    %9 = sbr.rel (0) target = $region5
  $region4: #{transformer_tts_forward.94} parent=0 // pred_region
    _
  $region5: #{transformer_tts_forward.94} parent=0 // pred_fallthru
    _
  // Predicated region
  $region6: #{transformer_tts_forward.94} parent=0 // pred_check
    _
  $region7: #{transformer_tts_forward.94} parent=0 // pred_check_branch
    %11 = sbr.rel (0) target = $region9
  $region8: #{transformer_tts_forward.94} parent=0 // pred_region
    _
  $region9: #{transformer_tts_forward.94} parent=0 // pred_fallthru
    _
  // Predicated region
  $region10: #{transformer_tts_forward.94} parent=0 // pred_check
    _
  $region11: #{transformer_tts_forward.94} parent=0 // pred_check_branch
    %13 = sbr.rel (0) target = $region13
  $region12: #{transformer_tts_forward.94} parent=0 // pred_region
    _
  $region13: #{transformer_tts_forward.94} parent=0 // pred_fallthru
    _
  %p14 = scmp.eq.s32.totalorder 0, 0
  // Predicated region
  $region14: #{transformer_tts_forward.94} parent=0 // pred_check
    %p15 = pneg %p14
  $region15: #{transformer_tts_forward.94} parent=0 // pred_check_branch
    %17 = sbr.rel (%p15) target = $region17
  $region16: #{transformer_tts_forward.94} parent=0 // pred_region
    %vm18 = vcmask 138240
    %19 = vst.msk [vmem:[#allocation2] sm:$0xff] %vm18, 0.0
    %20 = vst.msk [vmem:[#allocation2 + $0x8] sm:$0xff] %vm18, 0.0
  $region17: #{transformer_tts_forward.94} parent=0 // pred_fallthru
    _
  %v21 = vld [vmem:[#allocation2] sm:$0xff]
  %v22 = vld [vmem:[#allocation2 + $0x8] sm:$0xff]
  %v23 = vld [vmem:[%s0] sm:$0xff]
  %v24 = vld [vmem:[%s0 + $0x8] sm:$0xff]
  %v25 = vld [vmem:[%s1] sm:$0xff]
  %v26 = vld [vmem:[%s1 + $0x8] sm:$0xff]
  %v27 = vld [vmem:[%s1 + $0x10] sm:$0xff]
  %v28 = vld [vmem:[%s1 + $0x18] sm:$0xff]
  %vm29 = vcmask 261120
  %v31 = vsel %vm29, %v23, 0
  %v34 = vsel %vm29, %v24, 0
  %36 = vmatprep.subr.mxu0 0.0
  %37 = vmatpush1.msra.mxu0 %v25
  %38 = vmatprep.subr.mxu0 0.0
  %39 = vmatpush1.msra.mxu0 %v26
  %40 = vmatprep.subr.mxu0 0.0
  %41 = vmatpush1.msra.mxu0 %v27
  %42 = vmatprep.subr.mxu0 0.0
  %43 = vmatpush1.msra.mxu0 %v28
  %44 = vmatprep.subr.mxu0 0.0
  %45 = vmatpush1.msra.mxu0 0.0
  %46 = vmatprep.subr.mxu0 0.0
  %47 = vmatpush1.msra.mxu0 0.0
  %48 = vmatprep.subr.mxu0 0.0
  %49 = vmatpush1.msra.mxu0 0.0
  %50 = vmatprep.subr.mxu0 0.0
  %51 = vmatpush1.msra.mxu0 0.0
  %52 = vmatprep.subr.mxu0 0.0
  %53 = vmatpush1.msra.mxu0 0.0
  %54 = vmatprep.subr.mxu0 0.0
  %55 = vmatpush1.msra.mxu0 0.0
  %56 = vmatprep.subr.mxu0 0.0
  %57 = vmatpush1.msra.mxu0 0.0
  %58 = vmatprep.subr.mxu0 0.0
  %59 = vmatpush1.msra.mxu0 0.0
  %60 = vmatprep.subr.mxu0 0.0
  %61 = vmatpush1.msra.mxu0 0.0
  %62 = vmatprep.subr.mxu0 0.0
  %63 = vmatpush1.msra.mxu0 0.0
  %64 = vmatprep.subr.mxu0 0.0
  %65 = vmatpush1.msra.mxu0 0.0
  %66 = vmatprep.subr.mxu0 0.0
  %67 = vmatpush1.msra.mxu0 0.0
  %68 = vmatprep.subr.mxu0 0.0
  %69 = vmatpush1.msra.mxu0 0.0
  %70 = vmatprep.subr.mxu0 0.0
  %71 = vmatpush1.msra.mxu0 0.0
  %72 = vmatprep.subr.mxu0 0.0
  %73 = vmatpush1.msra.mxu0 0.0
  %74 = vmatprep.subr.mxu0 0.0
  %75 = vmatpush1.msra.mxu0 0.0
  %76 = vmatprep.subr.mxu0 0.0
  %77 = vmatpush1.msra.mxu0 0.0
  %78 = vmatprep.subr.mxu0 0.0
  %79 = vmatpush1.msra.mxu0 0.0
  %80 = vmatprep.subr.mxu0 0.0
  %81 = vmatpush1.msra.mxu0 0.0
  %82 = vmatprep.subr.mxu0 0.0
  %83 = vmatpush1.msra.mxu0 0.0
  %84 = vmatprep.subr.mxu0 0.0
  %85 = vmatpush1.msra.mxu0 0.0
  %86 = vmatprep.subr.mxu0 0.0
  %87 = vmatpush1.msra.mxu0 0.0
  %88 = vmatprep.subr.mxu0 0.0
  %89 = vmatpush1.msra.mxu0 0.0
  %90 = vmatprep.subr.mxu0 0.0
  %91 = vmatpush1.msra.mxu0 0.0
  %92 = vmatprep.subr.mxu0 0.0
  %93 = vmatpush1.msra.mxu0 0.0
  %94 = vmatprep.subr.mxu0 0.0
  %95 = vmatpush1.msra.mxu0 0.0
  %96 = vmatprep.subr.mxu0 0.0
  %97 = vmatpush1.msra.mxu0 0.0
  %98 = vmatprep.subr.mxu0 0.0
  %99 = vmatpush1.msra.mxu0 0.0
  %100 = vmatprep.mubr.f32.mxu0 0.0
  %101 = vmatmul.mubr.f32.gmra.mrb[0].mxu0 %v31
  %v102 = vpop.f32.mrb[0].mxu0
  %v103 = vadd.f32 0.0, %v102
  %v104 = vpop.f32.mrb[0].mxu0
  %105 = vmatprep.mubr.f32.mxu0 0.0
  %106 = vmatmul.mubr.f32.gmra.mrb[0].mxu0 %v34
  %v107 = vpop.f32.mrb[0].mxu0
  %v108 = vadd.f32 0.0, %v107
  %v109 = vpop.f32.mrb[0].mxu0
  %110 = vdwg.mxu0
  %v111 = vadd.f32 %v21, %v103
  %v112 = vadd.f32 %v22, %v108
  %vm113 = vcmask 138240
  %114 = vst.msk [vmem:[#allocation2] sm:$0xff] %vm113, %v111
  %115 = vst.msk [vmem:[#allocation2 + $0x8] sm:$0xff] %vm113, %v112
  // Predicated region
  $region18: #{transformer_tts_forward.94} parent=0 // pred_check
    %p116 = pneg %p14
  $region19: #{transformer_tts_forward.94} parent=0 // pred_check_branch
    %118 = sbr.rel (%p116) target = $region21
  $region20: #{transformer_tts_forward.94} parent=0 // pred_region
    %v119 = vld [vmem:[#allocation2] sm:$0xff]
    %v120 = vld [vmem:[#allocation2 + $0x8] sm:$0xff]
    %v121 = vld [vmem:[%s2] sm:$0x1]
    %v123 = vlaneseq
    %v124 = vshrl.u32 %v123, 7
    %v125 = vsub.s32 0, %v124
    %v126 = vrot.slane %v121, %v125
    %v128 = vadd.f32 %v119, %v126
    %v129 = vadd.f32 %v120, %v126
    %130 = vst.msk [vmem:[%s3] sm:$0xff] %vm113, %v128
    %131 = vst.msk [vmem:[%s3 + $0x8] sm:$0xff] %vm113, %v129
  $region21: #{transformer_tts_forward.94} parent=0 // pred_fallthru
    _
  // Predicated region
  $region22: #{transformer_tts_forward.94} parent=0 // pred_check
    _
  $region23: #{transformer_tts_forward.94} parent=0 // pred_check_branch
    %133 = sbr.rel (0) target = $region25
  $region24: #{transformer_tts_forward.94} parent=0 // pred_region
    _
  $region25: #{transformer_tts_forward.94} parent=0 // pred_fallthru
    _
  // Predicated region
  $region26: #{transformer_tts_forward.94} parent=0 // pred_check
    _
  $region27: #{transformer_tts_forward.94} parent=0 // pred_check_branch
    %135 = sbr.rel (0) target = $region29
  $region28: #{transformer_tts_forward.94} parent=0 // pred_region
    _
  $region29: #{transformer_tts_forward.94} parent=0 // pred_fallthru
    _

// kernel: transformer_tts_forward.95
$region0: #{transformer_tts_forward.95}
  #allocation0 [shape = 'u32[]', space=smem, size = 0x4, offset = 0x4, fixed_abs, tag = 'smem constant byte address 0x4 - core index']
  #allocation1 [shape = 'u32[144,128]{1,0:T(1,128)}', space=vmem, size = 0x12000, scoped, tag = 'internal scratch']
  %s0 = inlined_call_operand.vmem [shape: f32[2,12,16], index: 0, kind: input, shape index: {}]
  %s1 = inlined_call_operand.vmem [shape: f32[5,16,32], index: 1, kind: input, shape index: {}]
  %s2 = inlined_call_operand.vmem [shape: f32[1,32], index: 2, kind: input, shape index: {}]
  %s3 = inlined_call_operand.vmem [shape: f32[2,8,32], index: 3, kind: output, shape index: {}]
  %s4 = sld [smem:[#allocation0]]
  $region45: #{transformer_tts_forward.95} parent=0
    _
  %s6 = ssub.s32 1, %s4
  %s7 = scalar_select 0, %s6, %s4
  loop: start=0, step=1, limit=4
  $region2: #{transformer_tts_forward.95} parent=0 // loop_pre_header
    _
  $region3: #{transformer_tts_forward.95} parent=0 // loop_header
    %s9 = sphi 0, %s13
    %p10 = scmp.ge.s32.totalorder %s9, 4
    %s19 = sphi 0, %s21
    %s22 = sphi 0, %s19
    %s23 = sphi 0, %s22
    %s39 = sphi 0, %s23
    %s43 = sphi 0, %s43
    %s45 = sphi 0, %s43
    %s46 = sphi 0, %s45
    %s60 = sphi 0, %s46
    %s64 = sphi 0, %s64
    %s66 = sphi 0, %s64
    %s67 = sphi 0, %s66
    %s81 = sphi 0, %s67
    %s87 = sphi 0, %s89
    %s90 = sphi 0, %s87
    %s91 = sphi 0, %s90
    %s107 = sphi 0, %s91
  $region4: #{transformer_tts_forward.95} parent=0 // loop_header_branch
    %12 = sbr.rel (%p10) target = $region8
  $region5: #{transformer_tts_forward.95} parent=0 // loop_body
    %s14 = ssub.s32 %s9, 1
    %s15 = ssub.s32 %s9, 2
    %s16 = sadd.s32 %s9, 1
    %s17 = ssub.s32 %s9, %s16
    %p18 = scmp.eq.s32.totalorder %s17, 0
    %s20 = sadd.s32 %s19, 1
    %s21 = scalar_select %p18, %s19, %s20
    %p24 = pneg %p18
    %p25 = scmp.eq.s32.totalorder %s9, 1
    %p26 = por %p24, %p25
    %p27 = scmp.ne.s32.totalorder %s19, %s22
    %p28 = scmp.eq.s32.totalorder %s9, 0
    %p29 = por %p27, %p28
    %p30 = scmp.ne.s32.totalorder %s19, %s22
    %p31 = scmp.eq.s32.totalorder %s14, 1
    %p32 = por %p30, %p31
    %p33 = scmp.ne.s32.totalorder %s22, %s23
    %p34 = scmp.eq.s32.totalorder %s14, 0
    %p35 = por %p33, %p34
    %p36 = scmp.ne.s32.totalorder %s22, %s23
    %p37 = scmp.eq.s32.totalorder %s15, 1
    %p38 = por %p36, %p37
    %p40 = scmp.ne.s32.totalorder %s23, %s39
    %p41 = scmp.eq.s32.totalorder %s15, 0
    %p42 = por %p40, %p41
    %s44 = sadd.s32 %s43, 1
    %p47 = scmp.eq.s32.totalorder %s9, 1
    %p48 = scmp.ne.s32.totalorder %s43, %s45
    %p49 = scmp.eq.s32.totalorder %s9, 0
    %p50 = por %p48, %p49
    %p51 = scmp.ne.s32.totalorder %s43, %s45
    %p52 = scmp.eq.s32.totalorder %s14, 1
    %p53 = por %p51, %p52
    %p54 = scmp.ne.s32.totalorder %s45, %s46
    %p55 = scmp.eq.s32.totalorder %s14, 0
    %p56 = por %p54, %p55
    %p57 = scmp.ne.s32.totalorder %s45, %s46
    %p58 = scmp.eq.s32.totalorder %s15, 1
    %p59 = por %p57, %p58
    %p61 = scmp.ne.s32.totalorder %s46, %s60
    %p62 = scmp.eq.s32.totalorder %s15, 0
    %p63 = por %p61, %p62
    %s65 = sadd.s32 %s64, 1
    %p68 = scmp.eq.s32.totalorder %s9, 1
    %p69 = scmp.ne.s32.totalorder %s64, %s66
    %p70 = scmp.eq.s32.totalorder %s9, 0
    %p71 = por %p69, %p70
    %p72 = scmp.ne.s32.totalorder %s64, %s66
    %p73 = scmp.eq.s32.totalorder %s14, 1
    %p74 = por %p72, %p73
    %p75 = scmp.ne.s32.totalorder %s66, %s67
    %p76 = scmp.eq.s32.totalorder %s14, 0
    %p77 = por %p75, %p76
    %p78 = scmp.ne.s32.totalorder %s66, %s67
    %p79 = scmp.eq.s32.totalorder %s15, 1
    %p80 = por %p78, %p79
    %p82 = scmp.ne.s32.totalorder %s67, %s81
    %p83 = scmp.eq.s32.totalorder %s15, 0
    %p84 = por %p82, %p83
    %s85 = ssub.s32 %s9, %s16
    %p86 = scmp.eq.s32.totalorder %s85, 0
    %s88 = sadd.s32 %s87, 1
    %s89 = scalar_select %p86, %s87, %s88
    %p92 = pneg %p86
    %p93 = scmp.eq.s32.totalorder %s9, 1
    %p94 = por %p92, %p93
    %p95 = scmp.ne.s32.totalorder %s87, %s90
    %p96 = scmp.eq.s32.totalorder %s9, 0
    %p97 = por %p95, %p96
    %p98 = scmp.ne.s32.totalorder %s87, %s90
    %p99 = scmp.eq.s32.totalorder %s14, 1
    %p100 = por %p98, %p99
    %p101 = scmp.ne.s32.totalorder %s90, %s91
    %p102 = scmp.eq.s32.totalorder %s14, 0
    %p103 = por %p101, %p102
    %p104 = scmp.ne.s32.totalorder %s90, %s91
    %p105 = scmp.eq.s32.totalorder %s15, 1
    %p106 = por %p104, %p105
    %p108 = scmp.ne.s32.totalorder %s91, %s107
    %p109 = scmp.eq.s32.totalorder %s15, 0
    %p110 = por %p108, %p109
    %p111 = scmp.le.s32.totalorder 1, %s9
    %p112 = scmp.lt.s32.totalorder %s9, 3
    %p113 = pnand %p111, %p112
    %p114 = pneg %p113
    // Predicated region
    $region9: #{transformer_tts_forward.95} parent=5 // pred_check
      _
    $region10: #{transformer_tts_forward.95} parent=5 // pred_check_branch
      %116 = sbr.rel (%p113) target = $region12
    $region11: #{transformer_tts_forward.95} parent=5 // pred_region
      %s117 = ssub.s32 %s9, 1
      // Predicated region
      $region13: #{transformer_tts_forward.95} parent=11 // pred_check
        %p118 = pneg %p56
      $region14: #{transformer_tts_forward.95} parent=11 // pred_check_branch
        %120 = sbr.rel (%p118) target = $region16
      $region15: #{transformer_tts_forward.95} parent=11 // pred_region
        _
      $region16: #{transformer_tts_forward.95} parent=11 // pred_fallthru
        _
      // Predicated region
      $region17: #{transformer_tts_forward.95} parent=11 // pred_check
        %p121 = pneg %p77
      $region18: #{transformer_tts_forward.95} parent=11 // pred_check_branch
        %123 = sbr.rel (%p121) target = $region20
      $region19: #{transformer_tts_forward.95} parent=11 // pred_region
        _
      $region20: #{transformer_tts_forward.95} parent=11 // pred_fallthru
        _
    $region12: #{transformer_tts_forward.95} parent=5 // pred_fallthru
      _
    %p124 = scmp.lt.s32.totalorder %s9, 2
    // Predicated region
    $region21: #{transformer_tts_forward.95} parent=5 // pred_check
      %p125 = pneg %p124
    $region22: #{transformer_tts_forward.95} parent=5 // pred_check_branch
      %127 = sbr.rel (%p125) target = $region24
    $region23: #{transformer_tts_forward.95} parent=5 // pred_region
      // Predicated region
      $region25: #{transformer_tts_forward.95} parent=23 // pred_check
        %p128 = pneg %p29
      $region26: #{transformer_tts_forward.95} parent=23 // pred_check_branch
        %130 = sbr.rel (%p128) target = $region28
      $region27: #{transformer_tts_forward.95} parent=23 // pred_region
        %p131 = scmp.lt.s32.totalorder %s9, 1
        %s132 = scalar_select %p131, %s9, 1
        %s133 = smul.addr %s132, 2
        %s134 = smul.addr %s133, 8
        %s135 = scalar_lea.vmem %s0, %s134
      $region28: #{transformer_tts_forward.95} parent=23 // pred_fallthru
        _
    $region24: #{transformer_tts_forward.95} parent=5 // pred_fallthru
      _
    %p136 = scmp.le.s32.totalorder 1, %s9
    %p137 = scmp.lt.s32.totalorder %s9, 3
    %p138 = pnand %p136, %p137
    %p139 = pneg %p138
    // Predicated region
    $region29: #{transformer_tts_forward.95} parent=5 // pred_check
      _
    $region30: #{transformer_tts_forward.95} parent=5 // pred_check_branch
      %141 = sbr.rel (%p138) target = $region32
    $region31: #{transformer_tts_forward.95} parent=5 // pred_region
      %s142 = ssub.s32 %s9, 1
      %p143 = scmp.lt.s32.totalorder %s14, 1
      %s144 = scalar_select %p143, %s14, 1
      %s145 = smul.addr %s144, 2
      %s146 = smul.addr %s145, 8
      %s147 = scalar_lea.vmem %s0, %s146
      %p148 = pneg %p35
      %p149 = pneg %p32
      %p150 = pneg %p56
      %p151 = pneg %p53
      %p152 = pneg %p77
      %p153 = pneg %p74
      %p154 = pneg %p103
      %p155 = pneg %p100
      %p156 = scmp.lt.s32.totalorder %s14, 1
      %s157 = scalar_select %p156, %s14, 1
      %s158 = smul.addr %s157, 8
      %s159 = scalar_lea.vmem %s3, %s158
      %p160 = scmp.lt.s32.totalorder %s14, 1
      %s161 = scalar_select %p160, %s14, 1
      %s162 = smul.addr %s161, 2
      %s163 = smul.addr %s162, 8
      %s164 = scalar_lea.vmem %s0, %s163
      %p165 = scmp.lt.s32.totalorder %s14, 1
      %s166 = scalar_select %p165, %s14, 1
      %s167 = smul.addr %s166, 8
      %s168 = scalar_lea.vmem %s3, %s167
      %v169 = vld [vmem:[%s164] sm:$0xff]
      %v170 = vld [vmem:[%s164 + $0x8] sm:$0xf]
      %v171 = vld [vmem:[%s1] sm:$0xff]
      %v172 = vld [vmem:[%s1 + $0x8] sm:$0xff]
      %v173 = vld [vmem:[%s1 + $0x10] sm:$0xff]
      %v174 = vld [vmem:[%s1 + $0x18] sm:$0xff]
      %v175 = vld [vmem:[%s1 + $0x20] sm:$0xff]
      %v176 = vld [vmem:[%s1 + $0x28] sm:$0xff]
      %v177 = vld [vmem:[%s1 + $0x30] sm:$0xff]
      %v178 = vld [vmem:[%s1 + $0x38] sm:$0xff]
      %v179 = vld [vmem:[%s1 + $0x40] sm:$0xff]
      %v180 = vld [vmem:[%s1 + $0x48] sm:$0xff]
      %vm183 = vcmask 1046528
      %v184 = vrot.slane %v169, 1
      %v185 = vrot.slane %v170, 1
      %v186 = vsel %vm183, %v184, %v185
      %vm187 = vcmask 130048
      %v188 = vsel %vm187, %v186, 0
      %190 = vmatprep.subr.mxu0 0.0
      %191 = vmatpush1.msra.mxu0 %v173
      %192 = vmatprep.subr.mxu0 0.0
      %193 = vmatpush1.msra.mxu0 %v174
      %194 = vmatprep.subr.mxu0 0.0
      %195 = vmatpush1.msra.mxu0 0.0
      %196 = vmatprep.subr.mxu0 0.0
      %197 = vmatpush1.msra.mxu0 0.0
      %198 = vmatprep.subr.mxu0 0.0
      %199 = vmatpush1.msra.mxu0 0.0
      %200 = vmatprep.subr.mxu0 0.0
      %201 = vmatpush1.msra.mxu0 0.0
      %202 = vmatprep.subr.mxu0 0.0
      %203 = vmatpush1.msra.mxu0 0.0
      %204 = vmatprep.subr.mxu0 0.0
      %205 = vmatpush1.msra.mxu0 0.0
      %206 = vmatprep.subr.mxu0 0.0
      %207 = vmatpush1.msra.mxu0 0.0
      %208 = vmatprep.subr.mxu0 0.0
      %209 = vmatpush1.msra.mxu0 0.0
      %210 = vmatprep.subr.mxu0 0.0
      %211 = vmatpush1.msra.mxu0 0.0
      %212 = vmatprep.subr.mxu0 0.0
      %213 = vmatpush1.msra.mxu0 0.0
      %214 = vmatprep.subr.mxu0 0.0
      %215 = vmatpush1.msra.mxu0 0.0
      %216 = vmatprep.subr.mxu0 0.0
      %217 = vmatpush1.msra.mxu0 0.0
      %218 = vmatprep.subr.mxu0 0.0
      %219 = vmatpush1.msra.mxu0 0.0
      %220 = vmatprep.subr.mxu0 0.0
      %221 = vmatpush1.msra.mxu0 0.0
      %222 = vmatprep.subr.mxu0 0.0
      %223 = vmatpush1.msra.mxu0 0.0
      %224 = vmatprep.subr.mxu0 0.0
      %225 = vmatpush1.msra.mxu0 0.0
      %226 = vmatprep.subr.mxu0 0.0
      %227 = vmatpush1.msra.mxu0 0.0
      %228 = vmatprep.subr.mxu0 0.0
      %229 = vmatpush1.msra.mxu0 0.0
      %230 = vmatprep.subr.mxu0 0.0
      %231 = vmatpush1.msra.mxu0 0.0
      %232 = vmatprep.subr.mxu0 0.0
      %233 = vmatpush1.msra.mxu0 0.0
      %234 = vmatprep.subr.mxu0 0.0
      %235 = vmatpush1.msra.mxu0 0.0
      %236 = vmatprep.subr.mxu0 0.0
      %237 = vmatpush1.msra.mxu0 0.0
      %238 = vmatprep.subr.mxu0 0.0
      %239 = vmatpush1.msra.mxu0 0.0
      %240 = vmatprep.subr.mxu0 0.0
      %241 = vmatpush1.msra.mxu0 0.0
      %242 = vmatprep.subr.mxu0 0.0
      %243 = vmatpush1.msra.mxu0 0.0
      %244 = vmatprep.subr.mxu0 0.0
      %245 = vmatpush1.msra.mxu0 0.0
      %246 = vmatprep.subr.mxu0 0.0
      %247 = vmatpush1.msra.mxu0 0.0
      %248 = vmatprep.subr.mxu0 0.0
      %249 = vmatpush1.msra.mxu0 0.0
      %250 = vmatprep.subr.mxu0 0.0
      %251 = vmatpush1.msra.mxu0 0.0
      %252 = vmatprep.subr.mxu0 0.0
      %253 = vmatpush1.msra.mxu0 0.0
      %254 = vmatprep.mubr.f32.mxu0 0.0
      %255 = vmatmul.mubr.f32.gmra.mrb[0].mxu0 %v188
      %v256 = vpop.f32.mrb[0].mxu0
      %v257 = vadd.f32 0.0, %v256
      %v258 = vpop.f32.mrb[0].mxu0
      %259 = vdwg.mxu0
      %v260 = vsel %vm187, %v169, 0
      %262 = vmatprep.subr.mxu0 0.0
      %263 = vmatpush1.msra.mxu0 %v171
      %264 = vmatprep.subr.mxu0 0.0
      %265 = vmatpush1.msra.mxu0 %v172
      %266 = vmatprep.subr.mxu0 0.0
      %267 = vmatpush1.msra.mxu0 0.0
      %268 = vmatprep.subr.mxu0 0.0
      %269 = vmatpush1.msra.mxu0 0.0
      %270 = vmatprep.subr.mxu0 0.0
      %271 = vmatpush1.msra.mxu0 0.0
      %272 = vmatprep.subr.mxu0 0.0
      %273 = vmatpush1.msra.mxu0 0.0
      %274 = vmatprep.subr.mxu0 0.0
      %275 = vmatpush1.msra.mxu0 0.0
      %276 = vmatprep.subr.mxu0 0.0
      %277 = vmatpush1.msra.mxu0 0.0
      %278 = vmatprep.subr.mxu0 0.0
      %279 = vmatpush1.msra.mxu0 0.0
      %280 = vmatprep.subr.mxu0 0.0
      %281 = vmatpush1.msra.mxu0 0.0
      %282 = vmatprep.subr.mxu0 0.0
      %283 = vmatpush1.msra.mxu0 0.0
      %284 = vmatprep.subr.mxu0 0.0
      %285 = vmatpush1.msra.mxu0 0.0
      %286 = vmatprep.subr.mxu0 0.0
      %287 = vmatpush1.msra.mxu0 0.0
      %288 = vmatprep.subr.mxu0 0.0
      %289 = vmatpush1.msra.mxu0 0.0
      %290 = vmatprep.subr.mxu0 0.0
      %291 = vmatpush1.msra.mxu0 0.0
      %292 = vmatprep.subr.mxu0 0.0
      %293 = vmatpush1.msra.mxu0 0.0
      %294 = vmatprep.subr.mxu0 0.0
      %295 = vmatpush1.msra.mxu0 0.0
      %296 = vmatprep.subr.mxu0 0.0
      %297 = vmatpush1.msra.mxu0 0.0
      %298 = vmatprep.subr.mxu0 0.0
      %299 = vmatpush1.msra.mxu0 0.0
      %300 = vmatprep.subr.mxu0 0.0
      %301 = vmatpush1.msra.mxu0 0.0
      %302 = vmatprep.subr.mxu0 0.0
      %303 = vmatpush1.msra.mxu0 0.0
      %304 = vmatprep.subr.mxu0 0.0
      %305 = vmatpush1.msra.mxu0 0.0
      %306 = vmatprep.subr.mxu0 0.0
      %307 = vmatpush1.msra.mxu0 0.0
      %308 = vmatprep.subr.mxu0 0.0
      %309 = vmatpush1.msra.mxu0 0.0
      %310 = vmatprep.subr.mxu0 0.0
      %311 = vmatpush1.msra.mxu0 0.0
      %312 = vmatprep.subr.mxu0 0.0
      %313 = vmatpush1.msra.mxu0 0.0
      %314 = vmatprep.subr.mxu0 0.0
      %315 = vmatpush1.msra.mxu0 0.0
      %316 = vmatprep.subr.mxu0 0.0
      %317 = vmatpush1.msra.mxu0 0.0
      %318 = vmatprep.subr.mxu0 0.0
      %319 = vmatpush1.msra.mxu0 0.0
      %320 = vmatprep.subr.mxu0 0.0
      %321 = vmatpush1.msra.mxu0 0.0
      %322 = vmatprep.subr.mxu0 0.0
      %323 = vmatpush1.msra.mxu0 0.0
      %324 = vmatprep.subr.mxu0 0.0
      %325 = vmatpush1.msra.mxu0 0.0
      %326 = vmatprep.mubr.f32.mxu0 0.0
      %327 = vmatmul.mubr.f32.gmra.mrb[0].mxu0 %v260
      %v328 = vpop.f32.mrb[0].mxu0
      %v329 = vadd.f32 %v257, %v328
      %v330 = vpop.f32.mrb[0].mxu0
      %331 = vdwg.mxu0
      %vm332 = vcmask 1045504
      %v333 = vrot.slane %v169, 2
      %v334 = vrot.slane %v170, 2
      %v335 = vsel %vm332, %v333, %v334
      %v336 = vsel %vm187, %v335, 0
      %338 = vmatprep.subr.mxu0 0.0
      %339 = vmatpush1.msra.mxu0 %v175
      %340 = vmatprep.subr.mxu0 0.0
      %341 = vmatpush1.msra.mxu0 %v176
      %342 = vmatprep.subr.mxu0 0.0
      %343 = vmatpush1.msra.mxu0 0.0
      %344 = vmatprep.subr.mxu0 0.0
      %345 = vmatpush1.msra.mxu0 0.0
      %346 = vmatprep.subr.mxu0 0.0
      %347 = vmatpush1.msra.mxu0 0.0
      %348 = vmatprep.subr.mxu0 0.0
      %349 = vmatpush1.msra.mxu0 0.0
      %350 = vmatprep.subr.mxu0 0.0
      %351 = vmatpush1.msra.mxu0 0.0
      %352 = vmatprep.subr.mxu0 0.0
      %353 = vmatpush1.msra.mxu0 0.0
      %354 = vmatprep.subr.mxu0 0.0
      %355 = vmatpush1.msra.mxu0 0.0
      %356 = vmatprep.subr.mxu0 0.0
      %357 = vmatpush1.msra.mxu0 0.0
      %358 = vmatprep.subr.mxu0 0.0
      %359 = vmatpush1.msra.mxu0 0.0
      %360 = vmatprep.subr.mxu0 0.0
      %361 = vmatpush1.msra.mxu0 0.0
      %362 = vmatprep.subr.mxu0 0.0
      %363 = vmatpush1.msra.mxu0 0.0
      %364 = vmatprep.subr.mxu0 0.0
      %365 = vmatpush1.msra.mxu0 0.0
      %366 = vmatprep.subr.mxu0 0.0
      %367 = vmatpush1.msra.mxu0 0.0
      %368 = vmatprep.subr.mxu0 0.0
      %369 = vmatpush1.msra.mxu0 0.0
      %370 = vmatprep.subr.mxu0 0.0
      %371 = vmatpush1.msra.mxu0 0.0
      %372 = vmatprep.subr.mxu0 0.0
      %373 = vmatpush1.msra.mxu0 0.0
      %374 = vmatprep.subr.mxu0 0.0
      %375 = vmatpush1.msra.mxu0 0.0
      %376 = vmatprep.subr.mxu0 0.0
      %377 = vmatpush1.msra.mxu0 0.0
      %378 = vmatprep.subr.mxu0 0.0
      %379 = vmatpush1.msra.mxu0 0.0
      %380 = vmatprep.subr.mxu0 0.0
      %381 = vmatpush1.msra.mxu0 0.0
      %382 = vmatprep.subr.mxu0 0.0
      %383 = vmatpush1.msra.mxu0 0.0
      %384 = vmatprep.subr.mxu0 0.0
      %385 = vmatpush1.msra.mxu0 0.0
      %386 = vmatprep.subr.mxu0 0.0
      %387 = vmatpush1.msra.mxu0 0.0
      %388 = vmatprep.subr.mxu0 0.0
      %389 = vmatpush1.msra.mxu0 0.0
      %390 = vmatprep.subr.mxu0 0.0
      %391 = vmatpush1.msra.mxu0 0.0
      %392 = vmatprep.subr.mxu0 0.0
      %393 = vmatpush1.msra.mxu0 0.0
      %394 = vmatprep.subr.mxu0 0.0
      %395 = vmatpush1.msra.mxu0 0.0
      %396 = vmatprep.subr.mxu0 0.0
      %397 = vmatpush1.msra.mxu0 0.0
      %398 = vmatprep.subr.mxu0 0.0
      %399 = vmatpush1.msra.mxu0 0.0
      %400 = vmatprep.subr.mxu0 0.0
      %401 = vmatpush1.msra.mxu0 0.0
      %402 = vmatprep.mubr.f32.mxu0 0.0
      %403 = vmatmul.mubr.f32.gmra.mrb[0].mxu0 %v336
      %v404 = vpop.f32.mrb[0].mxu0
      %v405 = vadd.f32 0.0, %v404
      %v406 = vpop.f32.mrb[0].mxu0
      %407 = vdwg.mxu0
      %v408 = vadd.f32 %v329, %v405
      %vm409 = vcmask 1044480
      %v410 = vrot.slane %v169, 3
      %v411 = vrot.slane %v170, 3
      %v412 = vsel %vm409, %v410, %v411
      %v413 = vsel %vm187, %v412, 0
      %415 = vmatprep.subr.mxu0 0.0
      %416 = vmatpush1.msra.mxu0 %v177
      %417 = vmatprep.subr.mxu0 0.0
      %418 = vmatpush1.msra.mxu0 %v178
      %419 = vmatprep.subr.mxu0 0.0
      %420 = vmatpush1.msra.mxu0 0.0
      %421 = vmatprep.subr.mxu0 0.0
      %422 = vmatpush1.msra.mxu0 0.0
      %423 = vmatprep.subr.mxu0 0.0
      %424 = vmatpush1.msra.mxu0 0.0
      %425 = vmatprep.subr.mxu0 0.0
      %426 = vmatpush1.msra.mxu0 0.0
      %427 = vmatprep.subr.mxu0 0.0
      %428 = vmatpush1.msra.mxu0 0.0
      %429 = vmatprep.subr.mxu0 0.0
      %430 = vmatpush1.msra.mxu0 0.0
      %431 = vmatprep.subr.mxu0 0.0
      %432 = vmatpush1.msra.mxu0 0.0
      %433 = vmatprep.subr.mxu0 0.0
      %434 = vmatpush1.msra.mxu0 0.0
      %435 = vmatprep.subr.mxu0 0.0
      %436 = vmatpush1.msra.mxu0 0.0
      %437 = vmatprep.subr.mxu0 0.0
      %438 = vmatpush1.msra.mxu0 0.0
      %439 = vmatprep.subr.mxu0 0.0
      %440 = vmatpush1.msra.mxu0 0.0
      %441 = vmatprep.subr.mxu0 0.0
      %442 = vmatpush1.msra.mxu0 0.0
      %443 = vmatprep.subr.mxu0 0.0
      %444 = vmatpush1.msra.mxu0 0.0
      %445 = vmatprep.subr.mxu0 0.0
      %446 = vmatpush1.msra.mxu0 0.0
      %447 = vmatprep.subr.mxu0 0.0
      %448 = vmatpush1.msra.mxu0 0.0
      %449 = vmatprep.subr.mxu0 0.0
      %450 = vmatpush1.msra.mxu0 0.0
      %451 = vmatprep.subr.mxu0 0.0
      %452 = vmatpush1.msra.mxu0 0.0
      %453 = vmatprep.subr.mxu0 0.0
      %454 = vmatpush1.msra.mxu0 0.0
      %455 = vmatprep.subr.mxu0 0.0
      %456 = vmatpush1.msra.mxu0 0.0
      %457 = vmatprep.subr.mxu0 0.0
      %458 = vmatpush1.msra.mxu0 0.0
      %459 = vmatprep.subr.mxu0 0.0
      %460 = vmatpush1.msra.mxu0 0.0
      %461 = vmatprep.subr.mxu0 0.0
      %462 = vmatpush1.msra.mxu0 0.0
      %463 = vmatprep.subr.mxu0 0.0
      %464 = vmatpush1.msra.mxu0 0.0
      %465 = vmatprep.subr.mxu0 0.0
      %466 = vmatpush1.msra.mxu0 0.0
      %467 = vmatprep.subr.mxu0 0.0
      %468 = vmatpush1.msra.mxu0 0.0
      %469 = vmatprep.subr.mxu0 0.0
      %470 = vmatpush1.msra.mxu0 0.0
      %471 = vmatprep.subr.mxu0 0.0
      %472 = vmatpush1.msra.mxu0 0.0
      %473 = vmatprep.subr.mxu0 0.0
      %474 = vmatpush1.msra.mxu0 0.0
      %475 = vmatprep.subr.mxu0 0.0
      %476 = vmatpush1.msra.mxu0 0.0
      %477 = vmatprep.subr.mxu0 0.0
      %478 = vmatpush1.msra.mxu0 0.0
      %479 = vmatprep.mubr.f32.mxu0 0.0
      %480 = vmatmul.mubr.f32.gmra.mrb[0].mxu0 %v413
      %v481 = vpop.f32.mrb[0].mxu0
      %v482 = vadd.f32 0.0, %v481
      %v483 = vpop.f32.mrb[0].mxu0
      %484 = vdwg.mxu0
      %v485 = vadd.f32 %v408, %v482
      %vm486 = vcmask 1043456
      %v487 = vrot.slane %v169, 4
      %v488 = vrot.slane %v170, 4
      %v489 = vsel %vm486, %v487, %v488
      %v490 = vsel %vm187, %v489, 0
      %492 = vmatprep.subr.mxu0 0.0
      %493 = vmatpush1.msra.mxu0 %v179
      %494 = vmatprep.subr.mxu0 0.0
      %495 = vmatpush1.msra.mxu0 %v180
      %496 = vmatprep.subr.mxu0 0.0
      %497 = vmatpush1.msra.mxu0 0.0
      %498 = vmatprep.subr.mxu0 0.0
      %499 = vmatpush1.msra.mxu0 0.0
      %500 = vmatprep.subr.mxu0 0.0
      %501 = vmatpush1.msra.mxu0 0.0
      %502 = vmatprep.subr.mxu0 0.0
      %503 = vmatpush1.msra.mxu0 0.0
      %504 = vmatprep.subr.mxu0 0.0
      %505 = vmatpush1.msra.mxu0 0.0
      %506 = vmatprep.subr.mxu0 0.0
      %507 = vmatpush1.msra.mxu0 0.0
      %508 = vmatprep.subr.mxu0 0.0
      %509 = vmatpush1.msra.mxu0 0.0
      %510 = vmatprep.subr.mxu0 0.0
      %511 = vmatpush1.msra.mxu0 0.0
      %512 = vmatprep.subr.mxu0 0.0
      %513 = vmatpush1.msra.mxu0 0.0
      %514 = vmatprep.subr.mxu0 0.0
      %515 = vmatpush1.msra.mxu0 0.0
      %516 = vmatprep.subr.mxu0 0.0
      %517 = vmatpush1.msra.mxu0 0.0
      %518 = vmatprep.subr.mxu0 0.0
      %519 = vmatpush1.msra.mxu0 0.0
      %520 = vmatprep.subr.mxu0 0.0
      %521 = vmatpush1.msra.mxu0 0.0
      %522 = vmatprep.subr.mxu0 0.0
      %523 = vmatpush1.msra.mxu0 0.0
      %524 = vmatprep.subr.mxu0 0.0
      %525 = vmatpush1.msra.mxu0 0.0
      %526 = vmatprep.subr.mxu0 0.0
      %527 = vmatpush1.msra.mxu0 0.0
      %528 = vmatprep.subr.mxu0 0.0
      %529 = vmatpush1.msra.mxu0 0.0
      %530 = vmatprep.subr.mxu0 0.0
      %531 = vmatpush1.msra.mxu0 0.0
      %532 = vmatprep.subr.mxu0 0.0
      %533 = vmatpush1.msra.mxu0 0.0
      %534 = vmatprep.subr.mxu0 0.0
      %535 = vmatpush1.msra.mxu0 0.0
      %536 = vmatprep.subr.mxu0 0.0
      %537 = vmatpush1.msra.mxu0 0.0
      %538 = vmatprep.subr.mxu0 0.0
      %539 = vmatpush1.msra.mxu0 0.0
      %540 = vmatprep.subr.mxu0 0.0
      %541 = vmatpush1.msra.mxu0 0.0
      %542 = vmatprep.subr.mxu0 0.0
      %543 = vmatpush1.msra.mxu0 0.0
      %544 = vmatprep.subr.mxu0 0.0
      %545 = vmatpush1.msra.mxu0 0.0
      %546 = vmatprep.subr.mxu0 0.0
      %547 = vmatpush1.msra.mxu0 0.0
      %548 = vmatprep.subr.mxu0 0.0
      %549 = vmatpush1.msra.mxu0 0.0
      %550 = vmatprep.subr.mxu0 0.0
      %551 = vmatpush1.msra.mxu0 0.0
      %552 = vmatprep.subr.mxu0 0.0
      %553 = vmatpush1.msra.mxu0 0.0
      %554 = vmatprep.subr.mxu0 0.0
      %555 = vmatpush1.msra.mxu0 0.0
      %556 = vmatprep.mubr.f32.mxu0 0.0
      %557 = vmatmul.mubr.f32.gmra.mrb[0].mxu0 %v490
      %v558 = vpop.f32.mrb[0].mxu0
      %v559 = vadd.f32 0.0, %v558
      %v560 = vpop.f32.mrb[0].mxu0
      %561 = vdwg.mxu0
      %v562 = vadd.f32 %v485, %v559
      %v563 = vld [vmem:[%s2] sm:$0x1]
      %v565 = vlaneseq
      %v566 = vshrl.u32 %v565, 7
      %v567 = vsub.s32 0, %v566
      %v568 = vrot.slane %v563, %v567
      %v570 = vadd.f32 %v562, %v568
      %v571 = vtanh.pop %v570
      %vm572 = vcmask 261120
      %573 = vst.msk [vmem:[%s168] sm:$0xff] %vm572, %v571
      %p574 = scmp.lt.s32.totalorder %s14, 1
      %s575 = scalar_select %p574, %s14, 1
      %s576 = smul.addr %s575, 8
      %s577 = scalar_lea.vmem %s3, %s576
      // Predicated region
      $region33: #{transformer_tts_forward.95} parent=31 // pred_check
        %p578 = pneg %p100
      $region34: #{transformer_tts_forward.95} parent=31 // pred_check_branch
        %580 = sbr.rel (%p578) target = $region36
      $region35: #{transformer_tts_forward.95} parent=31 // pred_region
        _
      $region36: #{transformer_tts_forward.95} parent=31 // pred_fallthru
        _
    $region32: #{transformer_tts_forward.95} parent=5 // pred_fallthru
      _
    %p581 = scmp.le.s32.totalorder 2, %s9
    // Predicated region
    $region37: #{transformer_tts_forward.95} parent=5 // pred_check
      %p582 = pneg %p581
    $region38: #{transformer_tts_forward.95} parent=5 // pred_check_branch
      %584 = sbr.rel (%p582) target = $region40
    $region39: #{transformer_tts_forward.95} parent=5 // pred_region
      %s585 = ssub.s32 %s9, 2
      // Predicated region
      $region41: #{transformer_tts_forward.95} parent=39 // pred_check
        %p586 = pneg %p106
      $region42: #{transformer_tts_forward.95} parent=39 // pred_check_branch
        %588 = sbr.rel (%p586) target = $region44
      $region43: #{transformer_tts_forward.95} parent=39 // pred_region
        %p589 = scmp.lt.s32.totalorder %s15, 1
        %s590 = scalar_select %p589, %s15, 1
        %s591 = smul.addr %s590, 8
        %s592 = scalar_lea.vmem %s3, %s591
      $region44: #{transformer_tts_forward.95} parent=39 // pred_fallthru
        _
    $region40: #{transformer_tts_forward.95} parent=5 // pred_fallthru
      _
  $region6: #{transformer_tts_forward.95} parent=0 // loop_footer
    %s13 = sadd.s32 1, %s9
  $region7: #{transformer_tts_forward.95} parent=0 // loop_footer_branch
    %8 = sbr.rel target = $region3
  $region8: #{transformer_tts_forward.95} parent=0 // loop_exit
    _

// kernel: transformer_tts_forward.96
$region0: #{transformer_tts_forward.96}
  #allocation0 [shape = 'u32[]', space=smem, size = 0x4, offset = 0x4, fixed_abs, tag = 'smem constant byte address 0x4 - core index']
  #allocation1 [shape = 'u32[144,128]{1,0:T(1,128)}', space=vmem, size = 0x12000, scoped, tag = 'internal scratch']
  %s0 = inlined_call_operand.vmem [shape: f32[2,12,32], index: 0, kind: input, shape index: {}]
  %s1 = inlined_call_operand.vmem [shape: f32[5,32,32], index: 1, kind: input, shape index: {}]
  %s2 = inlined_call_operand.vmem [shape: f32[1,32], index: 2, kind: input, shape index: {}]
  %s3 = inlined_call_operand.vmem [shape: f32[2,8,32], index: 3, kind: output, shape index: {}]
  %s4 = sld [smem:[#allocation0]]
  $region45: #{transformer_tts_forward.96} parent=0
    _
  %s6 = ssub.s32 1, %s4
  %s7 = scalar_select 0, %s6, %s4
  loop: start=0, step=1, limit=4
  $region2: #{transformer_tts_forward.96} parent=0 // loop_pre_header
    _
  $region3: #{transformer_tts_forward.96} parent=0 // loop_header
    %s9 = sphi 0, %s13
    %p10 = scmp.ge.s32.totalorder %s9, 4
    %s19 = sphi 0, %s21
    %s22 = sphi 0, %s19
    %s23 = sphi 0, %s22
    %s39 = sphi 0, %s23
    %s43 = sphi 0, %s43
    %s45 = sphi 0, %s43
    %s46 = sphi 0, %s45
    %s60 = sphi 0, %s46
    %s64 = sphi 0, %s64
    %s66 = sphi 0, %s64
    %s67 = sphi 0, %s66
    %s81 = sphi 0, %s67
    %s87 = sphi 0, %s89
    %s90 = sphi 0, %s87
    %s91 = sphi 0, %s90
    %s107 = sphi 0, %s91
  $region4: #{transformer_tts_forward.96} parent=0 // loop_header_branch
    %12 = sbr.rel (%p10) target = $region8
  $region5: #{transformer_tts_forward.96} parent=0 // loop_body
    %s14 = ssub.s32 %s9, 1
    %s15 = ssub.s32 %s9, 2
    %s16 = sadd.s32 %s9, 1
    %s17 = ssub.s32 %s9, %s16
    %p18 = scmp.eq.s32.totalorder %s17, 0
    %s20 = sadd.s32 %s19, 1
    %s21 = scalar_select %p18, %s19, %s20
    %p24 = pneg %p18
    %p25 = scmp.eq.s32.totalorder %s9, 1
    %p26 = por %p24, %p25
    %p27 = scmp.ne.s32.totalorder %s19, %s22
    %p28 = scmp.eq.s32.totalorder %s9, 0
    %p29 = por %p27, %p28
    %p30 = scmp.ne.s32.totalorder %s19, %s22
    %p31 = scmp.eq.s32.totalorder %s14, 1
    %p32 = por %p30, %p31
    %p33 = scmp.ne.s32.totalorder %s22, %s23
    %p34 = scmp.eq.s32.totalorder %s14, 0
    %p35 = por %p33, %p34
    %p36 = scmp.ne.s32.totalorder %s22, %s23
    %p37 = scmp.eq.s32.totalorder %s15, 1
    %p38 = por %p36, %p37
    %p40 = scmp.ne.s32.totalorder %s23, %s39
    %p41 = scmp.eq.s32.totalorder %s15, 0
    %p42 = por %p40, %p41
    %s44 = sadd.s32 %s43, 1
    %p47 = scmp.eq.s32.totalorder %s9, 1
    %p48 = scmp.ne.s32.totalorder %s43, %s45
    %p49 = scmp.eq.s32.totalorder %s9, 0
    %p50 = por %p48, %p49
    %p51 = scmp.ne.s32.totalorder %s43, %s45
    %p52 = scmp.eq.s32.totalorder %s14, 1
    %p53 = por %p51, %p52
    %p54 = scmp.ne.s32.totalorder %s45, %s46
    %p55 = scmp.eq.s32.totalorder %s14, 0
    %p56 = por %p54, %p55
    %p57 = scmp.ne.s32.totalorder %s45, %s46
    %p58 = scmp.eq.s32.totalorder %s15, 1
    %p59 = por %p57, %p58
    %p61 = scmp.ne.s32.totalorder %s46, %s60
    %p62 = scmp.eq.s32.totalorder %s15, 0
    %p63 = por %p61, %p62
    %s65 = sadd.s32 %s64, 1
    %p68 = scmp.eq.s32.totalorder %s9, 1
    %p69 = scmp.ne.s32.totalorder %s64, %s66
    %p70 = scmp.eq.s32.totalorder %s9, 0
    %p71 = por %p69, %p70
    %p72 = scmp.ne.s32.totalorder %s64, %s66
    %p73 = scmp.eq.s32.totalorder %s14, 1
    %p74 = por %p72, %p73
    %p75 = scmp.ne.s32.totalorder %s66, %s67
    %p76 = scmp.eq.s32.totalorder %s14, 0
    %p77 = por %p75, %p76
    %p78 = scmp.ne.s32.totalorder %s66, %s67
    %p79 = scmp.eq.s32.totalorder %s15, 1
    %p80 = por %p78, %p79
    %p82 = scmp.ne.s32.totalorder %s67, %s81
    %p83 = scmp.eq.s32.totalorder %s15, 0
    %p84 = por %p82, %p83
    %s85 = ssub.s32 %s9, %s16
    %p86 = scmp.eq.s32.totalorder %s85, 0
    %s88 = sadd.s32 %s87, 1
    %s89 = scalar_select %p86, %s87, %s88
    %p92 = pneg %p86
    %p93 = scmp.eq.s32.totalorder %s9, 1
    %p94 = por %p92, %p93
    %p95 = scmp.ne.s32.totalorder %s87, %s90
    %p96 = scmp.eq.s32.totalorder %s9, 0
    %p97 = por %p95, %p96
    %p98 = scmp.ne.s32.totalorder %s87, %s90
    %p99 = scmp.eq.s32.totalorder %s14, 1
    %p100 = por %p98, %p99
    %p101 = scmp.ne.s32.totalorder %s90, %s91
    %p102 = scmp.eq.s32.totalorder %s14, 0
    %p103 = por %p101, %p102
    %p104 = scmp.ne.s32.totalorder %s90, %s91
    %p105 = scmp.eq.s32.totalorder %s15, 1
    %p106 = por %p104, %p105
    %p108 = scmp.ne.s32.totalorder %s91, %s107
    %p109 = scmp.eq.s32.totalorder %s15, 0
    %p110 = por %p108, %p109
    %p111 = scmp.le.s32.totalorder 1, %s9
    %p112 = scmp.lt.s32.totalorder %s9, 3
    %p113 = pnand %p111, %p112
    %p114 = pneg %p113
    // Predicated region
    $region9: #{transformer_tts_forward.96} parent=5 // pred_check
      _
    $region10: #{transformer_tts_forward.96} parent=5 // pred_check_branch
      %116 = sbr.rel (%p113) target = $region12
    $region11: #{transformer_tts_forward.96} parent=5 // pred_region
      %s117 = ssub.s32 %s9, 1
      // Predicated region
      $region13: #{transformer_tts_forward.96} parent=11 // pred_check
        %p118 = pneg %p56
      $region14: #{transformer_tts_forward.96} parent=11 // pred_check_branch
        %120 = sbr.rel (%p118) target = $region16
      $region15: #{transformer_tts_forward.96} parent=11 // pred_region
        _
      $region16: #{transformer_tts_forward.96} parent=11 // pred_fallthru
        _
      // Predicated region
      $region17: #{transformer_tts_forward.96} parent=11 // pred_check
        %p121 = pneg %p77
      $region18: #{transformer_tts_forward.96} parent=11 // pred_check_branch
        %123 = sbr.rel (%p121) target = $region20
      $region19: #{transformer_tts_forward.96} parent=11 // pred_region
        _
      $region20: #{transformer_tts_forward.96} parent=11 // pred_fallthru
        _
    $region12: #{transformer_tts_forward.96} parent=5 // pred_fallthru
      _
    %p124 = scmp.lt.s32.totalorder %s9, 2
    // Predicated region
    $region21: #{transformer_tts_forward.96} parent=5 // pred_check
      %p125 = pneg %p124
    $region22: #{transformer_tts_forward.96} parent=5 // pred_check_branch
      %127 = sbr.rel (%p125) target = $region24
    $region23: #{transformer_tts_forward.96} parent=5 // pred_region
      // Predicated region
      $region25: #{transformer_tts_forward.96} parent=23 // pred_check
        %p128 = pneg %p29
      $region26: #{transformer_tts_forward.96} parent=23 // pred_check_branch
        %130 = sbr.rel (%p128) target = $region28
      $region27: #{transformer_tts_forward.96} parent=23 // pred_region
        %p131 = scmp.lt.s32.totalorder %s9, 1
        %s132 = scalar_select %p131, %s9, 1
        %s133 = smul.addr %s132, 2
        %s134 = smul.addr %s133, 8
        %s135 = scalar_lea.vmem %s0, %s134
      $region28: #{transformer_tts_forward.96} parent=23 // pred_fallthru
        _
    $region24: #{transformer_tts_forward.96} parent=5 // pred_fallthru
      _
    %p136 = scmp.le.s32.totalorder 1, %s9
    %p137 = scmp.lt.s32.totalorder %s9, 3
    %p138 = pnand %p136, %p137
    %p139 = pneg %p138
    // Predicated region
    $region29: #{transformer_tts_forward.96} parent=5 // pred_check
      _
    $region30: #{transformer_tts_forward.96} parent=5 // pred_check_branch
      %141 = sbr.rel (%p138) target = $region32
    $region31: #{transformer_tts_forward.96} parent=5 // pred_region
      %s142 = ssub.s32 %s9, 1
      %p143 = scmp.lt.s32.totalorder %s14, 1
      %s144 = scalar_select %p143, %s14, 1
      %s145 = smul.addr %s144, 2
      %s146 = smul.addr %s145, 8
      %s147 = scalar_lea.vmem %s0, %s146
      %p148 = pneg %p35
      %p149 = pneg %p32
      %p150 = pneg %p56
      %p151 = pneg %p53
      %p152 = pneg %p77
      %p153 = pneg %p74
      %p154 = pneg %p103
      %p155 = pneg %p100
      %p156 = scmp.lt.s32.totalorder %s14, 1
      %s157 = scalar_select %p156, %s14, 1
      %s158 = smul.addr %s157, 8
      %s159 = scalar_lea.vmem %s3, %s158
      %p160 = scmp.lt.s32.totalorder %s14, 1
      %s161 = scalar_select %p160, %s14, 1
      %s162 = smul.addr %s161, 2
      %s163 = smul.addr %s162, 8
      %s164 = scalar_lea.vmem %s0, %s163
      %p165 = scmp.lt.s32.totalorder %s14, 1
      %s166 = scalar_select %p165, %s14, 1
      %s167 = smul.addr %s166, 8
      %s168 = scalar_lea.vmem %s3, %s167
      %v169 = vld [vmem:[%s164] sm:$0xff]
      %v170 = vld [vmem:[%s164 + $0x8] sm:$0xf]
      %v171 = vld [vmem:[%s1] sm:$0xff]
      %v172 = vld [vmem:[%s1 + $0x8] sm:$0xff]
      %v173 = vld [vmem:[%s1 + $0x10] sm:$0xff]
      %v174 = vld [vmem:[%s1 + $0x18] sm:$0xff]
      %v175 = vld [vmem:[%s1 + $0x20] sm:$0xff]
      %v176 = vld [vmem:[%s1 + $0x28] sm:$0xff]
      %v177 = vld [vmem:[%s1 + $0x30] sm:$0xff]
      %v178 = vld [vmem:[%s1 + $0x38] sm:$0xff]
      %v179 = vld [vmem:[%s1 + $0x40] sm:$0xff]
      %v180 = vld [vmem:[%s1 + $0x48] sm:$0xff]
      %v181 = vld [vmem:[%s1 + $0x50] sm:$0xff]
      %v182 = vld [vmem:[%s1 + $0x58] sm:$0xff]
      %v183 = vld [vmem:[%s1 + $0x60] sm:$0xff]
      %v184 = vld [vmem:[%s1 + $0x68] sm:$0xff]
      %v185 = vld [vmem:[%s1 + $0x70] sm:$0xff]
      %v186 = vld [vmem:[%s1 + $0x78] sm:$0xff]
      %v187 = vld [vmem:[%s1 + $0x80] sm:$0xff]
      %v188 = vld [vmem:[%s1 + $0x88] sm:$0xff]
      %v189 = vld [vmem:[%s1 + $0x90] sm:$0xff]
      %v190 = vld [vmem:[%s1 + $0x98] sm:$0xff]
      %vm193 = vcmask 1046528
      %v194 = vrot.slane %v169, 1
      %v195 = vrot.slane %v170, 1
      %v196 = vsel %vm193, %v194, %v195
      %vm197 = vcmask 261120
      %v198 = vsel %vm197, %v196, 0
      %200 = vmatprep.subr.mxu0 0.0
      %201 = vmatpush1.msra.mxu0 %v175
      %202 = vmatprep.subr.mxu0 0.0
      %203 = vmatpush1.msra.mxu0 %v176
      %204 = vmatprep.subr.mxu0 0.0
      %205 = vmatpush1.msra.mxu0 %v177
      %206 = vmatprep.subr.mxu0 0.0
      %207 = vmatpush1.msra.mxu0 %v178
      %208 = vmatprep.subr.mxu0 0.0
      %209 = vmatpush1.msra.mxu0 0.0
      %210 = vmatprep.subr.mxu0 0.0
      %211 = vmatpush1.msra.mxu0 0.0
      %212 = vmatprep.subr.mxu0 0.0
      %213 = vmatpush1.msra.mxu0 0.0
      %214 = vmatprep.subr.mxu0 0.0
      %215 = vmatpush1.msra.mxu0 0.0
      %216 = vmatprep.subr.mxu0 0.0
      %217 = vmatpush1.msra.mxu0 0.0
      %218 = vmatprep.subr.mxu0 0.0
      %219 = vmatpush1.msra.mxu0 0.0
      %220 = vmatprep.subr.mxu0 0.0
      %221 = vmatpush1.msra.mxu0 0.0
      %222 = vmatprep.subr.mxu0 0.0
      %223 = vmatpush1.msra.mxu0 0.0
      %224 = vmatprep.subr.mxu0 0.0
      %225 = vmatpush1.msra.mxu0 0.0
      %226 = vmatprep.subr.mxu0 0.0
      %227 = vmatpush1.msra.mxu0 0.0
      %228 = vmatprep.subr.mxu0 0.0
      %229 = vmatpush1.msra.mxu0 0.0
      %230 = vmatprep.subr.mxu0 0.0
      %231 = vmatpush1.msra.mxu0 0.0
      %232 = vmatprep.subr.mxu0 0.0
      %233 = vmatpush1.msra.mxu0 0.0
      %234 = vmatprep.subr.mxu0 0.0
      %235 = vmatpush1.msra.mxu0 0.0
      %236 = vmatprep.subr.mxu0 0.0
      %237 = vmatpush1.msra.mxu0 0.0
      %238 = vmatprep.subr.mxu0 0.0
      %239 = vmatpush1.msra.mxu0 0.0
      %240 = vmatprep.subr.mxu0 0.0
      %241 = vmatpush1.msra.mxu0 0.0
      %242 = vmatprep.subr.mxu0 0.0
      %243 = vmatpush1.msra.mxu0 0.0
      %244 = vmatprep.subr.mxu0 0.0
      %245 = vmatpush1.msra.mxu0 0.0
      %246 = vmatprep.subr.mxu0 0.0
      %247 = vmatpush1.msra.mxu0 0.0
      %248 = vmatprep.subr.mxu0 0.0
      %249 = vmatpush1.msra.mxu0 0.0
      %250 = vmatprep.subr.mxu0 0.0
      %251 = vmatpush1.msra.mxu0 0.0
      %252 = vmatprep.subr.mxu0 0.0
      %253 = vmatpush1.msra.mxu0 0.0
      %254 = vmatprep.subr.mxu0 0.0
      %255 = vmatpush1.msra.mxu0 0.0
      %256 = vmatprep.subr.mxu0 0.0
      %257 = vmatpush1.msra.mxu0 0.0
      %258 = vmatprep.subr.mxu0 0.0
      %259 = vmatpush1.msra.mxu0 0.0
      %260 = vmatprep.subr.mxu0 0.0
      %261 = vmatpush1.msra.mxu0 0.0
      %262 = vmatprep.subr.mxu0 0.0
      %263 = vmatpush1.msra.mxu0 0.0
      %264 = vmatprep.mubr.f32.mxu0 0.0
      %265 = vmatmul.mubr.f32.gmra.mrb[0].mxu0 %v198
      %v266 = vpop.f32.mrb[0].mxu0
      %v267 = vadd.f32 0.0, %v266
      %v268 = vpop.f32.mrb[0].mxu0
      %269 = vdwg.mxu0
      %v270 = vsel %vm197, %v169, 0
      %272 = vmatprep.subr.mxu0 0.0
      %273 = vmatpush1.msra.mxu0 %v171
      %274 = vmatprep.subr.mxu0 0.0
      %275 = vmatpush1.msra.mxu0 %v172
      %276 = vmatprep.subr.mxu0 0.0
      %277 = vmatpush1.msra.mxu0 %v173
      %278 = vmatprep.subr.mxu0 0.0
      %279 = vmatpush1.msra.mxu0 %v174
      %280 = vmatprep.subr.mxu0 0.0
      %281 = vmatpush1.msra.mxu0 0.0
      %282 = vmatprep.subr.mxu0 0.0
      %283 = vmatpush1.msra.mxu0 0.0
      %284 = vmatprep.subr.mxu0 0.0
      %285 = vmatpush1.msra.mxu0 0.0
      %286 = vmatprep.subr.mxu0 0.0
      %287 = vmatpush1.msra.mxu0 0.0
      %288 = vmatprep.subr.mxu0 0.0
      %289 = vmatpush1.msra.mxu0 0.0
      %290 = vmatprep.subr.mxu0 0.0
      %291 = vmatpush1.msra.mxu0 0.0
      %292 = vmatprep.subr.mxu0 0.0
      %293 = vmatpush1.msra.mxu0 0.0
      %294 = vmatprep.subr.mxu0 0.0
      %295 = vmatpush1.msra.mxu0 0.0
      %296 = vmatprep.subr.mxu0 0.0
      %297 = vmatpush1.msra.mxu0 0.0
      %298 = vmatprep.subr.mxu0 0.0
      %299 = vmatpush1.msra.mxu0 0.0
      %300 = vmatprep.subr.mxu0 0.0
      %301 = vmatpush1.msra.mxu0 0.0
      %302 = vmatprep.subr.mxu0 0.0
      %303 = vmatpush1.msra.mxu0 0.0
      %304 = vmatprep.subr.mxu0 0.0
      %305 = vmatpush1.msra.mxu0 0.0
      %306 = vmatprep.subr.mxu0 0.0
      %307 = vmatpush1.msra.mxu0 0.0
      %308 = vmatprep.subr.mxu0 0.0
      %309 = vmatpush1.msra.mxu0 0.0
      %310 = vmatprep.subr.mxu0 0.0
      %311 = vmatpush1.msra.mxu0 0.0
      %312 = vmatprep.subr.mxu0 0.0
      %313 = vmatpush1.msra.mxu0 0.0
      %314 = vmatprep.subr.mxu0 0.0
      %315 = vmatpush1.msra.mxu0 0.0
      %316 = vmatprep.subr.mxu0 0.0
      %317 = vmatpush1.msra.mxu0 0.0
      %318 = vmatprep.subr.mxu0 0.0
      %319 = vmatpush1.msra.mxu0 0.0
      %320 = vmatprep.subr.mxu0 0.0
      %321 = vmatpush1.msra.mxu0 0.0
      %322 = vmatprep.subr.mxu0 0.0
      %323 = vmatpush1.msra.mxu0 0.0
      %324 = vmatprep.subr.mxu0 0.0
      %325 = vmatpush1.msra.mxu0 0.0
      %326 = vmatprep.subr.mxu0 0.0
      %327 = vmatpush1.msra.mxu0 0.0
      %328 = vmatprep.subr.mxu0 0.0
      %329 = vmatpush1.msra.mxu0 0.0
      %330 = vmatprep.subr.mxu0 0.0
      %331 = vmatpush1.msra.mxu0 0.0
      %332 = vmatprep.subr.mxu0 0.0
      %333 = vmatpush1.msra.mxu0 0.0
      %334 = vmatprep.subr.mxu0 0.0
      %335 = vmatpush1.msra.mxu0 0.0
      %336 = vmatprep.mubr.f32.mxu0 0.0
      %337 = vmatmul.mubr.f32.gmra.mrb[0].mxu0 %v270
      %v338 = vpop.f32.mrb[0].mxu0
      %v339 = vadd.f32 %v267, %v338
      %v340 = vpop.f32.mrb[0].mxu0
      %341 = vdwg.mxu0
      %vm342 = vcmask 1045504
      %v343 = vrot.slane %v169, 2
      %v344 = vrot.slane %v170, 2
      %v345 = vsel %vm342, %v343, %v344
      %v346 = vsel %vm197, %v345, 0
      %348 = vmatprep.subr.mxu0 0.0
      %349 = vmatpush1.msra.mxu0 %v179
      %350 = vmatprep.subr.mxu0 0.0
      %351 = vmatpush1.msra.mxu0 %v180
      %352 = vmatprep.subr.mxu0 0.0
      %353 = vmatpush1.msra.mxu0 %v181
      %354 = vmatprep.subr.mxu0 0.0
      %355 = vmatpush1.msra.mxu0 %v182
      %356 = vmatprep.subr.mxu0 0.0
      %357 = vmatpush1.msra.mxu0 0.0
      %358 = vmatprep.subr.mxu0 0.0
      %359 = vmatpush1.msra.mxu0 0.0
      %360 = vmatprep.subr.mxu0 0.0
      %361 = vmatpush1.msra.mxu0 0.0
      %362 = vmatprep.subr.mxu0 0.0
      %363 = vmatpush1.msra.mxu0 0.0
      %364 = vmatprep.subr.mxu0 0.0
      %365 = vmatpush1.msra.mxu0 0.0
      %366 = vmatprep.subr.mxu0 0.0
      %367 = vmatpush1.msra.mxu0 0.0
      %368 = vmatprep.subr.mxu0 0.0
      %369 = vmatpush1.msra.mxu0 0.0
      %370 = vmatprep.subr.mxu0 0.0
      %371 = vmatpush1.msra.mxu0 0.0
      %372 = vmatprep.subr.mxu0 0.0
      %373 = vmatpush1.msra.mxu0 0.0
      %374 = vmatprep.subr.mxu0 0.0
      %375 = vmatpush1.msra.mxu0 0.0
      %376 = vmatprep.subr.mxu0 0.0
      %377 = vmatpush1.msra.mxu0 0.0
      %378 = vmatprep.subr.mxu0 0.0
      %379 = vmatpush1.msra.mxu0 0.0
      %380 = vmatprep.subr.mxu0 0.0
      %381 = vmatpush1.msra.mxu0 0.0
      %382 = vmatprep.subr.mxu0 0.0
      %383 = vmatpush1.msra.mxu0 0.0
      %384 = vmatprep.subr.mxu0 0.0
      %385 = vmatpush1.msra.mxu0 0.0
      %386 = vmatprep.subr.mxu0 0.0
      %387 = vmatpush1.msra.mxu0 0.0
      %388 = vmatprep.subr.mxu0 0.0
      %389 = vmatpush1.msra.mxu0 0.0
      %390 = vmatprep.subr.mxu0 0.0
      %391 = vmatpush1.msra.mxu0 0.0
      %392 = vmatprep.subr.mxu0 0.0
      %393 = vmatpush1.msra.mxu0 0.0
      %394 = vmatprep.subr.mxu0 0.0
      %395 = vmatpush1.msra.mxu0 0.0
      %396 = vmatprep.subr.mxu0 0.0
      %397 = vmatpush1.msra.mxu0 0.0
      %398 = vmatprep.subr.mxu0 0.0
      %399 = vmatpush1.msra.mxu0 0.0
      %400 = vmatprep.subr.mxu0 0.0
      %401 = vmatpush1.msra.mxu0 0.0
      %402 = vmatprep.subr.mxu0 0.0
      %403 = vmatpush1.msra.mxu0 0.0
      %404 = vmatprep.subr.mxu0 0.0
      %405 = vmatpush1.msra.mxu0 0.0
      %406 = vmatprep.subr.mxu0 0.0
      %407 = vmatpush1.msra.mxu0 0.0
      %408 = vmatprep.subr.mxu0 0.0
      %409 = vmatpush1.msra.mxu0 0.0
      %410 = vmatprep.subr.mxu0 0.0
      %411 = vmatpush1.msra.mxu0 0.0
      %412 = vmatprep.mubr.f32.mxu0 0.0
      %413 = vmatmul.mubr.f32.gmra.mrb[0].mxu0 %v346
      %v414 = vpop.f32.mrb[0].mxu0
      %v415 = vadd.f32 0.0, %v414
      %v416 = vpop.f32.mrb[0].mxu0
      %417 = vdwg.mxu0
      %v418 = vadd.f32 %v339, %v415
      %vm419 = vcmask 1044480
      %v420 = vrot.slane %v169, 3
      %v421 = vrot.slane %v170, 3
      %v422 = vsel %vm419, %v420, %v421
      %v423 = vsel %vm197, %v422, 0
      %425 = vmatprep.subr.mxu0 0.0
      %426 = vmatpush1.msra.mxu0 %v183
      %427 = vmatprep.subr.mxu0 0.0
      %428 = vmatpush1.msra.mxu0 %v184
      %429 = vmatprep.subr.mxu0 0.0
      %430 = vmatpush1.msra.mxu0 %v185
      %431 = vmatprep.subr.mxu0 0.0
      %432 = vmatpush1.msra.mxu0 %v186
      %433 = vmatprep.subr.mxu0 0.0
      %434 = vmatpush1.msra.mxu0 0.0
      %435 = vmatprep.subr.mxu0 0.0
      %436 = vmatpush1.msra.mxu0 0.0
      %437 = vmatprep.subr.mxu0 0.0
      %438 = vmatpush1.msra.mxu0 0.0
      %439 = vmatprep.subr.mxu0 0.0
      %440 = vmatpush1.msra.mxu0 0.0
      %441 = vmatprep.subr.mxu0 0.0
      %442 = vmatpush1.msra.mxu0 0.0
      %443 = vmatprep.subr.mxu0 0.0
      %444 = vmatpush1.msra.mxu0 0.0
      %445 = vmatprep.subr.mxu0 0.0
      %446 = vmatpush1.msra.mxu0 0.0
      %447 = vmatprep.subr.mxu0 0.0
      %448 = vmatpush1.msra.mxu0 0.0
      %449 = vmatprep.subr.mxu0 0.0
      %450 = vmatpush1.msra.mxu0 0.0
      %451 = vmatprep.subr.mxu0 0.0
      %452 = vmatpush1.msra.mxu0 0.0
      %453 = vmatprep.subr.mxu0 0.0
      %454 = vmatpush1.msra.mxu0 0.0
      %455 = vmatprep.subr.mxu0 0.0
      %456 = vmatpush1.msra.mxu0 0.0
      %457 = vmatprep.subr.mxu0 0.0
      %458 = vmatpush1.msra.mxu0 0.0
      %459 = vmatprep.subr.mxu0 0.0
      %460 = vmatpush1.msra.mxu0 0.0
      %461 = vmatprep.subr.mxu0 0.0
      %462 = vmatpush1.msra.mxu0 0.0
      %463 = vmatprep.subr.mxu0 0.0
      %464 = vmatpush1.msra.mxu0 0.0
      %465 = vmatprep.subr.mxu0 0.0
      %466 = vmatpush1.msra.mxu0 0.0
      %467 = vmatprep.subr.mxu0 0.0
      %468 = vmatpush1.msra.mxu0 0.0
      %469 = vmatprep.subr.mxu0 0.0
      %470 = vmatpush1.msra.mxu0 0.0
      %471 = vmatprep.subr.mxu0 0.0
      %472 = vmatpush1.msra.mxu0 0.0
      %473 = vmatprep.subr.mxu0 0.0
      %474 = vmatpush1.msra.mxu0 0.0
      %475 = vmatprep.subr.mxu0 0.0
      %476 = vmatpush1.msra.mxu0 0.0
      %477 = vmatprep.subr.mxu0 0.0
      %478 = vmatpush1.msra.mxu0 0.0
      %479 = vmatprep.subr.mxu0 0.0
      %480 = vmatpush1.msra.mxu0 0.0
      %481 = vmatprep.subr.mxu0 0.0
      %482 = vmatpush1.msra.mxu0 0.0
      %483 = vmatprep.subr.mxu0 0.0
      %484 = vmatpush1.msra.mxu0 0.0
      %485 = vmatprep.subr.mxu0 0.0
      %486 = vmatpush1.msra.mxu0 0.0
      %487 = vmatprep.subr.mxu0 0.0
      %488 = vmatpush1.msra.mxu0 0.0
      %489 = vmatprep.mubr.f32.mxu0 0.0
      %490 = vmatmul.mubr.f32.gmra.mrb[0].mxu0 %v423
      %v491 = vpop.f32.mrb[0].mxu0
      %v492 = vadd.f32 0.0, %v491
      %v493 = vpop.f32.mrb[0].mxu0
      %494 = vdwg.mxu0
      %v495 = vadd.f32 %v418, %v492
      %vm496 = vcmask 1043456
      %v497 = vrot.slane %v169, 4
      %v498 = vrot.slane %v170, 4
      %v499 = vsel %vm496, %v497, %v498
      %v500 = vsel %vm197, %v499, 0
      %502 = vmatprep.subr.mxu0 0.0
      %503 = vmatpush1.msra.mxu0 %v187
      %504 = vmatprep.subr.mxu0 0.0
      %505 = vmatpush1.msra.mxu0 %v188
      %506 = vmatprep.subr.mxu0 0.0
      %507 = vmatpush1.msra.mxu0 %v189
      %508 = vmatprep.subr.mxu0 0.0
      %509 = vmatpush1.msra.mxu0 %v190
      %510 = vmatprep.subr.mxu0 0.0
      %511 = vmatpush1.msra.mxu0 0.0
      %512 = vmatprep.subr.mxu0 0.0
      %513 = vmatpush1.msra.mxu0 0.0
      %514 = vmatprep.subr.mxu0 0.0
      %515 = vmatpush1.msra.mxu0 0.0
      %516 = vmatprep.subr.mxu0 0.0
      %517 = vmatpush1.msra.mxu0 0.0
      %518 = vmatprep.subr.mxu0 0.0
      %519 = vmatpush1.msra.mxu0 0.0
      %520 = vmatprep.subr.mxu0 0.0
      %521 = vmatpush1.msra.mxu0 0.0
      %522 = vmatprep.subr.mxu0 0.0
      %523 = vmatpush1.msra.mxu0 0.0
      %524 = vmatprep.subr.mxu0 0.0
      %525 = vmatpush1.msra.mxu0 0.0
      %526 = vmatprep.subr.mxu0 0.0
      %527 = vmatpush1.msra.mxu0 0.0
      %528 = vmatprep.subr.mxu0 0.0
      %529 = vmatpush1.msra.mxu0 0.0
      %530 = vmatprep.subr.mxu0 0.0
      %531 = vmatpush1.msra.mxu0 0.0
      %532 = vmatprep.subr.mxu0 0.0
      %533 = vmatpush1.msra.mxu0 0.0
      %534 = vmatprep.subr.mxu0 0.0
      %535 = vmatpush1.msra.mxu0 0.0
      %536 = vmatprep.subr.mxu0 0.0
      %537 = vmatpush1.msra.mxu0 0.0
      %538 = vmatprep.subr.mxu0 0.0
      %539 = vmatpush1.msra.mxu0 0.0
      %540 = vmatprep.subr.mxu0 0.0
      %541 = vmatpush1.msra.mxu0 0.0
      %542 = vmatprep.subr.mxu0 0.0
      %543 = vmatpush1.msra.mxu0 0.0
      %544 = vmatprep.subr.mxu0 0.0
      %545 = vmatpush1.msra.mxu0 0.0
      %546 = vmatprep.subr.mxu0 0.0
      %547 = vmatpush1.msra.mxu0 0.0
      %548 = vmatprep.subr.mxu0 0.0
      %549 = vmatpush1.msra.mxu0 0.0
      %550 = vmatprep.subr.mxu0 0.0
      %551 = vmatpush1.msra.mxu0 0.0
      %552 = vmatprep.subr.mxu0 0.0
      %553 = vmatpush1.msra.mxu0 0.0
      %554 = vmatprep.subr.mxu0 0.0
      %555 = vmatpush1.msra.mxu0 0.0
      %556 = vmatprep.subr.mxu0 0.0
      %557 = vmatpush1.msra.mxu0 0.0
      %558 = vmatprep.subr.mxu0 0.0
      %559 = vmatpush1.msra.mxu0 0.0
      %560 = vmatprep.subr.mxu0 0.0
      %561 = vmatpush1.msra.mxu0 0.0
      %562 = vmatprep.subr.mxu0 0.0
      %563 = vmatpush1.msra.mxu0 0.0
      %564 = vmatprep.subr.mxu0 0.0
      %565 = vmatpush1.msra.mxu0 0.0
      %566 = vmatprep.mubr.f32.mxu0 0.0
      %567 = vmatmul.mubr.f32.gmra.mrb[0].mxu0 %v500
      %v568 = vpop.f32.mrb[0].mxu0
      %v569 = vadd.f32 0.0, %v568
      %v570 = vpop.f32.mrb[0].mxu0
      %571 = vdwg.mxu0
      %v572 = vadd.f32 %v495, %v569
      %v573 = vld [vmem:[%s2] sm:$0x1]
      %v575 = vlaneseq
      %v576 = vshrl.u32 %v575, 7
      %v577 = vsub.s32 0, %v576
      %v578 = vrot.slane %v573, %v577
      %v580 = vadd.f32 %v572, %v578
      %v581 = vtanh.pop %v580
      %582 = vst.msk [vmem:[%s168] sm:$0xff] %vm197, %v581
      %p583 = scmp.lt.s32.totalorder %s14, 1
      %s584 = scalar_select %p583, %s14, 1
      %s585 = smul.addr %s584, 8
      %s586 = scalar_lea.vmem %s3, %s585
      // Predicated region
      $region33: #{transformer_tts_forward.96} parent=31 // pred_check
        %p587 = pneg %p100
      $region34: #{transformer_tts_forward.96} parent=31 // pred_check_branch
        %589 = sbr.rel (%p587) target = $region36
      $region35: #{transformer_tts_forward.96} parent=31 // pred_region
        _
      $region36: #{transformer_tts_forward.96} parent=31 // pred_fallthru
        _
    $region32: #{transformer_tts_forward.96} parent=5 // pred_fallthru
      _
    %p590 = scmp.le.s32.totalorder 2, %s9
    // Predicated region
    $region37: #{transformer_tts_forward.96} parent=5 // pred_check
      %p591 = pneg %p590
    $region38: #{transformer_tts_forward.96} parent=5 // pred_check_branch
      %593 = sbr.rel (%p591) target = $region40
    $region39: #{transformer_tts_forward.96} parent=5 // pred_region
      %s594 = ssub.s32 %s9, 2
      // Predicated region
      $region41: #{transformer_tts_forward.96} parent=39 // pred_check
        %p595 = pneg %p106
      $region42: #{transformer_tts_forward.96} parent=39 // pred_check_branch
        %597 = sbr.rel (%p595) target = $region44
      $region43: #{transformer_tts_forward.96} parent=39 // pred_region
        %p598 = scmp.lt.s32.totalorder %s15, 1
        %s599 = scalar_select %p598, %s15, 1
        %s600 = smul.addr %s599, 8
        %s601 = scalar_lea.vmem %s3, %s600
      $region44: #{transformer_tts_forward.96} parent=39 // pred_fallthru
        _
    $region40: #{transformer_tts_forward.96} parent=5 // pred_fallthru
      _
  $region6: #{transformer_tts_forward.96} parent=0 // loop_footer
    %s13 = sadd.s32 1, %s9
  $region7: #{transformer_tts_forward.96} parent=0 // loop_footer_branch
    %8 = sbr.rel target = $region3
  $region8: #{transformer_tts_forward.96} parent=0 // loop_exit
    _

// kernel: transformer_tts_forward.99
$region0: #{transformer_tts_forward.99}
  #allocation0 [shape = 'u32[]', space=smem, size = 0x4, offset = 0x4, fixed_abs, tag = 'smem constant byte address 0x4 - core index']
  #allocation1 [shape = 'u32[144,128]{1,0:T(1,128)}', space=vmem, size = 0x12000, scoped, tag = 'internal scratch']
  %s0 = inlined_call_operand.vmem [shape: f32[2,12,32], index: 0, kind: input, shape index: {}]
  %s1 = inlined_call_operand.vmem [shape: f32[5,32,16], index: 1, kind: input, shape index: {}]
  %s2 = inlined_call_operand.vmem [shape: f32[1,16], index: 2, kind: input, shape index: {}]
  %s3 = inlined_call_operand.vmem [shape: f32[2,8,16], index: 3, kind: output, shape index: {}]
  %s4 = sld [smem:[#allocation0]]
  $region45: #{transformer_tts_forward.99} parent=0
    _
  %s6 = ssub.s32 1, %s4
  %s7 = scalar_select 0, %s6, %s4
  loop: start=0, step=1, limit=4
  $region2: #{transformer_tts_forward.99} parent=0 // loop_pre_header
    _
  $region3: #{transformer_tts_forward.99} parent=0 // loop_header
    %s9 = sphi 0, %s13
    %p10 = scmp.ge.s32.totalorder %s9, 4
    %s19 = sphi 0, %s21
    %s22 = sphi 0, %s19
    %s23 = sphi 0, %s22
    %s39 = sphi 0, %s23
    %s43 = sphi 0, %s43
    %s45 = sphi 0, %s43
    %s46 = sphi 0, %s45
    %s60 = sphi 0, %s46
    %s64 = sphi 0, %s64
    %s66 = sphi 0, %s64
    %s67 = sphi 0, %s66
    %s81 = sphi 0, %s67
    %s87 = sphi 0, %s89
    %s90 = sphi 0, %s87
    %s91 = sphi 0, %s90
    %s107 = sphi 0, %s91
  $region4: #{transformer_tts_forward.99} parent=0 // loop_header_branch
    %12 = sbr.rel (%p10) target = $region8
  $region5: #{transformer_tts_forward.99} parent=0 // loop_body
    %s14 = ssub.s32 %s9, 1
    %s15 = ssub.s32 %s9, 2
    %s16 = sadd.s32 %s9, 1
    %s17 = ssub.s32 %s9, %s16
    %p18 = scmp.eq.s32.totalorder %s17, 0
    %s20 = sadd.s32 %s19, 1
    %s21 = scalar_select %p18, %s19, %s20
    %p24 = pneg %p18
    %p25 = scmp.eq.s32.totalorder %s9, 1
    %p26 = por %p24, %p25
    %p27 = scmp.ne.s32.totalorder %s19, %s22
    %p28 = scmp.eq.s32.totalorder %s9, 0
    %p29 = por %p27, %p28
    %p30 = scmp.ne.s32.totalorder %s19, %s22
    %p31 = scmp.eq.s32.totalorder %s14, 1
    %p32 = por %p30, %p31
    %p33 = scmp.ne.s32.totalorder %s22, %s23
    %p34 = scmp.eq.s32.totalorder %s14, 0
    %p35 = por %p33, %p34
    %p36 = scmp.ne.s32.totalorder %s22, %s23
    %p37 = scmp.eq.s32.totalorder %s15, 1
    %p38 = por %p36, %p37
    %p40 = scmp.ne.s32.totalorder %s23, %s39
    %p41 = scmp.eq.s32.totalorder %s15, 0
    %p42 = por %p40, %p41
    %s44 = sadd.s32 %s43, 1
    %p47 = scmp.eq.s32.totalorder %s9, 1
    %p48 = scmp.ne.s32.totalorder %s43, %s45
    %p49 = scmp.eq.s32.totalorder %s9, 0
    %p50 = por %p48, %p49
    %p51 = scmp.ne.s32.totalorder %s43, %s45
    %p52 = scmp.eq.s32.totalorder %s14, 1
    %p53 = por %p51, %p52
    %p54 = scmp.ne.s32.totalorder %s45, %s46
    %p55 = scmp.eq.s32.totalorder %s14, 0
    %p56 = por %p54, %p55
    %p57 = scmp.ne.s32.totalorder %s45, %s46
    %p58 = scmp.eq.s32.totalorder %s15, 1
    %p59 = por %p57, %p58
    %p61 = scmp.ne.s32.totalorder %s46, %s60
    %p62 = scmp.eq.s32.totalorder %s15, 0
    %p63 = por %p61, %p62
    %s65 = sadd.s32 %s64, 1
    %p68 = scmp.eq.s32.totalorder %s9, 1
    %p69 = scmp.ne.s32.totalorder %s64, %s66
    %p70 = scmp.eq.s32.totalorder %s9, 0
    %p71 = por %p69, %p70
    %p72 = scmp.ne.s32.totalorder %s64, %s66
    %p73 = scmp.eq.s32.totalorder %s14, 1
    %p74 = por %p72, %p73
    %p75 = scmp.ne.s32.totalorder %s66, %s67
    %p76 = scmp.eq.s32.totalorder %s14, 0
    %p77 = por %p75, %p76
    %p78 = scmp.ne.s32.totalorder %s66, %s67
    %p79 = scmp.eq.s32.totalorder %s15, 1
    %p80 = por %p78, %p79
    %p82 = scmp.ne.s32.totalorder %s67, %s81
    %p83 = scmp.eq.s32.totalorder %s15, 0
    %p84 = por %p82, %p83
    %s85 = ssub.s32 %s9, %s16
    %p86 = scmp.eq.s32.totalorder %s85, 0
    %s88 = sadd.s32 %s87, 1
    %s89 = scalar_select %p86, %s87, %s88
    %p92 = pneg %p86
    %p93 = scmp.eq.s32.totalorder %s9, 1
    %p94 = por %p92, %p93
    %p95 = scmp.ne.s32.totalorder %s87, %s90
    %p96 = scmp.eq.s32.totalorder %s9, 0
    %p97 = por %p95, %p96
    %p98 = scmp.ne.s32.totalorder %s87, %s90
    %p99 = scmp.eq.s32.totalorder %s14, 1
    %p100 = por %p98, %p99
    %p101 = scmp.ne.s32.totalorder %s90, %s91
    %p102 = scmp.eq.s32.totalorder %s14, 0
    %p103 = por %p101, %p102
    %p104 = scmp.ne.s32.totalorder %s90, %s91
    %p105 = scmp.eq.s32.totalorder %s15, 1
    %p106 = por %p104, %p105
    %p108 = scmp.ne.s32.totalorder %s91, %s107
    %p109 = scmp.eq.s32.totalorder %s15, 0
    %p110 = por %p108, %p109
    %p111 = scmp.le.s32.totalorder 1, %s9
    %p112 = scmp.lt.s32.totalorder %s9, 3
    %p113 = pnand %p111, %p112
    %p114 = pneg %p113
    // Predicated region
    $region9: #{transformer_tts_forward.99} parent=5 // pred_check
      _
    $region10: #{transformer_tts_forward.99} parent=5 // pred_check_branch
      %116 = sbr.rel (%p113) target = $region12
    $region11: #{transformer_tts_forward.99} parent=5 // pred_region
      %s117 = ssub.s32 %s9, 1
      // Predicated region
      $region13: #{transformer_tts_forward.99} parent=11 // pred_check
        %p118 = pneg %p56
      $region14: #{transformer_tts_forward.99} parent=11 // pred_check_branch
        %120 = sbr.rel (%p118) target = $region16
      $region15: #{transformer_tts_forward.99} parent=11 // pred_region
        _
      $region16: #{transformer_tts_forward.99} parent=11 // pred_fallthru
        _
      // Predicated region
      $region17: #{transformer_tts_forward.99} parent=11 // pred_check
        %p121 = pneg %p77
      $region18: #{transformer_tts_forward.99} parent=11 // pred_check_branch
        %123 = sbr.rel (%p121) target = $region20
      $region19: #{transformer_tts_forward.99} parent=11 // pred_region
        _
      $region20: #{transformer_tts_forward.99} parent=11 // pred_fallthru
        _
    $region12: #{transformer_tts_forward.99} parent=5 // pred_fallthru
      _
    %p124 = scmp.lt.s32.totalorder %s9, 2
    // Predicated region
    $region21: #{transformer_tts_forward.99} parent=5 // pred_check
      %p125 = pneg %p124
    $region22: #{transformer_tts_forward.99} parent=5 // pred_check_branch
      %127 = sbr.rel (%p125) target = $region24
    $region23: #{transformer_tts_forward.99} parent=5 // pred_region
      // Predicated region
      $region25: #{transformer_tts_forward.99} parent=23 // pred_check
        %p128 = pneg %p29
      $region26: #{transformer_tts_forward.99} parent=23 // pred_check_branch
        %130 = sbr.rel (%p128) target = $region28
      $region27: #{transformer_tts_forward.99} parent=23 // pred_region
        %p131 = scmp.lt.s32.totalorder %s9, 1
        %s132 = scalar_select %p131, %s9, 1
        %s133 = smul.addr %s132, 2
        %s134 = smul.addr %s133, 8
        %s135 = scalar_lea.vmem %s0, %s134
      $region28: #{transformer_tts_forward.99} parent=23 // pred_fallthru
        _
    $region24: #{transformer_tts_forward.99} parent=5 // pred_fallthru
      _
    %p136 = scmp.le.s32.totalorder 1, %s9
    %p137 = scmp.lt.s32.totalorder %s9, 3
    %p138 = pnand %p136, %p137
    %p139 = pneg %p138
    // Predicated region
    $region29: #{transformer_tts_forward.99} parent=5 // pred_check
      _
    $region30: #{transformer_tts_forward.99} parent=5 // pred_check_branch
      %141 = sbr.rel (%p138) target = $region32
    $region31: #{transformer_tts_forward.99} parent=5 // pred_region
      %s142 = ssub.s32 %s9, 1
      %p143 = scmp.lt.s32.totalorder %s14, 1
      %s144 = scalar_select %p143, %s14, 1
      %s145 = smul.addr %s144, 2
      %s146 = smul.addr %s145, 8
      %s147 = scalar_lea.vmem %s0, %s146
      %p148 = pneg %p35
      %p149 = pneg %p32
      %p150 = pneg %p56
      %p151 = pneg %p53
      %p152 = pneg %p77
      %p153 = pneg %p74
      %p154 = pneg %p103
      %p155 = pneg %p100
      %p156 = scmp.lt.s32.totalorder %s14, 1
      %s157 = scalar_select %p156, %s14, 1
      %s158 = smul.addr %s157, 8
      %s159 = scalar_lea.vmem %s3, %s158
      %p160 = scmp.lt.s32.totalorder %s14, 1
      %s161 = scalar_select %p160, %s14, 1
      %s162 = smul.addr %s161, 2
      %s163 = smul.addr %s162, 8
      %s164 = scalar_lea.vmem %s0, %s163
      %p165 = scmp.lt.s32.totalorder %s14, 1
      %s166 = scalar_select %p165, %s14, 1
      %s167 = smul.addr %s166, 8
      %s168 = scalar_lea.vmem %s3, %s167
      %v169 = vld [vmem:[%s164] sm:$0xff]
      %v170 = vld [vmem:[%s164 + $0x8] sm:$0xf]
      %v171 = vld [vmem:[%s1] sm:$0xff]
      %v172 = vld [vmem:[%s1 + $0x8] sm:$0xff]
      %v173 = vld [vmem:[%s1 + $0x10] sm:$0xff]
      %v174 = vld [vmem:[%s1 + $0x18] sm:$0xff]
      %v175 = vld [vmem:[%s1 + $0x20] sm:$0xff]
      %v176 = vld [vmem:[%s1 + $0x28] sm:$0xff]
      %v177 = vld [vmem:[%s1 + $0x30] sm:$0xff]
      %v178 = vld [vmem:[%s1 + $0x38] sm:$0xff]
      %v179 = vld [vmem:[%s1 + $0x40] sm:$0xff]
      %v180 = vld [vmem:[%s1 + $0x48] sm:$0xff]
      %v181 = vld [vmem:[%s1 + $0x50] sm:$0xff]
      %v182 = vld [vmem:[%s1 + $0x58] sm:$0xff]
      %v183 = vld [vmem:[%s1 + $0x60] sm:$0xff]
      %v184 = vld [vmem:[%s1 + $0x68] sm:$0xff]
      %v185 = vld [vmem:[%s1 + $0x70] sm:$0xff]
      %v186 = vld [vmem:[%s1 + $0x78] sm:$0xff]
      %v187 = vld [vmem:[%s1 + $0x80] sm:$0xff]
      %v188 = vld [vmem:[%s1 + $0x88] sm:$0xff]
      %v189 = vld [vmem:[%s1 + $0x90] sm:$0xff]
      %v190 = vld [vmem:[%s1 + $0x98] sm:$0xff]
      %vm193 = vcmask 1046528
      %v194 = vrot.slane %v169, 1
      %v195 = vrot.slane %v170, 1
      %v196 = vsel %vm193, %v194, %v195
      %vm197 = vcmask 261120
      %v198 = vsel %vm197, %v196, 0
      %200 = vmatprep.subr.mxu0 0.0
      %201 = vmatpush1.msra.mxu0 %v175
      %202 = vmatprep.subr.mxu0 0.0
      %203 = vmatpush1.msra.mxu0 %v176
      %204 = vmatprep.subr.mxu0 0.0
      %205 = vmatpush1.msra.mxu0 %v177
      %206 = vmatprep.subr.mxu0 0.0
      %207 = vmatpush1.msra.mxu0 %v178
      %208 = vmatprep.subr.mxu0 0.0
      %209 = vmatpush1.msra.mxu0 0.0
      %210 = vmatprep.subr.mxu0 0.0
      %211 = vmatpush1.msra.mxu0 0.0
      %212 = vmatprep.subr.mxu0 0.0
      %213 = vmatpush1.msra.mxu0 0.0
      %214 = vmatprep.subr.mxu0 0.0
      %215 = vmatpush1.msra.mxu0 0.0
      %216 = vmatprep.subr.mxu0 0.0
      %217 = vmatpush1.msra.mxu0 0.0
      %218 = vmatprep.subr.mxu0 0.0
      %219 = vmatpush1.msra.mxu0 0.0
      %220 = vmatprep.subr.mxu0 0.0
      %221 = vmatpush1.msra.mxu0 0.0
      %222 = vmatprep.subr.mxu0 0.0
      %223 = vmatpush1.msra.mxu0 0.0
      %224 = vmatprep.subr.mxu0 0.0
      %225 = vmatpush1.msra.mxu0 0.0
      %226 = vmatprep.subr.mxu0 0.0
      %227 = vmatpush1.msra.mxu0 0.0
      %228 = vmatprep.subr.mxu0 0.0
      %229 = vmatpush1.msra.mxu0 0.0
      %230 = vmatprep.subr.mxu0 0.0
      %231 = vmatpush1.msra.mxu0 0.0
      %232 = vmatprep.subr.mxu0 0.0
      %233 = vmatpush1.msra.mxu0 0.0
      %234 = vmatprep.subr.mxu0 0.0
      %235 = vmatpush1.msra.mxu0 0.0
      %236 = vmatprep.subr.mxu0 0.0
      %237 = vmatpush1.msra.mxu0 0.0
      %238 = vmatprep.subr.mxu0 0.0
      %239 = vmatpush1.msra.mxu0 0.0
      %240 = vmatprep.subr.mxu0 0.0
      %241 = vmatpush1.msra.mxu0 0.0
      %242 = vmatprep.subr.mxu0 0.0
      %243 = vmatpush1.msra.mxu0 0.0
      %244 = vmatprep.subr.mxu0 0.0
      %245 = vmatpush1.msra.mxu0 0.0
      %246 = vmatprep.subr.mxu0 0.0
      %247 = vmatpush1.msra.mxu0 0.0
      %248 = vmatprep.subr.mxu0 0.0
      %249 = vmatpush1.msra.mxu0 0.0
      %250 = vmatprep.subr.mxu0 0.0
      %251 = vmatpush1.msra.mxu0 0.0
      %252 = vmatprep.subr.mxu0 0.0
      %253 = vmatpush1.msra.mxu0 0.0
      %254 = vmatprep.subr.mxu0 0.0
      %255 = vmatpush1.msra.mxu0 0.0
      %256 = vmatprep.subr.mxu0 0.0
      %257 = vmatpush1.msra.mxu0 0.0
      %258 = vmatprep.subr.mxu0 0.0
      %259 = vmatpush1.msra.mxu0 0.0
      %260 = vmatprep.subr.mxu0 0.0
      %261 = vmatpush1.msra.mxu0 0.0
      %262 = vmatprep.subr.mxu0 0.0
      %263 = vmatpush1.msra.mxu0 0.0
      %264 = vmatprep.mubr.f32.mxu0 0.0
      %265 = vmatmul.mubr.f32.gmra.mrb[0].mxu0 %v198
      %v266 = vpop.f32.mrb[0].mxu0
      %v267 = vadd.f32 0.0, %v266
      %v268 = vpop.f32.mrb[0].mxu0
      %269 = vdwg.mxu0
      %v270 = vsel %vm197, %v169, 0
      %272 = vmatprep.subr.mxu0 0.0
      %273 = vmatpush1.msra.mxu0 %v171
      %274 = vmatprep.subr.mxu0 0.0
      %275 = vmatpush1.msra.mxu0 %v172
      %276 = vmatprep.subr.mxu0 0.0
      %277 = vmatpush1.msra.mxu0 %v173
      %278 = vmatprep.subr.mxu0 0.0
      %279 = vmatpush1.msra.mxu0 %v174
      %280 = vmatprep.subr.mxu0 0.0
      %281 = vmatpush1.msra.mxu0 0.0
      %282 = vmatprep.subr.mxu0 0.0
      %283 = vmatpush1.msra.mxu0 0.0
      %284 = vmatprep.subr.mxu0 0.0
      %285 = vmatpush1.msra.mxu0 0.0
      %286 = vmatprep.subr.mxu0 0.0
      %287 = vmatpush1.msra.mxu0 0.0
      %288 = vmatprep.subr.mxu0 0.0
      %289 = vmatpush1.msra.mxu0 0.0
      %290 = vmatprep.subr.mxu0 0.0
      %291 = vmatpush1.msra.mxu0 0.0
      %292 = vmatprep.subr.mxu0 0.0
      %293 = vmatpush1.msra.mxu0 0.0
      %294 = vmatprep.subr.mxu0 0.0
      %295 = vmatpush1.msra.mxu0 0.0
      %296 = vmatprep.subr.mxu0 0.0
      %297 = vmatpush1.msra.mxu0 0.0
      %298 = vmatprep.subr.mxu0 0.0
      %299 = vmatpush1.msra.mxu0 0.0
      %300 = vmatprep.subr.mxu0 0.0
      %301 = vmatpush1.msra.mxu0 0.0
      %302 = vmatprep.subr.mxu0 0.0
      %303 = vmatpush1.msra.mxu0 0.0
      %304 = vmatprep.subr.mxu0 0.0
      %305 = vmatpush1.msra.mxu0 0.0
      %306 = vmatprep.subr.mxu0 0.0
      %307 = vmatpush1.msra.mxu0 0.0
      %308 = vmatprep.subr.mxu0 0.0
      %309 = vmatpush1.msra.mxu0 0.0
      %310 = vmatprep.subr.mxu0 0.0
      %311 = vmatpush1.msra.mxu0 0.0
      %312 = vmatprep.subr.mxu0 0.0
      %313 = vmatpush1.msra.mxu0 0.0
      %314 = vmatprep.subr.mxu0 0.0
      %315 = vmatpush1.msra.mxu0 0.0
      %316 = vmatprep.subr.mxu0 0.0
      %317 = vmatpush1.msra.mxu0 0.0
      %318 = vmatprep.subr.mxu0 0.0
      %319 = vmatpush1.msra.mxu0 0.0
      %320 = vmatprep.subr.mxu0 0.0
      %321 = vmatpush1.msra.mxu0 0.0
      %322 = vmatprep.subr.mxu0 0.0
      %323 = vmatpush1.msra.mxu0 0.0
      %324 = vmatprep.subr.mxu0 0.0
      %325 = vmatpush1.msra.mxu0 0.0
      %326 = vmatprep.subr.mxu0 0.0
      %327 = vmatpush1.msra.mxu0 0.0
      %328 = vmatprep.subr.mxu0 0.0
      %329 = vmatpush1.msra.mxu0 0.0
      %330 = vmatprep.subr.mxu0 0.0
      %331 = vmatpush1.msra.mxu0 0.0
      %332 = vmatprep.subr.mxu0 0.0
      %333 = vmatpush1.msra.mxu0 0.0
      %334 = vmatprep.subr.mxu0 0.0
      %335 = vmatpush1.msra.mxu0 0.0
      %336 = vmatprep.mubr.f32.mxu0 0.0
      %337 = vmatmul.mubr.f32.gmra.mrb[0].mxu0 %v270
      %v338 = vpop.f32.mrb[0].mxu0
      %v339 = vadd.f32 %v267, %v338
      %v340 = vpop.f32.mrb[0].mxu0
      %341 = vdwg.mxu0
      %vm342 = vcmask 1045504
      %v343 = vrot.slane %v169, 2
      %v344 = vrot.slane %v170, 2
      %v345 = vsel %vm342, %v343, %v344
      %v346 = vsel %vm197, %v345, 0
      %348 = vmatprep.subr.mxu0 0.0
      %349 = vmatpush1.msra.mxu0 %v179
      %350 = vmatprep.subr.mxu0 0.0
      %351 = vmatpush1.msra.mxu0 %v180
      %352 = vmatprep.subr.mxu0 0.0
      %353 = vmatpush1.msra.mxu0 %v181
      %354 = vmatprep.subr.mxu0 0.0
      %355 = vmatpush1.msra.mxu0 %v182
      %356 = vmatprep.subr.mxu0 0.0
      %357 = vmatpush1.msra.mxu0 0.0
      %358 = vmatprep.subr.mxu0 0.0
      %359 = vmatpush1.msra.mxu0 0.0
      %360 = vmatprep.subr.mxu0 0.0
      %361 = vmatpush1.msra.mxu0 0.0
      %362 = vmatprep.subr.mxu0 0.0
      %363 = vmatpush1.msra.mxu0 0.0
      %364 = vmatprep.subr.mxu0 0.0
      %365 = vmatpush1.msra.mxu0 0.0
      %366 = vmatprep.subr.mxu0 0.0
      %367 = vmatpush1.msra.mxu0 0.0
      %368 = vmatprep.subr.mxu0 0.0
      %369 = vmatpush1.msra.mxu0 0.0
      %370 = vmatprep.subr.mxu0 0.0
      %371 = vmatpush1.msra.mxu0 0.0
      %372 = vmatprep.subr.mxu0 0.0
      %373 = vmatpush1.msra.mxu0 0.0
      %374 = vmatprep.subr.mxu0 0.0
      %375 = vmatpush1.msra.mxu0 0.0
      %376 = vmatprep.subr.mxu0 0.0
      %377 = vmatpush1.msra.mxu0 0.0
      %378 = vmatprep.subr.mxu0 0.0
      %379 = vmatpush1.msra.mxu0 0.0
      %380 = vmatprep.subr.mxu0 0.0
      %381 = vmatpush1.msra.mxu0 0.0
      %382 = vmatprep.subr.mxu0 0.0
      %383 = vmatpush1.msra.mxu0 0.0
      %384 = vmatprep.subr.mxu0 0.0
      %385 = vmatpush1.msra.mxu0 0.0
      %386 = vmatprep.subr.mxu0 0.0
      %387 = vmatpush1.msra.mxu0 0.0
      %388 = vmatprep.subr.mxu0 0.0
      %389 = vmatpush1.msra.mxu0 0.0
      %390 = vmatprep.subr.mxu0 0.0
      %391 = vmatpush1.msra.mxu0 0.0
      %392 = vmatprep.subr.mxu0 0.0
      %393 = vmatpush1.msra.mxu0 0.0
      %394 = vmatprep.subr.mxu0 0.0
      %395 = vmatpush1.msra.mxu0 0.0
      %396 = vmatprep.subr.mxu0 0.0
      %397 = vmatpush1.msra.mxu0 0.0
      %398 = vmatprep.subr.mxu0 0.0
      %399 = vmatpush1.msra.mxu0 0.0
      %400 = vmatprep.subr.mxu0 0.0
      %401 = vmatpush1.msra.mxu0 0.0
      %402 = vmatprep.subr.mxu0 0.0
      %403 = vmatpush1.msra.mxu0 0.0
      %404 = vmatprep.subr.mxu0 0.0
      %405 = vmatpush1.msra.mxu0 0.0
      %406 = vmatprep.subr.mxu0 0.0
      %407 = vmatpush1.msra.mxu0 0.0
      %408 = vmatprep.subr.mxu0 0.0
      %409 = vmatpush1.msra.mxu0 0.0
      %410 = vmatprep.subr.mxu0 0.0
      %411 = vmatpush1.msra.mxu0 0.0
      %412 = vmatprep.mubr.f32.mxu0 0.0
      %413 = vmatmul.mubr.f32.gmra.mrb[0].mxu0 %v346
      %v414 = vpop.f32.mrb[0].mxu0
      %v415 = vadd.f32 0.0, %v414
      %v416 = vpop.f32.mrb[0].mxu0
      %417 = vdwg.mxu0
      %v418 = vadd.f32 %v339, %v415
      %vm419 = vcmask 1044480
      %v420 = vrot.slane %v169, 3
      %v421 = vrot.slane %v170, 3
      %v422 = vsel %vm419, %v420, %v421
      %v423 = vsel %vm197, %v422, 0
      %425 = vmatprep.subr.mxu0 0.0
      %426 = vmatpush1.msra.mxu0 %v183
      %427 = vmatprep.subr.mxu0 0.0
      %428 = vmatpush1.msra.mxu0 %v184
      %429 = vmatprep.subr.mxu0 0.0
      %430 = vmatpush1.msra.mxu0 %v185
      %431 = vmatprep.subr.mxu0 0.0
      %432 = vmatpush1.msra.mxu0 %v186
      %433 = vmatprep.subr.mxu0 0.0
      %434 = vmatpush1.msra.mxu0 0.0
      %435 = vmatprep.subr.mxu0 0.0
      %436 = vmatpush1.msra.mxu0 0.0
      %437 = vmatprep.subr.mxu0 0.0
      %438 = vmatpush1.msra.mxu0 0.0
      %439 = vmatprep.subr.mxu0 0.0
      %440 = vmatpush1.msra.mxu0 0.0
      %441 = vmatprep.subr.mxu0 0.0
      %442 = vmatpush1.msra.mxu0 0.0
      %443 = vmatprep.subr.mxu0 0.0
      %444 = vmatpush1.msra.mxu0 0.0
      %445 = vmatprep.subr.mxu0 0.0
      %446 = vmatpush1.msra.mxu0 0.0
      %447 = vmatprep.subr.mxu0 0.0
      %448 = vmatpush1.msra.mxu0 0.0
      %449 = vmatprep.subr.mxu0 0.0
      %450 = vmatpush1.msra.mxu0 0.0
      %451 = vmatprep.subr.mxu0 0.0
      %452 = vmatpush1.msra.mxu0 0.0
      %453 = vmatprep.subr.mxu0 0.0
      %454 = vmatpush1.msra.mxu0 0.0
      %455 = vmatprep.subr.mxu0 0.0
      %456 = vmatpush1.msra.mxu0 0.0
      %457 = vmatprep.subr.mxu0 0.0
      %458 = vmatpush1.msra.mxu0 0.0
      %459 = vmatprep.subr.mxu0 0.0
      %460 = vmatpush1.msra.mxu0 0.0
      %461 = vmatprep.subr.mxu0 0.0
      %462 = vmatpush1.msra.mxu0 0.0
      %463 = vmatprep.subr.mxu0 0.0
      %464 = vmatpush1.msra.mxu0 0.0
      %465 = vmatprep.subr.mxu0 0.0
      %466 = vmatpush1.msra.mxu0 0.0
      %467 = vmatprep.subr.mxu0 0.0
      %468 = vmatpush1.msra.mxu0 0.0
      %469 = vmatprep.subr.mxu0 0.0
      %470 = vmatpush1.msra.mxu0 0.0
      %471 = vmatprep.subr.mxu0 0.0
      %472 = vmatpush1.msra.mxu0 0.0
      %473 = vmatprep.subr.mxu0 0.0
      %474 = vmatpush1.msra.mxu0 0.0
      %475 = vmatprep.subr.mxu0 0.0
      %476 = vmatpush1.msra.mxu0 0.0
      %477 = vmatprep.subr.mxu0 0.0
      %478 = vmatpush1.msra.mxu0 0.0
      %479 = vmatprep.subr.mxu0 0.0
      %480 = vmatpush1.msra.mxu0 0.0
      %481 = vmatprep.subr.mxu0 0.0
      %482 = vmatpush1.msra.mxu0 0.0
      %483 = vmatprep.subr.mxu0 0.0
      %484 = vmatpush1.msra.mxu0 0.0
      %485 = vmatprep.subr.mxu0 0.0
      %486 = vmatpush1.msra.mxu0 0.0
      %487 = vmatprep.subr.mxu0 0.0
      %488 = vmatpush1.msra.mxu0 0.0
      %489 = vmatprep.mubr.f32.mxu0 0.0
      %490 = vmatmul.mubr.f32.gmra.mrb[0].mxu0 %v423
      %v491 = vpop.f32.mrb[0].mxu0
      %v492 = vadd.f32 0.0, %v491
      %v493 = vpop.f32.mrb[0].mxu0
      %494 = vdwg.mxu0
      %v495 = vadd.f32 %v418, %v492
      %vm496 = vcmask 1043456
      %v497 = vrot.slane %v169, 4
      %v498 = vrot.slane %v170, 4
      %v499 = vsel %vm496, %v497, %v498
      %v500 = vsel %vm197, %v499, 0
      %502 = vmatprep.subr.mxu0 0.0
      %503 = vmatpush1.msra.mxu0 %v187
      %504 = vmatprep.subr.mxu0 0.0
      %505 = vmatpush1.msra.mxu0 %v188
      %506 = vmatprep.subr.mxu0 0.0
      %507 = vmatpush1.msra.mxu0 %v189
      %508 = vmatprep.subr.mxu0 0.0
      %509 = vmatpush1.msra.mxu0 %v190
      %510 = vmatprep.subr.mxu0 0.0
      %511 = vmatpush1.msra.mxu0 0.0
      %512 = vmatprep.subr.mxu0 0.0
      %513 = vmatpush1.msra.mxu0 0.0
      %514 = vmatprep.subr.mxu0 0.0
      %515 = vmatpush1.msra.mxu0 0.0
      %516 = vmatprep.subr.mxu0 0.0
      %517 = vmatpush1.msra.mxu0 0.0
      %518 = vmatprep.subr.mxu0 0.0
      %519 = vmatpush1.msra.mxu0 0.0
      %520 = vmatprep.subr.mxu0 0.0
      %521 = vmatpush1.msra.mxu0 0.0
      %522 = vmatprep.subr.mxu0 0.0
      %523 = vmatpush1.msra.mxu0 0.0
      %524 = vmatprep.subr.mxu0 0.0
      %525 = vmatpush1.msra.mxu0 0.0
      %526 = vmatprep.subr.mxu0 0.0
      %527 = vmatpush1.msra.mxu0 0.0
      %528 = vmatprep.subr.mxu0 0.0
      %529 = vmatpush1.msra.mxu0 0.0
      %530 = vmatprep.subr.mxu0 0.0
      %531 = vmatpush1.msra.mxu0 0.0
      %532 = vmatprep.subr.mxu0 0.0
      %533 = vmatpush1.msra.mxu0 0.0
      %534 = vmatprep.subr.mxu0 0.0
      %535 = vmatpush1.msra.mxu0 0.0
      %536 = vmatprep.subr.mxu0 0.0
      %537 = vmatpush1.msra.mxu0 0.0
      %538 = vmatprep.subr.mxu0 0.0
      %539 = vmatpush1.msra.mxu0 0.0
      %540 = vmatprep.subr.mxu0 0.0
      %541 = vmatpush1.msra.mxu0 0.0
      %542 = vmatprep.subr.mxu0 0.0
      %543 = vmatpush1.msra.mxu0 0.0
      %544 = vmatprep.subr.mxu0 0.0
      %545 = vmatpush1.msra.mxu0 0.0
      %546 = vmatprep.subr.mxu0 0.0
      %547 = vmatpush1.msra.mxu0 0.0
      %548 = vmatprep.subr.mxu0 0.0
      %549 = vmatpush1.msra.mxu0 0.0
      %550 = vmatprep.subr.mxu0 0.0
      %551 = vmatpush1.msra.mxu0 0.0
      %552 = vmatprep.subr.mxu0 0.0
      %553 = vmatpush1.msra.mxu0 0.0
      %554 = vmatprep.subr.mxu0 0.0
      %555 = vmatpush1.msra.mxu0 0.0
      %556 = vmatprep.subr.mxu0 0.0
      %557 = vmatpush1.msra.mxu0 0.0
      %558 = vmatprep.subr.mxu0 0.0
      %559 = vmatpush1.msra.mxu0 0.0
      %560 = vmatprep.subr.mxu0 0.0
      %561 = vmatpush1.msra.mxu0 0.0
      %562 = vmatprep.subr.mxu0 0.0
      %563 = vmatpush1.msra.mxu0 0.0
      %564 = vmatprep.subr.mxu0 0.0
      %565 = vmatpush1.msra.mxu0 0.0
      %566 = vmatprep.mubr.f32.mxu0 0.0
      %567 = vmatmul.mubr.f32.gmra.mrb[0].mxu0 %v500
      %v568 = vpop.f32.mrb[0].mxu0
      %v569 = vadd.f32 0.0, %v568
      %v570 = vpop.f32.mrb[0].mxu0
      %571 = vdwg.mxu0
      %v572 = vadd.f32 %v495, %v569
      %v573 = vld [vmem:[%s2] sm:$0x1]
      %v575 = vlaneseq
      %v576 = vshrl.u32 %v575, 7
      %v577 = vsub.s32 0, %v576
      %v578 = vrot.slane %v573, %v577
      %v580 = vadd.f32 %v572, %v578
      %vm581 = vcmask 130048
      %582 = vst.msk [vmem:[%s168] sm:$0xff] %vm581, %v580
      %p583 = scmp.lt.s32.totalorder %s14, 1
      %s584 = scalar_select %p583, %s14, 1
      %s585 = smul.addr %s584, 8
      %s586 = scalar_lea.vmem %s3, %s585
      // Predicated region
      $region33: #{transformer_tts_forward.99} parent=31 // pred_check
        %p587 = pneg %p100
      $region34: #{transformer_tts_forward.99} parent=31 // pred_check_branch
        %589 = sbr.rel (%p587) target = $region36
      $region35: #{transformer_tts_forward.99} parent=31 // pred_region
        _
      $region36: #{transformer_tts_forward.99} parent=31 // pred_fallthru
        _
    $region32: #{transformer_tts_forward.99} parent=5 // pred_fallthru
      _
    %p590 = scmp.le.s32.totalorder 2, %s9
    // Predicated region
    $region37: #{transformer_tts_forward.99} parent=5 // pred_check
      %p591 = pneg %p590
    $region38: #{transformer_tts_forward.99} parent=5 // pred_check_branch
      %593 = sbr.rel (%p591) target = $region40
    $region39: #{transformer_tts_forward.99} parent=5 // pred_region
      %s594 = ssub.s32 %s9, 2
      // Predicated region
      $region41: #{transformer_tts_forward.99} parent=39 // pred_check
        %p595 = pneg %p106
      $region42: #{transformer_tts_forward.99} parent=39 // pred_check_branch
        %597 = sbr.rel (%p595) target = $region44
      $region43: #{transformer_tts_forward.99} parent=39 // pred_region
        %p598 = scmp.lt.s32.totalorder %s15, 1
        %s599 = scalar_select %p598, %s15, 1
        %s600 = smul.addr %s599, 8
        %s601 = scalar_lea.vmem %s3, %s600
      $region44: #{transformer_tts_forward.99} parent=39 // pred_fallthru
        _
    $region40: #{transformer_tts_forward.99} parent=5 // pred_fallthru
      _
  $region6: #{transformer_tts_forward.99} parent=0 // loop_footer
    %s13 = sadd.s32 1, %s9
  $region7: #{transformer_tts_forward.99} parent=0 // loop_footer_branch
    %8 = sbr.rel target = $region3
  $region8: #{transformer_tts_forward.99} parent=0 // loop_exit
    _

</llo_original>
